<compile_context>
chip_gen: v7x
topology: tpu7x:2x2x1
jax: 0.10.0
libtpu: 0.0.40
codegen_flags: <defaults>
</compile_context>

<pallas_src>
import functools
import math

import jax
import jax.numpy as jnp
from jax import lax
from jax.experimental import pallas as pl
from jax.experimental.pallas import tpu as pltpu


# ----------------------------------------------------------------------------- fused kernel

def _make_decoder_kernel(d_model, nheads):
    dk = d_model // nheads

    def _softmax_rows(s):
        # numerically-stable softmax over the last dim; reciprocal on the EUP slot.
        s = s - jnp.max(s, axis=-1, keepdims=True)
        p = jnp.exp(s)
        return p * pl.reciprocal(jnp.sum(p, axis=-1, keepdims=True), approx=True)

    def _mha(q_src, kv_src, wq, bq, wkv, bkv, wo, bo, bias):
        # q_src / kv_src: (N, D) VMEM values; bias: (N, N) additive structural mask.
        # wq/bq are pre-scaled by 1/sqrt(dk).
        q = jnp.dot(q_src, wq, preferred_element_type=jnp.float32) + bq       # (N, D)
        kv = jnp.dot(kv_src, wkv, preferred_element_type=jnp.float32) + bkv   # (N, 2D)
        out = None
        for h in range(nheads):
            lo = h * dk
            qh = q[:, lo:lo + dk]                          # (N, dk)
            kh = kv[:, lo:lo + dk]                         # (N, dk)
            vh = kv[:, d_model + lo:d_model + lo + dk]     # (N, dk)
            s = lax.dot_general(qh, kh, (((1,), (1,)), ((), ())),
                                preferred_element_type=jnp.float32)            # (N, N)
            p = _softmax_rows(s + bias)
            oh = jnp.dot(p, vh, preferred_element_type=jnp.float32)            # (N, dk)
            # fold head-concat into the out projection: sum_h oh @ Wo[h*dk:(h+1)*dk, :]
            c = jnp.dot(oh, wo[lo:lo + dk, :], preferred_element_type=jnp.float32)
            out = c if out is None else out + c
        return out + bo

    def _add_ln(x, y, gamma, beta):
        # layerConnect: LayerNorm(x + sublayer(x)); eps = 1e-5 (PyTorch default).
        z = x + y
        mean = jnp.mean(z, axis=-1, keepdims=True)
        c = z - mean
        var = jnp.mean(c * c, axis=-1, keepdims=True)
        return (c * lax.rsqrt(var + 1e-5)) * gamma + beta

    def kernel(x_ref, en_ref, tb_ref, sb_ref, eb_ref,
               wq_ref, bq_ref, wkv_ref, bkv_ref, wo_ref, bo_ref,
               g_ref, b_ref, w1_ref, b1_ref, w2_ref, b2_ref,
               o_ref):
        x = x_ref[0].astype(jnp.float32)     # (N, D) flattened (space, time) rows
        en = en_ref[0].astype(jnp.float32)   # (N, D)

        # --- sublayer 0: LN(x + space_attn(time_attn(x, x, x, tgt_mask))) ---
        m = _mha(x, x, wq_ref[0], bq_ref[0], wkv_ref[0], bkv_ref[0],
                 wo_ref[0], bo_ref[0], tb_ref[...])
        y = _mha(m, m, wq_ref[1], bq_ref[1], wkv_ref[1], bkv_ref[1],
                 wo_ref[1], bo_ref[1], sb_ref[...])
        x = _add_ln(x, y, g_ref[0], b_ref[0])

        # --- sublayer 1: LN(x + encoder_attn(x, en_out, en_out, memory_mask)) ---
        y = _mha(x, en, wq_ref[2], bq_ref[2], wkv_ref[2], bkv_ref[2],
                 wo_ref[2], bo_ref[2], eb_ref[...])
        x = _add_ln(x, y, g_ref[1], b_ref[1])

        # --- sublayer 2: LN(x + FFN(x)) ---
        h = jnp.dot(x, w1_ref[...], preferred_element_type=jnp.float32) + b1_ref[...]
        h = jnp.maximum(h, 0.0)
        y = jnp.dot(h, w2_ref[...], preferred_element_type=jnp.float32) + b2_ref[...]
        x = _add_ln(x, y, g_ref[2], b_ref[2])

        o_ref[0] = x.astype(o_ref.dtype)

    return kernel


# ----------------------------------------------------------------------------- mask plumbing

def _build_structural_biases(S, T, tgt_mask, memory_mask):
    """Additive (S*T, S*T) biases that express the T/S group structure + user masks."""
    N = S * T
    NEG = jnp.float32(-1e30)
    s_idx = jnp.arange(N, dtype=jnp.int32) // T
    t_idx = jnp.arange(N, dtype=jnp.int32) % T
    same_s = s_idx[:, None] == s_idx[None, :]
    same_t = t_idx[:, None] == t_idx[None, :]

    def block_bias(same_group, mask_tt):
        allowed = same_group
        if mask_tt is not None:
            # mask_tt: (T, T) bool, True = masked (torch masked_fill semantics)
            ok_tt = jnp.logical_not(mask_tt.astype(bool))
            allowed = allowed & ok_tt[t_idx[:, None], t_idx[None, :]]
        return jnp.where(allowed, jnp.float32(0.0), NEG)

    bias_time = block_bias(same_s, tgt_mask)                       # T_attention + tgt mask
    bias_space = jnp.where(same_t, jnp.float32(0.0), NEG)          # S_attention (no mask)
    bias_enc = block_bias(same_s, memory_mask)                     # encoder T_attention
    return bias_time, bias_space, bias_enc


# ----------------------------------------------------------------------------- forward wrapper

def mini_decoder_forward(params, x, en_out, tgt_mask, memory_mask, nheads):
    B, S, T, D = x.shape
    dk = D // nheads
    scale = jnp.float32(1.0 / math.sqrt(dk))
    N = S * T

    mods = [params["time_attn"], params["space_attn"], params["enc_attn"]]
    # fold the 1/sqrt(dk) attention scale into the q projection
    wq = jnp.stack([m["wq"] for m in mods]) * scale        # (3, D, D)
    bq = jnp.stack([m["bq"] for m in mods]) * scale        # (3, 1, D)
    wkv = jnp.stack([jnp.concatenate([m["wk"], m["wv"]], axis=-1) for m in mods])   # (3, D, 2D)
    bkv = jnp.stack([jnp.concatenate([m["bk"], m["bv"]], axis=-1) for m in mods])   # (3, 1, 2D)
    wo = jnp.stack([m["wo"] for m in mods])                # (3, D, D)
    bo = jnp.stack([m["bo"] for m in mods])                # (3, 1, D)
    gamma = jnp.stack([g for g, _ in params["ln"]])        # (3, 1, D)
    beta = jnp.stack([b for _, b in params["ln"]])         # (3, 1, D)
    w1, b1, w2, b2 = params["fc"]

    bias_t, bias_s, bias_e = _build_structural_biases(S, T, tgt_mask, memory_mask)

    # channels-last layout; flatten (S, T) -> N rows outside the kernel (free reshape)
    x2 = x.reshape(B, N, D)
    en2 = en_out.reshape(B, N, D)

    def act_spec():
        return pl.BlockSpec((1, N, D), lambda b: (b, 0, 0))

    def full_spec(a):
        nd = a.ndim
        return pl.BlockSpec(a.shape, lambda b, _n=nd: (0,) * _n)

    weights = [wq, bq, wkv, bkv, wo, bo, gamma, beta, w1, b1, w2, b2]
    operands = [x2, en2, bias_t, bias_s, bias_e] + weights
    in_specs = ([act_spec(), act_spec(),
                 full_spec(bias_t), full_spec(bias_s), full_spec(bias_e)]
                + [full_spec(w) for w in weights])

    kernel = _make_decoder_kernel(D, nheads)

    out = pl.pallas_call(
        kernel,
        out_shape=jax.ShapeDtypeStruct((B, N, D), jnp.float32),
        grid=(B,),
        in_specs=in_specs,
        out_specs=act_spec(),
        compiler_params=pltpu.CompilerParams(dimension_semantics=("parallel",)),
    )(*operands)
    return out.reshape(B, S, T, D)


# ----------------------------------------------------------------------------- pure-JAX reference

def _reference_forward(params, x, en_out, tgt_mask, memory_mask, nheads):
    D = x.shape[-1]
    dk = D // nheads

    def linear(w, b, v):
        return v @ w + b

    def split_heads(v):
        B, S, T, _ = v.shape
        return v.reshape(B, S, T, nheads, dk).transpose(0, 3, 1, 2, 4)   # (B,H,S,T,dk)

    def merge_heads(v):
        B, H, S, T, _ = v.shape
        return v.transpose(0, 2, 3, 1, 4).reshape(B, S, T, H * dk)

    def t_attention(q, k, v, mask):
        sc = jnp.einsum("bhstd,bhsud->bhstu", q, k) / jnp.sqrt(jnp.float32(dk))
        if mask is not None:
            sc = jnp.where(mask[None, None, None], -jnp.inf, sc)
        p = jax.nn.softmax(sc, axis=-1)
        return jnp.einsum("bhstu,bhsud->bhstd", p, v)

    def s_attention(q, k, v):
        sc = jnp.einsum("bhatd,bhctd->bhtac", q, k) / jnp.sqrt(jnp.float32(dk))
        p = jax.nn.softmax(sc, axis=-1)
        o = jnp.einsum("bhtac,bhctd->bhtad", p, v)     # (B,H,T,S,dk)
        return o.transpose(0, 1, 3, 2, 4)              # (B,H,S,T,dk)

    def mha(p, q_in, k_in, v_in, kind, mask=None):
        q = split_heads(linear(p["wq"], p["bq"], q_in))
        k = split_heads(linear(p["wk"], p["bk"], k_in))
        v = split_heads(linear(p["wv"], p["bv"], v_in))
        o = t_attention(q, k, v, mask) if kind == "T" else s_attention(q, k, v)
        return linear(p["wo"], p["bo"], merge_heads(o))

    def add_ln(xv, yv, g, b):
        z = xv + yv
        mu = z.mean(-1, keepdims=True)
        var = ((z - mu) ** 2).mean(-1, keepdims=True)
        return (z - mu) / jnp.sqrt(var + 1e-5) * g + b

    m = mha(params["time_attn"], x, x, x, "T", tgt_mask)
    y = mha(params["space_attn"], m, m, m, "S")
    g, b = params["ln"][0]
    x1 = add_ln(x, y, g, b)
    y = mha(params["enc_attn"], x1, en_out, en_out, "T", memory_mask)
    g, b = params["ln"][1]
    x2 = add_ln(x1, y, g, b)
    w1, b1, w2, b2 = params["fc"]
    y = jnp.maximum(x2 @ w1 + b1, 0.0) @ w2 + b2
    g, b = params["ln"][2]
    return add_ln(x2, y, g, b)


# ----------------------------------------------------------------------------- params

def init_params(key, d_size, nheads, dim_feedforward):
    keys = iter(jax.random.split(key, 16))

    def lin(kin, kout):
        w = jax.random.normal(next(keys), (kin, kout), jnp.float32) * (kin ** -0.5)
        b = jnp.zeros((1, kout), jnp.float32)
        return w, b

    def attn_params():
        wq, bq = lin(d_size, d_size)
        wk, bk = lin(d_size, d_size)
        wv, bv = lin(d_size, d_size)
        wo, bo = lin(d_size, d_size)
        return dict(wq=wq, bq=bq, wk=wk, bk=bk, wv=wv, bv=bv, wo=wo, bo=bo)

    params = {
        "time_attn": attn_params(),
        "space_attn": attn_params(),
        "enc_attn": attn_params(),
        "ln": [(jnp.ones((1, d_size), jnp.float32),
                jnp.zeros((1, d_size), jnp.float32)) for _ in range(3)],
    }
    w1, b1 = lin(d_size, dim_feedforward)
    w2, b2 = lin(dim_feedforward, d_size)
    params["fc"] = (w1, b1, w2, b2)
    return params


# ----------------------------------------------------------------------------- main

if __name__ == "__main__":
    B, S, T, D, NHEADS, DFF = 2, 4, 8, 32, 4, 64

    key = jax.random.PRNGKey(0)
    kx, ke, kp = jax.random.split(key, 3)
    x = jax.random.normal(kx, (B, S, T, D), jnp.float32)
    en_out = jax.random.normal(ke, (B, S, T, D), jnp.float32)
    params = init_params(kp, D, NHEADS, DFF)

    # causal target mask (True = masked), torch masked_fill semantics; memory_mask = None.
    tgt_mask = jnp.triu(jnp.ones((T, T), dtype=bool), k=1)
    memory_mask = None

    fwd = jax.jit(functools.partial(mini_decoder_forward, nheads=NHEADS))
    out = fwd(params, x, en_out, tgt_mask, memory_mask)
    out = jax.block_until_ready(out)

    assert out.shape == (B, S, T, D)
    assert bool(jnp.all(jnp.isfinite(out)))

    # correctness vs a pure-JAX reference of the PyTorch module (generous tol:
    # approx-reciprocal softmax denom + different accumulation order).
    with jax.default_matmul_precision("highest"):
        ref = _reference_forward(params, x, en_out, tgt_mask, memory_mask, NHEADS)
    ref = jax.block_until_ready(ref)
    assert bool(jnp.allclose(out, ref, atol=5e-2, rtol=5e-2))

    print("KERNEL_OK")
</pallas_src>

<mosaic_0001>
module attributes {stable_mosaic.version = 11 : i64} {
  func.func @kernel(%arg0: i32, %arg1: memref<1x32x32xf32, #tpu.memory_space<vmem>>, %arg2: memref<1x32x32xf32, #tpu.memory_space<vmem>>, %arg3: memref<32x32xf32, #tpu.memory_space<vmem>>, %arg4: memref<32x32xf32, #tpu.memory_space<vmem>>, %arg5: memref<32x32xf32, #tpu.memory_space<vmem>>, %arg6: memref<3x32x32xf32, #tpu.memory_space<vmem>>, %arg7: memref<3x1x32xf32, #tpu.memory_space<vmem>>, %arg8: memref<3x32x64xf32, #tpu.memory_space<vmem>>, %arg9: memref<3x1x64xf32, #tpu.memory_space<vmem>>, %arg10: memref<3x32x32xf32, #tpu.memory_space<vmem>>, %arg11: memref<3x1x32xf32, #tpu.memory_space<vmem>>, %arg12: memref<3x1x32xf32, #tpu.memory_space<vmem>>, %arg13: memref<3x1x32xf32, #tpu.memory_space<vmem>>, %arg14: memref<32x64xf32, #tpu.memory_space<vmem>>, %arg15: memref<1x64xf32, #tpu.memory_space<vmem>>, %arg16: memref<64x32xf32, #tpu.memory_space<vmem>>, %arg17: memref<1x32xf32, #tpu.memory_space<vmem>>, %arg18: memref<1x32x32xf32, #tpu.memory_space<vmem>>) attributes {dimension_semantics = [#tpu.dimension_semantics<parallel>], iteration_bounds = array<i64: 2>, scalar_prefetch = 0 : i64, scratch_operands = 0 : i64, tpu.core_type = #tpu.core_type<tc>, window_params = [{transform_indices = @transform_0, window_bounds = array<i64: 1, 32, 32>}, {transform_indices = @transform_1, window_bounds = array<i64: 1, 32, 32>}, {pipeline_mode = #tpu.pipeline_mode<synchronous>, transform_indices = @transform_2, window_bounds = array<i64: 32, 32>}, {pipeline_mode = #tpu.pipeline_mode<synchronous>, transform_indices = @transform_3, window_bounds = array<i64: 32, 32>}, {pipeline_mode = #tpu.pipeline_mode<synchronous>, transform_indices = @transform_4, window_bounds = array<i64: 32, 32>}, {pipeline_mode = #tpu.pipeline_mode<synchronous>, transform_indices = @transform_5, window_bounds = array<i64: 3, 32, 32>}, {pipeline_mode = #tpu.pipeline_mode<synchronous>, transform_indices = @transform_6, window_bounds = array<i64: 3, 1, 32>}, {pipeline_mode = #tpu.pipeline_mode<synchronous>, transform_indices = @transform_7, window_bounds = array<i64: 3, 32, 64>}, {pipeline_mode = #tpu.pipeline_mode<synchronous>, transform_indices = @transform_8, window_bounds = array<i64: 3, 1, 64>}, {pipeline_mode = #tpu.pipeline_mode<synchronous>, transform_indices = @transform_9, window_bounds = array<i64: 3, 32, 32>}, {pipeline_mode = #tpu.pipeline_mode<synchronous>, transform_indices = @transform_10, window_bounds = array<i64: 3, 1, 32>}, {pipeline_mode = #tpu.pipeline_mode<synchronous>, transform_indices = @transform_11, window_bounds = array<i64: 3, 1, 32>}, {pipeline_mode = #tpu.pipeline_mode<synchronous>, transform_indices = @transform_12, window_bounds = array<i64: 3, 1, 32>}, {pipeline_mode = #tpu.pipeline_mode<synchronous>, transform_indices = @transform_13, window_bounds = array<i64: 32, 64>}, {pipeline_mode = #tpu.pipeline_mode<synchronous>, transform_indices = @transform_14, window_bounds = array<i64: 1, 64>}, {pipeline_mode = #tpu.pipeline_mode<synchronous>, transform_indices = @transform_15, window_bounds = array<i64: 64, 32>}, {pipeline_mode = #tpu.pipeline_mode<synchronous>, transform_indices = @transform_16, window_bounds = array<i64: 1, 32>}, {transform_indices = @transform_17, window_bounds = array<i64: 1, 32, 32>}]} {
    %c0 = arith.constant 0 : index
    %c0_0 = arith.constant 0 : index
    %c0_1 = arith.constant 0 : index
    %0 = vector.load %arg1[%c0, %c0_0, %c0_1] : memref<1x32x32xf32, #tpu.memory_space<vmem>>, vector<1x32x32xf32>
    %1 = vector.shape_cast %0 : vector<1x32x32xf32> to vector<32x32xf32>
    %c0_2 = arith.constant 0 : index
    %c0_3 = arith.constant 0 : index
    %c0_4 = arith.constant 0 : index
    %2 = vector.load %arg2[%c0_2, %c0_3, %c0_4] : memref<1x32x32xf32, #tpu.memory_space<vmem>>, vector<1x32x32xf32>
    %3 = vector.shape_cast %2 : vector<1x32x32xf32> to vector<32x32xf32>
    %c0_5 = arith.constant 0 : index
    %c0_6 = arith.constant 0 : index
    %c0_7 = arith.constant 0 : index
    %4 = vector.load %arg6[%c0_5, %c0_6, %c0_7] : memref<3x32x32xf32, #tpu.memory_space<vmem>>, vector<1x32x32xf32>
    %5 = vector.shape_cast %4 : vector<1x32x32xf32> to vector<32x32xf32>
    %c0_8 = arith.constant 0 : index
    %c0_9 = arith.constant 0 : index
    %c0_10 = arith.constant 0 : index
    %6 = vector.load %arg7[%c0_8, %c0_9, %c0_10] : memref<3x1x32xf32, #tpu.memory_space<vmem>>, vector<1x1x32xf32>
    %7 = vector.shape_cast %6 : vector<1x1x32xf32> to vector<1x32xf32>
    %c0_11 = arith.constant 0 : index
    %c0_12 = arith.constant 0 : index
    %c0_13 = arith.constant 0 : index
    %8 = vector.load %arg8[%c0_11, %c0_12, %c0_13] : memref<3x32x64xf32, #tpu.memory_space<vmem>>, vector<1x32x64xf32>
    %9 = vector.shape_cast %8 : vector<1x32x64xf32> to vector<32x64xf32>
    %c0_14 = arith.constant 0 : index
    %c0_15 = arith.constant 0 : index
    %c0_16 = arith.constant 0 : index
    %10 = vector.load %arg9[%c0_14, %c0_15, %c0_16] : memref<3x1x64xf32, #tpu.memory_space<vmem>>, vector<1x1x64xf32>
    %11 = vector.shape_cast %10 : vector<1x1x64xf32> to vector<1x64xf32>
    %c0_17 = arith.constant 0 : index
    %c0_18 = arith.constant 0 : index
    %c0_19 = arith.constant 0 : index
    %12 = vector.load %arg10[%c0_17, %c0_18, %c0_19] : memref<3x32x32xf32, #tpu.memory_space<vmem>>, vector<1x32x32xf32>
    %13 = vector.shape_cast %12 : vector<1x32x32xf32> to vector<32x32xf32>
    %c0_20 = arith.constant 0 : index
    %c0_21 = arith.constant 0 : index
    %c0_22 = arith.constant 0 : index
    %14 = vector.load %arg11[%c0_20, %c0_21, %c0_22] : memref<3x1x32xf32, #tpu.memory_space<vmem>>, vector<1x1x32xf32>
    %15 = vector.shape_cast %14 : vector<1x1x32xf32> to vector<1x32xf32>
    %c0_23 = arith.constant 0 : index
    %c0_24 = arith.constant 0 : index
    %16 = vector.load %arg3[%c0_23, %c0_24] : memref<32x32xf32, #tpu.memory_space<vmem>>, vector<32x32xf32>
    %cst = arith.constant dense<0.000000e+00> : vector<32x32xf32>
    %17 = tpu.matmul %1, %5, %cst {dimension_numbers = #tpu.dot_dimension_numbers<[1], [0], [0], [1], [0, 0, 1, 1], [], []>} : vector<32x32xf32>, vector<32x32xf32>, vector<32x32xf32> -> vector<32x32xf32>
    %18 = vector.broadcast %7 : vector<1x32xf32> to vector<32x32xf32>
    %19 = arith.addf %17, %18 : vector<32x32xf32>
    %cst_25 = arith.constant dense<0.000000e+00> : vector<32x64xf32>
    %20 = tpu.matmul %1, %9, %cst_25 {dimension_numbers = #tpu.dot_dimension_numbers<[1], [0], [0], [1], [0, 0, 1, 1], [], []>} : vector<32x32xf32>, vector<32x64xf32>, vector<32x64xf32> -> vector<32x64xf32>
    %21 = vector.broadcast %11 : vector<1x64xf32> to vector<32x64xf32>
    %22 = arith.addf %20, %21 : vector<32x64xf32>
    %23 = vector.extract_strided_slice %19 {offsets = [0, 0], sizes = [32, 8], strides = [1, 1]} : vector<32x32xf32> to vector<32x8xf32>
    %24 = vector.extract_strided_slice %22 {offsets = [0, 0], sizes = [32, 8], strides = [1, 1]} : vector<32x64xf32> to vector<32x8xf32>
    %25 = vector.extract_strided_slice %22 {offsets = [0, 32], sizes = [32, 8], strides = [1, 1]} : vector<32x64xf32> to vector<32x8xf32>
    %cst_26 = arith.constant dense<0.000000e+00> : vector<32x32xf32>
    %26 = tpu.matmul %23, %24, %cst_26 {dimension_numbers = #tpu.dot_dimension_numbers<[1], [1], [0], [0], [0, 0, 1, 0], [], []>} : vector<32x8xf32>, vector<32x8xf32>, vector<32x32xf32> -> vector<32x32xf32>
    %27 = arith.addf %26, %16 : vector<32x32xf32>
    %cst_27 = arith.constant dense<0xFF800000> : vector<32xf32>
    %28 = vector.multi_reduction <maximumf>, %27, %cst_27 [1] : vector<32x32xf32> to vector<32xf32>
    %29 = vector.shape_cast %28 : vector<32xf32> to vector<32x1xf32>
    %30 = vector.broadcast %29 : vector<32x1xf32> to vector<32x32xf32>
    %31 = arith.subf %27, %30 : vector<32x32xf32>
    %32 = math.exp %31 : vector<32x32xf32>
    %cst_28 = arith.constant dense<0.000000e+00> : vector<32xf32>
    %33 = vector.multi_reduction <add>, %32, %cst_28 [1] : vector<32x32xf32> to vector<32xf32>
    %34 = vector.shape_cast %33 : vector<32xf32> to vector<32x1xf32>
    %35 = tpu.reciprocal %34 {approx = true} : vector<32x1xf32> -> vector<32x1xf32>
    %36 = vector.broadcast %35 : vector<32x1xf32> to vector<32x32xf32>
    %37 = arith.mulf %32, %36 : vector<32x32xf32>
    %cst_29 = arith.constant dense<0.000000e+00> : vector<32x8xf32>
    %38 = tpu.matmul %37, %25, %cst_29 {dimension_numbers = #tpu.dot_dimension_numbers<[1], [0], [0], [1], [0, 0, 1, 1], [], []>} : vector<32x32xf32>, vector<32x8xf32>, vector<32x8xf32> -> vector<32x8xf32>
    %39 = vector.extract_strided_slice %13 {offsets = [0, 0], sizes = [8, 32], strides = [1, 1]} : vector<32x32xf32> to vector<8x32xf32>
    %cst_30 = arith.constant dense<0.000000e+00> : vector<32x32xf32>
    %40 = tpu.matmul %38, %39, %cst_30 {dimension_numbers = #tpu.dot_dimension_numbers<[1], [0], [0], [1], [0, 0, 1, 1], [], []>} : vector<32x8xf32>, vector<8x32xf32>, vector<32x32xf32> -> vector<32x32xf32>
    %41 = vector.extract_strided_slice %19 {offsets = [0, 8], sizes = [32, 8], strides = [1, 1]} : vector<32x32xf32> to vector<32x8xf32>
    %42 = vector.extract_strided_slice %22 {offsets = [0, 8], sizes = [32, 8], strides = [1, 1]} : vector<32x64xf32> to vector<32x8xf32>
    %43 = vector.extract_strided_slice %22 {offsets = [0, 40], sizes = [32, 8], strides = [1, 1]} : vector<32x64xf32> to vector<32x8xf32>
    %cst_31 = arith.constant dense<0.000000e+00> : vector<32x32xf32>
    %44 = tpu.matmul %41, %42, %cst_31 {dimension_numbers = #tpu.dot_dimension_numbers<[1], [1], [0], [0], [0, 0, 1, 0], [], []>} : vector<32x8xf32>, vector<32x8xf32>, vector<32x32xf32> -> vector<32x32xf32>
    %45 = arith.addf %44, %16 : vector<32x32xf32>
    %cst_32 = arith.constant dense<0xFF800000> : vector<32xf32>
    %46 = vector.multi_reduction <maximumf>, %45, %cst_32 [1] : vector<32x32xf32> to vector<32xf32>
    %47 = vector.shape_cast %46 : vector<32xf32> to vector<32x1xf32>
    %48 = vector.broadcast %47 : vector<32x1xf32> to vector<32x32xf32>
    %49 = arith.subf %45, %48 : vector<32x32xf32>
    %50 = math.exp %49 : vector<32x32xf32>
    %cst_33 = arith.constant dense<0.000000e+00> : vector<32xf32>
    %51 = vector.multi_reduction <add>, %50, %cst_33 [1] : vector<32x32xf32> to vector<32xf32>
    %52 = vector.shape_cast %51 : vector<32xf32> to vector<32x1xf32>
    %53 = tpu.reciprocal %52 {approx = true} : vector<32x1xf32> -> vector<32x1xf32>
    %54 = vector.broadcast %53 : vector<32x1xf32> to vector<32x32xf32>
    %55 = arith.mulf %50, %54 : vector<32x32xf32>
    %cst_34 = arith.constant dense<0.000000e+00> : vector<32x8xf32>
    %56 = tpu.matmul %55, %43, %cst_34 {dimension_numbers = #tpu.dot_dimension_numbers<[1], [0], [0], [1], [0, 0, 1, 1], [], []>} : vector<32x32xf32>, vector<32x8xf32>, vector<32x8xf32> -> vector<32x8xf32>
    %57 = vector.extract_strided_slice %13 {offsets = [8, 0], sizes = [8, 32], strides = [1, 1]} : vector<32x32xf32> to vector<8x32xf32>
    %cst_35 = arith.constant dense<0.000000e+00> : vector<32x32xf32>
    %58 = tpu.matmul %56, %57, %cst_35 {dimension_numbers = #tpu.dot_dimension_numbers<[1], [0], [0], [1], [0, 0, 1, 1], [], []>} : vector<32x8xf32>, vector<8x32xf32>, vector<32x32xf32> -> vector<32x32xf32>
    %59 = arith.addf %40, %58 : vector<32x32xf32>
    %60 = vector.extract_strided_slice %19 {offsets = [0, 16], sizes = [32, 8], strides = [1, 1]} : vector<32x32xf32> to vector<32x8xf32>
    %61 = vector.extract_strided_slice %22 {offsets = [0, 16], sizes = [32, 8], strides = [1, 1]} : vector<32x64xf32> to vector<32x8xf32>
    %62 = vector.extract_strided_slice %22 {offsets = [0, 48], sizes = [32, 8], strides = [1, 1]} : vector<32x64xf32> to vector<32x8xf32>
    %cst_36 = arith.constant dense<0.000000e+00> : vector<32x32xf32>
    %63 = tpu.matmul %60, %61, %cst_36 {dimension_numbers = #tpu.dot_dimension_numbers<[1], [1], [0], [0], [0, 0, 1, 0], [], []>} : vector<32x8xf32>, vector<32x8xf32>, vector<32x32xf32> -> vector<32x32xf32>
    %64 = arith.addf %63, %16 : vector<32x32xf32>
    %cst_37 = arith.constant dense<0xFF800000> : vector<32xf32>
    %65 = vector.multi_reduction <maximumf>, %64, %cst_37 [1] : vector<32x32xf32> to vector<32xf32>
    %66 = vector.shape_cast %65 : vector<32xf32> to vector<32x1xf32>
    %67 = vector.broadcast %66 : vector<32x1xf32> to vector<32x32xf32>
    %68 = arith.subf %64, %67 : vector<32x32xf32>
    %69 = math.exp %68 : vector<32x32xf32>
    %cst_38 = arith.constant dense<0.000000e+00> : vector<32xf32>
    %70 = vector.multi_reduction <add>, %69, %cst_38 [1] : vector<32x32xf32> to vector<32xf32>
    %71 = vector.shape_cast %70 : vector<32xf32> to vector<32x1xf32>
    %72 = tpu.reciprocal %71 {approx = true} : vector<32x1xf32> -> vector<32x1xf32>
    %73 = vector.broadcast %72 : vector<32x1xf32> to vector<32x32xf32>
    %74 = arith.mulf %69, %73 : vector<32x32xf32>
    %cst_39 = arith.constant dense<0.000000e+00> : vector<32x8xf32>
    %75 = tpu.matmul %74, %62, %cst_39 {dimension_numbers = #tpu.dot_dimension_numbers<[1], [0], [0], [1], [0, 0, 1, 1], [], []>} : vector<32x32xf32>, vector<32x8xf32>, vector<32x8xf32> -> vector<32x8xf32>
    %76 = vector.extract_strided_slice %13 {offsets = [16, 0], sizes = [8, 32], strides = [1, 1]} : vector<32x32xf32> to vector<8x32xf32>
    %cst_40 = arith.constant dense<0.000000e+00> : vector<32x32xf32>
    %77 = tpu.matmul %75, %76, %cst_40 {dimension_numbers = #tpu.dot_dimension_numbers<[1], [0], [0], [1], [0, 0, 1, 1], [], []>} : vector<32x8xf32>, vector<8x32xf32>, vector<32x32xf32> -> vector<32x32xf32>
    %78 = arith.addf %59, %77 : vector<32x32xf32>
    %79 = vector.extract_strided_slice %19 {offsets = [0, 24], sizes = [32, 8], strides = [1, 1]} : vector<32x32xf32> to vector<32x8xf32>
    %80 = vector.extract_strided_slice %22 {offsets = [0, 24], sizes = [32, 8], strides = [1, 1]} : vector<32x64xf32> to vector<32x8xf32>
    %81 = vector.extract_strided_slice %22 {offsets = [0, 56], sizes = [32, 8], strides = [1, 1]} : vector<32x64xf32> to vector<32x8xf32>
    %cst_41 = arith.constant dense<0.000000e+00> : vector<32x32xf32>
    %82 = tpu.matmul %79, %80, %cst_41 {dimension_numbers = #tpu.dot_dimension_numbers<[1], [1], [0], [0], [0, 0, 1, 0], [], []>} : vector<32x8xf32>, vector<32x8xf32>, vector<32x32xf32> -> vector<32x32xf32>
    %83 = arith.addf %82, %16 : vector<32x32xf32>
    %cst_42 = arith.constant dense<0xFF800000> : vector<32xf32>
    %84 = vector.multi_reduction <maximumf>, %83, %cst_42 [1] : vector<32x32xf32> to vector<32xf32>
    %85 = vector.shape_cast %84 : vector<32xf32> to vector<32x1xf32>
    %86 = vector.broadcast %85 : vector<32x1xf32> to vector<32x32xf32>
    %87 = arith.subf %83, %86 : vector<32x32xf32>
    %88 = math.exp %87 : vector<32x32xf32>
    %cst_43 = arith.constant dense<0.000000e+00> : vector<32xf32>
    %89 = vector.multi_reduction <add>, %88, %cst_43 [1] : vector<32x32xf32> to vector<32xf32>
    %90 = vector.shape_cast %89 : vector<32xf32> to vector<32x1xf32>
    %91 = tpu.reciprocal %90 {approx = true} : vector<32x1xf32> -> vector<32x1xf32>
    %92 = vector.broadcast %91 : vector<32x1xf32> to vector<32x32xf32>
    %93 = arith.mulf %88, %92 : vector<32x32xf32>
    %cst_44 = arith.constant dense<0.000000e+00> : vector<32x8xf32>
    %94 = tpu.matmul %93, %81, %cst_44 {dimension_numbers = #tpu.dot_dimension_numbers<[1], [0], [0], [1], [0, 0, 1, 1], [], []>} : vector<32x32xf32>, vector<32x8xf32>, vector<32x8xf32> -> vector<32x8xf32>
    %95 = vector.extract_strided_slice %13 {offsets = [24, 0], sizes = [8, 32], strides = [1, 1]} : vector<32x32xf32> to vector<8x32xf32>
    %cst_45 = arith.constant dense<0.000000e+00> : vector<32x32xf32>
    %96 = tpu.matmul %94, %95, %cst_45 {dimension_numbers = #tpu.dot_dimension_numbers<[1], [0], [0], [1], [0, 0, 1, 1], [], []>} : vector<32x8xf32>, vector<8x32xf32>, vector<32x32xf32> -> vector<32x32xf32>
    %97 = arith.addf %78, %96 : vector<32x32xf32>
    %98 = vector.broadcast %15 : vector<1x32xf32> to vector<32x32xf32>
    %99 = arith.addf %97, %98 : vector<32x32xf32>
    %c1 = arith.constant 1 : index
    %c0_46 = arith.constant 0 : index
    %c0_47 = arith.constant 0 : index
    %100 = vector.load %arg6[%c1, %c0_46, %c0_47] : memref<3x32x32xf32, #tpu.memory_space<vmem>>, vector<1x32x32xf32>
    %101 = vector.shape_cast %100 : vector<1x32x32xf32> to vector<32x32xf32>
    %c1_48 = arith.constant 1 : index
    %c0_49 = arith.constant 0 : index
    %c0_50 = arith.constant 0 : index
    %102 = vector.load %arg7[%c1_48, %c0_49, %c0_50] : memref<3x1x32xf32, #tpu.memory_space<vmem>>, vector<1x1x32xf32>
    %103 = vector.shape_cast %102 : vector<1x1x32xf32> to vector<1x32xf32>
    %c1_51 = arith.constant 1 : index
    %c0_52 = arith.constant 0 : index
    %c0_53 = arith.constant 0 : index
    %104 = vector.load %arg8[%c1_51, %c0_52, %c0_53] : memref<3x32x64xf32, #tpu.memory_space<vmem>>, vector<1x32x64xf32>
    %105 = vector.shape_cast %104 : vector<1x32x64xf32> to vector<32x64xf32>
    %c1_54 = arith.constant 1 : index
    %c0_55 = arith.constant 0 : index
    %c0_56 = arith.constant 0 : index
    %106 = vector.load %arg9[%c1_54, %c0_55, %c0_56] : memref<3x1x64xf32, #tpu.memory_space<vmem>>, vector<1x1x64xf32>
    %107 = vector.shape_cast %106 : vector<1x1x64xf32> to vector<1x64xf32>
    %c1_57 = arith.constant 1 : index
    %c0_58 = arith.constant 0 : index
    %c0_59 = arith.constant 0 : index
    %108 = vector.load %arg10[%c1_57, %c0_58, %c0_59] : memref<3x32x32xf32, #tpu.memory_space<vmem>>, vector<1x32x32xf32>
    %109 = vector.shape_cast %108 : vector<1x32x32xf32> to vector<32x32xf32>
    %c1_60 = arith.constant 1 : index
    %c0_61 = arith.constant 0 : index
    %c0_62 = arith.constant 0 : index
    %110 = vector.load %arg11[%c1_60, %c0_61, %c0_62] : memref<3x1x32xf32, #tpu.memory_space<vmem>>, vector<1x1x32xf32>
    %111 = vector.shape_cast %110 : vector<1x1x32xf32> to vector<1x32xf32>
    %c0_63 = arith.constant 0 : index
    %c0_64 = arith.constant 0 : index
    %112 = vector.load %arg4[%c0_63, %c0_64] : memref<32x32xf32, #tpu.memory_space<vmem>>, vector<32x32xf32>
    %cst_65 = arith.constant dense<0.000000e+00> : vector<32x32xf32>
    %113 = tpu.matmul %99, %101, %cst_65 {dimension_numbers = #tpu.dot_dimension_numbers<[1], [0], [0], [1], [0, 0, 1, 1], [], []>} : vector<32x32xf32>, vector<32x32xf32>, vector<32x32xf32> -> vector<32x32xf32>
    %114 = vector.broadcast %103 : vector<1x32xf32> to vector<32x32xf32>
    %115 = arith.addf %113, %114 : vector<32x32xf32>
    %cst_66 = arith.constant dense<0.000000e+00> : vector<32x64xf32>
    %116 = tpu.matmul %99, %105, %cst_66 {dimension_numbers = #tpu.dot_dimension_numbers<[1], [0], [0], [1], [0, 0, 1, 1], [], []>} : vector<32x32xf32>, vector<32x64xf32>, vector<32x64xf32> -> vector<32x64xf32>
    %117 = vector.broadcast %107 : vector<1x64xf32> to vector<32x64xf32>
    %118 = arith.addf %116, %117 : vector<32x64xf32>
    %119 = vector.extract_strided_slice %115 {offsets = [0, 0], sizes = [32, 8], strides = [1, 1]} : vector<32x32xf32> to vector<32x8xf32>
    %120 = vector.extract_strided_slice %118 {offsets = [0, 0], sizes = [32, 8], strides = [1, 1]} : vector<32x64xf32> to vector<32x8xf32>
    %121 = vector.extract_strided_slice %118 {offsets = [0, 32], sizes = [32, 8], strides = [1, 1]} : vector<32x64xf32> to vector<32x8xf32>
    %cst_67 = arith.constant dense<0.000000e+00> : vector<32x32xf32>
    %122 = tpu.matmul %119, %120, %cst_67 {dimension_numbers = #tpu.dot_dimension_numbers<[1], [1], [0], [0], [0, 0, 1, 0], [], []>} : vector<32x8xf32>, vector<32x8xf32>, vector<32x32xf32> -> vector<32x32xf32>
    %123 = arith.addf %122, %112 : vector<32x32xf32>
    %cst_68 = arith.constant dense<0xFF800000> : vector<32xf32>
    %124 = vector.multi_reduction <maximumf>, %123, %cst_68 [1] : vector<32x32xf32> to vector<32xf32>
    %125 = vector.shape_cast %124 : vector<32xf32> to vector<32x1xf32>
    %126 = vector.broadcast %125 : vector<32x1xf32> to vector<32x32xf32>
    %127 = arith.subf %123, %126 : vector<32x32xf32>
    %128 = math.exp %127 : vector<32x32xf32>
    %cst_69 = arith.constant dense<0.000000e+00> : vector<32xf32>
    %129 = vector.multi_reduction <add>, %128, %cst_69 [1] : vector<32x32xf32> to vector<32xf32>
    %130 = vector.shape_cast %129 : vector<32xf32> to vector<32x1xf32>
    %131 = tpu.reciprocal %130 {approx = true} : vector<32x1xf32> -> vector<32x1xf32>
    %132 = vector.broadcast %131 : vector<32x1xf32> to vector<32x32xf32>
    %133 = arith.mulf %128, %132 : vector<32x32xf32>
    %cst_70 = arith.constant dense<0.000000e+00> : vector<32x8xf32>
    %134 = tpu.matmul %133, %121, %cst_70 {dimension_numbers = #tpu.dot_dimension_numbers<[1], [0], [0], [1], [0, 0, 1, 1], [], []>} : vector<32x32xf32>, vector<32x8xf32>, vector<32x8xf32> -> vector<32x8xf32>
    %135 = vector.extract_strided_slice %109 {offsets = [0, 0], sizes = [8, 32], strides = [1, 1]} : vector<32x32xf32> to vector<8x32xf32>
    %cst_71 = arith.constant dense<0.000000e+00> : vector<32x32xf32>
    %136 = tpu.matmul %134, %135, %cst_71 {dimension_numbers = #tpu.dot_dimension_numbers<[1], [0], [0], [1], [0, 0, 1, 1], [], []>} : vector<32x8xf32>, vector<8x32xf32>, vector<32x32xf32> -> vector<32x32xf32>
    %137 = vector.extract_strided_slice %115 {offsets = [0, 8], sizes = [32, 8], strides = [1, 1]} : vector<32x32xf32> to vector<32x8xf32>
    %138 = vector.extract_strided_slice %118 {offsets = [0, 8], sizes = [32, 8], strides = [1, 1]} : vector<32x64xf32> to vector<32x8xf32>
    %139 = vector.extract_strided_slice %118 {offsets = [0, 40], sizes = [32, 8], strides = [1, 1]} : vector<32x64xf32> to vector<32x8xf32>
    %cst_72 = arith.constant dense<0.000000e+00> : vector<32x32xf32>
    %140 = tpu.matmul %137, %138, %cst_72 {dimension_numbers = #tpu.dot_dimension_numbers<[1], [1], [0], [0], [0, 0, 1, 0], [], []>} : vector<32x8xf32>, vector<32x8xf32>, vector<32x32xf32> -> vector<32x32xf32>
    %141 = arith.addf %140, %112 : vector<32x32xf32>
    %cst_73 = arith.constant dense<0xFF800000> : vector<32xf32>
    %142 = vector.multi_reduction <maximumf>, %141, %cst_73 [1] : vector<32x32xf32> to vector<32xf32>
    %143 = vector.shape_cast %142 : vector<32xf32> to vector<32x1xf32>
    %144 = vector.broadcast %143 : vector<32x1xf32> to vector<32x32xf32>
    %145 = arith.subf %141, %144 : vector<32x32xf32>
    %146 = math.exp %145 : vector<32x32xf32>
    %cst_74 = arith.constant dense<0.000000e+00> : vector<32xf32>
    %147 = vector.multi_reduction <add>, %146, %cst_74 [1] : vector<32x32xf32> to vector<32xf32>
    %148 = vector.shape_cast %147 : vector<32xf32> to vector<32x1xf32>
    %149 = tpu.reciprocal %148 {approx = true} : vector<32x1xf32> -> vector<32x1xf32>
    %150 = vector.broadcast %149 : vector<32x1xf32> to vector<32x32xf32>
    %151 = arith.mulf %146, %150 : vector<32x32xf32>
    %cst_75 = arith.constant dense<0.000000e+00> : vector<32x8xf32>
    %152 = tpu.matmul %151, %139, %cst_75 {dimension_numbers = #tpu.dot_dimension_numbers<[1], [0], [0], [1], [0, 0, 1, 1], [], []>} : vector<32x32xf32>, vector<32x8xf32>, vector<32x8xf32> -> vector<32x8xf32>
    %153 = vector.extract_strided_slice %109 {offsets = [8, 0], sizes = [8, 32], strides = [1, 1]} : vector<32x32xf32> to vector<8x32xf32>
    %cst_76 = arith.constant dense<0.000000e+00> : vector<32x32xf32>
    %154 = tpu.matmul %152, %153, %cst_76 {dimension_numbers = #tpu.dot_dimension_numbers<[1], [0], [0], [1], [0, 0, 1, 1], [], []>} : vector<32x8xf32>, vector<8x32xf32>, vector<32x32xf32> -> vector<32x32xf32>
    %155 = arith.addf %136, %154 : vector<32x32xf32>
    %156 = vector.extract_strided_slice %115 {offsets = [0, 16], sizes = [32, 8], strides = [1, 1]} : vector<32x32xf32> to vector<32x8xf32>
    %157 = vector.extract_strided_slice %118 {offsets = [0, 16], sizes = [32, 8], strides = [1, 1]} : vector<32x64xf32> to vector<32x8xf32>
    %158 = vector.extract_strided_slice %118 {offsets = [0, 48], sizes = [32, 8], strides = [1, 1]} : vector<32x64xf32> to vector<32x8xf32>
    %cst_77 = arith.constant dense<0.000000e+00> : vector<32x32xf32>
    %159 = tpu.matmul %156, %157, %cst_77 {dimension_numbers = #tpu.dot_dimension_numbers<[1], [1], [0], [0], [0, 0, 1, 0], [], []>} : vector<32x8xf32>, vector<32x8xf32>, vector<32x32xf32> -> vector<32x32xf32>
    %160 = arith.addf %159, %112 : vector<32x32xf32>
    %cst_78 = arith.constant dense<0xFF800000> : vector<32xf32>
    %161 = vector.multi_reduction <maximumf>, %160, %cst_78 [1] : vector<32x32xf32> to vector<32xf32>
    %162 = vector.shape_cast %161 : vector<32xf32> to vector<32x1xf32>
    %163 = vector.broadcast %162 : vector<32x1xf32> to vector<32x32xf32>
    %164 = arith.subf %160, %163 : vector<32x32xf32>
    %165 = math.exp %164 : vector<32x32xf32>
    %cst_79 = arith.constant dense<0.000000e+00> : vector<32xf32>
    %166 = vector.multi_reduction <add>, %165, %cst_79 [1] : vector<32x32xf32> to vector<32xf32>
    %167 = vector.shape_cast %166 : vector<32xf32> to vector<32x1xf32>
    %168 = tpu.reciprocal %167 {approx = true} : vector<32x1xf32> -> vector<32x1xf32>
    %169 = vector.broadcast %168 : vector<32x1xf32> to vector<32x32xf32>
    %170 = arith.mulf %165, %169 : vector<32x32xf32>
    %cst_80 = arith.constant dense<0.000000e+00> : vector<32x8xf32>
    %171 = tpu.matmul %170, %158, %cst_80 {dimension_numbers = #tpu.dot_dimension_numbers<[1], [0], [0], [1], [0, 0, 1, 1], [], []>} : vector<32x32xf32>, vector<32x8xf32>, vector<32x8xf32> -> vector<32x8xf32>
    %172 = vector.extract_strided_slice %109 {offsets = [16, 0], sizes = [8, 32], strides = [1, 1]} : vector<32x32xf32> to vector<8x32xf32>
    %cst_81 = arith.constant dense<0.000000e+00> : vector<32x32xf32>
    %173 = tpu.matmul %171, %172, %cst_81 {dimension_numbers = #tpu.dot_dimension_numbers<[1], [0], [0], [1], [0, 0, 1, 1], [], []>} : vector<32x8xf32>, vector<8x32xf32>, vector<32x32xf32> -> vector<32x32xf32>
    %174 = arith.addf %155, %173 : vector<32x32xf32>
    %175 = vector.extract_strided_slice %115 {offsets = [0, 24], sizes = [32, 8], strides = [1, 1]} : vector<32x32xf32> to vector<32x8xf32>
    %176 = vector.extract_strided_slice %118 {offsets = [0, 24], sizes = [32, 8], strides = [1, 1]} : vector<32x64xf32> to vector<32x8xf32>
    %177 = vector.extract_strided_slice %118 {offsets = [0, 56], sizes = [32, 8], strides = [1, 1]} : vector<32x64xf32> to vector<32x8xf32>
    %cst_82 = arith.constant dense<0.000000e+00> : vector<32x32xf32>
    %178 = tpu.matmul %175, %176, %cst_82 {dimension_numbers = #tpu.dot_dimension_numbers<[1], [1], [0], [0], [0, 0, 1, 0], [], []>} : vector<32x8xf32>, vector<32x8xf32>, vector<32x32xf32> -> vector<32x32xf32>
    %179 = arith.addf %178, %112 : vector<32x32xf32>
    %cst_83 = arith.constant dense<0xFF800000> : vector<32xf32>
    %180 = vector.multi_reduction <maximumf>, %179, %cst_83 [1] : vector<32x32xf32> to vector<32xf32>
    %181 = vector.shape_cast %180 : vector<32xf32> to vector<32x1xf32>
    %182 = vector.broadcast %181 : vector<32x1xf32> to vector<32x32xf32>
    %183 = arith.subf %179, %182 : vector<32x32xf32>
    %184 = math.exp %183 : vector<32x32xf32>
    %cst_84 = arith.constant dense<0.000000e+00> : vector<32xf32>
    %185 = vector.multi_reduction <add>, %184, %cst_84 [1] : vector<32x32xf32> to vector<32xf32>
    %186 = vector.shape_cast %185 : vector<32xf32> to vector<32x1xf32>
    %187 = tpu.reciprocal %186 {approx = true} : vector<32x1xf32> -> vector<32x1xf32>
    %188 = vector.broadcast %187 : vector<32x1xf32> to vector<32x32xf32>
    %189 = arith.mulf %184, %188 : vector<32x32xf32>
    %cst_85 = arith.constant dense<0.000000e+00> : vector<32x8xf32>
    %190 = tpu.matmul %189, %177, %cst_85 {dimension_numbers = #tpu.dot_dimension_numbers<[1], [0], [0], [1], [0, 0, 1, 1], [], []>} : vector<32x32xf32>, vector<32x8xf32>, vector<32x8xf32> -> vector<32x8xf32>
    %191 = vector.extract_strided_slice %109 {offsets = [24, 0], sizes = [8, 32], strides = [1, 1]} : vector<32x32xf32> to vector<8x32xf32>
    %cst_86 = arith.constant dense<0.000000e+00> : vector<32x32xf32>
    %192 = tpu.matmul %190, %191, %cst_86 {dimension_numbers = #tpu.dot_dimension_numbers<[1], [0], [0], [1], [0, 0, 1, 1], [], []>} : vector<32x8xf32>, vector<8x32xf32>, vector<32x32xf32> -> vector<32x32xf32>
    %193 = arith.addf %174, %192 : vector<32x32xf32>
    %194 = vector.broadcast %111 : vector<1x32xf32> to vector<32x32xf32>
    %195 = arith.addf %193, %194 : vector<32x32xf32>
    %c0_87 = arith.constant 0 : index
    %c0_88 = arith.constant 0 : index
    %c0_89 = arith.constant 0 : index
    %196 = vector.load %arg12[%c0_87, %c0_88, %c0_89] : memref<3x1x32xf32, #tpu.memory_space<vmem>>, vector<1x1x32xf32>
    %197 = vector.shape_cast %196 : vector<1x1x32xf32> to vector<1x32xf32>
    %c0_90 = arith.constant 0 : index
    %c0_91 = arith.constant 0 : index
    %c0_92 = arith.constant 0 : index
    %198 = vector.load %arg13[%c0_90, %c0_91, %c0_92] : memref<3x1x32xf32, #tpu.memory_space<vmem>>, vector<1x1x32xf32>
    %199 = vector.shape_cast %198 : vector<1x1x32xf32> to vector<1x32xf32>
    %200 = arith.addf %1, %195 : vector<32x32xf32>
    %cst_93 = arith.constant dense<0.000000e+00> : vector<32xf32>
    %201 = vector.multi_reduction <add>, %200, %cst_93 [1] : vector<32x32xf32> to vector<32xf32>
    %202 = vector.shape_cast %201 : vector<32xf32> to vector<32x1xf32>
    %cst_94 = arith.constant 3.200000e+01 : f32
    %203 = vector.broadcast %cst_94 : f32 to vector<32x1xf32>
    %204 = arith.divf %202, %203 : vector<32x1xf32>
    %205 = vector.broadcast %204 : vector<32x1xf32> to vector<32x32xf32>
    %206 = arith.subf %200, %205 : vector<32x32xf32>
    %207 = arith.mulf %206, %206 : vector<32x32xf32>
    %cst_95 = arith.constant dense<0.000000e+00> : vector<32xf32>
    %208 = vector.multi_reduction <add>, %207, %cst_95 [1] : vector<32x32xf32> to vector<32xf32>
    %209 = vector.shape_cast %208 : vector<32xf32> to vector<32x1xf32>
    %cst_96 = arith.constant 3.200000e+01 : f32
    %210 = vector.broadcast %cst_96 : f32 to vector<32x1xf32>
    %211 = arith.divf %209, %210 : vector<32x1xf32>
    %cst_97 = arith.constant 9.99999974E-6 : f32
    %212 = vector.broadcast %cst_97 : f32 to vector<32x1xf32>
    %213 = arith.addf %211, %212 : vector<32x1xf32>
    %214 = math.rsqrt %213 : vector<32x1xf32>
    %215 = vector.broadcast %214 : vector<32x1xf32> to vector<32x32xf32>
    %216 = arith.mulf %206, %215 : vector<32x32xf32>
    %217 = vector.broadcast %197 : vector<1x32xf32> to vector<32x32xf32>
    %218 = arith.mulf %216, %217 : vector<32x32xf32>
    %219 = vector.broadcast %199 : vector<1x32xf32> to vector<32x32xf32>
    %220 = arith.addf %218, %219 : vector<32x32xf32>
    %c2 = arith.constant 2 : index
    %c0_98 = arith.constant 0 : index
    %c0_99 = arith.constant 0 : index
    %221 = vector.load %arg6[%c2, %c0_98, %c0_99] : memref<3x32x32xf32, #tpu.memory_space<vmem>>, vector<1x32x32xf32>
    %222 = vector.shape_cast %221 : vector<1x32x32xf32> to vector<32x32xf32>
    %c2_100 = arith.constant 2 : index
    %c0_101 = arith.constant 0 : index
    %c0_102 = arith.constant 0 : index
    %223 = vector.load %arg7[%c2_100, %c0_101, %c0_102] : memref<3x1x32xf32, #tpu.memory_space<vmem>>, vector<1x1x32xf32>
    %224 = vector.shape_cast %223 : vector<1x1x32xf32> to vector<1x32xf32>
    %c2_103 = arith.constant 2 : index
    %c0_104 = arith.constant 0 : index
    %c0_105 = arith.constant 0 : index
    %225 = vector.load %arg8[%c2_103, %c0_104, %c0_105] : memref<3x32x64xf32, #tpu.memory_space<vmem>>, vector<1x32x64xf32>
    %226 = vector.shape_cast %225 : vector<1x32x64xf32> to vector<32x64xf32>
    %c2_106 = arith.constant 2 : index
    %c0_107 = arith.constant 0 : index
    %c0_108 = arith.constant 0 : index
    %227 = vector.load %arg9[%c2_106, %c0_107, %c0_108] : memref<3x1x64xf32, #tpu.memory_space<vmem>>, vector<1x1x64xf32>
    %228 = vector.shape_cast %227 : vector<1x1x64xf32> to vector<1x64xf32>
    %c2_109 = arith.constant 2 : index
    %c0_110 = arith.constant 0 : index
    %c0_111 = arith.constant 0 : index
    %229 = vector.load %arg10[%c2_109, %c0_110, %c0_111] : memref<3x32x32xf32, #tpu.memory_space<vmem>>, vector<1x32x32xf32>
    %230 = vector.shape_cast %229 : vector<1x32x32xf32> to vector<32x32xf32>
    %c2_112 = arith.constant 2 : index
    %c0_113 = arith.constant 0 : index
    %c0_114 = arith.constant 0 : index
    %231 = vector.load %arg11[%c2_112, %c0_113, %c0_114] : memref<3x1x32xf32, #tpu.memory_space<vmem>>, vector<1x1x32xf32>
    %232 = vector.shape_cast %231 : vector<1x1x32xf32> to vector<1x32xf32>
    %c0_115 = arith.constant 0 : index
    %c0_116 = arith.constant 0 : index
    %233 = vector.load %arg5[%c0_115, %c0_116] : memref<32x32xf32, #tpu.memory_space<vmem>>, vector<32x32xf32>
    %cst_117 = arith.constant dense<0.000000e+00> : vector<32x32xf32>
    %234 = tpu.matmul %220, %222, %cst_117 {dimension_numbers = #tpu.dot_dimension_numbers<[1], [0], [0], [1], [0, 0, 1, 1], [], []>} : vector<32x32xf32>, vector<32x32xf32>, vector<32x32xf32> -> vector<32x32xf32>
    %235 = vector.broadcast %224 : vector<1x32xf32> to vector<32x32xf32>
    %236 = arith.addf %234, %235 : vector<32x32xf32>
    %cst_118 = arith.constant dense<0.000000e+00> : vector<32x64xf32>
    %237 = tpu.matmul %3, %226, %cst_118 {dimension_numbers = #tpu.dot_dimension_numbers<[1], [0], [0], [1], [0, 0, 1, 1], [], []>} : vector<32x32xf32>, vector<32x64xf32>, vector<32x64xf32> -> vector<32x64xf32>
    %238 = vector.broadcast %228 : vector<1x64xf32> to vector<32x64xf32>
    %239 = arith.addf %237, %238 : vector<32x64xf32>
    %240 = vector.extract_strided_slice %236 {offsets = [0, 0], sizes = [32, 8], strides = [1, 1]} : vector<32x32xf32> to vector<32x8xf32>
    %241 = vector.extract_strided_slice %239 {offsets = [0, 0], sizes = [32, 8], strides = [1, 1]} : vector<32x64xf32> to vector<32x8xf32>
    %242 = vector.extract_strided_slice %239 {offsets = [0, 32], sizes = [32, 8], strides = [1, 1]} : vector<32x64xf32> to vector<32x8xf32>
    %cst_119 = arith.constant dense<0.000000e+00> : vector<32x32xf32>
    %243 = tpu.matmul %240, %241, %cst_119 {dimension_numbers = #tpu.dot_dimension_numbers<[1], [1], [0], [0], [0, 0, 1, 0], [], []>} : vector<32x8xf32>, vector<32x8xf32>, vector<32x32xf32> -> vector<32x32xf32>
    %244 = arith.addf %243, %233 : vector<32x32xf32>
    %cst_120 = arith.constant dense<0xFF800000> : vector<32xf32>
    %245 = vector.multi_reduction <maximumf>, %244, %cst_120 [1] : vector<32x32xf32> to vector<32xf32>
    %246 = vector.shape_cast %245 : vector<32xf32> to vector<32x1xf32>
    %247 = vector.broadcast %246 : vector<32x1xf32> to vector<32x32xf32>
    %248 = arith.subf %244, %247 : vector<32x32xf32>
    %249 = math.exp %248 : vector<32x32xf32>
    %cst_121 = arith.constant dense<0.000000e+00> : vector<32xf32>
    %250 = vector.multi_reduction <add>, %249, %cst_121 [1] : vector<32x32xf32> to vector<32xf32>
    %251 = vector.shape_cast %250 : vector<32xf32> to vector<32x1xf32>
    %252 = tpu.reciprocal %251 {approx = true} : vector<32x1xf32> -> vector<32x1xf32>
    %253 = vector.broadcast %252 : vector<32x1xf32> to vector<32x32xf32>
    %254 = arith.mulf %249, %253 : vector<32x32xf32>
    %cst_122 = arith.constant dense<0.000000e+00> : vector<32x8xf32>
    %255 = tpu.matmul %254, %242, %cst_122 {dimension_numbers = #tpu.dot_dimension_numbers<[1], [0], [0], [1], [0, 0, 1, 1], [], []>} : vector<32x32xf32>, vector<32x8xf32>, vector<32x8xf32> -> vector<32x8xf32>
    %256 = vector.extract_strided_slice %230 {offsets = [0, 0], sizes = [8, 32], strides = [1, 1]} : vector<32x32xf32> to vector<8x32xf32>
    %cst_123 = arith.constant dense<0.000000e+00> : vector<32x32xf32>
    %257 = tpu.matmul %255, %256, %cst_123 {dimension_numbers = #tpu.dot_dimension_numbers<[1], [0], [0], [1], [0, 0, 1, 1], [], []>} : vector<32x8xf32>, vector<8x32xf32>, vector<32x32xf32> -> vector<32x32xf32>
    %258 = vector.extract_strided_slice %236 {offsets = [0, 8], sizes = [32, 8], strides = [1, 1]} : vector<32x32xf32> to vector<32x8xf32>
    %259 = vector.extract_strided_slice %239 {offsets = [0, 8], sizes = [32, 8], strides = [1, 1]} : vector<32x64xf32> to vector<32x8xf32>
    %260 = vector.extract_strided_slice %239 {offsets = [0, 40], sizes = [32, 8], strides = [1, 1]} : vector<32x64xf32> to vector<32x8xf32>
    %cst_124 = arith.constant dense<0.000000e+00> : vector<32x32xf32>
    %261 = tpu.matmul %258, %259, %cst_124 {dimension_numbers = #tpu.dot_dimension_numbers<[1], [1], [0], [0], [0, 0, 1, 0], [], []>} : vector<32x8xf32>, vector<32x8xf32>, vector<32x32xf32> -> vector<32x32xf32>
    %262 = arith.addf %261, %233 : vector<32x32xf32>
    %cst_125 = arith.constant dense<0xFF800000> : vector<32xf32>
    %263 = vector.multi_reduction <maximumf>, %262, %cst_125 [1] : vector<32x32xf32> to vector<32xf32>
    %264 = vector.shape_cast %263 : vector<32xf32> to vector<32x1xf32>
    %265 = vector.broadcast %264 : vector<32x1xf32> to vector<32x32xf32>
    %266 = arith.subf %262, %265 : vector<32x32xf32>
    %267 = math.exp %266 : vector<32x32xf32>
    %cst_126 = arith.constant dense<0.000000e+00> : vector<32xf32>
    %268 = vector.multi_reduction <add>, %267, %cst_126 [1] : vector<32x32xf32> to vector<32xf32>
    %269 = vector.shape_cast %268 : vector<32xf32> to vector<32x1xf32>
    %270 = tpu.reciprocal %269 {approx = true} : vector<32x1xf32> -> vector<32x1xf32>
    %271 = vector.broadcast %270 : vector<32x1xf32> to vector<32x32xf32>
    %272 = arith.mulf %267, %271 : vector<32x32xf32>
    %cst_127 = arith.constant dense<0.000000e+00> : vector<32x8xf32>
    %273 = tpu.matmul %272, %260, %cst_127 {dimension_numbers = #tpu.dot_dimension_numbers<[1], [0], [0], [1], [0, 0, 1, 1], [], []>} : vector<32x32xf32>, vector<32x8xf32>, vector<32x8xf32> -> vector<32x8xf32>
    %274 = vector.extract_strided_slice %230 {offsets = [8, 0], sizes = [8, 32], strides = [1, 1]} : vector<32x32xf32> to vector<8x32xf32>
    %cst_128 = arith.constant dense<0.000000e+00> : vector<32x32xf32>
    %275 = tpu.matmul %273, %274, %cst_128 {dimension_numbers = #tpu.dot_dimension_numbers<[1], [0], [0], [1], [0, 0, 1, 1], [], []>} : vector<32x8xf32>, vector<8x32xf32>, vector<32x32xf32> -> vector<32x32xf32>
    %276 = arith.addf %257, %275 : vector<32x32xf32>
    %277 = vector.extract_strided_slice %236 {offsets = [0, 16], sizes = [32, 8], strides = [1, 1]} : vector<32x32xf32> to vector<32x8xf32>
    %278 = vector.extract_strided_slice %239 {offsets = [0, 16], sizes = [32, 8], strides = [1, 1]} : vector<32x64xf32> to vector<32x8xf32>
    %279 = vector.extract_strided_slice %239 {offsets = [0, 48], sizes = [32, 8], strides = [1, 1]} : vector<32x64xf32> to vector<32x8xf32>
    %cst_129 = arith.constant dense<0.000000e+00> : vector<32x32xf32>
    %280 = tpu.matmul %277, %278, %cst_129 {dimension_numbers = #tpu.dot_dimension_numbers<[1], [1], [0], [0], [0, 0, 1, 0], [], []>} : vector<32x8xf32>, vector<32x8xf32>, vector<32x32xf32> -> vector<32x32xf32>
    %281 = arith.addf %280, %233 : vector<32x32xf32>
    %cst_130 = arith.constant dense<0xFF800000> : vector<32xf32>
    %282 = vector.multi_reduction <maximumf>, %281, %cst_130 [1] : vector<32x32xf32> to vector<32xf32>
    %283 = vector.shape_cast %282 : vector<32xf32> to vector<32x1xf32>
    %284 = vector.broadcast %283 : vector<32x1xf32> to vector<32x32xf32>
    %285 = arith.subf %281, %284 : vector<32x32xf32>
    %286 = math.exp %285 : vector<32x32xf32>
    %cst_131 = arith.constant dense<0.000000e+00> : vector<32xf32>
    %287 = vector.multi_reduction <add>, %286, %cst_131 [1] : vector<32x32xf32> to vector<32xf32>
    %288 = vector.shape_cast %287 : vector<32xf32> to vector<32x1xf32>
    %289 = tpu.reciprocal %288 {approx = true} : vector<32x1xf32> -> vector<32x1xf32>
    %290 = vector.broadcast %289 : vector<32x1xf32> to vector<32x32xf32>
    %291 = arith.mulf %286, %290 : vector<32x32xf32>
    %cst_132 = arith.constant dense<0.000000e+00> : vector<32x8xf32>
    %292 = tpu.matmul %291, %279, %cst_132 {dimension_numbers = #tpu.dot_dimension_numbers<[1], [0], [0], [1], [0, 0, 1, 1], [], []>} : vector<32x32xf32>, vector<32x8xf32>, vector<32x8xf32> -> vector<32x8xf32>
    %293 = vector.extract_strided_slice %230 {offsets = [16, 0], sizes = [8, 32], strides = [1, 1]} : vector<32x32xf32> to vector<8x32xf32>
    %cst_133 = arith.constant dense<0.000000e+00> : vector<32x32xf32>
    %294 = tpu.matmul %292, %293, %cst_133 {dimension_numbers = #tpu.dot_dimension_numbers<[1], [0], [0], [1], [0, 0, 1, 1], [], []>} : vector<32x8xf32>, vector<8x32xf32>, vector<32x32xf32> -> vector<32x32xf32>
    %295 = arith.addf %276, %294 : vector<32x32xf32>
    %296 = vector.extract_strided_slice %236 {offsets = [0, 24], sizes = [32, 8], strides = [1, 1]} : vector<32x32xf32> to vector<32x8xf32>
    %297 = vector.extract_strided_slice %239 {offsets = [0, 24], sizes = [32, 8], strides = [1, 1]} : vector<32x64xf32> to vector<32x8xf32>
    %298 = vector.extract_strided_slice %239 {offsets = [0, 56], sizes = [32, 8], strides = [1, 1]} : vector<32x64xf32> to vector<32x8xf32>
    %cst_134 = arith.constant dense<0.000000e+00> : vector<32x32xf32>
    %299 = tpu.matmul %296, %297, %cst_134 {dimension_numbers = #tpu.dot_dimension_numbers<[1], [1], [0], [0], [0, 0, 1, 0], [], []>} : vector<32x8xf32>, vector<32x8xf32>, vector<32x32xf32> -> vector<32x32xf32>
    %300 = arith.addf %299, %233 : vector<32x32xf32>
    %cst_135 = arith.constant dense<0xFF800000> : vector<32xf32>
    %301 = vector.multi_reduction <maximumf>, %300, %cst_135 [1] : vector<32x32xf32> to vector<32xf32>
    %302 = vector.shape_cast %301 : vector<32xf32> to vector<32x1xf32>
    %303 = vector.broadcast %302 : vector<32x1xf32> to vector<32x32xf32>
    %304 = arith.subf %300, %303 : vector<32x32xf32>
    %305 = math.exp %304 : vector<32x32xf32>
    %cst_136 = arith.constant dense<0.000000e+00> : vector<32xf32>
    %306 = vector.multi_reduction <add>, %305, %cst_136 [1] : vector<32x32xf32> to vector<32xf32>
    %307 = vector.shape_cast %306 : vector<32xf32> to vector<32x1xf32>
    %308 = tpu.reciprocal %307 {approx = true} : vector<32x1xf32> -> vector<32x1xf32>
    %309 = vector.broadcast %308 : vector<32x1xf32> to vector<32x32xf32>
    %310 = arith.mulf %305, %309 : vector<32x32xf32>
    %cst_137 = arith.constant dense<0.000000e+00> : vector<32x8xf32>
    %311 = tpu.matmul %310, %298, %cst_137 {dimension_numbers = #tpu.dot_dimension_numbers<[1], [0], [0], [1], [0, 0, 1, 1], [], []>} : vector<32x32xf32>, vector<32x8xf32>, vector<32x8xf32> -> vector<32x8xf32>
    %312 = vector.extract_strided_slice %230 {offsets = [24, 0], sizes = [8, 32], strides = [1, 1]} : vector<32x32xf32> to vector<8x32xf32>
    %cst_138 = arith.constant dense<0.000000e+00> : vector<32x32xf32>
    %313 = tpu.matmul %311, %312, %cst_138 {dimension_numbers = #tpu.dot_dimension_numbers<[1], [0], [0], [1], [0, 0, 1, 1], [], []>} : vector<32x8xf32>, vector<8x32xf32>, vector<32x32xf32> -> vector<32x32xf32>
    %314 = arith.addf %295, %313 : vector<32x32xf32>
    %315 = vector.broadcast %232 : vector<1x32xf32> to vector<32x32xf32>
    %316 = arith.addf %314, %315 : vector<32x32xf32>
    %c1_139 = arith.constant 1 : index
    %c0_140 = arith.constant 0 : index
    %c0_141 = arith.constant 0 : index
    %317 = vector.load %arg12[%c1_139, %c0_140, %c0_141] : memref<3x1x32xf32, #tpu.memory_space<vmem>>, vector<1x1x32xf32>
    %318 = vector.shape_cast %317 : vector<1x1x32xf32> to vector<1x32xf32>
    %c1_142 = arith.constant 1 : index
    %c0_143 = arith.constant 0 : index
    %c0_144 = arith.constant 0 : index
    %319 = vector.load %arg13[%c1_142, %c0_143, %c0_144] : memref<3x1x32xf32, #tpu.memory_space<vmem>>, vector<1x1x32xf32>
    %320 = vector.shape_cast %319 : vector<1x1x32xf32> to vector<1x32xf32>
    %321 = arith.addf %220, %316 : vector<32x32xf32>
    %cst_145 = arith.constant dense<0.000000e+00> : vector<32xf32>
    %322 = vector.multi_reduction <add>, %321, %cst_145 [1] : vector<32x32xf32> to vector<32xf32>
    %323 = vector.shape_cast %322 : vector<32xf32> to vector<32x1xf32>
    %cst_146 = arith.constant 3.200000e+01 : f32
    %324 = vector.broadcast %cst_146 : f32 to vector<32x1xf32>
    %325 = arith.divf %323, %324 : vector<32x1xf32>
    %326 = vector.broadcast %325 : vector<32x1xf32> to vector<32x32xf32>
    %327 = arith.subf %321, %326 : vector<32x32xf32>
    %328 = arith.mulf %327, %327 : vector<32x32xf32>
    %cst_147 = arith.constant dense<0.000000e+00> : vector<32xf32>
    %329 = vector.multi_reduction <add>, %328, %cst_147 [1] : vector<32x32xf32> to vector<32xf32>
    %330 = vector.shape_cast %329 : vector<32xf32> to vector<32x1xf32>
    %cst_148 = arith.constant 3.200000e+01 : f32
    %331 = vector.broadcast %cst_148 : f32 to vector<32x1xf32>
    %332 = arith.divf %330, %331 : vector<32x1xf32>
    %cst_149 = arith.constant 9.99999974E-6 : f32
    %333 = vector.broadcast %cst_149 : f32 to vector<32x1xf32>
    %334 = arith.addf %332, %333 : vector<32x1xf32>
    %335 = math.rsqrt %334 : vector<32x1xf32>
    %336 = vector.broadcast %335 : vector<32x1xf32> to vector<32x32xf32>
    %337 = arith.mulf %327, %336 : vector<32x32xf32>
    %338 = vector.broadcast %318 : vector<1x32xf32> to vector<32x32xf32>
    %339 = arith.mulf %337, %338 : vector<32x32xf32>
    %340 = vector.broadcast %320 : vector<1x32xf32> to vector<32x32xf32>
    %341 = arith.addf %339, %340 : vector<32x32xf32>
    %c0_150 = arith.constant 0 : index
    %c0_151 = arith.constant 0 : index
    %342 = vector.load %arg14[%c0_150, %c0_151] : memref<32x64xf32, #tpu.memory_space<vmem>>, vector<32x64xf32>
    %cst_152 = arith.constant dense<0.000000e+00> : vector<32x64xf32>
    %343 = tpu.matmul %341, %342, %cst_152 {dimension_numbers = #tpu.dot_dimension_numbers<[1], [0], [0], [1], [0, 0, 1, 1], [], []>} : vector<32x32xf32>, vector<32x64xf32>, vector<32x64xf32> -> vector<32x64xf32>
    %c0_153 = arith.constant 0 : index
    %c0_154 = arith.constant 0 : index
    %344 = vector.load %arg15[%c0_153, %c0_154] : memref<1x64xf32, #tpu.memory_space<vmem>>, vector<1x64xf32>
    %345 = vector.broadcast %344 : vector<1x64xf32> to vector<32x64xf32>
    %346 = arith.addf %343, %345 : vector<32x64xf32>
    %cst_155 = arith.constant 0.000000e+00 : f32
    %347 = vector.broadcast %cst_155 : f32 to vector<32x64xf32>
    %348 = arith.maximumf %346, %347 : vector<32x64xf32>
    %c0_156 = arith.constant 0 : index
    %c0_157 = arith.constant 0 : index
    %349 = vector.load %arg16[%c0_156, %c0_157] : memref<64x32xf32, #tpu.memory_space<vmem>>, vector<64x32xf32>
    %cst_158 = arith.constant dense<0.000000e+00> : vector<32x32xf32>
    %350 = tpu.matmul %348, %349, %cst_158 {dimension_numbers = #tpu.dot_dimension_numbers<[1], [0], [0], [1], [0, 0, 1, 1], [], []>} : vector<32x64xf32>, vector<64x32xf32>, vector<32x32xf32> -> vector<32x32xf32>
    %c0_159 = arith.constant 0 : index
    %c0_160 = arith.constant 0 : index
    %351 = vector.load %arg17[%c0_159, %c0_160] : memref<1x32xf32, #tpu.memory_space<vmem>>, vector<1x32xf32>
    %352 = vector.broadcast %351 : vector<1x32xf32> to vector<32x32xf32>
    %353 = arith.addf %350, %352 : vector<32x32xf32>
    %c2_161 = arith.constant 2 : index
    %c0_162 = arith.constant 0 : index
    %c0_163 = arith.constant 0 : index
    %354 = vector.load %arg12[%c2_161, %c0_162, %c0_163] : memref<3x1x32xf32, #tpu.memory_space<vmem>>, vector<1x1x32xf32>
    %355 = vector.shape_cast %354 : vector<1x1x32xf32> to vector<1x32xf32>
    %c2_164 = arith.constant 2 : index
    %c0_165 = arith.constant 0 : index
    %c0_166 = arith.constant 0 : index
    %356 = vector.load %arg13[%c2_164, %c0_165, %c0_166] : memref<3x1x32xf32, #tpu.memory_space<vmem>>, vector<1x1x32xf32>
    %357 = vector.shape_cast %356 : vector<1x1x32xf32> to vector<1x32xf32>
    %358 = arith.addf %341, %353 : vector<32x32xf32>
    %cst_167 = arith.constant dense<0.000000e+00> : vector<32xf32>
    %359 = vector.multi_reduction <add>, %358, %cst_167 [1] : vector<32x32xf32> to vector<32xf32>
    %360 = vector.shape_cast %359 : vector<32xf32> to vector<32x1xf32>
    %cst_168 = arith.constant 3.200000e+01 : f32
    %361 = vector.broadcast %cst_168 : f32 to vector<32x1xf32>
    %362 = arith.divf %360, %361 : vector<32x1xf32>
    %363 = vector.broadcast %362 : vector<32x1xf32> to vector<32x32xf32>
    %364 = arith.subf %358, %363 : vector<32x32xf32>
    %365 = arith.mulf %364, %364 : vector<32x32xf32>
    %cst_169 = arith.constant dense<0.000000e+00> : vector<32xf32>
    %366 = vector.multi_reduction <add>, %365, %cst_169 [1] : vector<32x32xf32> to vector<32xf32>
    %367 = vector.shape_cast %366 : vector<32xf32> to vector<32x1xf32>
    %cst_170 = arith.constant 3.200000e+01 : f32
    %368 = vector.broadcast %cst_170 : f32 to vector<32x1xf32>
    %369 = arith.divf %367, %368 : vector<32x1xf32>
    %cst_171 = arith.constant 9.99999974E-6 : f32
    %370 = vector.broadcast %cst_171 : f32 to vector<32x1xf32>
    %371 = arith.addf %369, %370 : vector<32x1xf32>
    %372 = math.rsqrt %371 : vector<32x1xf32>
    %373 = vector.broadcast %372 : vector<32x1xf32> to vector<32x32xf32>
    %374 = arith.mulf %364, %373 : vector<32x32xf32>
    %375 = vector.broadcast %355 : vector<1x32xf32> to vector<32x32xf32>
    %376 = arith.mulf %374, %375 : vector<32x32xf32>
    %377 = vector.broadcast %357 : vector<1x32xf32> to vector<32x32xf32>
    %378 = arith.addf %376, %377 : vector<32x32xf32>
    %c0_172 = arith.constant 0 : index
    %c0_173 = arith.constant 0 : index
    %c0_174 = arith.constant 0 : index
    %379 = vector.load %arg18[%c0_172, %c0_173, %c0_174] : memref<1x32x32xf32, #tpu.memory_space<vmem>>, vector<1x32x32xf32>
    %380 = vector.shape_cast %379 : vector<1x32x32xf32> to vector<32x32xf32>
    %381 = vector.shape_cast %378 : vector<32x32xf32> to vector<1x32x32xf32>
    tpu.vector_store %arg18[%c0_172, %c0_173, %c0_174], %381 {strides = array<i32>} : memref<1x32x32xf32, #tpu.memory_space<vmem>>, vector<1x32x32xf32>,
    return
  }
  func.func @transform_0(%arg0: i32) -> (i32, i32, i32) {
    %c0_i32 = arith.constant 0 : i32
    %c0_i32_0 = arith.constant 0 : i32
    %c0_i32_1 = arith.constant 0 : i32
    return %arg0, %c0_i32, %c0_i32_0 : i32, i32, i32
  }
  func.func @transform_1(%arg0: i32) -> (i32, i32, i32) {
    %c0_i32 = arith.constant 0 : i32
    %c0_i32_0 = arith.constant 0 : i32
    %c0_i32_1 = arith.constant 0 : i32
    return %arg0, %c0_i32, %c0_i32_0 : i32, i32, i32
  }
  func.func @transform_2(%arg0: i32) -> (i32, i32) {
    %c0_i32 = arith.constant 0 : i32
    %c0_i32_0 = arith.constant 0 : i32
    %c0_i32_1 = arith.constant 0 : i32
    return %c0_i32, %c0_i32_0 : i32, i32
  }
  func.func @transform_3(%arg0: i32) -> (i32, i32) {
    %c0_i32 = arith.constant 0 : i32
    %c0_i32_0 = arith.constant 0 : i32
    %c0_i32_1 = arith.constant 0 : i32
    return %c0_i32, %c0_i32_0 : i32, i32
  }
  func.func @transform_4(%arg0: i32) -> (i32, i32) {
    %c0_i32 = arith.constant 0 : i32
    %c0_i32_0 = arith.constant 0 : i32
    %c0_i32_1 = arith.constant 0 : i32
    return %c0_i32, %c0_i32_0 : i32, i32
  }
  func.func @transform_5(%arg0: i32) -> (i32, i32, i32) {
    %c0_i32 = arith.constant 0 : i32
    %c0_i32_0 = arith.constant 0 : i32
    %c0_i32_1 = arith.constant 0 : i32
    %c0_i32_2 = arith.constant 0 : i32
    return %c0_i32, %c0_i32_0, %c0_i32_1 : i32, i32, i32
  }
  func.func @transform_6(%arg0: i32) -> (i32, i32, i32) {
    %c0_i32 = arith.constant 0 : i32
    %c0_i32_0 = arith.constant 0 : i32
    %c0_i32_1 = arith.constant 0 : i32
    %c0_i32_2 = arith.constant 0 : i32
    return %c0_i32, %c0_i32_0, %c0_i32_1 : i32, i32, i32
  }
  func.func @transform_7(%arg0: i32) -> (i32, i32, i32) {
    %c0_i32 = arith.constant 0 : i32
    %c0_i32_0 = arith.constant 0 : i32
    %c0_i32_1 = arith.constant 0 : i32
    %c0_i32_2 = arith.constant 0 : i32
    return %c0_i32, %c0_i32_0, %c0_i32_1 : i32, i32, i32
  }
  func.func @transform_8(%arg0: i32) -> (i32, i32, i32) {
    %c0_i32 = arith.constant 0 : i32
    %c0_i32_0 = arith.constant 0 : i32
    %c0_i32_1 = arith.constant 0 : i32
    %c0_i32_2 = arith.constant 0 : i32
    return %c0_i32, %c0_i32_0, %c0_i32_1 : i32, i32, i32
  }
  func.func @transform_9(%arg0: i32) -> (i32, i32, i32) {
    %c0_i32 = arith.constant 0 : i32
    %c0_i32_0 = arith.constant 0 : i32
    %c0_i32_1 = arith.constant 0 : i32
    %c0_i32_2 = arith.constant 0 : i32
    return %c0_i32, %c0_i32_0, %c0_i32_1 : i32, i32, i32
  }
  func.func @transform_10(%arg0: i32) -> (i32, i32, i32) {
    %c0_i32 = arith.constant 0 : i32
    %c0_i32_0 = arith.constant 0 : i32
    %c0_i32_1 = arith.constant 0 : i32
    %c0_i32_2 = arith.constant 0 : i32
    return %c0_i32, %c0_i32_0, %c0_i32_1 : i32, i32, i32
  }
  func.func @transform_11(%arg0: i32) -> (i32, i32, i32) {
    %c0_i32 = arith.constant 0 : i32
    %c0_i32_0 = arith.constant 0 : i32
    %c0_i32_1 = arith.constant 0 : i32
    %c0_i32_2 = arith.constant 0 : i32
    return %c0_i32, %c0_i32_0, %c0_i32_1 : i32, i32, i32
  }
  func.func @transform_12(%arg0: i32) -> (i32, i32, i32) {
    %c0_i32 = arith.constant 0 : i32
    %c0_i32_0 = arith.constant 0 : i32
    %c0_i32_1 = arith.constant 0 : i32
    %c0_i32_2 = arith.constant 0 : i32
    return %c0_i32, %c0_i32_0, %c0_i32_1 : i32, i32, i32
  }
  func.func @transform_13(%arg0: i32) -> (i32, i32) {
    %c0_i32 = arith.constant 0 : i32
    %c0_i32_0 = arith.constant 0 : i32
    %c0_i32_1 = arith.constant 0 : i32
    return %c0_i32, %c0_i32_0 : i32, i32
  }
  func.func @transform_14(%arg0: i32) -> (i32, i32) {
    %c0_i32 = arith.constant 0 : i32
    %c0_i32_0 = arith.constant 0 : i32
    %c0_i32_1 = arith.constant 0 : i32
    return %c0_i32, %c0_i32_0 : i32, i32
  }
  func.func @transform_15(%arg0: i32) -> (i32, i32) {
    %c0_i32 = arith.constant 0 : i32
    %c0_i32_0 = arith.constant 0 : i32
    %c0_i32_1 = arith.constant 0 : i32
    return %c0_i32, %c0_i32_0 : i32, i32
  }
  func.func @transform_16(%arg0: i32) -> (i32, i32) {
    %c0_i32 = arith.constant 0 : i32
    %c0_i32_0 = arith.constant 0 : i32
    %c0_i32_1 = arith.constant 0 : i32
    return %c0_i32, %c0_i32_0 : i32, i32
  }
  func.func @transform_17(%arg0: i32) -> (i32, i32, i32) {
    %c0_i32 = arith.constant 0 : i32
    %c0_i32_0 = arith.constant 0 : i32
    %c0_i32_1 = arith.constant 0 : i32
    return %arg0, %c0_i32, %c0_i32_0 : i32, i32, i32
  }
}

</mosaic_0001>

<llo_original>
// kernel: mini_decoder_forward.1
$region0: #{mini_decoder_forward.1}
  #allocation0 [shape = 'u32[]', space=smem, size = 0x4, offset = 0x4, fixed_abs, tag = 'smem constant byte address 0x4 - core index']
  #allocation1 [shape = 'u32[144,128]{1,0:T(1,128)}', space=vmem, size = 0x12000, scoped, tag = 'internal scratch']
  %s0 = inlined_call_operand.vmem [shape: f32[2,32,32], index: 0, kind: input, shape index: {}]
  %s1 = inlined_call_operand.vmem [shape: f32[2,32,32], index: 1, kind: input, shape index: {}]
  %s2 = inlined_call_operand.vmem [shape: f32[32,32], index: 2, kind: input, shape index: {}]
  %s3 = inlined_call_operand.vmem [shape: f32[32,32], index: 3, kind: input, shape index: {}]
  %s4 = inlined_call_operand.vmem [shape: f32[32,32], index: 4, kind: input, shape index: {}]
  %s5 = inlined_call_operand.vmem [shape: f32[3,32,32], index: 5, kind: input, shape index: {}]
  %s6 = inlined_call_operand.vmem [shape: f32[3,1,32], index: 6, kind: input, shape index: {}]
  %s7 = inlined_call_operand.vmem [shape: f32[3,32,64], index: 7, kind: input, shape index: {}]
  %s8 = inlined_call_operand.vmem [shape: f32[3,1,64], index: 8, kind: input, shape index: {}]
  %s9 = inlined_call_operand.vmem [shape: f32[3,32,32], index: 9, kind: input, shape index: {}]
  %s10 = inlined_call_operand.vmem [shape: f32[3,1,32], index: 10, kind: input, shape index: {}]
  %s11 = inlined_call_operand.vmem [shape: f32[3,1,32], index: 11, kind: input, shape index: {}]
  %s12 = inlined_call_operand.vmem [shape: f32[3,1,32], index: 12, kind: input, shape index: {}]
  %s13 = inlined_call_operand.vmem [shape: f32[32,64], index: 13, kind: input, shape index: {}]
  %s14 = inlined_call_operand.vmem [shape: f32[1,64], index: 14, kind: input, shape index: {}]
  %s15 = inlined_call_operand.vmem [shape: f32[64,32], index: 15, kind: input, shape index: {}]
  %s16 = inlined_call_operand.vmem [shape: f32[1,32], index: 16, kind: input, shape index: {}]
  %s17 = inlined_call_operand.hbm [shape: f32[2,32,32], index: 17, kind: output, shape index: {}]
  %s18 = sld [smem:[#allocation0]]
  $region101: #{mini_decoder_forward.1} parent=0
    _
  %s20 = ssub.s32 1, %s18
  %s21 = scalar_select 0, %s20, %s18
  $region1: #{mini_decoder_forward.1} parent=0
    #allocation2 [shape = 'u8[32768]{0}', space=vmem, size = 0x8000, scoped, tag = 'output window, operand 0']
    #allocation3 [shape = 's32[2]{0}', space=sflag, size = 0x8, scoped, tag = 'scoped memory for mini_decoder_forward.1']
    %22 = vsyncpa [#allocation3], 0
    %s23 = scalar_lea.sflag [#allocation3], 1
    %24 = vsyncpa %s23, 0
    loop: start=0, step=1, limit=4
    $region2: #{mini_decoder_forward.1} parent=1 // loop_pre_header
      _
    $region3: #{mini_decoder_forward.1} parent=1 // loop_header
      %s26 = sphi 0, %s30
      %p27 = scmp.ge.s32.totalorder %s26, 4
      %s36 = sphi 0, %s38
      %s39 = sphi 0, %s36
      %s40 = sphi 0, %s39
      %s56 = sphi 0, %s40
      %s62 = sphi 0, %s64
      %s65 = sphi 0, %s62
      %s66 = sphi 0, %s65
      %s82 = sphi 0, %s66
      %s86 = sphi 0, %s86
      %s88 = sphi 0, %s86
      %s89 = sphi 0, %s88
      %s103 = sphi 0, %s89
      %s107 = sphi 0, %s107
      %s109 = sphi 0, %s107
      %s110 = sphi 0, %s109
      %s124 = sphi 0, %s110
      %s128 = sphi 0, %s128
      %s130 = sphi 0, %s128
      %s131 = sphi 0, %s130
      %s145 = sphi 0, %s131
      %s149 = sphi 0, %s149
      %s151 = sphi 0, %s149
      %s152 = sphi 0, %s151
      %s166 = sphi 0, %s152
      %s170 = sphi 0, %s170
      %s172 = sphi 0, %s170
      %s173 = sphi 0, %s172
      %s187 = sphi 0, %s173
      %s191 = sphi 0, %s191
      %s193 = sphi 0, %s191
      %s194 = sphi 0, %s193
      %s208 = sphi 0, %s194
      %s212 = sphi 0, %s212
      %s214 = sphi 0, %s212
      %s215 = sphi 0, %s214
      %s229 = sphi 0, %s215
      %s233 = sphi 0, %s233
      %s235 = sphi 0, %s233
      %s236 = sphi 0, %s235
      %s250 = sphi 0, %s236
      %s254 = sphi 0, %s254
      %s256 = sphi 0, %s254
      %s257 = sphi 0, %s256
      %s271 = sphi 0, %s257
      %s275 = sphi 0, %s275
      %s277 = sphi 0, %s275
      %s278 = sphi 0, %s277
      %s292 = sphi 0, %s278
      %s296 = sphi 0, %s296
      %s298 = sphi 0, %s296
      %s299 = sphi 0, %s298
      %s313 = sphi 0, %s299
      %s317 = sphi 0, %s317
      %s319 = sphi 0, %s317
      %s320 = sphi 0, %s319
      %s334 = sphi 0, %s320
      %s338 = sphi 0, %s338
      %s340 = sphi 0, %s338
      %s341 = sphi 0, %s340
      %s355 = sphi 0, %s341
      %s359 = sphi 0, %s359
      %s361 = sphi 0, %s359
      %s362 = sphi 0, %s361
      %s376 = sphi 0, %s362
      %s380 = sphi 0, %s380
      %s382 = sphi 0, %s380
      %s383 = sphi 0, %s382
      %s397 = sphi 0, %s383
      %s403 = sphi 0, %s405
      %s406 = sphi 0, %s403
      %s407 = sphi 0, %s406
      %s423 = sphi 0, %s407
    $region4: #{mini_decoder_forward.1} parent=1 // loop_header_branch
      %29 = sbr.rel (%p27) target = $region8
    $region5: #{mini_decoder_forward.1} parent=1 // loop_body
      %s31 = ssub.s32 %s26, 1
      %s32 = ssub.s32 %s26, 2
      %s33 = sadd.s32 %s26, 1
      %s34 = ssub.s32 %s26, %s33
      %p35 = scmp.eq.s32.totalorder %s34, 0
      %s37 = sadd.s32 %s36, 1
      %s38 = scalar_select %p35, %s36, %s37
      %p41 = pneg %p35
      %p42 = scmp.eq.s32.totalorder %s26, 1
      %p43 = por %p41, %p42
      %p44 = scmp.ne.s32.totalorder %s36, %s39
      %p45 = scmp.eq.s32.totalorder %s26, 0
      %p46 = por %p44, %p45
      %p47 = scmp.ne.s32.totalorder %s36, %s39
      %p48 = scmp.eq.s32.totalorder %s31, 1
      %p49 = por %p47, %p48
      %p50 = scmp.ne.s32.totalorder %s39, %s40
      %p51 = scmp.eq.s32.totalorder %s31, 0
      %p52 = por %p50, %p51
      %p53 = scmp.ne.s32.totalorder %s39, %s40
      %p54 = scmp.eq.s32.totalorder %s32, 1
      %p55 = por %p53, %p54
      %p57 = scmp.ne.s32.totalorder %s40, %s56
      %p58 = scmp.eq.s32.totalorder %s32, 0
      %p59 = por %p57, %p58
      %s60 = ssub.s32 %s26, %s33
      %p61 = scmp.eq.s32.totalorder %s60, 0
      %s63 = sadd.s32 %s62, 1
      %s64 = scalar_select %p61, %s62, %s63
      %p67 = pneg %p61
      %p68 = scmp.eq.s32.totalorder %s26, 1
      %p69 = por %p67, %p68
      %p70 = scmp.ne.s32.totalorder %s62, %s65
      %p71 = scmp.eq.s32.totalorder %s26, 0
      %p72 = por %p70, %p71
      %p73 = scmp.ne.s32.totalorder %s62, %s65
      %p74 = scmp.eq.s32.totalorder %s31, 1
      %p75 = por %p73, %p74
      %p76 = scmp.ne.s32.totalorder %s65, %s66
      %p77 = scmp.eq.s32.totalorder %s31, 0
      %p78 = por %p76, %p77
      %p79 = scmp.ne.s32.totalorder %s65, %s66
      %p80 = scmp.eq.s32.totalorder %s32, 1
      %p81 = por %p79, %p80
      %p83 = scmp.ne.s32.totalorder %s66, %s82
      %p84 = scmp.eq.s32.totalorder %s32, 0
      %p85 = por %p83, %p84
      %s87 = sadd.s32 %s86, 1
      %p90 = scmp.eq.s32.totalorder %s26, 1
      %p91 = scmp.ne.s32.totalorder %s86, %s88
      %p92 = scmp.eq.s32.totalorder %s26, 0
      %p93 = por %p91, %p92
      %p94 = scmp.ne.s32.totalorder %s86, %s88
      %p95 = scmp.eq.s32.totalorder %s31, 1
      %p96 = por %p94, %p95
      %p97 = scmp.ne.s32.totalorder %s88, %s89
      %p98 = scmp.eq.s32.totalorder %s31, 0
      %p99 = por %p97, %p98
      %p100 = scmp.ne.s32.totalorder %s88, %s89
      %p101 = scmp.eq.s32.totalorder %s32, 1
      %p102 = por %p100, %p101
      %p104 = scmp.ne.s32.totalorder %s89, %s103
      %p105 = scmp.eq.s32.totalorder %s32, 0
      %p106 = por %p104, %p105
      %s108 = sadd.s32 %s107, 1
      %p111 = scmp.eq.s32.totalorder %s26, 1
      %p112 = scmp.ne.s32.totalorder %s107, %s109
      %p113 = scmp.eq.s32.totalorder %s26, 0
      %p114 = por %p112, %p113
      %p115 = scmp.ne.s32.totalorder %s107, %s109
      %p116 = scmp.eq.s32.totalorder %s31, 1
      %p117 = por %p115, %p116
      %p118 = scmp.ne.s32.totalorder %s109, %s110
      %p119 = scmp.eq.s32.totalorder %s31, 0
      %p120 = por %p118, %p119
      %p121 = scmp.ne.s32.totalorder %s109, %s110
      %p122 = scmp.eq.s32.totalorder %s32, 1
      %p123 = por %p121, %p122
      %p125 = scmp.ne.s32.totalorder %s110, %s124
      %p126 = scmp.eq.s32.totalorder %s32, 0
      %p127 = por %p125, %p126
      %s129 = sadd.s32 %s128, 1
      %p132 = scmp.eq.s32.totalorder %s26, 1
      %p133 = scmp.ne.s32.totalorder %s128, %s130
      %p134 = scmp.eq.s32.totalorder %s26, 0
      %p135 = por %p133, %p134
      %p136 = scmp.ne.s32.totalorder %s128, %s130
      %p137 = scmp.eq.s32.totalorder %s31, 1
      %p138 = por %p136, %p137
      %p139 = scmp.ne.s32.totalorder %s130, %s131
      %p140 = scmp.eq.s32.totalorder %s31, 0
      %p141 = por %p139, %p140
      %p142 = scmp.ne.s32.totalorder %s130, %s131
      %p143 = scmp.eq.s32.totalorder %s32, 1
      %p144 = por %p142, %p143
      %p146 = scmp.ne.s32.totalorder %s131, %s145
      %p147 = scmp.eq.s32.totalorder %s32, 0
      %p148 = por %p146, %p147
      %s150 = sadd.s32 %s149, 1
      %p153 = scmp.eq.s32.totalorder %s26, 1
      %p154 = scmp.ne.s32.totalorder %s149, %s151
      %p155 = scmp.eq.s32.totalorder %s26, 0
      %p156 = por %p154, %p155
      %p157 = scmp.ne.s32.totalorder %s149, %s151
      %p158 = scmp.eq.s32.totalorder %s31, 1
      %p159 = por %p157, %p158
      %p160 = scmp.ne.s32.totalorder %s151, %s152
      %p161 = scmp.eq.s32.totalorder %s31, 0
      %p162 = por %p160, %p161
      %p163 = scmp.ne.s32.totalorder %s151, %s152
      %p164 = scmp.eq.s32.totalorder %s32, 1
      %p165 = por %p163, %p164
      %p167 = scmp.ne.s32.totalorder %s152, %s166
      %p168 = scmp.eq.s32.totalorder %s32, 0
      %p169 = por %p167, %p168
      %s171 = sadd.s32 %s170, 1
      %p174 = scmp.eq.s32.totalorder %s26, 1
      %p175 = scmp.ne.s32.totalorder %s170, %s172
      %p176 = scmp.eq.s32.totalorder %s26, 0
      %p177 = por %p175, %p176
      %p178 = scmp.ne.s32.totalorder %s170, %s172
      %p179 = scmp.eq.s32.totalorder %s31, 1
      %p180 = por %p178, %p179
      %p181 = scmp.ne.s32.totalorder %s172, %s173
      %p182 = scmp.eq.s32.totalorder %s31, 0
      %p183 = por %p181, %p182
      %p184 = scmp.ne.s32.totalorder %s172, %s173
      %p185 = scmp.eq.s32.totalorder %s32, 1
      %p186 = por %p184, %p185
      %p188 = scmp.ne.s32.totalorder %s173, %s187
      %p189 = scmp.eq.s32.totalorder %s32, 0
      %p190 = por %p188, %p189
      %s192 = sadd.s32 %s191, 1
      %p195 = scmp.eq.s32.totalorder %s26, 1
      %p196 = scmp.ne.s32.totalorder %s191, %s193
      %p197 = scmp.eq.s32.totalorder %s26, 0
      %p198 = por %p196, %p197
      %p199 = scmp.ne.s32.totalorder %s191, %s193
      %p200 = scmp.eq.s32.totalorder %s31, 1
      %p201 = por %p199, %p200
      %p202 = scmp.ne.s32.totalorder %s193, %s194
      %p203 = scmp.eq.s32.totalorder %s31, 0
      %p204 = por %p202, %p203
      %p205 = scmp.ne.s32.totalorder %s193, %s194
      %p206 = scmp.eq.s32.totalorder %s32, 1
      %p207 = por %p205, %p206
      %p209 = scmp.ne.s32.totalorder %s194, %s208
      %p210 = scmp.eq.s32.totalorder %s32, 0
      %p211 = por %p209, %p210
      %s213 = sadd.s32 %s212, 1
      %p216 = scmp.eq.s32.totalorder %s26, 1
      %p217 = scmp.ne.s32.totalorder %s212, %s214
      %p218 = scmp.eq.s32.totalorder %s26, 0
      %p219 = por %p217, %p218
      %p220 = scmp.ne.s32.totalorder %s212, %s214
      %p221 = scmp.eq.s32.totalorder %s31, 1
      %p222 = por %p220, %p221
      %p223 = scmp.ne.s32.totalorder %s214, %s215
      %p224 = scmp.eq.s32.totalorder %s31, 0
      %p225 = por %p223, %p224
      %p226 = scmp.ne.s32.totalorder %s214, %s215
      %p227 = scmp.eq.s32.totalorder %s32, 1
      %p228 = por %p226, %p227
      %p230 = scmp.ne.s32.totalorder %s215, %s229
      %p231 = scmp.eq.s32.totalorder %s32, 0
      %p232 = por %p230, %p231
      %s234 = sadd.s32 %s233, 1
      %p237 = scmp.eq.s32.totalorder %s26, 1
      %p238 = scmp.ne.s32.totalorder %s233, %s235
      %p239 = scmp.eq.s32.totalorder %s26, 0
      %p240 = por %p238, %p239
      %p241 = scmp.ne.s32.totalorder %s233, %s235
      %p242 = scmp.eq.s32.totalorder %s31, 1
      %p243 = por %p241, %p242
      %p244 = scmp.ne.s32.totalorder %s235, %s236
      %p245 = scmp.eq.s32.totalorder %s31, 0
      %p246 = por %p244, %p245
      %p247 = scmp.ne.s32.totalorder %s235, %s236
      %p248 = scmp.eq.s32.totalorder %s32, 1
      %p249 = por %p247, %p248
      %p251 = scmp.ne.s32.totalorder %s236, %s250
      %p252 = scmp.eq.s32.totalorder %s32, 0
      %p253 = por %p251, %p252
      %s255 = sadd.s32 %s254, 1
      %p258 = scmp.eq.s32.totalorder %s26, 1
      %p259 = scmp.ne.s32.totalorder %s254, %s256
      %p260 = scmp.eq.s32.totalorder %s26, 0
      %p261 = por %p259, %p260
      %p262 = scmp.ne.s32.totalorder %s254, %s256
      %p263 = scmp.eq.s32.totalorder %s31, 1
      %p264 = por %p262, %p263
      %p265 = scmp.ne.s32.totalorder %s256, %s257
      %p266 = scmp.eq.s32.totalorder %s31, 0
      %p267 = por %p265, %p266
      %p268 = scmp.ne.s32.totalorder %s256, %s257
      %p269 = scmp.eq.s32.totalorder %s32, 1
      %p270 = por %p268, %p269
      %p272 = scmp.ne.s32.totalorder %s257, %s271
      %p273 = scmp.eq.s32.totalorder %s32, 0
      %p274 = por %p272, %p273
      %s276 = sadd.s32 %s275, 1
      %p279 = scmp.eq.s32.totalorder %s26, 1
      %p280 = scmp.ne.s32.totalorder %s275, %s277
      %p281 = scmp.eq.s32.totalorder %s26, 0
      %p282 = por %p280, %p281
      %p283 = scmp.ne.s32.totalorder %s275, %s277
      %p284 = scmp.eq.s32.totalorder %s31, 1
      %p285 = por %p283, %p284
      %p286 = scmp.ne.s32.totalorder %s277, %s278
      %p287 = scmp.eq.s32.totalorder %s31, 0
      %p288 = por %p286, %p287
      %p289 = scmp.ne.s32.totalorder %s277, %s278
      %p290 = scmp.eq.s32.totalorder %s32, 1
      %p291 = por %p289, %p290
      %p293 = scmp.ne.s32.totalorder %s278, %s292
      %p294 = scmp.eq.s32.totalorder %s32, 0
      %p295 = por %p293, %p294
      %s297 = sadd.s32 %s296, 1
      %p300 = scmp.eq.s32.totalorder %s26, 1
      %p301 = scmp.ne.s32.totalorder %s296, %s298
      %p302 = scmp.eq.s32.totalorder %s26, 0
      %p303 = por %p301, %p302
      %p304 = scmp.ne.s32.totalorder %s296, %s298
      %p305 = scmp.eq.s32.totalorder %s31, 1
      %p306 = por %p304, %p305
      %p307 = scmp.ne.s32.totalorder %s298, %s299
      %p308 = scmp.eq.s32.totalorder %s31, 0
      %p309 = por %p307, %p308
      %p310 = scmp.ne.s32.totalorder %s298, %s299
      %p311 = scmp.eq.s32.totalorder %s32, 1
      %p312 = por %p310, %p311
      %p314 = scmp.ne.s32.totalorder %s299, %s313
      %p315 = scmp.eq.s32.totalorder %s32, 0
      %p316 = por %p314, %p315
      %s318 = sadd.s32 %s317, 1
      %p321 = scmp.eq.s32.totalorder %s26, 1
      %p322 = scmp.ne.s32.totalorder %s317, %s319
      %p323 = scmp.eq.s32.totalorder %s26, 0
      %p324 = por %p322, %p323
      %p325 = scmp.ne.s32.totalorder %s317, %s319
      %p326 = scmp.eq.s32.totalorder %s31, 1
      %p327 = por %p325, %p326
      %p328 = scmp.ne.s32.totalorder %s319, %s320
      %p329 = scmp.eq.s32.totalorder %s31, 0
      %p330 = por %p328, %p329
      %p331 = scmp.ne.s32.totalorder %s319, %s320
      %p332 = scmp.eq.s32.totalorder %s32, 1
      %p333 = por %p331, %p332
      %p335 = scmp.ne.s32.totalorder %s320, %s334
      %p336 = scmp.eq.s32.totalorder %s32, 0
      %p337 = por %p335, %p336
      %s339 = sadd.s32 %s338, 1
      %p342 = scmp.eq.s32.totalorder %s26, 1
      %p343 = scmp.ne.s32.totalorder %s338, %s340
      %p344 = scmp.eq.s32.totalorder %s26, 0
      %p345 = por %p343, %p344
      %p346 = scmp.ne.s32.totalorder %s338, %s340
      %p347 = scmp.eq.s32.totalorder %s31, 1
      %p348 = por %p346, %p347
      %p349 = scmp.ne.s32.totalorder %s340, %s341
      %p350 = scmp.eq.s32.totalorder %s31, 0
      %p351 = por %p349, %p350
      %p352 = scmp.ne.s32.totalorder %s340, %s341
      %p353 = scmp.eq.s32.totalorder %s32, 1
      %p354 = por %p352, %p353
      %p356 = scmp.ne.s32.totalorder %s341, %s355
      %p357 = scmp.eq.s32.totalorder %s32, 0
      %p358 = por %p356, %p357
      %s360 = sadd.s32 %s359, 1
      %p363 = scmp.eq.s32.totalorder %s26, 1
      %p364 = scmp.ne.s32.totalorder %s359, %s361
      %p365 = scmp.eq.s32.totalorder %s26, 0
      %p366 = por %p364, %p365
      %p367 = scmp.ne.s32.totalorder %s359, %s361
      %p368 = scmp.eq.s32.totalorder %s31, 1
      %p369 = por %p367, %p368
      %p370 = scmp.ne.s32.totalorder %s361, %s362
      %p371 = scmp.eq.s32.totalorder %s31, 0
      %p372 = por %p370, %p371
      %p373 = scmp.ne.s32.totalorder %s361, %s362
      %p374 = scmp.eq.s32.totalorder %s32, 1
      %p375 = por %p373, %p374
      %p377 = scmp.ne.s32.totalorder %s362, %s376
      %p378 = scmp.eq.s32.totalorder %s32, 0
      %p379 = por %p377, %p378
      %s381 = sadd.s32 %s380, 1
      %p384 = scmp.eq.s32.totalorder %s26, 1
      %p385 = scmp.ne.s32.totalorder %s380, %s382
      %p386 = scmp.eq.s32.totalorder %s26, 0
      %p387 = por %p385, %p386
      %p388 = scmp.ne.s32.totalorder %s380, %s382
      %p389 = scmp.eq.s32.totalorder %s31, 1
      %p390 = por %p388, %p389
      %p391 = scmp.ne.s32.totalorder %s382, %s383
      %p392 = scmp.eq.s32.totalorder %s31, 0
      %p393 = por %p391, %p392
      %p394 = scmp.ne.s32.totalorder %s382, %s383
      %p395 = scmp.eq.s32.totalorder %s32, 1
      %p396 = por %p394, %p395
      %p398 = scmp.ne.s32.totalorder %s383, %s397
      %p399 = scmp.eq.s32.totalorder %s32, 0
      %p400 = por %p398, %p399
      %s401 = ssub.s32 %s26, %s33
      %p402 = scmp.eq.s32.totalorder %s401, 0
      %s404 = sadd.s32 %s403, 1
      %s405 = scalar_select %p402, %s403, %s404
      %p408 = pneg %p402
      %p409 = scmp.eq.s32.totalorder %s26, 1
      %p410 = por %p408, %p409
      %p411 = scmp.ne.s32.totalorder %s403, %s406
      %p412 = scmp.eq.s32.totalorder %s26, 0
      %p413 = por %p411, %p412
      %p414 = scmp.ne.s32.totalorder %s403, %s406
      %p415 = scmp.eq.s32.totalorder %s31, 1
      %p416 = por %p414, %p415
      %p417 = scmp.ne.s32.totalorder %s406, %s407
      %p418 = scmp.eq.s32.totalorder %s31, 0
      %p419 = por %p417, %p418
      %p420 = scmp.ne.s32.totalorder %s406, %s407
      %p421 = scmp.eq.s32.totalorder %s32, 1
      %p422 = por %p420, %p421
      %p424 = scmp.ne.s32.totalorder %s407, %s423
      %p425 = scmp.eq.s32.totalorder %s32, 0
      %p426 = por %p424, %p425
      %p427 = scmp.le.s32.totalorder 1, %s26
      %p428 = scmp.lt.s32.totalorder %s26, 3
      %p429 = pnand %p427, %p428
      %p430 = pneg %p429
      // Predicated region
      $region9: #{mini_decoder_forward.1} parent=5 // pred_check
        _
      $region10: #{mini_decoder_forward.1} parent=5 // pred_check_branch
        %432 = sbr.rel (%p429) target = $region12
      $region11: #{mini_decoder_forward.1} parent=5 // pred_region
        %s433 = ssub.s32 %s26, 1
        // Predicated region
        $region13: #{mini_decoder_forward.1} parent=11 // pred_check
          %p434 = pneg %p99
        $region14: #{mini_decoder_forward.1} parent=11 // pred_check_branch
          %436 = sbr.rel (%p434) target = $region16
        $region15: #{mini_decoder_forward.1} parent=11 // pred_region
          _
        $region16: #{mini_decoder_forward.1} parent=11 // pred_fallthru
          _
        // Predicated region
        $region17: #{mini_decoder_forward.1} parent=11 // pred_check
          %p437 = pneg %p120
        $region18: #{mini_decoder_forward.1} parent=11 // pred_check_branch
          %439 = sbr.rel (%p437) target = $region20
        $region19: #{mini_decoder_forward.1} parent=11 // pred_region
          _
        $region20: #{mini_decoder_forward.1} parent=11 // pred_fallthru
          _
        // Predicated region
        $region21: #{mini_decoder_forward.1} parent=11 // pred_check
          %p440 = pneg %p141
        $region22: #{mini_decoder_forward.1} parent=11 // pred_check_branch
          %442 = sbr.rel (%p440) target = $region24
        $region23: #{mini_decoder_forward.1} parent=11 // pred_region
          _
        $region24: #{mini_decoder_forward.1} parent=11 // pred_fallthru
          _
        // Predicated region
        $region25: #{mini_decoder_forward.1} parent=11 // pred_check
          %p443 = pneg %p162
        $region26: #{mini_decoder_forward.1} parent=11 // pred_check_branch
          %445 = sbr.rel (%p443) target = $region28
        $region27: #{mini_decoder_forward.1} parent=11 // pred_region
          _
        $region28: #{mini_decoder_forward.1} parent=11 // pred_fallthru
          _
        // Predicated region
        $region29: #{mini_decoder_forward.1} parent=11 // pred_check
          %p446 = pneg %p183
        $region30: #{mini_decoder_forward.1} parent=11 // pred_check_branch
          %448 = sbr.rel (%p446) target = $region32
        $region31: #{mini_decoder_forward.1} parent=11 // pred_region
          _
        $region32: #{mini_decoder_forward.1} parent=11 // pred_fallthru
          _
        // Predicated region
        $region33: #{mini_decoder_forward.1} parent=11 // pred_check
          %p449 = pneg %p204
        $region34: #{mini_decoder_forward.1} parent=11 // pred_check_branch
          %451 = sbr.rel (%p449) target = $region36
        $region35: #{mini_decoder_forward.1} parent=11 // pred_region
          _
        $region36: #{mini_decoder_forward.1} parent=11 // pred_fallthru
          _
        // Predicated region
        $region37: #{mini_decoder_forward.1} parent=11 // pred_check
          %p452 = pneg %p225
        $region38: #{mini_decoder_forward.1} parent=11 // pred_check_branch
          %454 = sbr.rel (%p452) target = $region40
        $region39: #{mini_decoder_forward.1} parent=11 // pred_region
          _
        $region40: #{mini_decoder_forward.1} parent=11 // pred_fallthru
          _
        // Predicated region
        $region41: #{mini_decoder_forward.1} parent=11 // pred_check
          %p455 = pneg %p246
        $region42: #{mini_decoder_forward.1} parent=11 // pred_check_branch
          %457 = sbr.rel (%p455) target = $region44
        $region43: #{mini_decoder_forward.1} parent=11 // pred_region
          _
        $region44: #{mini_decoder_forward.1} parent=11 // pred_fallthru
          _
        // Predicated region
        $region45: #{mini_decoder_forward.1} parent=11 // pred_check
          %p458 = pneg %p267
        $region46: #{mini_decoder_forward.1} parent=11 // pred_check_branch
          %460 = sbr.rel (%p458) target = $region48
        $region47: #{mini_decoder_forward.1} parent=11 // pred_region
          _
        $region48: #{mini_decoder_forward.1} parent=11 // pred_fallthru
          _
        // Predicated region
        $region49: #{mini_decoder_forward.1} parent=11 // pred_check
          %p461 = pneg %p288
        $region50: #{mini_decoder_forward.1} parent=11 // pred_check_branch
          %463 = sbr.rel (%p461) target = $region52
        $region51: #{mini_decoder_forward.1} parent=11 // pred_region
          _
        $region52: #{mini_decoder_forward.1} parent=11 // pred_fallthru
          _
        // Predicated region
        $region53: #{mini_decoder_forward.1} parent=11 // pred_check
          %p464 = pneg %p309
        $region54: #{mini_decoder_forward.1} parent=11 // pred_check_branch
          %466 = sbr.rel (%p464) target = $region56
        $region55: #{mini_decoder_forward.1} parent=11 // pred_region
          _
        $region56: #{mini_decoder_forward.1} parent=11 // pred_fallthru
          _
        // Predicated region
        $region57: #{mini_decoder_forward.1} parent=11 // pred_check
          %p467 = pneg %p330
        $region58: #{mini_decoder_forward.1} parent=11 // pred_check_branch
          %469 = sbr.rel (%p467) target = $region60
        $region59: #{mini_decoder_forward.1} parent=11 // pred_region
          _
        $region60: #{mini_decoder_forward.1} parent=11 // pred_fallthru
          _
        // Predicated region
        $region61: #{mini_decoder_forward.1} parent=11 // pred_check
          %p470 = pneg %p351
        $region62: #{mini_decoder_forward.1} parent=11 // pred_check_branch
          %472 = sbr.rel (%p470) target = $region64
        $region63: #{mini_decoder_forward.1} parent=11 // pred_region
          _
        $region64: #{mini_decoder_forward.1} parent=11 // pred_fallthru
          _
        // Predicated region
        $region65: #{mini_decoder_forward.1} parent=11 // pred_check
          %p473 = pneg %p372
        $region66: #{mini_decoder_forward.1} parent=11 // pred_check_branch
          %475 = sbr.rel (%p473) target = $region68
        $region67: #{mini_decoder_forward.1} parent=11 // pred_region
          _
        $region68: #{mini_decoder_forward.1} parent=11 // pred_fallthru
          _
        // Predicated region
        $region69: #{mini_decoder_forward.1} parent=11 // pred_check
          %p476 = pneg %p393
        $region70: #{mini_decoder_forward.1} parent=11 // pred_check_branch
          %478 = sbr.rel (%p476) target = $region72
        $region71: #{mini_decoder_forward.1} parent=11 // pred_region
          _
        $region72: #{mini_decoder_forward.1} parent=11 // pred_fallthru
          _
      $region12: #{mini_decoder_forward.1} parent=5 // pred_fallthru
        _
      %p479 = scmp.lt.s32.totalorder %s26, 2
      // Predicated region
      $region73: #{mini_decoder_forward.1} parent=5 // pred_check
        %p480 = pneg %p479
      $region74: #{mini_decoder_forward.1} parent=5 // pred_check_branch
        %482 = sbr.rel (%p480) target = $region76
      $region75: #{mini_decoder_forward.1} parent=5 // pred_region
        // Predicated region
        $region77: #{mini_decoder_forward.1} parent=75 // pred_check
          %p483 = pneg %p46
        $region78: #{mini_decoder_forward.1} parent=75 // pred_check_branch
          %485 = sbr.rel (%p483) target = $region80
        $region79: #{mini_decoder_forward.1} parent=75 // pred_region
          %p486 = scmp.lt.s32.totalorder %s26, 1
          %s487 = scalar_select %p486, %s26, 1
          %s488 = smul.addr %s487, 4
          %s489 = smul.addr %s488, 8
          %s490 = scalar_lea.vmem %s0, %s489
        $region80: #{mini_decoder_forward.1} parent=75 // pred_fallthru
          _
        // Predicated region
        $region81: #{mini_decoder_forward.1} parent=75 // pred_check
          %p491 = pneg %p72
        $region82: #{mini_decoder_forward.1} parent=75 // pred_check_branch
          %493 = sbr.rel (%p491) target = $region84
        $region83: #{mini_decoder_forward.1} parent=75 // pred_region
          %p494 = scmp.lt.s32.totalorder %s26, 1
          %s495 = scalar_select %p494, %s26, 1
          %s496 = smul.addr %s495, 4
          %s497 = smul.addr %s496, 8
          %s498 = scalar_lea.vmem %s1, %s497
        $region84: #{mini_decoder_forward.1} parent=75 // pred_fallthru
          _
      $region76: #{mini_decoder_forward.1} parent=5 // pred_fallthru
        _
      %p499 = scmp.le.s32.totalorder 1, %s26
      %p500 = scmp.lt.s32.totalorder %s26, 3
      %p501 = pnand %p499, %p500
      %p502 = pneg %p501
      // Predicated region
      $region85: #{mini_decoder_forward.1} parent=5 // pred_check
        _
      $region86: #{mini_decoder_forward.1} parent=5 // pred_check_branch
        %504 = sbr.rel (%p501) target = $region88
      $region87: #{mini_decoder_forward.1} parent=5 // pred_region
        %s505 = ssub.s32 %s26, 1
        %p506 = scmp.lt.s32.totalorder %s31, 1
        %s507 = scalar_select %p506, %s31, 1
        %s508 = smul.addr %s507, 4
        %s509 = smul.addr %s508, 8
        %s510 = scalar_lea.vmem %s0, %s509
        %p511 = pneg %p52
        %p512 = pneg %p49
        %p513 = scmp.lt.s32.totalorder %s31, 1
        %s514 = scalar_select %p513, %s31, 1
        %s515 = smul.addr %s514, 4
        %s516 = smul.addr %s515, 8
        %s517 = scalar_lea.vmem %s1, %s516
        %p518 = pneg %p78
        %p519 = pneg %p75
        %p520 = pneg %p99
        %p521 = pneg %p96
        %p522 = pneg %p120
        %p523 = pneg %p117
        %p524 = pneg %p141
        %p525 = pneg %p138
        %p526 = pneg %p162
        %p527 = pneg %p159
        %p528 = pneg %p183
        %p529 = pneg %p180
        %p530 = pneg %p204
        %p531 = pneg %p201
        %p532 = pneg %p225
        %p533 = pneg %p222
        %p534 = pneg %p246
        %p535 = pneg %p243
        %p536 = pneg %p267
        %p537 = pneg %p264
        %p538 = pneg %p288
        %p539 = pneg %p285
        %p540 = pneg %p309
        %p541 = pneg %p306
        %p542 = pneg %p330
        %p543 = pneg %p327
        %p544 = pneg %p351
        %p545 = pneg %p348
        %p546 = pneg %p372
        %p547 = pneg %p369
        %p548 = pneg %p393
        %p549 = pneg %p390
        %p550 = pneg %p419
        %p551 = pneg %p416
        %s552 = sand.u32 %s406, 1
        %s553 = scalar_lea.sflag [#allocation3], %s552
        %s554 = sand.u32 %s406, 1
        %s555 = smul.addr %s554, 32
        %s556 = scalar_lea.vmem [#allocation2], %s555
        %p557 = scmp.lt.s32.totalorder %s31, 1
        %s558 = scalar_select %p557, %s31, 1
        %s559 = smul.addr %s558, 4
        %s560 = smul.addr %s559, 8
        %s561 = scalar_lea.vmem %s0, %s560
        %p562 = scmp.lt.s32.totalorder %s31, 1
        %s563 = scalar_select %p562, %s31, 1
        %s564 = smul.addr %s563, 4
        %s565 = smul.addr %s564, 8
        %s566 = scalar_lea.vmem %s1, %s565
        %v567 = vld [vmem:[%s561] sm:$0xff]
        %v568 = vld [vmem:[%s561 + $0x8] sm:$0xff]
        %v569 = vld [vmem:[%s561 + $0x10] sm:$0xff]
        %v570 = vld [vmem:[%s561 + $0x18] sm:$0xff]
        %v571 = vld [vmem:[%s566] sm:$0xff]
        %v572 = vld [vmem:[%s566 + $0x8] sm:$0xff]
        %v573 = vld [vmem:[%s566 + $0x10] sm:$0xff]
        %v574 = vld [vmem:[%s566 + $0x18] sm:$0xff]
        %v575 = vld [vmem:[%s5] sm:$0xff]
        %v576 = vld [vmem:[%s5 + $0x8] sm:$0xff]
        %v577 = vld [vmem:[%s5 + $0x10] sm:$0xff]
        %v578 = vld [vmem:[%s5 + $0x18] sm:$0xff]
        %v579 = vld [vmem:[%s6] sm:$0x1]
        %v580 = vld [vmem:[%s7] sm:$0xff]
        %v581 = vld [vmem:[%s7 + $0x8] sm:$0xff]
        %v582 = vld [vmem:[%s7 + $0x10] sm:$0xff]
        %v583 = vld [vmem:[%s7 + $0x18] sm:$0xff]
        %v584 = vld [vmem:[%s8] sm:$0x1]
        %v585 = vld [vmem:[%s9] sm:$0xff]
        %v586 = vld [vmem:[%s9 + $0x8] sm:$0xff]
        %v587 = vld [vmem:[%s9 + $0x10] sm:$0xff]
        %v588 = vld [vmem:[%s9 + $0x18] sm:$0xff]
        %v589 = vld [vmem:[%s10] sm:$0x1]
        %v590 = vld [vmem:[%s2] sm:$0xff]
        %v591 = vld [vmem:[%s2 + $0x8] sm:$0xff]
        %v592 = vld [vmem:[%s2 + $0x10] sm:$0xff]
        %v593 = vld [vmem:[%s2 + $0x18] sm:$0xff]
        %v595 = vlaneseq
        %v596 = vshrl.u32 %v595, 7
        %v597 = vsub.s32 0, %v596
        %v598 = vrot.slane %v579, %v597
        %vm600 = vcmask 261120
        %v602 = vsel %vm600, %v567, 0
        %v605 = vsel %vm600, %v568, 0
        %v608 = vsel %vm600, %v569, 0
        %v611 = vsel %vm600, %v570, 0
        %613 = vmatprep.subr.mxu0 0.0
        %614 = vmatpush1.msra.mxu0 %v575
        %615 = vmatprep.subr.mxu0 0.0
        %616 = vmatpush1.msra.mxu0 %v576
        %617 = vmatprep.subr.mxu0 0.0
        %618 = vmatpush1.msra.mxu0 %v577
        %619 = vmatprep.subr.mxu0 0.0
        %620 = vmatpush1.msra.mxu0 %v578
        %621 = vmatprep.subr.mxu0 0.0
        %622 = vmatpush1.msra.mxu0 0.0
        %623 = vmatprep.subr.mxu0 0.0
        %624 = vmatpush1.msra.mxu0 0.0
        %625 = vmatprep.subr.mxu0 0.0
        %626 = vmatpush1.msra.mxu0 0.0
        %627 = vmatprep.subr.mxu0 0.0
        %628 = vmatpush1.msra.mxu0 0.0
        %629 = vmatprep.subr.mxu0 0.0
        %630 = vmatpush1.msra.mxu0 0.0
        %631 = vmatprep.subr.mxu0 0.0
        %632 = vmatpush1.msra.mxu0 0.0
        %633 = vmatprep.subr.mxu0 0.0
        %634 = vmatpush1.msra.mxu0 0.0
        %635 = vmatprep.subr.mxu0 0.0
        %636 = vmatpush1.msra.mxu0 0.0
        %637 = vmatprep.subr.mxu0 0.0
        %638 = vmatpush1.msra.mxu0 0.0
        %639 = vmatprep.subr.mxu0 0.0
        %640 = vmatpush1.msra.mxu0 0.0
        %641 = vmatprep.subr.mxu0 0.0
        %642 = vmatpush1.msra.mxu0 0.0
        %643 = vmatprep.subr.mxu0 0.0
        %644 = vmatpush1.msra.mxu0 0.0
        %645 = vmatprep.subr.mxu0 0.0
        %646 = vmatpush1.msra.mxu0 0.0
        %647 = vmatprep.subr.mxu0 0.0
        %648 = vmatpush1.msra.mxu0 0.0
        %649 = vmatprep.subr.mxu0 0.0
        %650 = vmatpush1.msra.mxu0 0.0
        %651 = vmatprep.subr.mxu0 0.0
        %652 = vmatpush1.msra.mxu0 0.0
        %653 = vmatprep.subr.mxu0 0.0
        %654 = vmatpush1.msra.mxu0 0.0
        %655 = vmatprep.subr.mxu0 0.0
        %656 = vmatpush1.msra.mxu0 0.0
        %657 = vmatprep.subr.mxu0 0.0
        %658 = vmatpush1.msra.mxu0 0.0
        %659 = vmatprep.subr.mxu0 0.0
        %660 = vmatpush1.msra.mxu0 0.0
        %661 = vmatprep.subr.mxu0 0.0
        %662 = vmatpush1.msra.mxu0 0.0
        %663 = vmatprep.subr.mxu0 0.0
        %664 = vmatpush1.msra.mxu0 0.0
        %665 = vmatprep.subr.mxu0 0.0
        %666 = vmatpush1.msra.mxu0 0.0
        %667 = vmatprep.subr.mxu0 0.0
        %668 = vmatpush1.msra.mxu0 0.0
        %669 = vmatprep.subr.mxu0 0.0
        %670 = vmatpush1.msra.mxu0 0.0
        %671 = vmatprep.subr.mxu0 0.0
        %672 = vmatpush1.msra.mxu0 0.0
        %673 = vmatprep.subr.mxu0 0.0
        %674 = vmatpush1.msra.mxu0 0.0
        %675 = vmatprep.subr.mxu0 0.0
        %676 = vmatpush1.msra.mxu0 0.0
        %677 = vmatprep.mubr.f32.mxu0 0.0
        %678 = vmatmul.mubr.f32.gmra.mrb[0].mxu0 %v602
        %v679 = vpop.f32.mrb[0].mxu0
        %v680 = vadd.f32 %v598, %v679
        %v681 = vpop.f32.mrb[0].mxu0
        %682 = vmatprep.mubr.f32.mxu0 0.0
        %683 = vmatmul.mubr.f32.gmra.mrb[0].mxu0 %v605
        %v684 = vpop.f32.mrb[0].mxu0
        %v685 = vadd.f32 %v598, %v684
        %v686 = vpop.f32.mrb[0].mxu0
        %687 = vmatprep.mubr.f32.mxu0 0.0
        %688 = vmatmul.mubr.f32.gmra.mrb[0].mxu0 %v608
        %v689 = vpop.f32.mrb[0].mxu0
        %v690 = vadd.f32 %v598, %v689
        %v691 = vpop.f32.mrb[0].mxu0
        %692 = vmatprep.mubr.f32.mxu0 0.0
        %693 = vmatmul.mubr.f32.gmra.mrb[0].mxu0 %v611
        %v694 = vpop.f32.mrb[0].mxu0
        %v695 = vadd.f32 %v598, %v694
        %v696 = vpop.f32.mrb[0].mxu0
        %697 = vdwg.mxu0
        %v699 = vlaneseq
        %v700 = vshrl.u32 %v699, 7
        %v701 = vsub.s32 0, %v700
        %v702 = vrot.slane %v584, %v701
        %704 = vmatprep.subr.mxu0 0.0
        %705 = vmatpush1.msra.mxu0 %v580
        %706 = vmatprep.subr.mxu0 0.0
        %707 = vmatpush1.msra.mxu0 %v581
        %708 = vmatprep.subr.mxu0 0.0
        %709 = vmatpush1.msra.mxu0 %v582
        %710 = vmatprep.subr.mxu0 0.0
        %711 = vmatpush1.msra.mxu0 %v583
        %712 = vmatprep.subr.mxu0 0.0
        %713 = vmatpush1.msra.mxu0 0.0
        %714 = vmatprep.subr.mxu0 0.0
        %715 = vmatpush1.msra.mxu0 0.0
        %716 = vmatprep.subr.mxu0 0.0
        %717 = vmatpush1.msra.mxu0 0.0
        %718 = vmatprep.subr.mxu0 0.0
        %719 = vmatpush1.msra.mxu0 0.0
        %720 = vmatprep.subr.mxu0 0.0
        %721 = vmatpush1.msra.mxu0 0.0
        %722 = vmatprep.subr.mxu0 0.0
        %723 = vmatpush1.msra.mxu0 0.0
        %724 = vmatprep.subr.mxu0 0.0
        %725 = vmatpush1.msra.mxu0 0.0
        %726 = vmatprep.subr.mxu0 0.0
        %727 = vmatpush1.msra.mxu0 0.0
        %728 = vmatprep.subr.mxu0 0.0
        %729 = vmatpush1.msra.mxu0 0.0
        %730 = vmatprep.subr.mxu0 0.0
        %731 = vmatpush1.msra.mxu0 0.0
        %732 = vmatprep.subr.mxu0 0.0
        %733 = vmatpush1.msra.mxu0 0.0
        %734 = vmatprep.subr.mxu0 0.0
        %735 = vmatpush1.msra.mxu0 0.0
        %736 = vmatprep.subr.mxu0 0.0
        %737 = vmatpush1.msra.mxu0 0.0
        %738 = vmatprep.subr.mxu0 0.0
        %739 = vmatpush1.msra.mxu0 0.0
        %740 = vmatprep.subr.mxu0 0.0
        %741 = vmatpush1.msra.mxu0 0.0
        %742 = vmatprep.subr.mxu0 0.0
        %743 = vmatpush1.msra.mxu0 0.0
        %744 = vmatprep.subr.mxu0 0.0
        %745 = vmatpush1.msra.mxu0 0.0
        %746 = vmatprep.subr.mxu0 0.0
        %747 = vmatpush1.msra.mxu0 0.0
        %748 = vmatprep.subr.mxu0 0.0
        %749 = vmatpush1.msra.mxu0 0.0
        %750 = vmatprep.subr.mxu0 0.0
        %751 = vmatpush1.msra.mxu0 0.0
        %752 = vmatprep.subr.mxu0 0.0
        %753 = vmatpush1.msra.mxu0 0.0
        %754 = vmatprep.subr.mxu0 0.0
        %755 = vmatpush1.msra.mxu0 0.0
        %756 = vmatprep.subr.mxu0 0.0
        %757 = vmatpush1.msra.mxu0 0.0
        %758 = vmatprep.subr.mxu0 0.0
        %759 = vmatpush1.msra.mxu0 0.0
        %760 = vmatprep.subr.mxu0 0.0
        %761 = vmatpush1.msra.mxu0 0.0
        %762 = vmatprep.subr.mxu0 0.0
        %763 = vmatpush1.msra.mxu0 0.0
        %764 = vmatprep.subr.mxu0 0.0
        %765 = vmatpush1.msra.mxu0 0.0
        %766 = vmatprep.subr.mxu0 0.0
        %767 = vmatpush1.msra.mxu0 0.0
        %768 = vmatprep.mubr.f32.mxu0 0.0
        %769 = vmatmul.mubr.f32.gmra.mrb[0].mxu0 %v602
        %v770 = vpop.f32.mrb[0].mxu0
        %v771 = vadd.f32 %v702, %v770
        %v772 = vpop.f32.mrb[0].mxu0
        %773 = vmatprep.mubr.f32.mxu0 0.0
        %774 = vmatmul.mubr.f32.gmra.mrb[0].mxu0 %v605
        %v775 = vpop.f32.mrb[0].mxu0
        %v776 = vadd.f32 %v702, %v775
        %v777 = vpop.f32.mrb[0].mxu0
        %778 = vmatprep.mubr.f32.mxu0 0.0
        %779 = vmatmul.mubr.f32.gmra.mrb[0].mxu0 %v608
        %v780 = vpop.f32.mrb[0].mxu0
        %v781 = vadd.f32 %v702, %v780
        %v782 = vpop.f32.mrb[0].mxu0
        %783 = vmatprep.mubr.f32.mxu0 0.0
        %784 = vmatmul.mubr.f32.gmra.mrb[0].mxu0 %v611
        %v785 = vpop.f32.mrb[0].mxu0
        %v786 = vadd.f32 %v702, %v785
        %v787 = vpop.f32.mrb[0].mxu0
        %788 = vdwg.mxu0
        %vm789 = vcmask 64512
        %v791 = vsel %vm789, %v680, 0
        %v794 = vsel %vm789, %v685, 0
        %v797 = vsel %vm789, %v690, 0
        %v800 = vsel %vm789, %v695, 0
        %v803 = vsel %vm789, %v771, 0
        %v806 = vsel %vm789, %v776, 0
        %v809 = vsel %vm789, %v781, 0
        %v812 = vsel %vm789, %v786, 0
        %814 = vmatprep.subr.mxu0 0.0
        %815 = vmatpush1.xpose.msra.mxu0 %v803
        %816 = vmatprep.subr.mxu0 0.0
        %817 = vmatpush1.xpose.msra.mxu0 %v806
        %818 = vmatprep.subr.mxu0 0.0
        %819 = vmatpush1.xpose.msra.mxu0 %v809
        %820 = vmatprep.subr.mxu0 0.0
        %821 = vmatpush1.xpose.msra.mxu0 %v812
        %822 = vmatprep.subr.mxu0 0.0
        %823 = vmatpush1.xpose.msra.mxu0 0.0
        %824 = vmatprep.subr.mxu0 0.0
        %825 = vmatpush1.xpose.msra.mxu0 0.0
        %826 = vmatprep.subr.mxu0 0.0
        %827 = vmatpush1.xpose.msra.mxu0 0.0
        %828 = vmatprep.subr.mxu0 0.0
        %829 = vmatpush1.xpose.msra.mxu0 0.0
        %830 = vmatprep.subr.mxu0 0.0
        %831 = vmatpush1.xpose.msra.mxu0 0.0
        %832 = vmatprep.subr.mxu0 0.0
        %833 = vmatpush1.xpose.msra.mxu0 0.0
        %834 = vmatprep.subr.mxu0 0.0
        %835 = vmatpush1.xpose.msra.mxu0 0.0
        %836 = vmatprep.subr.mxu0 0.0
        %837 = vmatpush1.xpose.msra.mxu0 0.0
        %838 = vmatprep.subr.mxu0 0.0
        %839 = vmatpush1.xpose.msra.mxu0 0.0
        %840 = vmatprep.subr.mxu0 0.0
        %841 = vmatpush1.xpose.msra.mxu0 0.0
        %842 = vmatprep.subr.mxu0 0.0
        %843 = vmatpush1.xpose.msra.mxu0 0.0
        %844 = vmatprep.subr.mxu0 0.0
        %845 = vmatpush1.xpose.msra.mxu0 0.0
        %846 = vmatprep.subr.mxu0 0.0
        %847 = vmatpush1.xpose.msra.mxu0 0.0
        %848 = vmatprep.subr.mxu0 0.0
        %849 = vmatpush1.xpose.msra.mxu0 0.0
        %850 = vmatprep.subr.mxu0 0.0
        %851 = vmatpush1.xpose.msra.mxu0 0.0
        %852 = vmatprep.subr.mxu0 0.0
        %853 = vmatpush1.xpose.msra.mxu0 0.0
        %854 = vmatprep.subr.mxu0 0.0
        %855 = vmatpush1.xpose.msra.mxu0 0.0
        %856 = vmatprep.subr.mxu0 0.0
        %857 = vmatpush1.xpose.msra.mxu0 0.0
        %858 = vmatprep.subr.mxu0 0.0
        %859 = vmatpush1.xpose.msra.mxu0 0.0
        %860 = vmatprep.subr.mxu0 0.0
        %861 = vmatpush1.xpose.msra.mxu0 0.0
        %862 = vmatprep.subr.mxu0 0.0
        %863 = vmatpush1.xpose.msra.mxu0 0.0
        %864 = vmatprep.subr.mxu0 0.0
        %865 = vmatpush1.xpose.msra.mxu0 0.0
        %866 = vmatprep.subr.mxu0 0.0
        %867 = vmatpush1.xpose.msra.mxu0 0.0
        %868 = vmatprep.subr.mxu0 0.0
        %869 = vmatpush1.xpose.msra.mxu0 0.0
        %870 = vmatprep.subr.mxu0 0.0
        %871 = vmatpush1.xpose.msra.mxu0 0.0
        %872 = vmatprep.subr.mxu0 0.0
        %873 = vmatpush1.xpose.msra.mxu0 0.0
        %874 = vmatprep.subr.mxu0 0.0
        %875 = vmatpush1.xpose.msra.mxu0 0.0
        %876 = vmatprep.subr.mxu0 0.0
        %877 = vmatpush1.xpose.msra.mxu0 0.0
        %878 = vmatprep.mubr.f32.mxu0 0.0
        %879 = vmatmul.mubr.f32.gmra.mrb[0].mxu0 %v791
        %v880 = vpop.f32.mrb[0].mxu0
        %v881 = vadd.f32 %v590, %v880
        %v882 = vpop.f32.mrb[0].mxu0
        %883 = vmatprep.mubr.f32.mxu0 0.0
        %884 = vmatmul.mubr.f32.gmra.mrb[0].mxu0 %v794
        %v885 = vpop.f32.mrb[0].mxu0
        %v886 = vadd.f32 %v591, %v885
        %v887 = vpop.f32.mrb[0].mxu0
        %888 = vmatprep.mubr.f32.mxu0 0.0
        %889 = vmatmul.mubr.f32.gmra.mrb[0].mxu0 %v797
        %v890 = vpop.f32.mrb[0].mxu0
        %v891 = vadd.f32 %v592, %v890
        %v892 = vpop.f32.mrb[0].mxu0
        %893 = vmatprep.mubr.f32.mxu0 0.0
        %894 = vmatmul.mubr.f32.gmra.mrb[0].mxu0 %v800
        %v895 = vpop.f32.mrb[0].mxu0
        %v896 = vadd.f32 %v593, %v895
        %v897 = vpop.f32.mrb[0].mxu0
        %898 = vdwg.mxu0
        %v899 = vsel %vm600, %v881, -inf
        %900 = vmax.xlane.f32.xlu0 %v899
        %v901 = vpop.xlane.xlu0 %900
        %v902 = vsel %vm600, %v886, -inf
        %903 = vmax.xlane.f32.xlu0 %v902
        %v904 = vpop.xlane.xlu0 %903
        %v905 = vsel %vm600, %v891, -inf
        %906 = vmax.xlane.f32.xlu0 %v905
        %v907 = vpop.xlane.xlu0 %906
        %v908 = vsel %vm600, %v896, -inf
        %909 = vmax.xlane.f32.xlu0 %v908
        %v910 = vpop.xlane.xlu0 %909
        %v911 = vsub.f32 %v881, %v901
        %v912 = vsub.f32 %v886, %v904
        %v913 = vsub.f32 %v891, %v907
        %v914 = vsub.f32 %v896, %v910
        %v915 = vmul.f32 %v911, 1.442695
        %v916 = vpow.pop %v915
        %v917 = vmul.f32 %v912, 1.442695
        %v918 = vpow.pop %v917
        %v919 = vmul.f32 %v913, 1.442695
        %v920 = vpow.pop %v919
        %v921 = vmul.f32 %v914, 1.442695
        %v922 = vpow.pop %v921
        %v923 = vsel %vm600, %v916, 0.0
        %924 = vadd.xlane.f32.xlu0 %v923
        %v925 = vpop.xlane.xlu0 %924
        %v926 = vsel %vm600, %v918, 0.0
        %927 = vadd.xlane.f32.xlu0 %v926
        %v928 = vpop.xlane.xlu0 %927
        %v929 = vsel %vm600, %v920, 0.0
        %930 = vadd.xlane.f32.xlu0 %v929
        %v931 = vpop.xlane.xlu0 %930
        %v932 = vsel %vm600, %v922, 0.0
        %933 = vadd.xlane.f32.xlu0 %v932
        %v934 = vpop.xlane.xlu0 %933
        %v935 = vrcp.pop %v925
        %v936 = vrcp.pop %v928
        %v937 = vrcp.pop %v931
        %v938 = vrcp.pop %v934
        %v939 = vmul.f32 %v916, %v935
        %v940 = vmul.f32 %v918, %v936
        %v941 = vmul.f32 %v920, %v937
        %v942 = vmul.f32 %v922, %v938
        %943 = vrot.lane.b32.xlu0 %v771, 96
        %v944 = vpop.permute.xlu0 %943
        %945 = vrot.lane.b32.xlu0 %v776, 96
        %v946 = vpop.permute.xlu0 %945
        %947 = vrot.lane.b32.xlu0 %v781, 96
        %v948 = vpop.permute.xlu0 %947
        %949 = vrot.lane.b32.xlu0 %v786, 96
        %v950 = vpop.permute.xlu0 %949
        %v956 = vsel %vm600, %v939, 0
        %v959 = vsel %vm600, %v940, 0
        %v962 = vsel %vm600, %v941, 0
        %v965 = vsel %vm600, %v942, 0
        %967 = vmatprep.subr.mxu0 0.0
        %968 = vmatpush1.msra.mxu0 %v944
        %969 = vmatprep.subr.mxu0 0.0
        %970 = vmatpush1.msra.mxu0 %v946
        %971 = vmatprep.subr.mxu0 0.0
        %972 = vmatpush1.msra.mxu0 %v948
        %973 = vmatprep.subr.mxu0 0.0
        %974 = vmatpush1.msra.mxu0 %v950
        %975 = vmatprep.subr.mxu0 0.0
        %976 = vmatpush1.msra.mxu0 0.0
        %977 = vmatprep.subr.mxu0 0.0
        %978 = vmatpush1.msra.mxu0 0.0
        %979 = vmatprep.subr.mxu0 0.0
        %980 = vmatpush1.msra.mxu0 0.0
        %981 = vmatprep.subr.mxu0 0.0
        %982 = vmatpush1.msra.mxu0 0.0
        %983 = vmatprep.subr.mxu0 0.0
        %984 = vmatpush1.msra.mxu0 0.0
        %985 = vmatprep.subr.mxu0 0.0
        %986 = vmatpush1.msra.mxu0 0.0
        %987 = vmatprep.subr.mxu0 0.0
        %988 = vmatpush1.msra.mxu0 0.0
        %989 = vmatprep.subr.mxu0 0.0
        %990 = vmatpush1.msra.mxu0 0.0
        %991 = vmatprep.subr.mxu0 0.0
        %992 = vmatpush1.msra.mxu0 0.0
        %993 = vmatprep.subr.mxu0 0.0
        %994 = vmatpush1.msra.mxu0 0.0
        %995 = vmatprep.subr.mxu0 0.0
        %996 = vmatpush1.msra.mxu0 0.0
        %997 = vmatprep.subr.mxu0 0.0
        %998 = vmatpush1.msra.mxu0 0.0
        %999 = vmatprep.subr.mxu0 0.0
        %1000 = vmatpush1.msra.mxu0 0.0
        %1001 = vmatprep.subr.mxu0 0.0
        %1002 = vmatpush1.msra.mxu0 0.0
        %1003 = vmatprep.subr.mxu0 0.0
        %1004 = vmatpush1.msra.mxu0 0.0
        %1005 = vmatprep.subr.mxu0 0.0
        %1006 = vmatpush1.msra.mxu0 0.0
        %1007 = vmatprep.subr.mxu0 0.0
        %1008 = vmatpush1.msra.mxu0 0.0
        %1009 = vmatprep.subr.mxu0 0.0
        %1010 = vmatpush1.msra.mxu0 0.0
        %1011 = vmatprep.subr.mxu0 0.0
        %1012 = vmatpush1.msra.mxu0 0.0
        %1013 = vmatprep.subr.mxu0 0.0
        %1014 = vmatpush1.msra.mxu0 0.0
        %1015 = vmatprep.subr.mxu0 0.0
        %1016 = vmatpush1.msra.mxu0 0.0
        %1017 = vmatprep.subr.mxu0 0.0
        %1018 = vmatpush1.msra.mxu0 0.0
        %1019 = vmatprep.subr.mxu0 0.0
        %1020 = vmatpush1.msra.mxu0 0.0
        %1021 = vmatprep.subr.mxu0 0.0
        %1022 = vmatpush1.msra.mxu0 0.0
        %1023 = vmatprep.subr.mxu0 0.0
        %1024 = vmatpush1.msra.mxu0 0.0
        %1025 = vmatprep.subr.mxu0 0.0
        %1026 = vmatpush1.msra.mxu0 0.0
        %1027 = vmatprep.subr.mxu0 0.0
        %1028 = vmatpush1.msra.mxu0 0.0
        %1029 = vmatprep.subr.mxu0 0.0
        %1030 = vmatpush1.msra.mxu0 0.0
        %1031 = vmatprep.mubr.f32.mxu0 0.0
        %1032 = vmatmul.mubr.f32.gmra.mrb[0].mxu0 %v956
        %v1033 = vpop.f32.mrb[0].mxu0
        %v1034 = vadd.f32 0.0, %v1033
        %v1035 = vpop.f32.mrb[0].mxu0
        %1036 = vmatprep.mubr.f32.mxu0 0.0
        %1037 = vmatmul.mubr.f32.gmra.mrb[0].mxu0 %v959
        %v1038 = vpop.f32.mrb[0].mxu0
        %v1039 = vadd.f32 0.0, %v1038
        %v1040 = vpop.f32.mrb[0].mxu0
        %1041 = vmatprep.mubr.f32.mxu0 0.0
        %1042 = vmatmul.mubr.f32.gmra.mrb[0].mxu0 %v962
        %v1043 = vpop.f32.mrb[0].mxu0
        %v1044 = vadd.f32 0.0, %v1043
        %v1045 = vpop.f32.mrb[0].mxu0
        %1046 = vmatprep.mubr.f32.mxu0 0.0
        %1047 = vmatmul.mubr.f32.gmra.mrb[0].mxu0 %v965
        %v1048 = vpop.f32.mrb[0].mxu0
        %v1049 = vadd.f32 0.0, %v1048
        %v1050 = vpop.f32.mrb[0].mxu0
        %1051 = vdwg.mxu0
        %1052 = vrot.lane.b32.xlu0 %v680, 120
        %v1053 = vpop.permute.xlu0 %1052
        %1054 = vrot.lane.b32.xlu0 %v685, 120
        %v1055 = vpop.permute.xlu0 %1054
        %1056 = vrot.lane.b32.xlu0 %v690, 120
        %v1057 = vpop.permute.xlu0 %1056
        %1058 = vrot.lane.b32.xlu0 %v695, 120
        %v1059 = vpop.permute.xlu0 %1058
        %1060 = vrot.lane.b32.xlu0 %v771, 120
        %v1061 = vpop.permute.xlu0 %1060
        %1062 = vrot.lane.b32.xlu0 %v776, 120
        %v1063 = vpop.permute.xlu0 %1062
        %1064 = vrot.lane.b32.xlu0 %v781, 120
        %v1065 = vpop.permute.xlu0 %1064
        %1066 = vrot.lane.b32.xlu0 %v786, 120
        %v1067 = vpop.permute.xlu0 %1066
        %v1068 = vsel %vm789, %v1053, 0
        %v1070 = vsel %vm789, %v1055, 0
        %v1072 = vsel %vm789, %v1057, 0
        %v1074 = vsel %vm789, %v1059, 0
        %v1076 = vsel %vm789, %v1061, 0
        %v1078 = vsel %vm789, %v1063, 0
        %v1080 = vsel %vm789, %v1065, 0
        %v1082 = vsel %vm789, %v1067, 0
        %1084 = vmatprep.subr.mxu0 0.0
        %1085 = vmatpush1.xpose.msra.mxu0 %v1076
        %1086 = vmatprep.subr.mxu0 0.0
        %1087 = vmatpush1.xpose.msra.mxu0 %v1078
        %1088 = vmatprep.subr.mxu0 0.0
        %1089 = vmatpush1.xpose.msra.mxu0 %v1080
        %1090 = vmatprep.subr.mxu0 0.0
        %1091 = vmatpush1.xpose.msra.mxu0 %v1082
        %1092 = vmatprep.subr.mxu0 0.0
        %1093 = vmatpush1.xpose.msra.mxu0 0.0
        %1094 = vmatprep.subr.mxu0 0.0
        %1095 = vmatpush1.xpose.msra.mxu0 0.0
        %1096 = vmatprep.subr.mxu0 0.0
        %1097 = vmatpush1.xpose.msra.mxu0 0.0
        %1098 = vmatprep.subr.mxu0 0.0
        %1099 = vmatpush1.xpose.msra.mxu0 0.0
        %1100 = vmatprep.subr.mxu0 0.0
        %1101 = vmatpush1.xpose.msra.mxu0 0.0
        %1102 = vmatprep.subr.mxu0 0.0
        %1103 = vmatpush1.xpose.msra.mxu0 0.0
        %1104 = vmatprep.subr.mxu0 0.0
        %1105 = vmatpush1.xpose.msra.mxu0 0.0
        %1106 = vmatprep.subr.mxu0 0.0
        %1107 = vmatpush1.xpose.msra.mxu0 0.0
        %1108 = vmatprep.subr.mxu0 0.0
        %1109 = vmatpush1.xpose.msra.mxu0 0.0
        %1110 = vmatprep.subr.mxu0 0.0
        %1111 = vmatpush1.xpose.msra.mxu0 0.0
        %1112 = vmatprep.subr.mxu0 0.0
        %1113 = vmatpush1.xpose.msra.mxu0 0.0
        %1114 = vmatprep.subr.mxu0 0.0
        %1115 = vmatpush1.xpose.msra.mxu0 0.0
        %1116 = vmatprep.subr.mxu0 0.0
        %1117 = vmatpush1.xpose.msra.mxu0 0.0
        %1118 = vmatprep.subr.mxu0 0.0
        %1119 = vmatpush1.xpose.msra.mxu0 0.0
        %1120 = vmatprep.subr.mxu0 0.0
        %1121 = vmatpush1.xpose.msra.mxu0 0.0
        %1122 = vmatprep.subr.mxu0 0.0
        %1123 = vmatpush1.xpose.msra.mxu0 0.0
        %1124 = vmatprep.subr.mxu0 0.0
        %1125 = vmatpush1.xpose.msra.mxu0 0.0
        %1126 = vmatprep.subr.mxu0 0.0
        %1127 = vmatpush1.xpose.msra.mxu0 0.0
        %1128 = vmatprep.subr.mxu0 0.0
        %1129 = vmatpush1.xpose.msra.mxu0 0.0
        %1130 = vmatprep.subr.mxu0 0.0
        %1131 = vmatpush1.xpose.msra.mxu0 0.0
        %1132 = vmatprep.subr.mxu0 0.0
        %1133 = vmatpush1.xpose.msra.mxu0 0.0
        %1134 = vmatprep.subr.mxu0 0.0
        %1135 = vmatpush1.xpose.msra.mxu0 0.0
        %1136 = vmatprep.subr.mxu0 0.0
        %1137 = vmatpush1.xpose.msra.mxu0 0.0
        %1138 = vmatprep.subr.mxu0 0.0
        %1139 = vmatpush1.xpose.msra.mxu0 0.0
        %1140 = vmatprep.subr.mxu0 0.0
        %1141 = vmatpush1.xpose.msra.mxu0 0.0
        %1142 = vmatprep.subr.mxu0 0.0
        %1143 = vmatpush1.xpose.msra.mxu0 0.0
        %1144 = vmatprep.subr.mxu0 0.0
        %1145 = vmatpush1.xpose.msra.mxu0 0.0
        %1146 = vmatprep.subr.mxu0 0.0
        %1147 = vmatpush1.xpose.msra.mxu0 0.0
        %1148 = vmatprep.mubr.f32.mxu0 0.0
        %1149 = vmatmul.mubr.f32.gmra.mrb[0].mxu0 %v1068
        %v1150 = vpop.f32.mrb[0].mxu0
        %v1151 = vadd.f32 %v590, %v1150
        %v1152 = vpop.f32.mrb[0].mxu0
        %1153 = vmatprep.mubr.f32.mxu0 0.0
        %1154 = vmatmul.mubr.f32.gmra.mrb[0].mxu0 %v1070
        %v1155 = vpop.f32.mrb[0].mxu0
        %v1156 = vadd.f32 %v591, %v1155
        %v1157 = vpop.f32.mrb[0].mxu0
        %1158 = vmatprep.mubr.f32.mxu0 0.0
        %1159 = vmatmul.mubr.f32.gmra.mrb[0].mxu0 %v1072
        %v1160 = vpop.f32.mrb[0].mxu0
        %v1161 = vadd.f32 %v592, %v1160
        %v1162 = vpop.f32.mrb[0].mxu0
        %1163 = vmatprep.mubr.f32.mxu0 0.0
        %1164 = vmatmul.mubr.f32.gmra.mrb[0].mxu0 %v1074
        %v1165 = vpop.f32.mrb[0].mxu0
        %v1166 = vadd.f32 %v593, %v1165
        %v1167 = vpop.f32.mrb[0].mxu0
        %1168 = vdwg.mxu0
        %v1169 = vsel %vm600, %v1151, -inf
        %1170 = vmax.xlane.f32.xlu0 %v1169
        %v1171 = vpop.xlane.xlu0 %1170
        %v1172 = vsel %vm600, %v1156, -inf
        %1173 = vmax.xlane.f32.xlu0 %v1172
        %v1174 = vpop.xlane.xlu0 %1173
        %v1175 = vsel %vm600, %v1161, -inf
        %1176 = vmax.xlane.f32.xlu0 %v1175
        %v1177 = vpop.xlane.xlu0 %1176
        %v1178 = vsel %vm600, %v1166, -inf
        %1179 = vmax.xlane.f32.xlu0 %v1178
        %v1180 = vpop.xlane.xlu0 %1179
        %v1181 = vsub.f32 %v1151, %v1171
        %v1182 = vsub.f32 %v1156, %v1174
        %v1183 = vsub.f32 %v1161, %v1177
        %v1184 = vsub.f32 %v1166, %v1180
        %v1185 = vmul.f32 %v1181, 1.442695
        %v1186 = vpow.pop %v1185
        %v1187 = vmul.f32 %v1182, 1.442695
        %v1188 = vpow.pop %v1187
        %v1189 = vmul.f32 %v1183, 1.442695
        %v1190 = vpow.pop %v1189
        %v1191 = vmul.f32 %v1184, 1.442695
        %v1192 = vpow.pop %v1191
        %v1193 = vsel %vm600, %v1186, 0.0
        %1194 = vadd.xlane.f32.xlu0 %v1193
        %v1195 = vpop.xlane.xlu0 %1194
        %v1196 = vsel %vm600, %v1188, 0.0
        %1197 = vadd.xlane.f32.xlu0 %v1196
        %v1198 = vpop.xlane.xlu0 %1197
        %v1199 = vsel %vm600, %v1190, 0.0
        %1200 = vadd.xlane.f32.xlu0 %v1199
        %v1201 = vpop.xlane.xlu0 %1200
        %v1202 = vsel %vm600, %v1192, 0.0
        %1203 = vadd.xlane.f32.xlu0 %v1202
        %v1204 = vpop.xlane.xlu0 %1203
        %v1205 = vrcp.pop %v1195
        %v1206 = vrcp.pop %v1198
        %v1207 = vrcp.pop %v1201
        %v1208 = vrcp.pop %v1204
        %v1209 = vmul.f32 %v1186, %v1205
        %v1210 = vmul.f32 %v1188, %v1206
        %v1211 = vmul.f32 %v1190, %v1207
        %v1212 = vmul.f32 %v1192, %v1208
        %1213 = vrot.lane.b32.xlu0 %v771, 88
        %v1214 = vpop.permute.xlu0 %1213
        %1215 = vrot.lane.b32.xlu0 %v776, 88
        %v1216 = vpop.permute.xlu0 %1215
        %1217 = vrot.lane.b32.xlu0 %v781, 88
        %v1218 = vpop.permute.xlu0 %1217
        %1219 = vrot.lane.b32.xlu0 %v786, 88
        %v1220 = vpop.permute.xlu0 %1219
        %v1226 = vsel %vm600, %v1209, 0
        %v1229 = vsel %vm600, %v1210, 0
        %v1232 = vsel %vm600, %v1211, 0
        %v1235 = vsel %vm600, %v1212, 0
        %1237 = vmatprep.subr.mxu0 0.0
        %1238 = vmatpush1.msra.mxu0 %v1214
        %1239 = vmatprep.subr.mxu0 0.0
        %1240 = vmatpush1.msra.mxu0 %v1216
        %1241 = vmatprep.subr.mxu0 0.0
        %1242 = vmatpush1.msra.mxu0 %v1218
        %1243 = vmatprep.subr.mxu0 0.0
        %1244 = vmatpush1.msra.mxu0 %v1220
        %1245 = vmatprep.subr.mxu0 0.0
        %1246 = vmatpush1.msra.mxu0 0.0
        %1247 = vmatprep.subr.mxu0 0.0
        %1248 = vmatpush1.msra.mxu0 0.0
        %1249 = vmatprep.subr.mxu0 0.0
        %1250 = vmatpush1.msra.mxu0 0.0
        %1251 = vmatprep.subr.mxu0 0.0
        %1252 = vmatpush1.msra.mxu0 0.0
        %1253 = vmatprep.subr.mxu0 0.0
        %1254 = vmatpush1.msra.mxu0 0.0
        %1255 = vmatprep.subr.mxu0 0.0
        %1256 = vmatpush1.msra.mxu0 0.0
        %1257 = vmatprep.subr.mxu0 0.0
        %1258 = vmatpush1.msra.mxu0 0.0
        %1259 = vmatprep.subr.mxu0 0.0
        %1260 = vmatpush1.msra.mxu0 0.0
        %1261 = vmatprep.subr.mxu0 0.0
        %1262 = vmatpush1.msra.mxu0 0.0
        %1263 = vmatprep.subr.mxu0 0.0
        %1264 = vmatpush1.msra.mxu0 0.0
        %1265 = vmatprep.subr.mxu0 0.0
        %1266 = vmatpush1.msra.mxu0 0.0
        %1267 = vmatprep.subr.mxu0 0.0
        %1268 = vmatpush1.msra.mxu0 0.0
        %1269 = vmatprep.subr.mxu0 0.0
        %1270 = vmatpush1.msra.mxu0 0.0
        %1271 = vmatprep.subr.mxu0 0.0
        %1272 = vmatpush1.msra.mxu0 0.0
        %1273 = vmatprep.subr.mxu0 0.0
        %1274 = vmatpush1.msra.mxu0 0.0
        %1275 = vmatprep.subr.mxu0 0.0
        %1276 = vmatpush1.msra.mxu0 0.0
        %1277 = vmatprep.subr.mxu0 0.0
        %1278 = vmatpush1.msra.mxu0 0.0
        %1279 = vmatprep.subr.mxu0 0.0
        %1280 = vmatpush1.msra.mxu0 0.0
        %1281 = vmatprep.subr.mxu0 0.0
        %1282 = vmatpush1.msra.mxu0 0.0
        %1283 = vmatprep.subr.mxu0 0.0
        %1284 = vmatpush1.msra.mxu0 0.0
        %1285 = vmatprep.subr.mxu0 0.0
        %1286 = vmatpush1.msra.mxu0 0.0
        %1287 = vmatprep.subr.mxu0 0.0
        %1288 = vmatpush1.msra.mxu0 0.0
        %1289 = vmatprep.subr.mxu0 0.0
        %1290 = vmatpush1.msra.mxu0 0.0
        %1291 = vmatprep.subr.mxu0 0.0
        %1292 = vmatpush1.msra.mxu0 0.0
        %1293 = vmatprep.subr.mxu0 0.0
        %1294 = vmatpush1.msra.mxu0 0.0
        %1295 = vmatprep.subr.mxu0 0.0
        %1296 = vmatpush1.msra.mxu0 0.0
        %1297 = vmatprep.subr.mxu0 0.0
        %1298 = vmatpush1.msra.mxu0 0.0
        %1299 = vmatprep.subr.mxu0 0.0
        %1300 = vmatpush1.msra.mxu0 0.0
        %1301 = vmatprep.mubr.f32.mxu0 0.0
        %1302 = vmatmul.mubr.f32.gmra.mrb[0].mxu0 %v1226
        %v1303 = vpop.f32.mrb[0].mxu0
        %v1304 = vadd.f32 0.0, %v1303
        %v1305 = vpop.f32.mrb[0].mxu0
        %1306 = vmatprep.mubr.f32.mxu0 0.0
        %1307 = vmatmul.mubr.f32.gmra.mrb[0].mxu0 %v1229
        %v1308 = vpop.f32.mrb[0].mxu0
        %v1309 = vadd.f32 0.0, %v1308
        %v1310 = vpop.f32.mrb[0].mxu0
        %1311 = vmatprep.mubr.f32.mxu0 0.0
        %1312 = vmatmul.mubr.f32.gmra.mrb[0].mxu0 %v1232
        %v1313 = vpop.f32.mrb[0].mxu0
        %v1314 = vadd.f32 0.0, %v1313
        %v1315 = vpop.f32.mrb[0].mxu0
        %1316 = vmatprep.mubr.f32.mxu0 0.0
        %1317 = vmatmul.mubr.f32.gmra.mrb[0].mxu0 %v1235
        %v1318 = vpop.f32.mrb[0].mxu0
        %v1319 = vadd.f32 0.0, %v1318
        %v1320 = vpop.f32.mrb[0].mxu0
        %1321 = vdwg.mxu0
        %v1323 = vsel %vm789, %v1304, 0
        %v1326 = vsel %vm789, %v1309, 0
        %v1329 = vsel %vm789, %v1314, 0
        %v1332 = vsel %vm789, %v1319, 0
        %1334 = vmatprep.subr.mxu0 0.0
        %1335 = vmatpush1.msra.mxu0 %v586
        %1336 = vmatprep.subr.mxu0 0.0
        %1337 = vmatpush1.msra.mxu0 0.0
        %1338 = vmatprep.subr.mxu0 0.0
        %1339 = vmatpush1.msra.mxu0 0.0
        %1340 = vmatprep.subr.mxu0 0.0
        %1341 = vmatpush1.msra.mxu0 0.0
        %1342 = vmatprep.subr.mxu0 0.0
        %1343 = vmatpush1.msra.mxu0 0.0
        %1344 = vmatprep.subr.mxu0 0.0
        %1345 = vmatpush1.msra.mxu0 0.0
        %1346 = vmatprep.subr.mxu0 0.0
        %1347 = vmatpush1.msra.mxu0 0.0
        %1348 = vmatprep.subr.mxu0 0.0
        %1349 = vmatpush1.msra.mxu0 0.0
        %1350 = vmatprep.subr.mxu0 0.0
        %1351 = vmatpush1.msra.mxu0 0.0
        %1352 = vmatprep.subr.mxu0 0.0
        %1353 = vmatpush1.msra.mxu0 0.0
        %1354 = vmatprep.subr.mxu0 0.0
        %1355 = vmatpush1.msra.mxu0 0.0
        %1356 = vmatprep.subr.mxu0 0.0
        %1357 = vmatpush1.msra.mxu0 0.0
        %1358 = vmatprep.subr.mxu0 0.0
        %1359 = vmatpush1.msra.mxu0 0.0
        %1360 = vmatprep.subr.mxu0 0.0
        %1361 = vmatpush1.msra.mxu0 0.0
        %1362 = vmatprep.subr.mxu0 0.0
        %1363 = vmatpush1.msra.mxu0 0.0
        %1364 = vmatprep.subr.mxu0 0.0
        %1365 = vmatpush1.msra.mxu0 0.0
        %1366 = vmatprep.subr.mxu0 0.0
        %1367 = vmatpush1.msra.mxu0 0.0
        %1368 = vmatprep.subr.mxu0 0.0
        %1369 = vmatpush1.msra.mxu0 0.0
        %1370 = vmatprep.subr.mxu0 0.0
        %1371 = vmatpush1.msra.mxu0 0.0
        %1372 = vmatprep.subr.mxu0 0.0
        %1373 = vmatpush1.msra.mxu0 0.0
        %1374 = vmatprep.subr.mxu0 0.0
        %1375 = vmatpush1.msra.mxu0 0.0
        %1376 = vmatprep.subr.mxu0 0.0
        %1377 = vmatpush1.msra.mxu0 0.0
        %1378 = vmatprep.subr.mxu0 0.0
        %1379 = vmatpush1.msra.mxu0 0.0
        %1380 = vmatprep.subr.mxu0 0.0
        %1381 = vmatpush1.msra.mxu0 0.0
        %1382 = vmatprep.subr.mxu0 0.0
        %1383 = vmatpush1.msra.mxu0 0.0
        %1384 = vmatprep.subr.mxu0 0.0
        %1385 = vmatpush1.msra.mxu0 0.0
        %1386 = vmatprep.subr.mxu0 0.0
        %1387 = vmatpush1.msra.mxu0 0.0
        %1388 = vmatprep.subr.mxu0 0.0
        %1389 = vmatpush1.msra.mxu0 0.0
        %1390 = vmatprep.subr.mxu0 0.0
        %1391 = vmatpush1.msra.mxu0 0.0
        %1392 = vmatprep.subr.mxu0 0.0
        %1393 = vmatpush1.msra.mxu0 0.0
        %1394 = vmatprep.subr.mxu0 0.0
        %1395 = vmatpush1.msra.mxu0 0.0
        %1396 = vmatprep.subr.mxu0 0.0
        %1397 = vmatpush1.msra.mxu0 0.0
        %1398 = vmatprep.mubr.f32.mxu0 0.0
        %1399 = vmatmul.mubr.f32.gmra.mrb[0].mxu0 %v1323
        %v1400 = vpop.f32.mrb[0].mxu0
        %v1401 = vadd.f32 0.0, %v1400
        %v1402 = vpop.f32.mrb[0].mxu0
        %1403 = vmatprep.mubr.f32.mxu0 0.0
        %1404 = vmatmul.mubr.f32.gmra.mrb[0].mxu0 %v1326
        %v1405 = vpop.f32.mrb[0].mxu0
        %v1406 = vadd.f32 0.0, %v1405
        %v1407 = vpop.f32.mrb[0].mxu0
        %1408 = vmatprep.mubr.f32.mxu0 0.0
        %1409 = vmatmul.mubr.f32.gmra.mrb[0].mxu0 %v1329
        %v1410 = vpop.f32.mrb[0].mxu0
        %v1411 = vadd.f32 0.0, %v1410
        %v1412 = vpop.f32.mrb[0].mxu0
        %1413 = vmatprep.mubr.f32.mxu0 0.0
        %1414 = vmatmul.mubr.f32.gmra.mrb[0].mxu0 %v1332
        %v1415 = vpop.f32.mrb[0].mxu0
        %v1416 = vadd.f32 0.0, %v1415
        %v1417 = vpop.f32.mrb[0].mxu0
        %1418 = vdwg.mxu0
        %v1420 = vsel %vm789, %v1034, 0
        %v1423 = vsel %vm789, %v1039, 0
        %v1426 = vsel %vm789, %v1044, 0
        %v1429 = vsel %vm789, %v1049, 0
        %1431 = vmatprep.subr.mxu0 0.0
        %1432 = vmatpush1.msra.mxu0 %v585
        %1433 = vmatprep.subr.mxu0 0.0
        %1434 = vmatpush1.msra.mxu0 0.0
        %1435 = vmatprep.subr.mxu0 0.0
        %1436 = vmatpush1.msra.mxu0 0.0
        %1437 = vmatprep.subr.mxu0 0.0
        %1438 = vmatpush1.msra.mxu0 0.0
        %1439 = vmatprep.subr.mxu0 0.0
        %1440 = vmatpush1.msra.mxu0 0.0
        %1441 = vmatprep.subr.mxu0 0.0
        %1442 = vmatpush1.msra.mxu0 0.0
        %1443 = vmatprep.subr.mxu0 0.0
        %1444 = vmatpush1.msra.mxu0 0.0
        %1445 = vmatprep.subr.mxu0 0.0
        %1446 = vmatpush1.msra.mxu0 0.0
        %1447 = vmatprep.subr.mxu0 0.0
        %1448 = vmatpush1.msra.mxu0 0.0
        %1449 = vmatprep.subr.mxu0 0.0
        %1450 = vmatpush1.msra.mxu0 0.0
        %1451 = vmatprep.subr.mxu0 0.0
        %1452 = vmatpush1.msra.mxu0 0.0
        %1453 = vmatprep.subr.mxu0 0.0
        %1454 = vmatpush1.msra.mxu0 0.0
        %1455 = vmatprep.subr.mxu0 0.0
        %1456 = vmatpush1.msra.mxu0 0.0
        %1457 = vmatprep.subr.mxu0 0.0
        %1458 = vmatpush1.msra.mxu0 0.0
        %1459 = vmatprep.subr.mxu0 0.0
        %1460 = vmatpush1.msra.mxu0 0.0
        %1461 = vmatprep.subr.mxu0 0.0
        %1462 = vmatpush1.msra.mxu0 0.0
        %1463 = vmatprep.subr.mxu0 0.0
        %1464 = vmatpush1.msra.mxu0 0.0
        %1465 = vmatprep.subr.mxu0 0.0
        %1466 = vmatpush1.msra.mxu0 0.0
        %1467 = vmatprep.subr.mxu0 0.0
        %1468 = vmatpush1.msra.mxu0 0.0
        %1469 = vmatprep.subr.mxu0 0.0
        %1470 = vmatpush1.msra.mxu0 0.0
        %1471 = vmatprep.subr.mxu0 0.0
        %1472 = vmatpush1.msra.mxu0 0.0
        %1473 = vmatprep.subr.mxu0 0.0
        %1474 = vmatpush1.msra.mxu0 0.0
        %1475 = vmatprep.subr.mxu0 0.0
        %1476 = vmatpush1.msra.mxu0 0.0
        %1477 = vmatprep.subr.mxu0 0.0
        %1478 = vmatpush1.msra.mxu0 0.0
        %1479 = vmatprep.subr.mxu0 0.0
        %1480 = vmatpush1.msra.mxu0 0.0
        %1481 = vmatprep.subr.mxu0 0.0
        %1482 = vmatpush1.msra.mxu0 0.0
        %1483 = vmatprep.subr.mxu0 0.0
        %1484 = vmatpush1.msra.mxu0 0.0
        %1485 = vmatprep.subr.mxu0 0.0
        %1486 = vmatpush1.msra.mxu0 0.0
        %1487 = vmatprep.subr.mxu0 0.0
        %1488 = vmatpush1.msra.mxu0 0.0
        %1489 = vmatprep.subr.mxu0 0.0
        %1490 = vmatpush1.msra.mxu0 0.0
        %1491 = vmatprep.subr.mxu0 0.0
        %1492 = vmatpush1.msra.mxu0 0.0
        %1493 = vmatprep.subr.mxu0 0.0
        %1494 = vmatpush1.msra.mxu0 0.0
        %1495 = vmatprep.mubr.f32.mxu0 0.0
        %1496 = vmatmul.mubr.f32.gmra.mrb[0].mxu0 %v1420
        %v1497 = vpop.f32.mrb[0].mxu0
        %v1498 = vadd.f32 %v1401, %v1497
        %v1499 = vpop.f32.mrb[0].mxu0
        %1500 = vmatprep.mubr.f32.mxu0 0.0
        %1501 = vmatmul.mubr.f32.gmra.mrb[0].mxu0 %v1423
        %v1502 = vpop.f32.mrb[0].mxu0
        %v1503 = vadd.f32 %v1406, %v1502
        %v1504 = vpop.f32.mrb[0].mxu0
        %1505 = vmatprep.mubr.f32.mxu0 0.0
        %1506 = vmatmul.mubr.f32.gmra.mrb[0].mxu0 %v1426
        %v1507 = vpop.f32.mrb[0].mxu0
        %v1508 = vadd.f32 %v1411, %v1507
        %v1509 = vpop.f32.mrb[0].mxu0
        %1510 = vmatprep.mubr.f32.mxu0 0.0
        %1511 = vmatmul.mubr.f32.gmra.mrb[0].mxu0 %v1429
        %v1512 = vpop.f32.mrb[0].mxu0
        %v1513 = vadd.f32 %v1416, %v1512
        %v1514 = vpop.f32.mrb[0].mxu0
        %1515 = vdwg.mxu0
        %1516 = vrot.lane.b32.xlu0 %v680, 112
        %v1517 = vpop.permute.xlu0 %1516
        %1518 = vrot.lane.b32.xlu0 %v685, 112
        %v1519 = vpop.permute.xlu0 %1518
        %1520 = vrot.lane.b32.xlu0 %v690, 112
        %v1521 = vpop.permute.xlu0 %1520
        %1522 = vrot.lane.b32.xlu0 %v695, 112
        %v1523 = vpop.permute.xlu0 %1522
        %1524 = vrot.lane.b32.xlu0 %v771, 112
        %v1525 = vpop.permute.xlu0 %1524
        %1526 = vrot.lane.b32.xlu0 %v776, 112
        %v1527 = vpop.permute.xlu0 %1526
        %1528 = vrot.lane.b32.xlu0 %v781, 112
        %v1529 = vpop.permute.xlu0 %1528
        %1530 = vrot.lane.b32.xlu0 %v786, 112
        %v1531 = vpop.permute.xlu0 %1530
        %v1532 = vsel %vm789, %v1517, 0
        %v1534 = vsel %vm789, %v1519, 0
        %v1536 = vsel %vm789, %v1521, 0
        %v1538 = vsel %vm789, %v1523, 0
        %v1540 = vsel %vm789, %v1525, 0
        %v1542 = vsel %vm789, %v1527, 0
        %v1544 = vsel %vm789, %v1529, 0
        %v1546 = vsel %vm789, %v1531, 0
        %1548 = vmatprep.subr.mxu0 0.0
        %1549 = vmatpush1.xpose.msra.mxu0 %v1540
        %1550 = vmatprep.subr.mxu0 0.0
        %1551 = vmatpush1.xpose.msra.mxu0 %v1542
        %1552 = vmatprep.subr.mxu0 0.0
        %1553 = vmatpush1.xpose.msra.mxu0 %v1544
        %1554 = vmatprep.subr.mxu0 0.0
        %1555 = vmatpush1.xpose.msra.mxu0 %v1546
        %1556 = vmatprep.subr.mxu0 0.0
        %1557 = vmatpush1.xpose.msra.mxu0 0.0
        %1558 = vmatprep.subr.mxu0 0.0
        %1559 = vmatpush1.xpose.msra.mxu0 0.0
        %1560 = vmatprep.subr.mxu0 0.0
        %1561 = vmatpush1.xpose.msra.mxu0 0.0
        %1562 = vmatprep.subr.mxu0 0.0
        %1563 = vmatpush1.xpose.msra.mxu0 0.0
        %1564 = vmatprep.subr.mxu0 0.0
        %1565 = vmatpush1.xpose.msra.mxu0 0.0
        %1566 = vmatprep.subr.mxu0 0.0
        %1567 = vmatpush1.xpose.msra.mxu0 0.0
        %1568 = vmatprep.subr.mxu0 0.0
        %1569 = vmatpush1.xpose.msra.mxu0 0.0
        %1570 = vmatprep.subr.mxu0 0.0
        %1571 = vmatpush1.xpose.msra.mxu0 0.0
        %1572 = vmatprep.subr.mxu0 0.0
        %1573 = vmatpush1.xpose.msra.mxu0 0.0
        %1574 = vmatprep.subr.mxu0 0.0
        %1575 = vmatpush1.xpose.msra.mxu0 0.0
        %1576 = vmatprep.subr.mxu0 0.0
        %1577 = vmatpush1.xpose.msra.mxu0 0.0
        %1578 = vmatprep.subr.mxu0 0.0
        %1579 = vmatpush1.xpose.msra.mxu0 0.0
        %1580 = vmatprep.subr.mxu0 0.0
        %1581 = vmatpush1.xpose.msra.mxu0 0.0
        %1582 = vmatprep.subr.mxu0 0.0
        %1583 = vmatpush1.xpose.msra.mxu0 0.0
        %1584 = vmatprep.subr.mxu0 0.0
        %1585 = vmatpush1.xpose.msra.mxu0 0.0
        %1586 = vmatprep.subr.mxu0 0.0
        %1587 = vmatpush1.xpose.msra.mxu0 0.0
        %1588 = vmatprep.subr.mxu0 0.0
        %1589 = vmatpush1.xpose.msra.mxu0 0.0
        %1590 = vmatprep.subr.mxu0 0.0
        %1591 = vmatpush1.xpose.msra.mxu0 0.0
        %1592 = vmatprep.subr.mxu0 0.0
        %1593 = vmatpush1.xpose.msra.mxu0 0.0
        %1594 = vmatprep.subr.mxu0 0.0
        %1595 = vmatpush1.xpose.msra.mxu0 0.0
        %1596 = vmatprep.subr.mxu0 0.0
        %1597 = vmatpush1.xpose.msra.mxu0 0.0
        %1598 = vmatprep.subr.mxu0 0.0
        %1599 = vmatpush1.xpose.msra.mxu0 0.0
        %1600 = vmatprep.subr.mxu0 0.0
        %1601 = vmatpush1.xpose.msra.mxu0 0.0
        %1602 = vmatprep.subr.mxu0 0.0
        %1603 = vmatpush1.xpose.msra.mxu0 0.0
        %1604 = vmatprep.subr.mxu0 0.0
        %1605 = vmatpush1.xpose.msra.mxu0 0.0
        %1606 = vmatprep.subr.mxu0 0.0
        %1607 = vmatpush1.xpose.msra.mxu0 0.0
        %1608 = vmatprep.subr.mxu0 0.0
        %1609 = vmatpush1.xpose.msra.mxu0 0.0
        %1610 = vmatprep.subr.mxu0 0.0
        %1611 = vmatpush1.xpose.msra.mxu0 0.0
        %1612 = vmatprep.mubr.f32.mxu0 0.0
        %1613 = vmatmul.mubr.f32.gmra.mrb[0].mxu0 %v1532
        %v1614 = vpop.f32.mrb[0].mxu0
        %v1615 = vadd.f32 %v590, %v1614
        %v1616 = vpop.f32.mrb[0].mxu0
        %1617 = vmatprep.mubr.f32.mxu0 0.0
        %1618 = vmatmul.mubr.f32.gmra.mrb[0].mxu0 %v1534
        %v1619 = vpop.f32.mrb[0].mxu0
        %v1620 = vadd.f32 %v591, %v1619
        %v1621 = vpop.f32.mrb[0].mxu0
        %1622 = vmatprep.mubr.f32.mxu0 0.0
        %1623 = vmatmul.mubr.f32.gmra.mrb[0].mxu0 %v1536
        %v1624 = vpop.f32.mrb[0].mxu0
        %v1625 = vadd.f32 %v592, %v1624
        %v1626 = vpop.f32.mrb[0].mxu0
        %1627 = vmatprep.mubr.f32.mxu0 0.0
        %1628 = vmatmul.mubr.f32.gmra.mrb[0].mxu0 %v1538
        %v1629 = vpop.f32.mrb[0].mxu0
        %v1630 = vadd.f32 %v593, %v1629
        %v1631 = vpop.f32.mrb[0].mxu0
        %1632 = vdwg.mxu0
        %v1633 = vsel %vm600, %v1615, -inf
        %1634 = vmax.xlane.f32.xlu0 %v1633
        %v1635 = vpop.xlane.xlu0 %1634
        %v1636 = vsel %vm600, %v1620, -inf
        %1637 = vmax.xlane.f32.xlu0 %v1636
        %v1638 = vpop.xlane.xlu0 %1637
        %v1639 = vsel %vm600, %v1625, -inf
        %1640 = vmax.xlane.f32.xlu0 %v1639
        %v1641 = vpop.xlane.xlu0 %1640
        %v1642 = vsel %vm600, %v1630, -inf
        %1643 = vmax.xlane.f32.xlu0 %v1642
        %v1644 = vpop.xlane.xlu0 %1643
        %v1645 = vsub.f32 %v1615, %v1635
        %v1646 = vsub.f32 %v1620, %v1638
        %v1647 = vsub.f32 %v1625, %v1641
        %v1648 = vsub.f32 %v1630, %v1644
        %v1649 = vmul.f32 %v1645, 1.442695
        %v1650 = vpow.pop %v1649
        %v1651 = vmul.f32 %v1646, 1.442695
        %v1652 = vpow.pop %v1651
        %v1653 = vmul.f32 %v1647, 1.442695
        %v1654 = vpow.pop %v1653
        %v1655 = vmul.f32 %v1648, 1.442695
        %v1656 = vpow.pop %v1655
        %v1657 = vsel %vm600, %v1650, 0.0
        %1658 = vadd.xlane.f32.xlu0 %v1657
        %v1659 = vpop.xlane.xlu0 %1658
        %v1660 = vsel %vm600, %v1652, 0.0
        %1661 = vadd.xlane.f32.xlu0 %v1660
        %v1662 = vpop.xlane.xlu0 %1661
        %v1663 = vsel %vm600, %v1654, 0.0
        %1664 = vadd.xlane.f32.xlu0 %v1663
        %v1665 = vpop.xlane.xlu0 %1664
        %v1666 = vsel %vm600, %v1656, 0.0
        %1667 = vadd.xlane.f32.xlu0 %v1666
        %v1668 = vpop.xlane.xlu0 %1667
        %v1669 = vrcp.pop %v1659
        %v1670 = vrcp.pop %v1662
        %v1671 = vrcp.pop %v1665
        %v1672 = vrcp.pop %v1668
        %v1673 = vmul.f32 %v1650, %v1669
        %v1674 = vmul.f32 %v1652, %v1670
        %v1675 = vmul.f32 %v1654, %v1671
        %v1676 = vmul.f32 %v1656, %v1672
        %1677 = vrot.lane.b32.xlu0 %v771, 80
        %v1678 = vpop.permute.xlu0 %1677
        %1679 = vrot.lane.b32.xlu0 %v776, 80
        %v1680 = vpop.permute.xlu0 %1679
        %1681 = vrot.lane.b32.xlu0 %v781, 80
        %v1682 = vpop.permute.xlu0 %1681
        %1683 = vrot.lane.b32.xlu0 %v786, 80
        %v1684 = vpop.permute.xlu0 %1683
        %v1690 = vsel %vm600, %v1673, 0
        %v1693 = vsel %vm600, %v1674, 0
        %v1696 = vsel %vm600, %v1675, 0
        %v1699 = vsel %vm600, %v1676, 0
        %1701 = vmatprep.subr.mxu0 0.0
        %1702 = vmatpush1.msra.mxu0 %v1678
        %1703 = vmatprep.subr.mxu0 0.0
        %1704 = vmatpush1.msra.mxu0 %v1680
        %1705 = vmatprep.subr.mxu0 0.0
        %1706 = vmatpush1.msra.mxu0 %v1682
        %1707 = vmatprep.subr.mxu0 0.0
        %1708 = vmatpush1.msra.mxu0 %v1684
        %1709 = vmatprep.subr.mxu0 0.0
        %1710 = vmatpush1.msra.mxu0 0.0
        %1711 = vmatprep.subr.mxu0 0.0
        %1712 = vmatpush1.msra.mxu0 0.0
        %1713 = vmatprep.subr.mxu0 0.0
        %1714 = vmatpush1.msra.mxu0 0.0
        %1715 = vmatprep.subr.mxu0 0.0
        %1716 = vmatpush1.msra.mxu0 0.0
        %1717 = vmatprep.subr.mxu0 0.0
        %1718 = vmatpush1.msra.mxu0 0.0
        %1719 = vmatprep.subr.mxu0 0.0
        %1720 = vmatpush1.msra.mxu0 0.0
        %1721 = vmatprep.subr.mxu0 0.0
        %1722 = vmatpush1.msra.mxu0 0.0
        %1723 = vmatprep.subr.mxu0 0.0
        %1724 = vmatpush1.msra.mxu0 0.0
        %1725 = vmatprep.subr.mxu0 0.0
        %1726 = vmatpush1.msra.mxu0 0.0
        %1727 = vmatprep.subr.mxu0 0.0
        %1728 = vmatpush1.msra.mxu0 0.0
        %1729 = vmatprep.subr.mxu0 0.0
        %1730 = vmatpush1.msra.mxu0 0.0
        %1731 = vmatprep.subr.mxu0 0.0
        %1732 = vmatpush1.msra.mxu0 0.0
        %1733 = vmatprep.subr.mxu0 0.0
        %1734 = vmatpush1.msra.mxu0 0.0
        %1735 = vmatprep.subr.mxu0 0.0
        %1736 = vmatpush1.msra.mxu0 0.0
        %1737 = vmatprep.subr.mxu0 0.0
        %1738 = vmatpush1.msra.mxu0 0.0
        %1739 = vmatprep.subr.mxu0 0.0
        %1740 = vmatpush1.msra.mxu0 0.0
        %1741 = vmatprep.subr.mxu0 0.0
        %1742 = vmatpush1.msra.mxu0 0.0
        %1743 = vmatprep.subr.mxu0 0.0
        %1744 = vmatpush1.msra.mxu0 0.0
        %1745 = vmatprep.subr.mxu0 0.0
        %1746 = vmatpush1.msra.mxu0 0.0
        %1747 = vmatprep.subr.mxu0 0.0
        %1748 = vmatpush1.msra.mxu0 0.0
        %1749 = vmatprep.subr.mxu0 0.0
        %1750 = vmatpush1.msra.mxu0 0.0
        %1751 = vmatprep.subr.mxu0 0.0
        %1752 = vmatpush1.msra.mxu0 0.0
        %1753 = vmatprep.subr.mxu0 0.0
        %1754 = vmatpush1.msra.mxu0 0.0
        %1755 = vmatprep.subr.mxu0 0.0
        %1756 = vmatpush1.msra.mxu0 0.0
        %1757 = vmatprep.subr.mxu0 0.0
        %1758 = vmatpush1.msra.mxu0 0.0
        %1759 = vmatprep.subr.mxu0 0.0
        %1760 = vmatpush1.msra.mxu0 0.0
        %1761 = vmatprep.subr.mxu0 0.0
        %1762 = vmatpush1.msra.mxu0 0.0
        %1763 = vmatprep.subr.mxu0 0.0
        %1764 = vmatpush1.msra.mxu0 0.0
        %1765 = vmatprep.mubr.f32.mxu0 0.0
        %1766 = vmatmul.mubr.f32.gmra.mrb[0].mxu0 %v1690
        %v1767 = vpop.f32.mrb[0].mxu0
        %v1768 = vadd.f32 0.0, %v1767
        %v1769 = vpop.f32.mrb[0].mxu0
        %1770 = vmatprep.mubr.f32.mxu0 0.0
        %1771 = vmatmul.mubr.f32.gmra.mrb[0].mxu0 %v1693
        %v1772 = vpop.f32.mrb[0].mxu0
        %v1773 = vadd.f32 0.0, %v1772
        %v1774 = vpop.f32.mrb[0].mxu0
        %1775 = vmatprep.mubr.f32.mxu0 0.0
        %1776 = vmatmul.mubr.f32.gmra.mrb[0].mxu0 %v1696
        %v1777 = vpop.f32.mrb[0].mxu0
        %v1778 = vadd.f32 0.0, %v1777
        %v1779 = vpop.f32.mrb[0].mxu0
        %1780 = vmatprep.mubr.f32.mxu0 0.0
        %1781 = vmatmul.mubr.f32.gmra.mrb[0].mxu0 %v1699
        %v1782 = vpop.f32.mrb[0].mxu0
        %v1783 = vadd.f32 0.0, %v1782
        %v1784 = vpop.f32.mrb[0].mxu0
        %1785 = vdwg.mxu0
        %v1787 = vsel %vm789, %v1768, 0
        %v1790 = vsel %vm789, %v1773, 0
        %v1793 = vsel %vm789, %v1778, 0
        %v1796 = vsel %vm789, %v1783, 0
        %1798 = vmatprep.subr.mxu0 0.0
        %1799 = vmatpush1.msra.mxu0 %v587
        %1800 = vmatprep.subr.mxu0 0.0
        %1801 = vmatpush1.msra.mxu0 0.0
        %1802 = vmatprep.subr.mxu0 0.0
        %1803 = vmatpush1.msra.mxu0 0.0
        %1804 = vmatprep.subr.mxu0 0.0
        %1805 = vmatpush1.msra.mxu0 0.0
        %1806 = vmatprep.subr.mxu0 0.0
        %1807 = vmatpush1.msra.mxu0 0.0
        %1808 = vmatprep.subr.mxu0 0.0
        %1809 = vmatpush1.msra.mxu0 0.0
        %1810 = vmatprep.subr.mxu0 0.0
        %1811 = vmatpush1.msra.mxu0 0.0
        %1812 = vmatprep.subr.mxu0 0.0
        %1813 = vmatpush1.msra.mxu0 0.0
        %1814 = vmatprep.subr.mxu0 0.0
        %1815 = vmatpush1.msra.mxu0 0.0
        %1816 = vmatprep.subr.mxu0 0.0
        %1817 = vmatpush1.msra.mxu0 0.0
        %1818 = vmatprep.subr.mxu0 0.0
        %1819 = vmatpush1.msra.mxu0 0.0
        %1820 = vmatprep.subr.mxu0 0.0
        %1821 = vmatpush1.msra.mxu0 0.0
        %1822 = vmatprep.subr.mxu0 0.0
        %1823 = vmatpush1.msra.mxu0 0.0
        %1824 = vmatprep.subr.mxu0 0.0
        %1825 = vmatpush1.msra.mxu0 0.0
        %1826 = vmatprep.subr.mxu0 0.0
        %1827 = vmatpush1.msra.mxu0 0.0
        %1828 = vmatprep.subr.mxu0 0.0
        %1829 = vmatpush1.msra.mxu0 0.0
        %1830 = vmatprep.subr.mxu0 0.0
        %1831 = vmatpush1.msra.mxu0 0.0
        %1832 = vmatprep.subr.mxu0 0.0
        %1833 = vmatpush1.msra.mxu0 0.0
        %1834 = vmatprep.subr.mxu0 0.0
        %1835 = vmatpush1.msra.mxu0 0.0
        %1836 = vmatprep.subr.mxu0 0.0
        %1837 = vmatpush1.msra.mxu0 0.0
        %1838 = vmatprep.subr.mxu0 0.0
        %1839 = vmatpush1.msra.mxu0 0.0
        %1840 = vmatprep.subr.mxu0 0.0
        %1841 = vmatpush1.msra.mxu0 0.0
        %1842 = vmatprep.subr.mxu0 0.0
        %1843 = vmatpush1.msra.mxu0 0.0
        %1844 = vmatprep.subr.mxu0 0.0
        %1845 = vmatpush1.msra.mxu0 0.0
        %1846 = vmatprep.subr.mxu0 0.0
        %1847 = vmatpush1.msra.mxu0 0.0
        %1848 = vmatprep.subr.mxu0 0.0
        %1849 = vmatpush1.msra.mxu0 0.0
        %1850 = vmatprep.subr.mxu0 0.0
        %1851 = vmatpush1.msra.mxu0 0.0
        %1852 = vmatprep.subr.mxu0 0.0
        %1853 = vmatpush1.msra.mxu0 0.0
        %1854 = vmatprep.subr.mxu0 0.0
        %1855 = vmatpush1.msra.mxu0 0.0
        %1856 = vmatprep.subr.mxu0 0.0
        %1857 = vmatpush1.msra.mxu0 0.0
        %1858 = vmatprep.subr.mxu0 0.0
        %1859 = vmatpush1.msra.mxu0 0.0
        %1860 = vmatprep.subr.mxu0 0.0
        %1861 = vmatpush1.msra.mxu0 0.0
        %1862 = vmatprep.mubr.f32.mxu0 0.0
        %1863 = vmatmul.mubr.f32.gmra.mrb[0].mxu0 %v1787
        %v1864 = vpop.f32.mrb[0].mxu0
        %v1865 = vadd.f32 0.0, %v1864
        %v1866 = vpop.f32.mrb[0].mxu0
        %1867 = vmatprep.mubr.f32.mxu0 0.0
        %1868 = vmatmul.mubr.f32.gmra.mrb[0].mxu0 %v1790
        %v1869 = vpop.f32.mrb[0].mxu0
        %v1870 = vadd.f32 0.0, %v1869
        %v1871 = vpop.f32.mrb[0].mxu0
        %1872 = vmatprep.mubr.f32.mxu0 0.0
        %1873 = vmatmul.mubr.f32.gmra.mrb[0].mxu0 %v1793
        %v1874 = vpop.f32.mrb[0].mxu0
        %v1875 = vadd.f32 0.0, %v1874
        %v1876 = vpop.f32.mrb[0].mxu0
        %1877 = vmatprep.mubr.f32.mxu0 0.0
        %1878 = vmatmul.mubr.f32.gmra.mrb[0].mxu0 %v1796
        %v1879 = vpop.f32.mrb[0].mxu0
        %v1880 = vadd.f32 0.0, %v1879
        %v1881 = vpop.f32.mrb[0].mxu0
        %1882 = vdwg.mxu0
        %v1883 = vadd.f32 %v1498, %v1865
        %v1884 = vadd.f32 %v1503, %v1870
        %v1885 = vadd.f32 %v1508, %v1875
        %v1886 = vadd.f32 %v1513, %v1880
        %1887 = vrot.lane.b32.xlu0 %v680, 104
        %v1888 = vpop.permute.xlu0 %1887
        %1889 = vrot.lane.b32.xlu0 %v685, 104
        %v1890 = vpop.permute.xlu0 %1889
        %1891 = vrot.lane.b32.xlu0 %v690, 104
        %v1892 = vpop.permute.xlu0 %1891
        %1893 = vrot.lane.b32.xlu0 %v695, 104
        %v1894 = vpop.permute.xlu0 %1893
        %1895 = vrot.lane.b32.xlu0 %v771, 104
        %v1896 = vpop.permute.xlu0 %1895
        %1897 = vrot.lane.b32.xlu0 %v776, 104
        %v1898 = vpop.permute.xlu0 %1897
        %1899 = vrot.lane.b32.xlu0 %v781, 104
        %v1900 = vpop.permute.xlu0 %1899
        %1901 = vrot.lane.b32.xlu0 %v786, 104
        %v1902 = vpop.permute.xlu0 %1901
        %v1903 = vsel %vm789, %v1888, 0
        %v1905 = vsel %vm789, %v1890, 0
        %v1907 = vsel %vm789, %v1892, 0
        %v1909 = vsel %vm789, %v1894, 0
        %v1911 = vsel %vm789, %v1896, 0
        %v1913 = vsel %vm789, %v1898, 0
        %v1915 = vsel %vm789, %v1900, 0
        %v1917 = vsel %vm789, %v1902, 0
        %1919 = vmatprep.subr.mxu0 0.0
        %1920 = vmatpush1.xpose.msra.mxu0 %v1911
        %1921 = vmatprep.subr.mxu0 0.0
        %1922 = vmatpush1.xpose.msra.mxu0 %v1913
        %1923 = vmatprep.subr.mxu0 0.0
        %1924 = vmatpush1.xpose.msra.mxu0 %v1915
        %1925 = vmatprep.subr.mxu0 0.0
        %1926 = vmatpush1.xpose.msra.mxu0 %v1917
        %1927 = vmatprep.subr.mxu0 0.0
        %1928 = vmatpush1.xpose.msra.mxu0 0.0
        %1929 = vmatprep.subr.mxu0 0.0
        %1930 = vmatpush1.xpose.msra.mxu0 0.0
        %1931 = vmatprep.subr.mxu0 0.0
        %1932 = vmatpush1.xpose.msra.mxu0 0.0
        %1933 = vmatprep.subr.mxu0 0.0
        %1934 = vmatpush1.xpose.msra.mxu0 0.0
        %1935 = vmatprep.subr.mxu0 0.0
        %1936 = vmatpush1.xpose.msra.mxu0 0.0
        %1937 = vmatprep.subr.mxu0 0.0
        %1938 = vmatpush1.xpose.msra.mxu0 0.0
        %1939 = vmatprep.subr.mxu0 0.0
        %1940 = vmatpush1.xpose.msra.mxu0 0.0
        %1941 = vmatprep.subr.mxu0 0.0
        %1942 = vmatpush1.xpose.msra.mxu0 0.0
        %1943 = vmatprep.subr.mxu0 0.0
        %1944 = vmatpush1.xpose.msra.mxu0 0.0
        %1945 = vmatprep.subr.mxu0 0.0
        %1946 = vmatpush1.xpose.msra.mxu0 0.0
        %1947 = vmatprep.subr.mxu0 0.0
        %1948 = vmatpush1.xpose.msra.mxu0 0.0
        %1949 = vmatprep.subr.mxu0 0.0
        %1950 = vmatpush1.xpose.msra.mxu0 0.0
        %1951 = vmatprep.subr.mxu0 0.0
        %1952 = vmatpush1.xpose.msra.mxu0 0.0
        %1953 = vmatprep.subr.mxu0 0.0
        %1954 = vmatpush1.xpose.msra.mxu0 0.0
        %1955 = vmatprep.subr.mxu0 0.0
        %1956 = vmatpush1.xpose.msra.mxu0 0.0
        %1957 = vmatprep.subr.mxu0 0.0
        %1958 = vmatpush1.xpose.msra.mxu0 0.0
        %1959 = vmatprep.subr.mxu0 0.0
        %1960 = vmatpush1.xpose.msra.mxu0 0.0
        %1961 = vmatprep.subr.mxu0 0.0
        %1962 = vmatpush1.xpose.msra.mxu0 0.0
        %1963 = vmatprep.subr.mxu0 0.0
        %1964 = vmatpush1.xpose.msra.mxu0 0.0
        %1965 = vmatprep.subr.mxu0 0.0
        %1966 = vmatpush1.xpose.msra.mxu0 0.0
        %1967 = vmatprep.subr.mxu0 0.0
        %1968 = vmatpush1.xpose.msra.mxu0 0.0
        %1969 = vmatprep.subr.mxu0 0.0
        %1970 = vmatpush1.xpose.msra.mxu0 0.0
        %1971 = vmatprep.subr.mxu0 0.0
        %1972 = vmatpush1.xpose.msra.mxu0 0.0
        %1973 = vmatprep.subr.mxu0 0.0
        %1974 = vmatpush1.xpose.msra.mxu0 0.0
        %1975 = vmatprep.subr.mxu0 0.0
        %1976 = vmatpush1.xpose.msra.mxu0 0.0
        %1977 = vmatprep.subr.mxu0 0.0
        %1978 = vmatpush1.xpose.msra.mxu0 0.0
        %1979 = vmatprep.subr.mxu0 0.0
        %1980 = vmatpush1.xpose.msra.mxu0 0.0
        %1981 = vmatprep.subr.mxu0 0.0
        %1982 = vmatpush1.xpose.msra.mxu0 0.0
        %1983 = vmatprep.mubr.f32.mxu0 0.0
        %1984 = vmatmul.mubr.f32.gmra.mrb[0].mxu0 %v1903
        %v1985 = vpop.f32.mrb[0].mxu0
        %v1986 = vadd.f32 %v590, %v1985
        %v1987 = vpop.f32.mrb[0].mxu0
        %1988 = vmatprep.mubr.f32.mxu0 0.0
        %1989 = vmatmul.mubr.f32.gmra.mrb[0].mxu0 %v1905
        %v1990 = vpop.f32.mrb[0].mxu0
        %v1991 = vadd.f32 %v591, %v1990
        %v1992 = vpop.f32.mrb[0].mxu0
        %1993 = vmatprep.mubr.f32.mxu0 0.0
        %1994 = vmatmul.mubr.f32.gmra.mrb[0].mxu0 %v1907
        %v1995 = vpop.f32.mrb[0].mxu0
        %v1996 = vadd.f32 %v592, %v1995
        %v1997 = vpop.f32.mrb[0].mxu0
        %1998 = vmatprep.mubr.f32.mxu0 0.0
        %1999 = vmatmul.mubr.f32.gmra.mrb[0].mxu0 %v1909
        %v2000 = vpop.f32.mrb[0].mxu0
        %v2001 = vadd.f32 %v593, %v2000
        %v2002 = vpop.f32.mrb[0].mxu0
        %2003 = vdwg.mxu0
        %v2004 = vsel %vm600, %v1986, -inf
        %2005 = vmax.xlane.f32.xlu0 %v2004
        %v2006 = vpop.xlane.xlu0 %2005
        %v2007 = vsel %vm600, %v1991, -inf
        %2008 = vmax.xlane.f32.xlu0 %v2007
        %v2009 = vpop.xlane.xlu0 %2008
        %v2010 = vsel %vm600, %v1996, -inf
        %2011 = vmax.xlane.f32.xlu0 %v2010
        %v2012 = vpop.xlane.xlu0 %2011
        %v2013 = vsel %vm600, %v2001, -inf
        %2014 = vmax.xlane.f32.xlu0 %v2013
        %v2015 = vpop.xlane.xlu0 %2014
        %v2016 = vsub.f32 %v1986, %v2006
        %v2017 = vsub.f32 %v1991, %v2009
        %v2018 = vsub.f32 %v1996, %v2012
        %v2019 = vsub.f32 %v2001, %v2015
        %v2020 = vmul.f32 %v2016, 1.442695
        %v2021 = vpow.pop %v2020
        %v2022 = vmul.f32 %v2017, 1.442695
        %v2023 = vpow.pop %v2022
        %v2024 = vmul.f32 %v2018, 1.442695
        %v2025 = vpow.pop %v2024
        %v2026 = vmul.f32 %v2019, 1.442695
        %v2027 = vpow.pop %v2026
        %v2028 = vsel %vm600, %v2021, 0.0
        %2029 = vadd.xlane.f32.xlu0 %v2028
        %v2030 = vpop.xlane.xlu0 %2029
        %v2031 = vsel %vm600, %v2023, 0.0
        %2032 = vadd.xlane.f32.xlu0 %v2031
        %v2033 = vpop.xlane.xlu0 %2032
        %v2034 = vsel %vm600, %v2025, 0.0
        %2035 = vadd.xlane.f32.xlu0 %v2034
        %v2036 = vpop.xlane.xlu0 %2035
        %v2037 = vsel %vm600, %v2027, 0.0
        %2038 = vadd.xlane.f32.xlu0 %v2037
        %v2039 = vpop.xlane.xlu0 %2038
        %v2040 = vrcp.pop %v2030
        %v2041 = vrcp.pop %v2033
        %v2042 = vrcp.pop %v2036
        %v2043 = vrcp.pop %v2039
        %v2044 = vmul.f32 %v2021, %v2040
        %v2045 = vmul.f32 %v2023, %v2041
        %v2046 = vmul.f32 %v2025, %v2042
        %v2047 = vmul.f32 %v2027, %v2043
        %2048 = vrot.lane.b32.xlu0 %v771, 72
        %v2049 = vpop.permute.xlu0 %2048
        %2050 = vrot.lane.b32.xlu0 %v776, 72
        %v2051 = vpop.permute.xlu0 %2050
        %2052 = vrot.lane.b32.xlu0 %v781, 72
        %v2053 = vpop.permute.xlu0 %2052
        %2054 = vrot.lane.b32.xlu0 %v786, 72
        %v2055 = vpop.permute.xlu0 %2054
        %v2061 = vsel %vm600, %v2044, 0
        %v2064 = vsel %vm600, %v2045, 0
        %v2067 = vsel %vm600, %v2046, 0
        %v2070 = vsel %vm600, %v2047, 0
        %2072 = vmatprep.subr.mxu0 0.0
        %2073 = vmatpush1.msra.mxu0 %v2049
        %2074 = vmatprep.subr.mxu0 0.0
        %2075 = vmatpush1.msra.mxu0 %v2051
        %2076 = vmatprep.subr.mxu0 0.0
        %2077 = vmatpush1.msra.mxu0 %v2053
        %2078 = vmatprep.subr.mxu0 0.0
        %2079 = vmatpush1.msra.mxu0 %v2055
        %2080 = vmatprep.subr.mxu0 0.0
        %2081 = vmatpush1.msra.mxu0 0.0
        %2082 = vmatprep.subr.mxu0 0.0
        %2083 = vmatpush1.msra.mxu0 0.0
        %2084 = vmatprep.subr.mxu0 0.0
        %2085 = vmatpush1.msra.mxu0 0.0
        %2086 = vmatprep.subr.mxu0 0.0
        %2087 = vmatpush1.msra.mxu0 0.0
        %2088 = vmatprep.subr.mxu0 0.0
        %2089 = vmatpush1.msra.mxu0 0.0
        %2090 = vmatprep.subr.mxu0 0.0
        %2091 = vmatpush1.msra.mxu0 0.0
        %2092 = vmatprep.subr.mxu0 0.0
        %2093 = vmatpush1.msra.mxu0 0.0
        %2094 = vmatprep.subr.mxu0 0.0
        %2095 = vmatpush1.msra.mxu0 0.0
        %2096 = vmatprep.subr.mxu0 0.0
        %2097 = vmatpush1.msra.mxu0 0.0
        %2098 = vmatprep.subr.mxu0 0.0
        %2099 = vmatpush1.msra.mxu0 0.0
        %2100 = vmatprep.subr.mxu0 0.0
        %2101 = vmatpush1.msra.mxu0 0.0
        %2102 = vmatprep.subr.mxu0 0.0
        %2103 = vmatpush1.msra.mxu0 0.0
        %2104 = vmatprep.subr.mxu0 0.0
        %2105 = vmatpush1.msra.mxu0 0.0
        %2106 = vmatprep.subr.mxu0 0.0
        %2107 = vmatpush1.msra.mxu0 0.0
        %2108 = vmatprep.subr.mxu0 0.0
        %2109 = vmatpush1.msra.mxu0 0.0
        %2110 = vmatprep.subr.mxu0 0.0
        %2111 = vmatpush1.msra.mxu0 0.0
        %2112 = vmatprep.subr.mxu0 0.0
        %2113 = vmatpush1.msra.mxu0 0.0
        %2114 = vmatprep.subr.mxu0 0.0
        %2115 = vmatpush1.msra.mxu0 0.0
        %2116 = vmatprep.subr.mxu0 0.0
        %2117 = vmatpush1.msra.mxu0 0.0
        %2118 = vmatprep.subr.mxu0 0.0
        %2119 = vmatpush1.msra.mxu0 0.0
        %2120 = vmatprep.subr.mxu0 0.0
        %2121 = vmatpush1.msra.mxu0 0.0
        %2122 = vmatprep.subr.mxu0 0.0
        %2123 = vmatpush1.msra.mxu0 0.0
        %2124 = vmatprep.subr.mxu0 0.0
        %2125 = vmatpush1.msra.mxu0 0.0
        %2126 = vmatprep.subr.mxu0 0.0
        %2127 = vmatpush1.msra.mxu0 0.0
        %2128 = vmatprep.subr.mxu0 0.0
        %2129 = vmatpush1.msra.mxu0 0.0
        %2130 = vmatprep.subr.mxu0 0.0
        %2131 = vmatpush1.msra.mxu0 0.0
        %2132 = vmatprep.subr.mxu0 0.0
        %2133 = vmatpush1.msra.mxu0 0.0
        %2134 = vmatprep.subr.mxu0 0.0
        %2135 = vmatpush1.msra.mxu0 0.0
        %2136 = vmatprep.mubr.f32.mxu0 0.0
        %2137 = vmatmul.mubr.f32.gmra.mrb[0].mxu0 %v2061
        %v2138 = vpop.f32.mrb[0].mxu0
        %v2139 = vadd.f32 0.0, %v2138
        %v2140 = vpop.f32.mrb[0].mxu0
        %2141 = vmatprep.mubr.f32.mxu0 0.0
        %2142 = vmatmul.mubr.f32.gmra.mrb[0].mxu0 %v2064
        %v2143 = vpop.f32.mrb[0].mxu0
        %v2144 = vadd.f32 0.0, %v2143
        %v2145 = vpop.f32.mrb[0].mxu0
        %2146 = vmatprep.mubr.f32.mxu0 0.0
        %2147 = vmatmul.mubr.f32.gmra.mrb[0].mxu0 %v2067
        %v2148 = vpop.f32.mrb[0].mxu0
        %v2149 = vadd.f32 0.0, %v2148
        %v2150 = vpop.f32.mrb[0].mxu0
        %2151 = vmatprep.mubr.f32.mxu0 0.0
        %2152 = vmatmul.mubr.f32.gmra.mrb[0].mxu0 %v2070
        %v2153 = vpop.f32.mrb[0].mxu0
        %v2154 = vadd.f32 0.0, %v2153
        %v2155 = vpop.f32.mrb[0].mxu0
        %2156 = vdwg.mxu0
        %v2158 = vsel %vm789, %v2139, 0
        %v2161 = vsel %vm789, %v2144, 0
        %v2164 = vsel %vm789, %v2149, 0
        %v2167 = vsel %vm789, %v2154, 0
        %2169 = vmatprep.subr.mxu0 0.0
        %2170 = vmatpush1.msra.mxu0 %v588
        %2171 = vmatprep.subr.mxu0 0.0
        %2172 = vmatpush1.msra.mxu0 0.0
        %2173 = vmatprep.subr.mxu0 0.0
        %2174 = vmatpush1.msra.mxu0 0.0
        %2175 = vmatprep.subr.mxu0 0.0
        %2176 = vmatpush1.msra.mxu0 0.0
        %2177 = vmatprep.subr.mxu0 0.0
        %2178 = vmatpush1.msra.mxu0 0.0
        %2179 = vmatprep.subr.mxu0 0.0
        %2180 = vmatpush1.msra.mxu0 0.0
        %2181 = vmatprep.subr.mxu0 0.0
        %2182 = vmatpush1.msra.mxu0 0.0
        %2183 = vmatprep.subr.mxu0 0.0
        %2184 = vmatpush1.msra.mxu0 0.0
        %2185 = vmatprep.subr.mxu0 0.0
        %2186 = vmatpush1.msra.mxu0 0.0
        %2187 = vmatprep.subr.mxu0 0.0
        %2188 = vmatpush1.msra.mxu0 0.0
        %2189 = vmatprep.subr.mxu0 0.0
        %2190 = vmatpush1.msra.mxu0 0.0
        %2191 = vmatprep.subr.mxu0 0.0
        %2192 = vmatpush1.msra.mxu0 0.0
        %2193 = vmatprep.subr.mxu0 0.0
        %2194 = vmatpush1.msra.mxu0 0.0
        %2195 = vmatprep.subr.mxu0 0.0
        %2196 = vmatpush1.msra.mxu0 0.0
        %2197 = vmatprep.subr.mxu0 0.0
        %2198 = vmatpush1.msra.mxu0 0.0
        %2199 = vmatprep.subr.mxu0 0.0
        %2200 = vmatpush1.msra.mxu0 0.0
        %2201 = vmatprep.subr.mxu0 0.0
        %2202 = vmatpush1.msra.mxu0 0.0
        %2203 = vmatprep.subr.mxu0 0.0
        %2204 = vmatpush1.msra.mxu0 0.0
        %2205 = vmatprep.subr.mxu0 0.0
        %2206 = vmatpush1.msra.mxu0 0.0
        %2207 = vmatprep.subr.mxu0 0.0
        %2208 = vmatpush1.msra.mxu0 0.0
        %2209 = vmatprep.subr.mxu0 0.0
        %2210 = vmatpush1.msra.mxu0 0.0
        %2211 = vmatprep.subr.mxu0 0.0
        %2212 = vmatpush1.msra.mxu0 0.0
        %2213 = vmatprep.subr.mxu0 0.0
        %2214 = vmatpush1.msra.mxu0 0.0
        %2215 = vmatprep.subr.mxu0 0.0
        %2216 = vmatpush1.msra.mxu0 0.0
        %2217 = vmatprep.subr.mxu0 0.0
        %2218 = vmatpush1.msra.mxu0 0.0
        %2219 = vmatprep.subr.mxu0 0.0
        %2220 = vmatpush1.msra.mxu0 0.0
        %2221 = vmatprep.subr.mxu0 0.0
        %2222 = vmatpush1.msra.mxu0 0.0
        %2223 = vmatprep.subr.mxu0 0.0
        %2224 = vmatpush1.msra.mxu0 0.0
        %2225 = vmatprep.subr.mxu0 0.0
        %2226 = vmatpush1.msra.mxu0 0.0
        %2227 = vmatprep.subr.mxu0 0.0
        %2228 = vmatpush1.msra.mxu0 0.0
        %2229 = vmatprep.subr.mxu0 0.0
        %2230 = vmatpush1.msra.mxu0 0.0
        %2231 = vmatprep.subr.mxu0 0.0
        %2232 = vmatpush1.msra.mxu0 0.0
        %2233 = vmatprep.mubr.f32.mxu0 0.0
        %2234 = vmatmul.mubr.f32.gmra.mrb[0].mxu0 %v2158
        %v2235 = vpop.f32.mrb[0].mxu0
        %v2236 = vadd.f32 0.0, %v2235
        %v2237 = vpop.f32.mrb[0].mxu0
        %2238 = vmatprep.mubr.f32.mxu0 0.0
        %2239 = vmatmul.mubr.f32.gmra.mrb[0].mxu0 %v2161
        %v2240 = vpop.f32.mrb[0].mxu0
        %v2241 = vadd.f32 0.0, %v2240
        %v2242 = vpop.f32.mrb[0].mxu0
        %2243 = vmatprep.mubr.f32.mxu0 0.0
        %2244 = vmatmul.mubr.f32.gmra.mrb[0].mxu0 %v2164
        %v2245 = vpop.f32.mrb[0].mxu0
        %v2246 = vadd.f32 0.0, %v2245
        %v2247 = vpop.f32.mrb[0].mxu0
        %2248 = vmatprep.mubr.f32.mxu0 0.0
        %2249 = vmatmul.mubr.f32.gmra.mrb[0].mxu0 %v2167
        %v2250 = vpop.f32.mrb[0].mxu0
        %v2251 = vadd.f32 0.0, %v2250
        %v2252 = vpop.f32.mrb[0].mxu0
        %2253 = vdwg.mxu0
        %v2254 = vadd.f32 %v1883, %v2236
        %v2255 = vadd.f32 %v1884, %v2241
        %v2256 = vadd.f32 %v1885, %v2246
        %v2257 = vadd.f32 %v1886, %v2251
        %v2259 = vlaneseq
        %v2260 = vshrl.u32 %v2259, 7
        %v2261 = vsub.s32 0, %v2260
        %v2262 = vrot.slane %v589, %v2261
        %v2264 = vadd.f32 %v2254, %v2262
        %v2265 = vadd.f32 %v2255, %v2262
        %v2266 = vadd.f32 %v2256, %v2262
        %v2267 = vadd.f32 %v2257, %v2262
        %s2268 = scalar_lea.vmem %s5, 32
        %v2269 = vld [vmem:[%s2268] sm:$0xff]
        %v2270 = vld [vmem:[%s2268 + $0x8] sm:$0xff]
        %v2271 = vld [vmem:[%s2268 + $0x10] sm:$0xff]
        %v2272 = vld [vmem:[%s2268 + $0x18] sm:$0xff]
        %s2273 = scalar_lea.vmem %s6, 1
        %v2274 = vld [vmem:[%s2273] sm:$0x1]
        %s2275 = scalar_lea.vmem %s7, 32
        %v2276 = vld [vmem:[%s2275] sm:$0xff]
        %v2277 = vld [vmem:[%s2275 + $0x8] sm:$0xff]
        %v2278 = vld [vmem:[%s2275 + $0x10] sm:$0xff]
        %v2279 = vld [vmem:[%s2275 + $0x18] sm:$0xff]
        %s2280 = scalar_lea.vmem %s8, 1
        %v2281 = vld [vmem:[%s2280] sm:$0x1]
        %s2282 = scalar_lea.vmem %s9, 32
        %v2283 = vld [vmem:[%s2282] sm:$0xff]
        %v2284 = vld [vmem:[%s2282 + $0x8] sm:$0xff]
        %v2285 = vld [vmem:[%s2282 + $0x10] sm:$0xff]
        %v2286 = vld [vmem:[%s2282 + $0x18] sm:$0xff]
        %s2287 = scalar_lea.vmem %s10, 1
        %v2288 = vld [vmem:[%s2287] sm:$0x1]
        %v2289 = vld [vmem:[%s3] sm:$0xff]
        %v2290 = vld [vmem:[%s3 + $0x8] sm:$0xff]
        %v2291 = vld [vmem:[%s3 + $0x10] sm:$0xff]
        %v2292 = vld [vmem:[%s3 + $0x18] sm:$0xff]
        %v2294 = vlaneseq
        %v2295 = vshrl.u32 %v2294, 7
        %v2296 = vsub.s32 0, %v2295
        %v2297 = vrot.slane %v2274, %v2296
        %v2300 = vsel %vm600, %v2264, 0
        %v2303 = vsel %vm600, %v2265, 0
        %v2306 = vsel %vm600, %v2266, 0
        %v2309 = vsel %vm600, %v2267, 0
        %2311 = vmatprep.subr.mxu0 0.0
        %2312 = vmatpush1.msra.mxu0 %v2269
        %2313 = vmatprep.subr.mxu0 0.0
        %2314 = vmatpush1.msra.mxu0 %v2270
        %2315 = vmatprep.subr.mxu0 0.0
        %2316 = vmatpush1.msra.mxu0 %v2271
        %2317 = vmatprep.subr.mxu0 0.0
        %2318 = vmatpush1.msra.mxu0 %v2272
        %2319 = vmatprep.subr.mxu0 0.0
        %2320 = vmatpush1.msra.mxu0 0.0
        %2321 = vmatprep.subr.mxu0 0.0
        %2322 = vmatpush1.msra.mxu0 0.0
        %2323 = vmatprep.subr.mxu0 0.0
        %2324 = vmatpush1.msra.mxu0 0.0
        %2325 = vmatprep.subr.mxu0 0.0
        %2326 = vmatpush1.msra.mxu0 0.0
        %2327 = vmatprep.subr.mxu0 0.0
        %2328 = vmatpush1.msra.mxu0 0.0
        %2329 = vmatprep.subr.mxu0 0.0
        %2330 = vmatpush1.msra.mxu0 0.0
        %2331 = vmatprep.subr.mxu0 0.0
        %2332 = vmatpush1.msra.mxu0 0.0
        %2333 = vmatprep.subr.mxu0 0.0
        %2334 = vmatpush1.msra.mxu0 0.0
        %2335 = vmatprep.subr.mxu0 0.0
        %2336 = vmatpush1.msra.mxu0 0.0
        %2337 = vmatprep.subr.mxu0 0.0
        %2338 = vmatpush1.msra.mxu0 0.0
        %2339 = vmatprep.subr.mxu0 0.0
        %2340 = vmatpush1.msra.mxu0 0.0
        %2341 = vmatprep.subr.mxu0 0.0
        %2342 = vmatpush1.msra.mxu0 0.0
        %2343 = vmatprep.subr.mxu0 0.0
        %2344 = vmatpush1.msra.mxu0 0.0
        %2345 = vmatprep.subr.mxu0 0.0
        %2346 = vmatpush1.msra.mxu0 0.0
        %2347 = vmatprep.subr.mxu0 0.0
        %2348 = vmatpush1.msra.mxu0 0.0
        %2349 = vmatprep.subr.mxu0 0.0
        %2350 = vmatpush1.msra.mxu0 0.0
        %2351 = vmatprep.subr.mxu0 0.0
        %2352 = vmatpush1.msra.mxu0 0.0
        %2353 = vmatprep.subr.mxu0 0.0
        %2354 = vmatpush1.msra.mxu0 0.0
        %2355 = vmatprep.subr.mxu0 0.0
        %2356 = vmatpush1.msra.mxu0 0.0
        %2357 = vmatprep.subr.mxu0 0.0
        %2358 = vmatpush1.msra.mxu0 0.0
        %2359 = vmatprep.subr.mxu0 0.0
        %2360 = vmatpush1.msra.mxu0 0.0
        %2361 = vmatprep.subr.mxu0 0.0
        %2362 = vmatpush1.msra.mxu0 0.0
        %2363 = vmatprep.subr.mxu0 0.0
        %2364 = vmatpush1.msra.mxu0 0.0
        %2365 = vmatprep.subr.mxu0 0.0
        %2366 = vmatpush1.msra.mxu0 0.0
        %2367 = vmatprep.subr.mxu0 0.0
        %2368 = vmatpush1.msra.mxu0 0.0
        %2369 = vmatprep.subr.mxu0 0.0
        %2370 = vmatpush1.msra.mxu0 0.0
        %2371 = vmatprep.subr.mxu0 0.0
        %2372 = vmatpush1.msra.mxu0 0.0
        %2373 = vmatprep.subr.mxu0 0.0
        %2374 = vmatpush1.msra.mxu0 0.0
        %2375 = vmatprep.mubr.f32.mxu0 0.0
        %2376 = vmatmul.mubr.f32.gmra.mrb[0].mxu0 %v2300
        %v2377 = vpop.f32.mrb[0].mxu0
        %v2378 = vadd.f32 %v2297, %v2377
        %v2379 = vpop.f32.mrb[0].mxu0
        %2380 = vmatprep.mubr.f32.mxu0 0.0
        %2381 = vmatmul.mubr.f32.gmra.mrb[0].mxu0 %v2303
        %v2382 = vpop.f32.mrb[0].mxu0
        %v2383 = vadd.f32 %v2297, %v2382
        %v2384 = vpop.f32.mrb[0].mxu0
        %2385 = vmatprep.mubr.f32.mxu0 0.0
        %2386 = vmatmul.mubr.f32.gmra.mrb[0].mxu0 %v2306
        %v2387 = vpop.f32.mrb[0].mxu0
        %v2388 = vadd.f32 %v2297, %v2387
        %v2389 = vpop.f32.mrb[0].mxu0
        %2390 = vmatprep.mubr.f32.mxu0 0.0
        %2391 = vmatmul.mubr.f32.gmra.mrb[0].mxu0 %v2309
        %v2392 = vpop.f32.mrb[0].mxu0
        %v2393 = vadd.f32 %v2297, %v2392
        %v2394 = vpop.f32.mrb[0].mxu0
        %2395 = vdwg.mxu0
        %v2397 = vlaneseq
        %v2398 = vshrl.u32 %v2397, 7
        %v2399 = vsub.s32 0, %v2398
        %v2400 = vrot.slane %v2281, %v2399
        %2402 = vmatprep.subr.mxu0 0.0
        %2403 = vmatpush1.msra.mxu0 %v2276
        %2404 = vmatprep.subr.mxu0 0.0
        %2405 = vmatpush1.msra.mxu0 %v2277
        %2406 = vmatprep.subr.mxu0 0.0
        %2407 = vmatpush1.msra.mxu0 %v2278
        %2408 = vmatprep.subr.mxu0 0.0
        %2409 = vmatpush1.msra.mxu0 %v2279
        %2410 = vmatprep.subr.mxu0 0.0
        %2411 = vmatpush1.msra.mxu0 0.0
        %2412 = vmatprep.subr.mxu0 0.0
        %2413 = vmatpush1.msra.mxu0 0.0
        %2414 = vmatprep.subr.mxu0 0.0
        %2415 = vmatpush1.msra.mxu0 0.0
        %2416 = vmatprep.subr.mxu0 0.0
        %2417 = vmatpush1.msra.mxu0 0.0
        %2418 = vmatprep.subr.mxu0 0.0
        %2419 = vmatpush1.msra.mxu0 0.0
        %2420 = vmatprep.subr.mxu0 0.0
        %2421 = vmatpush1.msra.mxu0 0.0
        %2422 = vmatprep.subr.mxu0 0.0
        %2423 = vmatpush1.msra.mxu0 0.0
        %2424 = vmatprep.subr.mxu0 0.0
        %2425 = vmatpush1.msra.mxu0 0.0
        %2426 = vmatprep.subr.mxu0 0.0
        %2427 = vmatpush1.msra.mxu0 0.0
        %2428 = vmatprep.subr.mxu0 0.0
        %2429 = vmatpush1.msra.mxu0 0.0
        %2430 = vmatprep.subr.mxu0 0.0
        %2431 = vmatpush1.msra.mxu0 0.0
        %2432 = vmatprep.subr.mxu0 0.0
        %2433 = vmatpush1.msra.mxu0 0.0
        %2434 = vmatprep.subr.mxu0 0.0
        %2435 = vmatpush1.msra.mxu0 0.0
        %2436 = vmatprep.subr.mxu0 0.0
        %2437 = vmatpush1.msra.mxu0 0.0
        %2438 = vmatprep.subr.mxu0 0.0
        %2439 = vmatpush1.msra.mxu0 0.0
        %2440 = vmatprep.subr.mxu0 0.0
        %2441 = vmatpush1.msra.mxu0 0.0
        %2442 = vmatprep.subr.mxu0 0.0
        %2443 = vmatpush1.msra.mxu0 0.0
        %2444 = vmatprep.subr.mxu0 0.0
        %2445 = vmatpush1.msra.mxu0 0.0
        %2446 = vmatprep.subr.mxu0 0.0
        %2447 = vmatpush1.msra.mxu0 0.0
        %2448 = vmatprep.subr.mxu0 0.0
        %2449 = vmatpush1.msra.mxu0 0.0
        %2450 = vmatprep.subr.mxu0 0.0
        %2451 = vmatpush1.msra.mxu0 0.0
        %2452 = vmatprep.subr.mxu0 0.0
        %2453 = vmatpush1.msra.mxu0 0.0
        %2454 = vmatprep.subr.mxu0 0.0
        %2455 = vmatpush1.msra.mxu0 0.0
        %2456 = vmatprep.subr.mxu0 0.0
        %2457 = vmatpush1.msra.mxu0 0.0
        %2458 = vmatprep.subr.mxu0 0.0
        %2459 = vmatpush1.msra.mxu0 0.0
        %2460 = vmatprep.subr.mxu0 0.0
        %2461 = vmatpush1.msra.mxu0 0.0
        %2462 = vmatprep.subr.mxu0 0.0
        %2463 = vmatpush1.msra.mxu0 0.0
        %2464 = vmatprep.subr.mxu0 0.0
        %2465 = vmatpush1.msra.mxu0 0.0
        %2466 = vmatprep.mubr.f32.mxu0 0.0
        %2467 = vmatmul.mubr.f32.gmra.mrb[0].mxu0 %v2300
        %v2468 = vpop.f32.mrb[0].mxu0
        %v2469 = vadd.f32 %v2400, %v2468
        %v2470 = vpop.f32.mrb[0].mxu0
        %2471 = vmatprep.mubr.f32.mxu0 0.0
        %2472 = vmatmul.mubr.f32.gmra.mrb[0].mxu0 %v2303
        %v2473 = vpop.f32.mrb[0].mxu0
        %v2474 = vadd.f32 %v2400, %v2473
        %v2475 = vpop.f32.mrb[0].mxu0
        %2476 = vmatprep.mubr.f32.mxu0 0.0
        %2477 = vmatmul.mubr.f32.gmra.mrb[0].mxu0 %v2306
        %v2478 = vpop.f32.mrb[0].mxu0
        %v2479 = vadd.f32 %v2400, %v2478
        %v2480 = vpop.f32.mrb[0].mxu0
        %2481 = vmatprep.mubr.f32.mxu0 0.0
        %2482 = vmatmul.mubr.f32.gmra.mrb[0].mxu0 %v2309
        %v2483 = vpop.f32.mrb[0].mxu0
        %v2484 = vadd.f32 %v2400, %v2483
        %v2485 = vpop.f32.mrb[0].mxu0
        %2486 = vdwg.mxu0
        %v2488 = vsel %vm789, %v2378, 0
        %v2491 = vsel %vm789, %v2383, 0
        %v2494 = vsel %vm789, %v2388, 0
        %v2497 = vsel %vm789, %v2393, 0
        %v2500 = vsel %vm789, %v2469, 0
        %v2503 = vsel %vm789, %v2474, 0
        %v2506 = vsel %vm789, %v2479, 0
        %v2509 = vsel %vm789, %v2484, 0
        %2511 = vmatprep.subr.mxu0 0.0
        %2512 = vmatpush1.xpose.msra.mxu0 %v2500
        %2513 = vmatprep.subr.mxu0 0.0
        %2514 = vmatpush1.xpose.msra.mxu0 %v2503
        %2515 = vmatprep.subr.mxu0 0.0
        %2516 = vmatpush1.xpose.msra.mxu0 %v2506
        %2517 = vmatprep.subr.mxu0 0.0
        %2518 = vmatpush1.xpose.msra.mxu0 %v2509
        %2519 = vmatprep.subr.mxu0 0.0
        %2520 = vmatpush1.xpose.msra.mxu0 0.0
        %2521 = vmatprep.subr.mxu0 0.0
        %2522 = vmatpush1.xpose.msra.mxu0 0.0
        %2523 = vmatprep.subr.mxu0 0.0
        %2524 = vmatpush1.xpose.msra.mxu0 0.0
        %2525 = vmatprep.subr.mxu0 0.0
        %2526 = vmatpush1.xpose.msra.mxu0 0.0
        %2527 = vmatprep.subr.mxu0 0.0
        %2528 = vmatpush1.xpose.msra.mxu0 0.0
        %2529 = vmatprep.subr.mxu0 0.0
        %2530 = vmatpush1.xpose.msra.mxu0 0.0
        %2531 = vmatprep.subr.mxu0 0.0
        %2532 = vmatpush1.xpose.msra.mxu0 0.0
        %2533 = vmatprep.subr.mxu0 0.0
        %2534 = vmatpush1.xpose.msra.mxu0 0.0
        %2535 = vmatprep.subr.mxu0 0.0
        %2536 = vmatpush1.xpose.msra.mxu0 0.0
        %2537 = vmatprep.subr.mxu0 0.0
        %2538 = vmatpush1.xpose.msra.mxu0 0.0
        %2539 = vmatprep.subr.mxu0 0.0
        %2540 = vmatpush1.xpose.msra.mxu0 0.0
        %2541 = vmatprep.subr.mxu0 0.0
        %2542 = vmatpush1.xpose.msra.mxu0 0.0
        %2543 = vmatprep.subr.mxu0 0.0
        %2544 = vmatpush1.xpose.msra.mxu0 0.0
        %2545 = vmatprep.subr.mxu0 0.0
        %2546 = vmatpush1.xpose.msra.mxu0 0.0
        %2547 = vmatprep.subr.mxu0 0.0
        %2548 = vmatpush1.xpose.msra.mxu0 0.0
        %2549 = vmatprep.subr.mxu0 0.0
        %2550 = vmatpush1.xpose.msra.mxu0 0.0
        %2551 = vmatprep.subr.mxu0 0.0
        %2552 = vmatpush1.xpose.msra.mxu0 0.0
        %2553 = vmatprep.subr.mxu0 0.0
        %2554 = vmatpush1.xpose.msra.mxu0 0.0
        %2555 = vmatprep.subr.mxu0 0.0
        %2556 = vmatpush1.xpose.msra.mxu0 0.0
        %2557 = vmatprep.subr.mxu0 0.0
        %2558 = vmatpush1.xpose.msra.mxu0 0.0
        %2559 = vmatprep.subr.mxu0 0.0
        %2560 = vmatpush1.xpose.msra.mxu0 0.0
        %2561 = vmatprep.subr.mxu0 0.0
        %2562 = vmatpush1.xpose.msra.mxu0 0.0
        %2563 = vmatprep.subr.mxu0 0.0
        %2564 = vmatpush1.xpose.msra.mxu0 0.0
        %2565 = vmatprep.subr.mxu0 0.0
        %2566 = vmatpush1.xpose.msra.mxu0 0.0
        %2567 = vmatprep.subr.mxu0 0.0
        %2568 = vmatpush1.xpose.msra.mxu0 0.0
        %2569 = vmatprep.subr.mxu0 0.0
        %2570 = vmatpush1.xpose.msra.mxu0 0.0
        %2571 = vmatprep.subr.mxu0 0.0
        %2572 = vmatpush1.xpose.msra.mxu0 0.0
        %2573 = vmatprep.subr.mxu0 0.0
        %2574 = vmatpush1.xpose.msra.mxu0 0.0
        %2575 = vmatprep.mubr.f32.mxu0 0.0
        %2576 = vmatmul.mubr.f32.gmra.mrb[0].mxu0 %v2488
        %v2577 = vpop.f32.mrb[0].mxu0
        %v2578 = vadd.f32 %v2289, %v2577
        %v2579 = vpop.f32.mrb[0].mxu0
        %2580 = vmatprep.mubr.f32.mxu0 0.0
        %2581 = vmatmul.mubr.f32.gmra.mrb[0].mxu0 %v2491
        %v2582 = vpop.f32.mrb[0].mxu0
        %v2583 = vadd.f32 %v2290, %v2582
        %v2584 = vpop.f32.mrb[0].mxu0
        %2585 = vmatprep.mubr.f32.mxu0 0.0
        %2586 = vmatmul.mubr.f32.gmra.mrb[0].mxu0 %v2494
        %v2587 = vpop.f32.mrb[0].mxu0
        %v2588 = vadd.f32 %v2291, %v2587
        %v2589 = vpop.f32.mrb[0].mxu0
        %2590 = vmatprep.mubr.f32.mxu0 0.0
        %2591 = vmatmul.mubr.f32.gmra.mrb[0].mxu0 %v2497
        %v2592 = vpop.f32.mrb[0].mxu0
        %v2593 = vadd.f32 %v2292, %v2592
        %v2594 = vpop.f32.mrb[0].mxu0
        %2595 = vdwg.mxu0
        %v2596 = vsel %vm600, %v2578, -inf
        %2597 = vmax.xlane.f32.xlu0 %v2596
        %v2598 = vpop.xlane.xlu0 %2597
        %v2599 = vsel %vm600, %v2583, -inf
        %2600 = vmax.xlane.f32.xlu0 %v2599
        %v2601 = vpop.xlane.xlu0 %2600
        %v2602 = vsel %vm600, %v2588, -inf
        %2603 = vmax.xlane.f32.xlu0 %v2602
        %v2604 = vpop.xlane.xlu0 %2603
        %v2605 = vsel %vm600, %v2593, -inf
        %2606 = vmax.xlane.f32.xlu0 %v2605
        %v2607 = vpop.xlane.xlu0 %2606
        %v2608 = vsub.f32 %v2578, %v2598
        %v2609 = vsub.f32 %v2583, %v2601
        %v2610 = vsub.f32 %v2588, %v2604
        %v2611 = vsub.f32 %v2593, %v2607
        %v2612 = vmul.f32 %v2608, 1.442695
        %v2613 = vpow.pop %v2612
        %v2614 = vmul.f32 %v2609, 1.442695
        %v2615 = vpow.pop %v2614
        %v2616 = vmul.f32 %v2610, 1.442695
        %v2617 = vpow.pop %v2616
        %v2618 = vmul.f32 %v2611, 1.442695
        %v2619 = vpow.pop %v2618
        %v2620 = vsel %vm600, %v2613, 0.0
        %2621 = vadd.xlane.f32.xlu0 %v2620
        %v2622 = vpop.xlane.xlu0 %2621
        %v2623 = vsel %vm600, %v2615, 0.0
        %2624 = vadd.xlane.f32.xlu0 %v2623
        %v2625 = vpop.xlane.xlu0 %2624
        %v2626 = vsel %vm600, %v2617, 0.0
        %2627 = vadd.xlane.f32.xlu0 %v2626
        %v2628 = vpop.xlane.xlu0 %2627
        %v2629 = vsel %vm600, %v2619, 0.0
        %2630 = vadd.xlane.f32.xlu0 %v2629
        %v2631 = vpop.xlane.xlu0 %2630
        %v2632 = vrcp.pop %v2622
        %v2633 = vrcp.pop %v2625
        %v2634 = vrcp.pop %v2628
        %v2635 = vrcp.pop %v2631
        %v2636 = vmul.f32 %v2613, %v2632
        %v2637 = vmul.f32 %v2615, %v2633
        %v2638 = vmul.f32 %v2617, %v2634
        %v2639 = vmul.f32 %v2619, %v2635
        %2640 = vrot.lane.b32.xlu0 %v2469, 96
        %v2641 = vpop.permute.xlu0 %2640
        %2642 = vrot.lane.b32.xlu0 %v2474, 96
        %v2643 = vpop.permute.xlu0 %2642
        %2644 = vrot.lane.b32.xlu0 %v2479, 96
        %v2645 = vpop.permute.xlu0 %2644
        %2646 = vrot.lane.b32.xlu0 %v2484, 96
        %v2647 = vpop.permute.xlu0 %2646
        %v2653 = vsel %vm600, %v2636, 0
        %v2656 = vsel %vm600, %v2637, 0
        %v2659 = vsel %vm600, %v2638, 0
        %v2662 = vsel %vm600, %v2639, 0
        %2664 = vmatprep.subr.mxu0 0.0
        %2665 = vmatpush1.msra.mxu0 %v2641
        %2666 = vmatprep.subr.mxu0 0.0
        %2667 = vmatpush1.msra.mxu0 %v2643
        %2668 = vmatprep.subr.mxu0 0.0
        %2669 = vmatpush1.msra.mxu0 %v2645
        %2670 = vmatprep.subr.mxu0 0.0
        %2671 = vmatpush1.msra.mxu0 %v2647
        %2672 = vmatprep.subr.mxu0 0.0
        %2673 = vmatpush1.msra.mxu0 0.0
        %2674 = vmatprep.subr.mxu0 0.0
        %2675 = vmatpush1.msra.mxu0 0.0
        %2676 = vmatprep.subr.mxu0 0.0
        %2677 = vmatpush1.msra.mxu0 0.0
        %2678 = vmatprep.subr.mxu0 0.0
        %2679 = vmatpush1.msra.mxu0 0.0
        %2680 = vmatprep.subr.mxu0 0.0
        %2681 = vmatpush1.msra.mxu0 0.0
        %2682 = vmatprep.subr.mxu0 0.0
        %2683 = vmatpush1.msra.mxu0 0.0
        %2684 = vmatprep.subr.mxu0 0.0
        %2685 = vmatpush1.msra.mxu0 0.0
        %2686 = vmatprep.subr.mxu0 0.0
        %2687 = vmatpush1.msra.mxu0 0.0
        %2688 = vmatprep.subr.mxu0 0.0
        %2689 = vmatpush1.msra.mxu0 0.0
        %2690 = vmatprep.subr.mxu0 0.0
        %2691 = vmatpush1.msra.mxu0 0.0
        %2692 = vmatprep.subr.mxu0 0.0
        %2693 = vmatpush1.msra.mxu0 0.0
        %2694 = vmatprep.subr.mxu0 0.0
        %2695 = vmatpush1.msra.mxu0 0.0
        %2696 = vmatprep.subr.mxu0 0.0
        %2697 = vmatpush1.msra.mxu0 0.0
        %2698 = vmatprep.subr.mxu0 0.0
        %2699 = vmatpush1.msra.mxu0 0.0
        %2700 = vmatprep.subr.mxu0 0.0
        %2701 = vmatpush1.msra.mxu0 0.0
        %2702 = vmatprep.subr.mxu0 0.0
        %2703 = vmatpush1.msra.mxu0 0.0
        %2704 = vmatprep.subr.mxu0 0.0
        %2705 = vmatpush1.msra.mxu0 0.0
        %2706 = vmatprep.subr.mxu0 0.0
        %2707 = vmatpush1.msra.mxu0 0.0
        %2708 = vmatprep.subr.mxu0 0.0
        %2709 = vmatpush1.msra.mxu0 0.0
        %2710 = vmatprep.subr.mxu0 0.0
        %2711 = vmatpush1.msra.mxu0 0.0
        %2712 = vmatprep.subr.mxu0 0.0
        %2713 = vmatpush1.msra.mxu0 0.0
        %2714 = vmatprep.subr.mxu0 0.0
        %2715 = vmatpush1.msra.mxu0 0.0
        %2716 = vmatprep.subr.mxu0 0.0
        %2717 = vmatpush1.msra.mxu0 0.0
        %2718 = vmatprep.subr.mxu0 0.0
        %2719 = vmatpush1.msra.mxu0 0.0
        %2720 = vmatprep.subr.mxu0 0.0
        %2721 = vmatpush1.msra.mxu0 0.0
        %2722 = vmatprep.subr.mxu0 0.0
        %2723 = vmatpush1.msra.mxu0 0.0
        %2724 = vmatprep.subr.mxu0 0.0
        %2725 = vmatpush1.msra.mxu0 0.0
        %2726 = vmatprep.subr.mxu0 0.0
        %2727 = vmatpush1.msra.mxu0 0.0
        %2728 = vmatprep.mubr.f32.mxu0 0.0
        %2729 = vmatmul.mubr.f32.gmra.mrb[0].mxu0 %v2653
        %v2730 = vpop.f32.mrb[0].mxu0
        %v2731 = vadd.f32 0.0, %v2730
        %v2732 = vpop.f32.mrb[0].mxu0
        %2733 = vmatprep.mubr.f32.mxu0 0.0
        %2734 = vmatmul.mubr.f32.gmra.mrb[0].mxu0 %v2656
        %v2735 = vpop.f32.mrb[0].mxu0
        %v2736 = vadd.f32 0.0, %v2735
        %v2737 = vpop.f32.mrb[0].mxu0
        %2738 = vmatprep.mubr.f32.mxu0 0.0
        %2739 = vmatmul.mubr.f32.gmra.mrb[0].mxu0 %v2659
        %v2740 = vpop.f32.mrb[0].mxu0
        %v2741 = vadd.f32 0.0, %v2740
        %v2742 = vpop.f32.mrb[0].mxu0
        %2743 = vmatprep.mubr.f32.mxu0 0.0
        %2744 = vmatmul.mubr.f32.gmra.mrb[0].mxu0 %v2662
        %v2745 = vpop.f32.mrb[0].mxu0
        %v2746 = vadd.f32 0.0, %v2745
        %v2747 = vpop.f32.mrb[0].mxu0
        %2748 = vdwg.mxu0
        %2749 = vrot.lane.b32.xlu0 %v2378, 120
        %v2750 = vpop.permute.xlu0 %2749
        %2751 = vrot.lane.b32.xlu0 %v2383, 120
        %v2752 = vpop.permute.xlu0 %2751
        %2753 = vrot.lane.b32.xlu0 %v2388, 120
        %v2754 = vpop.permute.xlu0 %2753
        %2755 = vrot.lane.b32.xlu0 %v2393, 120
        %v2756 = vpop.permute.xlu0 %2755
        %2757 = vrot.lane.b32.xlu0 %v2469, 120
        %v2758 = vpop.permute.xlu0 %2757
        %2759 = vrot.lane.b32.xlu0 %v2474, 120
        %v2760 = vpop.permute.xlu0 %2759
        %2761 = vrot.lane.b32.xlu0 %v2479, 120
        %v2762 = vpop.permute.xlu0 %2761
        %2763 = vrot.lane.b32.xlu0 %v2484, 120
        %v2764 = vpop.permute.xlu0 %2763
        %v2765 = vsel %vm789, %v2750, 0
        %v2767 = vsel %vm789, %v2752, 0
        %v2769 = vsel %vm789, %v2754, 0
        %v2771 = vsel %vm789, %v2756, 0
        %v2773 = vsel %vm789, %v2758, 0
        %v2775 = vsel %vm789, %v2760, 0
        %v2777 = vsel %vm789, %v2762, 0
        %v2779 = vsel %vm789, %v2764, 0
        %2781 = vmatprep.subr.mxu0 0.0
        %2782 = vmatpush1.xpose.msra.mxu0 %v2773
        %2783 = vmatprep.subr.mxu0 0.0
        %2784 = vmatpush1.xpose.msra.mxu0 %v2775
        %2785 = vmatprep.subr.mxu0 0.0
        %2786 = vmatpush1.xpose.msra.mxu0 %v2777
        %2787 = vmatprep.subr.mxu0 0.0
        %2788 = vmatpush1.xpose.msra.mxu0 %v2779
        %2789 = vmatprep.subr.mxu0 0.0
        %2790 = vmatpush1.xpose.msra.mxu0 0.0
        %2791 = vmatprep.subr.mxu0 0.0
        %2792 = vmatpush1.xpose.msra.mxu0 0.0
        %2793 = vmatprep.subr.mxu0 0.0
        %2794 = vmatpush1.xpose.msra.mxu0 0.0
        %2795 = vmatprep.subr.mxu0 0.0
        %2796 = vmatpush1.xpose.msra.mxu0 0.0
        %2797 = vmatprep.subr.mxu0 0.0
        %2798 = vmatpush1.xpose.msra.mxu0 0.0
        %2799 = vmatprep.subr.mxu0 0.0
        %2800 = vmatpush1.xpose.msra.mxu0 0.0
        %2801 = vmatprep.subr.mxu0 0.0
        %2802 = vmatpush1.xpose.msra.mxu0 0.0
        %2803 = vmatprep.subr.mxu0 0.0
        %2804 = vmatpush1.xpose.msra.mxu0 0.0
        %2805 = vmatprep.subr.mxu0 0.0
        %2806 = vmatpush1.xpose.msra.mxu0 0.0
        %2807 = vmatprep.subr.mxu0 0.0
        %2808 = vmatpush1.xpose.msra.mxu0 0.0
        %2809 = vmatprep.subr.mxu0 0.0
        %2810 = vmatpush1.xpose.msra.mxu0 0.0
        %2811 = vmatprep.subr.mxu0 0.0
        %2812 = vmatpush1.xpose.msra.mxu0 0.0
        %2813 = vmatprep.subr.mxu0 0.0
        %2814 = vmatpush1.xpose.msra.mxu0 0.0
        %2815 = vmatprep.subr.mxu0 0.0
        %2816 = vmatpush1.xpose.msra.mxu0 0.0
        %2817 = vmatprep.subr.mxu0 0.0
        %2818 = vmatpush1.xpose.msra.mxu0 0.0
        %2819 = vmatprep.subr.mxu0 0.0
        %2820 = vmatpush1.xpose.msra.mxu0 0.0
        %2821 = vmatprep.subr.mxu0 0.0
        %2822 = vmatpush1.xpose.msra.mxu0 0.0
        %2823 = vmatprep.subr.mxu0 0.0
        %2824 = vmatpush1.xpose.msra.mxu0 0.0
        %2825 = vmatprep.subr.mxu0 0.0
        %2826 = vmatpush1.xpose.msra.mxu0 0.0
        %2827 = vmatprep.subr.mxu0 0.0
        %2828 = vmatpush1.xpose.msra.mxu0 0.0
        %2829 = vmatprep.subr.mxu0 0.0
        %2830 = vmatpush1.xpose.msra.mxu0 0.0
        %2831 = vmatprep.subr.mxu0 0.0
        %2832 = vmatpush1.xpose.msra.mxu0 0.0
        %2833 = vmatprep.subr.mxu0 0.0
        %2834 = vmatpush1.xpose.msra.mxu0 0.0
        %2835 = vmatprep.subr.mxu0 0.0
        %2836 = vmatpush1.xpose.msra.mxu0 0.0
        %2837 = vmatprep.subr.mxu0 0.0
        %2838 = vmatpush1.xpose.msra.mxu0 0.0
        %2839 = vmatprep.subr.mxu0 0.0
        %2840 = vmatpush1.xpose.msra.mxu0 0.0
        %2841 = vmatprep.subr.mxu0 0.0
        %2842 = vmatpush1.xpose.msra.mxu0 0.0
        %2843 = vmatprep.subr.mxu0 0.0
        %2844 = vmatpush1.xpose.msra.mxu0 0.0
        %2845 = vmatprep.mubr.f32.mxu0 0.0
        %2846 = vmatmul.mubr.f32.gmra.mrb[0].mxu0 %v2765
        %v2847 = vpop.f32.mrb[0].mxu0
        %v2848 = vadd.f32 %v2289, %v2847
        %v2849 = vpop.f32.mrb[0].mxu0
        %2850 = vmatprep.mubr.f32.mxu0 0.0
        %2851 = vmatmul.mubr.f32.gmra.mrb[0].mxu0 %v2767
        %v2852 = vpop.f32.mrb[0].mxu0
        %v2853 = vadd.f32 %v2290, %v2852
        %v2854 = vpop.f32.mrb[0].mxu0
        %2855 = vmatprep.mubr.f32.mxu0 0.0
        %2856 = vmatmul.mubr.f32.gmra.mrb[0].mxu0 %v2769
        %v2857 = vpop.f32.mrb[0].mxu0
        %v2858 = vadd.f32 %v2291, %v2857
        %v2859 = vpop.f32.mrb[0].mxu0
        %2860 = vmatprep.mubr.f32.mxu0 0.0
        %2861 = vmatmul.mubr.f32.gmra.mrb[0].mxu0 %v2771
        %v2862 = vpop.f32.mrb[0].mxu0
        %v2863 = vadd.f32 %v2292, %v2862
        %v2864 = vpop.f32.mrb[0].mxu0
        %2865 = vdwg.mxu0
        %v2866 = vsel %vm600, %v2848, -inf
        %2867 = vmax.xlane.f32.xlu0 %v2866
        %v2868 = vpop.xlane.xlu0 %2867
        %v2869 = vsel %vm600, %v2853, -inf
        %2870 = vmax.xlane.f32.xlu0 %v2869
        %v2871 = vpop.xlane.xlu0 %2870
        %v2872 = vsel %vm600, %v2858, -inf
        %2873 = vmax.xlane.f32.xlu0 %v2872
        %v2874 = vpop.xlane.xlu0 %2873
        %v2875 = vsel %vm600, %v2863, -inf
        %2876 = vmax.xlane.f32.xlu0 %v2875
        %v2877 = vpop.xlane.xlu0 %2876
        %v2878 = vsub.f32 %v2848, %v2868
        %v2879 = vsub.f32 %v2853, %v2871
        %v2880 = vsub.f32 %v2858, %v2874
        %v2881 = vsub.f32 %v2863, %v2877
        %v2882 = vmul.f32 %v2878, 1.442695
        %v2883 = vpow.pop %v2882
        %v2884 = vmul.f32 %v2879, 1.442695
        %v2885 = vpow.pop %v2884
        %v2886 = vmul.f32 %v2880, 1.442695
        %v2887 = vpow.pop %v2886
        %v2888 = vmul.f32 %v2881, 1.442695
        %v2889 = vpow.pop %v2888
        %v2890 = vsel %vm600, %v2883, 0.0
        %2891 = vadd.xlane.f32.xlu0 %v2890
        %v2892 = vpop.xlane.xlu0 %2891
        %v2893 = vsel %vm600, %v2885, 0.0
        %2894 = vadd.xlane.f32.xlu0 %v2893
        %v2895 = vpop.xlane.xlu0 %2894
        %v2896 = vsel %vm600, %v2887, 0.0
        %2897 = vadd.xlane.f32.xlu0 %v2896
        %v2898 = vpop.xlane.xlu0 %2897
        %v2899 = vsel %vm600, %v2889, 0.0
        %2900 = vadd.xlane.f32.xlu0 %v2899
        %v2901 = vpop.xlane.xlu0 %2900
        %v2902 = vrcp.pop %v2892
        %v2903 = vrcp.pop %v2895
        %v2904 = vrcp.pop %v2898
        %v2905 = vrcp.pop %v2901
        %v2906 = vmul.f32 %v2883, %v2902
        %v2907 = vmul.f32 %v2885, %v2903
        %v2908 = vmul.f32 %v2887, %v2904
        %v2909 = vmul.f32 %v2889, %v2905
        %2910 = vrot.lane.b32.xlu0 %v2469, 88
        %v2911 = vpop.permute.xlu0 %2910
        %2912 = vrot.lane.b32.xlu0 %v2474, 88
        %v2913 = vpop.permute.xlu0 %2912
        %2914 = vrot.lane.b32.xlu0 %v2479, 88
        %v2915 = vpop.permute.xlu0 %2914
        %2916 = vrot.lane.b32.xlu0 %v2484, 88
        %v2917 = vpop.permute.xlu0 %2916
        %v2923 = vsel %vm600, %v2906, 0
        %v2926 = vsel %vm600, %v2907, 0
        %v2929 = vsel %vm600, %v2908, 0
        %v2932 = vsel %vm600, %v2909, 0
        %2934 = vmatprep.subr.mxu0 0.0
        %2935 = vmatpush1.msra.mxu0 %v2911
        %2936 = vmatprep.subr.mxu0 0.0
        %2937 = vmatpush1.msra.mxu0 %v2913
        %2938 = vmatprep.subr.mxu0 0.0
        %2939 = vmatpush1.msra.mxu0 %v2915
        %2940 = vmatprep.subr.mxu0 0.0
        %2941 = vmatpush1.msra.mxu0 %v2917
        %2942 = vmatprep.subr.mxu0 0.0
        %2943 = vmatpush1.msra.mxu0 0.0
        %2944 = vmatprep.subr.mxu0 0.0
        %2945 = vmatpush1.msra.mxu0 0.0
        %2946 = vmatprep.subr.mxu0 0.0
        %2947 = vmatpush1.msra.mxu0 0.0
        %2948 = vmatprep.subr.mxu0 0.0
        %2949 = vmatpush1.msra.mxu0 0.0
        %2950 = vmatprep.subr.mxu0 0.0
        %2951 = vmatpush1.msra.mxu0 0.0
        %2952 = vmatprep.subr.mxu0 0.0
        %2953 = vmatpush1.msra.mxu0 0.0
        %2954 = vmatprep.subr.mxu0 0.0
        %2955 = vmatpush1.msra.mxu0 0.0
        %2956 = vmatprep.subr.mxu0 0.0
        %2957 = vmatpush1.msra.mxu0 0.0
        %2958 = vmatprep.subr.mxu0 0.0
        %2959 = vmatpush1.msra.mxu0 0.0
        %2960 = vmatprep.subr.mxu0 0.0
        %2961 = vmatpush1.msra.mxu0 0.0
        %2962 = vmatprep.subr.mxu0 0.0
        %2963 = vmatpush1.msra.mxu0 0.0
        %2964 = vmatprep.subr.mxu0 0.0
        %2965 = vmatpush1.msra.mxu0 0.0
        %2966 = vmatprep.subr.mxu0 0.0
        %2967 = vmatpush1.msra.mxu0 0.0
        %2968 = vmatprep.subr.mxu0 0.0
        %2969 = vmatpush1.msra.mxu0 0.0
        %2970 = vmatprep.subr.mxu0 0.0
        %2971 = vmatpush1.msra.mxu0 0.0
        %2972 = vmatprep.subr.mxu0 0.0
        %2973 = vmatpush1.msra.mxu0 0.0
        %2974 = vmatprep.subr.mxu0 0.0
        %2975 = vmatpush1.msra.mxu0 0.0
        %2976 = vmatprep.subr.mxu0 0.0
        %2977 = vmatpush1.msra.mxu0 0.0
        %2978 = vmatprep.subr.mxu0 0.0
        %2979 = vmatpush1.msra.mxu0 0.0
        %2980 = vmatprep.subr.mxu0 0.0
        %2981 = vmatpush1.msra.mxu0 0.0
        %2982 = vmatprep.subr.mxu0 0.0
        %2983 = vmatpush1.msra.mxu0 0.0
        %2984 = vmatprep.subr.mxu0 0.0
        %2985 = vmatpush1.msra.mxu0 0.0
        %2986 = vmatprep.subr.mxu0 0.0
        %2987 = vmatpush1.msra.mxu0 0.0
        %2988 = vmatprep.subr.mxu0 0.0
        %2989 = vmatpush1.msra.mxu0 0.0
        %2990 = vmatprep.subr.mxu0 0.0
        %2991 = vmatpush1.msra.mxu0 0.0
        %2992 = vmatprep.subr.mxu0 0.0
        %2993 = vmatpush1.msra.mxu0 0.0
        %2994 = vmatprep.subr.mxu0 0.0
        %2995 = vmatpush1.msra.mxu0 0.0
        %2996 = vmatprep.subr.mxu0 0.0
        %2997 = vmatpush1.msra.mxu0 0.0
        %2998 = vmatprep.mubr.f32.mxu0 0.0
        %2999 = vmatmul.mubr.f32.gmra.mrb[0].mxu0 %v2923
        %v3000 = vpop.f32.mrb[0].mxu0
        %v3001 = vadd.f32 0.0, %v3000
        %v3002 = vpop.f32.mrb[0].mxu0
        %3003 = vmatprep.mubr.f32.mxu0 0.0
        %3004 = vmatmul.mubr.f32.gmra.mrb[0].mxu0 %v2926
        %v3005 = vpop.f32.mrb[0].mxu0
        %v3006 = vadd.f32 0.0, %v3005
        %v3007 = vpop.f32.mrb[0].mxu0
        %3008 = vmatprep.mubr.f32.mxu0 0.0
        %3009 = vmatmul.mubr.f32.gmra.mrb[0].mxu0 %v2929
        %v3010 = vpop.f32.mrb[0].mxu0
        %v3011 = vadd.f32 0.0, %v3010
        %v3012 = vpop.f32.mrb[0].mxu0
        %3013 = vmatprep.mubr.f32.mxu0 0.0
        %3014 = vmatmul.mubr.f32.gmra.mrb[0].mxu0 %v2932
        %v3015 = vpop.f32.mrb[0].mxu0
        %v3016 = vadd.f32 0.0, %v3015
        %v3017 = vpop.f32.mrb[0].mxu0
        %3018 = vdwg.mxu0
        %v3020 = vsel %vm789, %v3001, 0
        %v3023 = vsel %vm789, %v3006, 0
        %v3026 = vsel %vm789, %v3011, 0
        %v3029 = vsel %vm789, %v3016, 0
        %3031 = vmatprep.subr.mxu0 0.0
        %3032 = vmatpush1.msra.mxu0 %v2284
        %3033 = vmatprep.subr.mxu0 0.0
        %3034 = vmatpush1.msra.mxu0 0.0
        %3035 = vmatprep.subr.mxu0 0.0
        %3036 = vmatpush1.msra.mxu0 0.0
        %3037 = vmatprep.subr.mxu0 0.0
        %3038 = vmatpush1.msra.mxu0 0.0
        %3039 = vmatprep.subr.mxu0 0.0
        %3040 = vmatpush1.msra.mxu0 0.0
        %3041 = vmatprep.subr.mxu0 0.0
        %3042 = vmatpush1.msra.mxu0 0.0
        %3043 = vmatprep.subr.mxu0 0.0
        %3044 = vmatpush1.msra.mxu0 0.0
        %3045 = vmatprep.subr.mxu0 0.0
        %3046 = vmatpush1.msra.mxu0 0.0
        %3047 = vmatprep.subr.mxu0 0.0
        %3048 = vmatpush1.msra.mxu0 0.0
        %3049 = vmatprep.subr.mxu0 0.0
        %3050 = vmatpush1.msra.mxu0 0.0
        %3051 = vmatprep.subr.mxu0 0.0
        %3052 = vmatpush1.msra.mxu0 0.0
        %3053 = vmatprep.subr.mxu0 0.0
        %3054 = vmatpush1.msra.mxu0 0.0
        %3055 = vmatprep.subr.mxu0 0.0
        %3056 = vmatpush1.msra.mxu0 0.0
        %3057 = vmatprep.subr.mxu0 0.0
        %3058 = vmatpush1.msra.mxu0 0.0
        %3059 = vmatprep.subr.mxu0 0.0
        %3060 = vmatpush1.msra.mxu0 0.0
        %3061 = vmatprep.subr.mxu0 0.0
        %3062 = vmatpush1.msra.mxu0 0.0
        %3063 = vmatprep.subr.mxu0 0.0
        %3064 = vmatpush1.msra.mxu0 0.0
        %3065 = vmatprep.subr.mxu0 0.0
        %3066 = vmatpush1.msra.mxu0 0.0
        %3067 = vmatprep.subr.mxu0 0.0
        %3068 = vmatpush1.msra.mxu0 0.0
        %3069 = vmatprep.subr.mxu0 0.0
        %3070 = vmatpush1.msra.mxu0 0.0
        %3071 = vmatprep.subr.mxu0 0.0
        %3072 = vmatpush1.msra.mxu0 0.0
        %3073 = vmatprep.subr.mxu0 0.0
        %3074 = vmatpush1.msra.mxu0 0.0
        %3075 = vmatprep.subr.mxu0 0.0
        %3076 = vmatpush1.msra.mxu0 0.0
        %3077 = vmatprep.subr.mxu0 0.0
        %3078 = vmatpush1.msra.mxu0 0.0
        %3079 = vmatprep.subr.mxu0 0.0
        %3080 = vmatpush1.msra.mxu0 0.0
        %3081 = vmatprep.subr.mxu0 0.0
        %3082 = vmatpush1.msra.mxu0 0.0
        %3083 = vmatprep.subr.mxu0 0.0
        %3084 = vmatpush1.msra.mxu0 0.0
        %3085 = vmatprep.subr.mxu0 0.0
        %3086 = vmatpush1.msra.mxu0 0.0
        %3087 = vmatprep.subr.mxu0 0.0
        %3088 = vmatpush1.msra.mxu0 0.0
        %3089 = vmatprep.subr.mxu0 0.0
        %3090 = vmatpush1.msra.mxu0 0.0
        %3091 = vmatprep.subr.mxu0 0.0
        %3092 = vmatpush1.msra.mxu0 0.0
        %3093 = vmatprep.subr.mxu0 0.0
        %3094 = vmatpush1.msra.mxu0 0.0
        %3095 = vmatprep.mubr.f32.mxu0 0.0
        %3096 = vmatmul.mubr.f32.gmra.mrb[0].mxu0 %v3020
        %v3097 = vpop.f32.mrb[0].mxu0
        %v3098 = vadd.f32 0.0, %v3097
        %v3099 = vpop.f32.mrb[0].mxu0
        %3100 = vmatprep.mubr.f32.mxu0 0.0
        %3101 = vmatmul.mubr.f32.gmra.mrb[0].mxu0 %v3023
        %v3102 = vpop.f32.mrb[0].mxu0
        %v3103 = vadd.f32 0.0, %v3102
        %v3104 = vpop.f32.mrb[0].mxu0
        %3105 = vmatprep.mubr.f32.mxu0 0.0
        %3106 = vmatmul.mubr.f32.gmra.mrb[0].mxu0 %v3026
        %v3107 = vpop.f32.mrb[0].mxu0
        %v3108 = vadd.f32 0.0, %v3107
        %v3109 = vpop.f32.mrb[0].mxu0
        %3110 = vmatprep.mubr.f32.mxu0 0.0
        %3111 = vmatmul.mubr.f32.gmra.mrb[0].mxu0 %v3029
        %v3112 = vpop.f32.mrb[0].mxu0
        %v3113 = vadd.f32 0.0, %v3112
        %v3114 = vpop.f32.mrb[0].mxu0
        %3115 = vdwg.mxu0
        %v3117 = vsel %vm789, %v2731, 0
        %v3120 = vsel %vm789, %v2736, 0
        %v3123 = vsel %vm789, %v2741, 0
        %v3126 = vsel %vm789, %v2746, 0
        %3128 = vmatprep.subr.mxu0 0.0
        %3129 = vmatpush1.msra.mxu0 %v2283
        %3130 = vmatprep.subr.mxu0 0.0
        %3131 = vmatpush1.msra.mxu0 0.0
        %3132 = vmatprep.subr.mxu0 0.0
        %3133 = vmatpush1.msra.mxu0 0.0
        %3134 = vmatprep.subr.mxu0 0.0
        %3135 = vmatpush1.msra.mxu0 0.0
        %3136 = vmatprep.subr.mxu0 0.0
        %3137 = vmatpush1.msra.mxu0 0.0
        %3138 = vmatprep.subr.mxu0 0.0
        %3139 = vmatpush1.msra.mxu0 0.0
        %3140 = vmatprep.subr.mxu0 0.0
        %3141 = vmatpush1.msra.mxu0 0.0
        %3142 = vmatprep.subr.mxu0 0.0
        %3143 = vmatpush1.msra.mxu0 0.0
        %3144 = vmatprep.subr.mxu0 0.0
        %3145 = vmatpush1.msra.mxu0 0.0
        %3146 = vmatprep.subr.mxu0 0.0
        %3147 = vmatpush1.msra.mxu0 0.0
        %3148 = vmatprep.subr.mxu0 0.0
        %3149 = vmatpush1.msra.mxu0 0.0
        %3150 = vmatprep.subr.mxu0 0.0
        %3151 = vmatpush1.msra.mxu0 0.0
        %3152 = vmatprep.subr.mxu0 0.0
        %3153 = vmatpush1.msra.mxu0 0.0
        %3154 = vmatprep.subr.mxu0 0.0
        %3155 = vmatpush1.msra.mxu0 0.0
        %3156 = vmatprep.subr.mxu0 0.0
        %3157 = vmatpush1.msra.mxu0 0.0
        %3158 = vmatprep.subr.mxu0 0.0
        %3159 = vmatpush1.msra.mxu0 0.0
        %3160 = vmatprep.subr.mxu0 0.0
        %3161 = vmatpush1.msra.mxu0 0.0
        %3162 = vmatprep.subr.mxu0 0.0
        %3163 = vmatpush1.msra.mxu0 0.0
        %3164 = vmatprep.subr.mxu0 0.0
        %3165 = vmatpush1.msra.mxu0 0.0
        %3166 = vmatprep.subr.mxu0 0.0
        %3167 = vmatpush1.msra.mxu0 0.0
        %3168 = vmatprep.subr.mxu0 0.0
        %3169 = vmatpush1.msra.mxu0 0.0
        %3170 = vmatprep.subr.mxu0 0.0
        %3171 = vmatpush1.msra.mxu0 0.0
        %3172 = vmatprep.subr.mxu0 0.0
        %3173 = vmatpush1.msra.mxu0 0.0
        %3174 = vmatprep.subr.mxu0 0.0
        %3175 = vmatpush1.msra.mxu0 0.0
        %3176 = vmatprep.subr.mxu0 0.0
        %3177 = vmatpush1.msra.mxu0 0.0
        %3178 = vmatprep.subr.mxu0 0.0
        %3179 = vmatpush1.msra.mxu0 0.0
        %3180 = vmatprep.subr.mxu0 0.0
        %3181 = vmatpush1.msra.mxu0 0.0
        %3182 = vmatprep.subr.mxu0 0.0
        %3183 = vmatpush1.msra.mxu0 0.0
        %3184 = vmatprep.subr.mxu0 0.0
        %3185 = vmatpush1.msra.mxu0 0.0
        %3186 = vmatprep.subr.mxu0 0.0
        %3187 = vmatpush1.msra.mxu0 0.0
        %3188 = vmatprep.subr.mxu0 0.0
        %3189 = vmatpush1.msra.mxu0 0.0
        %3190 = vmatprep.subr.mxu0 0.0
        %3191 = vmatpush1.msra.mxu0 0.0
        %3192 = vmatprep.mubr.f32.mxu0 0.0
        %3193 = vmatmul.mubr.f32.gmra.mrb[0].mxu0 %v3117
        %v3194 = vpop.f32.mrb[0].mxu0
        %v3195 = vadd.f32 %v3098, %v3194
        %v3196 = vpop.f32.mrb[0].mxu0
        %3197 = vmatprep.mubr.f32.mxu0 0.0
        %3198 = vmatmul.mubr.f32.gmra.mrb[0].mxu0 %v3120
        %v3199 = vpop.f32.mrb[0].mxu0
        %v3200 = vadd.f32 %v3103, %v3199
        %v3201 = vpop.f32.mrb[0].mxu0
        %3202 = vmatprep.mubr.f32.mxu0 0.0
        %3203 = vmatmul.mubr.f32.gmra.mrb[0].mxu0 %v3123
        %v3204 = vpop.f32.mrb[0].mxu0
        %v3205 = vadd.f32 %v3108, %v3204
        %v3206 = vpop.f32.mrb[0].mxu0
        %3207 = vmatprep.mubr.f32.mxu0 0.0
        %3208 = vmatmul.mubr.f32.gmra.mrb[0].mxu0 %v3126
        %v3209 = vpop.f32.mrb[0].mxu0
        %v3210 = vadd.f32 %v3113, %v3209
        %v3211 = vpop.f32.mrb[0].mxu0
        %3212 = vdwg.mxu0
        %3213 = vrot.lane.b32.xlu0 %v2378, 112
        %v3214 = vpop.permute.xlu0 %3213
        %3215 = vrot.lane.b32.xlu0 %v2383, 112
        %v3216 = vpop.permute.xlu0 %3215
        %3217 = vrot.lane.b32.xlu0 %v2388, 112
        %v3218 = vpop.permute.xlu0 %3217
        %3219 = vrot.lane.b32.xlu0 %v2393, 112
        %v3220 = vpop.permute.xlu0 %3219
        %3221 = vrot.lane.b32.xlu0 %v2469, 112
        %v3222 = vpop.permute.xlu0 %3221
        %3223 = vrot.lane.b32.xlu0 %v2474, 112
        %v3224 = vpop.permute.xlu0 %3223
        %3225 = vrot.lane.b32.xlu0 %v2479, 112
        %v3226 = vpop.permute.xlu0 %3225
        %3227 = vrot.lane.b32.xlu0 %v2484, 112
        %v3228 = vpop.permute.xlu0 %3227
        %v3229 = vsel %vm789, %v3214, 0
        %v3231 = vsel %vm789, %v3216, 0
        %v3233 = vsel %vm789, %v3218, 0
        %v3235 = vsel %vm789, %v3220, 0
        %v3237 = vsel %vm789, %v3222, 0
        %v3239 = vsel %vm789, %v3224, 0
        %v3241 = vsel %vm789, %v3226, 0
        %v3243 = vsel %vm789, %v3228, 0
        %3245 = vmatprep.subr.mxu0 0.0
        %3246 = vmatpush1.xpose.msra.mxu0 %v3237
        %3247 = vmatprep.subr.mxu0 0.0
        %3248 = vmatpush1.xpose.msra.mxu0 %v3239
        %3249 = vmatprep.subr.mxu0 0.0
        %3250 = vmatpush1.xpose.msra.mxu0 %v3241
        %3251 = vmatprep.subr.mxu0 0.0
        %3252 = vmatpush1.xpose.msra.mxu0 %v3243
        %3253 = vmatprep.subr.mxu0 0.0
        %3254 = vmatpush1.xpose.msra.mxu0 0.0
        %3255 = vmatprep.subr.mxu0 0.0
        %3256 = vmatpush1.xpose.msra.mxu0 0.0
        %3257 = vmatprep.subr.mxu0 0.0
        %3258 = vmatpush1.xpose.msra.mxu0 0.0
        %3259 = vmatprep.subr.mxu0 0.0
        %3260 = vmatpush1.xpose.msra.mxu0 0.0
        %3261 = vmatprep.subr.mxu0 0.0
        %3262 = vmatpush1.xpose.msra.mxu0 0.0
        %3263 = vmatprep.subr.mxu0 0.0
        %3264 = vmatpush1.xpose.msra.mxu0 0.0
        %3265 = vmatprep.subr.mxu0 0.0
        %3266 = vmatpush1.xpose.msra.mxu0 0.0
        %3267 = vmatprep.subr.mxu0 0.0
        %3268 = vmatpush1.xpose.msra.mxu0 0.0
        %3269 = vmatprep.subr.mxu0 0.0
        %3270 = vmatpush1.xpose.msra.mxu0 0.0
        %3271 = vmatprep.subr.mxu0 0.0
        %3272 = vmatpush1.xpose.msra.mxu0 0.0
        %3273 = vmatprep.subr.mxu0 0.0
        %3274 = vmatpush1.xpose.msra.mxu0 0.0
        %3275 = vmatprep.subr.mxu0 0.0
        %3276 = vmatpush1.xpose.msra.mxu0 0.0
        %3277 = vmatprep.subr.mxu0 0.0
        %3278 = vmatpush1.xpose.msra.mxu0 0.0
        %3279 = vmatprep.subr.mxu0 0.0
        %3280 = vmatpush1.xpose.msra.mxu0 0.0
        %3281 = vmatprep.subr.mxu0 0.0
        %3282 = vmatpush1.xpose.msra.mxu0 0.0
        %3283 = vmatprep.subr.mxu0 0.0
        %3284 = vmatpush1.xpose.msra.mxu0 0.0
        %3285 = vmatprep.subr.mxu0 0.0
        %3286 = vmatpush1.xpose.msra.mxu0 0.0
        %3287 = vmatprep.subr.mxu0 0.0
        %3288 = vmatpush1.xpose.msra.mxu0 0.0
        %3289 = vmatprep.subr.mxu0 0.0
        %3290 = vmatpush1.xpose.msra.mxu0 0.0
        %3291 = vmatprep.subr.mxu0 0.0
        %3292 = vmatpush1.xpose.msra.mxu0 0.0
        %3293 = vmatprep.subr.mxu0 0.0
        %3294 = vmatpush1.xpose.msra.mxu0 0.0
        %3295 = vmatprep.subr.mxu0 0.0
        %3296 = vmatpush1.xpose.msra.mxu0 0.0
        %3297 = vmatprep.subr.mxu0 0.0
        %3298 = vmatpush1.xpose.msra.mxu0 0.0
        %3299 = vmatprep.subr.mxu0 0.0
        %3300 = vmatpush1.xpose.msra.mxu0 0.0
        %3301 = vmatprep.subr.mxu0 0.0
        %3302 = vmatpush1.xpose.msra.mxu0 0.0
        %3303 = vmatprep.subr.mxu0 0.0
        %3304 = vmatpush1.xpose.msra.mxu0 0.0
        %3305 = vmatprep.subr.mxu0 0.0
        %3306 = vmatpush1.xpose.msra.mxu0 0.0
        %3307 = vmatprep.subr.mxu0 0.0
        %3308 = vmatpush1.xpose.msra.mxu0 0.0
        %3309 = vmatprep.mubr.f32.mxu0 0.0
        %3310 = vmatmul.mubr.f32.gmra.mrb[0].mxu0 %v3229
        %v3311 = vpop.f32.mrb[0].mxu0
        %v3312 = vadd.f32 %v2289, %v3311
        %v3313 = vpop.f32.mrb[0].mxu0
        %3314 = vmatprep.mubr.f32.mxu0 0.0
        %3315 = vmatmul.mubr.f32.gmra.mrb[0].mxu0 %v3231
        %v3316 = vpop.f32.mrb[0].mxu0
        %v3317 = vadd.f32 %v2290, %v3316
        %v3318 = vpop.f32.mrb[0].mxu0
        %3319 = vmatprep.mubr.f32.mxu0 0.0
        %3320 = vmatmul.mubr.f32.gmra.mrb[0].mxu0 %v3233
        %v3321 = vpop.f32.mrb[0].mxu0
        %v3322 = vadd.f32 %v2291, %v3321
        %v3323 = vpop.f32.mrb[0].mxu0
        %3324 = vmatprep.mubr.f32.mxu0 0.0
        %3325 = vmatmul.mubr.f32.gmra.mrb[0].mxu0 %v3235
        %v3326 = vpop.f32.mrb[0].mxu0
        %v3327 = vadd.f32 %v2292, %v3326
        %v3328 = vpop.f32.mrb[0].mxu0
        %3329 = vdwg.mxu0
        %v3330 = vsel %vm600, %v3312, -inf
        %3331 = vmax.xlane.f32.xlu0 %v3330
        %v3332 = vpop.xlane.xlu0 %3331
        %v3333 = vsel %vm600, %v3317, -inf
        %3334 = vmax.xlane.f32.xlu0 %v3333
        %v3335 = vpop.xlane.xlu0 %3334
        %v3336 = vsel %vm600, %v3322, -inf
        %3337 = vmax.xlane.f32.xlu0 %v3336
        %v3338 = vpop.xlane.xlu0 %3337
        %v3339 = vsel %vm600, %v3327, -inf
        %3340 = vmax.xlane.f32.xlu0 %v3339
        %v3341 = vpop.xlane.xlu0 %3340
        %v3342 = vsub.f32 %v3312, %v3332
        %v3343 = vsub.f32 %v3317, %v3335
        %v3344 = vsub.f32 %v3322, %v3338
        %v3345 = vsub.f32 %v3327, %v3341
        %v3346 = vmul.f32 %v3342, 1.442695
        %v3347 = vpow.pop %v3346
        %v3348 = vmul.f32 %v3343, 1.442695
        %v3349 = vpow.pop %v3348
        %v3350 = vmul.f32 %v3344, 1.442695
        %v3351 = vpow.pop %v3350
        %v3352 = vmul.f32 %v3345, 1.442695
        %v3353 = vpow.pop %v3352
        %v3354 = vsel %vm600, %v3347, 0.0
        %3355 = vadd.xlane.f32.xlu0 %v3354
        %v3356 = vpop.xlane.xlu0 %3355
        %v3357 = vsel %vm600, %v3349, 0.0
        %3358 = vadd.xlane.f32.xlu0 %v3357
        %v3359 = vpop.xlane.xlu0 %3358
        %v3360 = vsel %vm600, %v3351, 0.0
        %3361 = vadd.xlane.f32.xlu0 %v3360
        %v3362 = vpop.xlane.xlu0 %3361
        %v3363 = vsel %vm600, %v3353, 0.0
        %3364 = vadd.xlane.f32.xlu0 %v3363
        %v3365 = vpop.xlane.xlu0 %3364
        %v3366 = vrcp.pop %v3356
        %v3367 = vrcp.pop %v3359
        %v3368 = vrcp.pop %v3362
        %v3369 = vrcp.pop %v3365
        %v3370 = vmul.f32 %v3347, %v3366
        %v3371 = vmul.f32 %v3349, %v3367
        %v3372 = vmul.f32 %v3351, %v3368
        %v3373 = vmul.f32 %v3353, %v3369
        %3374 = vrot.lane.b32.xlu0 %v2469, 80
        %v3375 = vpop.permute.xlu0 %3374
        %3376 = vrot.lane.b32.xlu0 %v2474, 80
        %v3377 = vpop.permute.xlu0 %3376
        %3378 = vrot.lane.b32.xlu0 %v2479, 80
        %v3379 = vpop.permute.xlu0 %3378
        %3380 = vrot.lane.b32.xlu0 %v2484, 80
        %v3381 = vpop.permute.xlu0 %3380
        %v3387 = vsel %vm600, %v3370, 0
        %v3390 = vsel %vm600, %v3371, 0
        %v3393 = vsel %vm600, %v3372, 0
        %v3396 = vsel %vm600, %v3373, 0
        %3398 = vmatprep.subr.mxu0 0.0
        %3399 = vmatpush1.msra.mxu0 %v3375
        %3400 = vmatprep.subr.mxu0 0.0
        %3401 = vmatpush1.msra.mxu0 %v3377
        %3402 = vmatprep.subr.mxu0 0.0
        %3403 = vmatpush1.msra.mxu0 %v3379
        %3404 = vmatprep.subr.mxu0 0.0
        %3405 = vmatpush1.msra.mxu0 %v3381
        %3406 = vmatprep.subr.mxu0 0.0
        %3407 = vmatpush1.msra.mxu0 0.0
        %3408 = vmatprep.subr.mxu0 0.0
        %3409 = vmatpush1.msra.mxu0 0.0
        %3410 = vmatprep.subr.mxu0 0.0
        %3411 = vmatpush1.msra.mxu0 0.0
        %3412 = vmatprep.subr.mxu0 0.0
        %3413 = vmatpush1.msra.mxu0 0.0
        %3414 = vmatprep.subr.mxu0 0.0
        %3415 = vmatpush1.msra.mxu0 0.0
        %3416 = vmatprep.subr.mxu0 0.0
        %3417 = vmatpush1.msra.mxu0 0.0
        %3418 = vmatprep.subr.mxu0 0.0
        %3419 = vmatpush1.msra.mxu0 0.0
        %3420 = vmatprep.subr.mxu0 0.0
        %3421 = vmatpush1.msra.mxu0 0.0
        %3422 = vmatprep.subr.mxu0 0.0
        %3423 = vmatpush1.msra.mxu0 0.0
        %3424 = vmatprep.subr.mxu0 0.0
        %3425 = vmatpush1.msra.mxu0 0.0
        %3426 = vmatprep.subr.mxu0 0.0
        %3427 = vmatpush1.msra.mxu0 0.0
        %3428 = vmatprep.subr.mxu0 0.0
        %3429 = vmatpush1.msra.mxu0 0.0
        %3430 = vmatprep.subr.mxu0 0.0
        %3431 = vmatpush1.msra.mxu0 0.0
        %3432 = vmatprep.subr.mxu0 0.0
        %3433 = vmatpush1.msra.mxu0 0.0
        %3434 = vmatprep.subr.mxu0 0.0
        %3435 = vmatpush1.msra.mxu0 0.0
        %3436 = vmatprep.subr.mxu0 0.0
        %3437 = vmatpush1.msra.mxu0 0.0
        %3438 = vmatprep.subr.mxu0 0.0
        %3439 = vmatpush1.msra.mxu0 0.0
        %3440 = vmatprep.subr.mxu0 0.0
        %3441 = vmatpush1.msra.mxu0 0.0
        %3442 = vmatprep.subr.mxu0 0.0
        %3443 = vmatpush1.msra.mxu0 0.0
        %3444 = vmatprep.subr.mxu0 0.0
        %3445 = vmatpush1.msra.mxu0 0.0
        %3446 = vmatprep.subr.mxu0 0.0
        %3447 = vmatpush1.msra.mxu0 0.0
        %3448 = vmatprep.subr.mxu0 0.0
        %3449 = vmatpush1.msra.mxu0 0.0
        %3450 = vmatprep.subr.mxu0 0.0
        %3451 = vmatpush1.msra.mxu0 0.0
        %3452 = vmatprep.subr.mxu0 0.0
        %3453 = vmatpush1.msra.mxu0 0.0
        %3454 = vmatprep.subr.mxu0 0.0
        %3455 = vmatpush1.msra.mxu0 0.0
        %3456 = vmatprep.subr.mxu0 0.0
        %3457 = vmatpush1.msra.mxu0 0.0
        %3458 = vmatprep.subr.mxu0 0.0
        %3459 = vmatpush1.msra.mxu0 0.0
        %3460 = vmatprep.subr.mxu0 0.0
        %3461 = vmatpush1.msra.mxu0 0.0
        %3462 = vmatprep.mubr.f32.mxu0 0.0
        %3463 = vmatmul.mubr.f32.gmra.mrb[0].mxu0 %v3387
        %v3464 = vpop.f32.mrb[0].mxu0
        %v3465 = vadd.f32 0.0, %v3464
        %v3466 = vpop.f32.mrb[0].mxu0
        %3467 = vmatprep.mubr.f32.mxu0 0.0
        %3468 = vmatmul.mubr.f32.gmra.mrb[0].mxu0 %v3390
        %v3469 = vpop.f32.mrb[0].mxu0
        %v3470 = vadd.f32 0.0, %v3469
        %v3471 = vpop.f32.mrb[0].mxu0
        %3472 = vmatprep.mubr.f32.mxu0 0.0
        %3473 = vmatmul.mubr.f32.gmra.mrb[0].mxu0 %v3393
        %v3474 = vpop.f32.mrb[0].mxu0
        %v3475 = vadd.f32 0.0, %v3474
        %v3476 = vpop.f32.mrb[0].mxu0
        %3477 = vmatprep.mubr.f32.mxu0 0.0
        %3478 = vmatmul.mubr.f32.gmra.mrb[0].mxu0 %v3396
        %v3479 = vpop.f32.mrb[0].mxu0
        %v3480 = vadd.f32 0.0, %v3479
        %v3481 = vpop.f32.mrb[0].mxu0
        %3482 = vdwg.mxu0
        %v3484 = vsel %vm789, %v3465, 0
        %v3487 = vsel %vm789, %v3470, 0
        %v3490 = vsel %vm789, %v3475, 0
        %v3493 = vsel %vm789, %v3480, 0
        %3495 = vmatprep.subr.mxu0 0.0
        %3496 = vmatpush1.msra.mxu0 %v2285
        %3497 = vmatprep.subr.mxu0 0.0
        %3498 = vmatpush1.msra.mxu0 0.0
        %3499 = vmatprep.subr.mxu0 0.0
        %3500 = vmatpush1.msra.mxu0 0.0
        %3501 = vmatprep.subr.mxu0 0.0
        %3502 = vmatpush1.msra.mxu0 0.0
        %3503 = vmatprep.subr.mxu0 0.0
        %3504 = vmatpush1.msra.mxu0 0.0
        %3505 = vmatprep.subr.mxu0 0.0
        %3506 = vmatpush1.msra.mxu0 0.0
        %3507 = vmatprep.subr.mxu0 0.0
        %3508 = vmatpush1.msra.mxu0 0.0
        %3509 = vmatprep.subr.mxu0 0.0
        %3510 = vmatpush1.msra.mxu0 0.0
        %3511 = vmatprep.subr.mxu0 0.0
        %3512 = vmatpush1.msra.mxu0 0.0
        %3513 = vmatprep.subr.mxu0 0.0
        %3514 = vmatpush1.msra.mxu0 0.0
        %3515 = vmatprep.subr.mxu0 0.0
        %3516 = vmatpush1.msra.mxu0 0.0
        %3517 = vmatprep.subr.mxu0 0.0
        %3518 = vmatpush1.msra.mxu0 0.0
        %3519 = vmatprep.subr.mxu0 0.0
        %3520 = vmatpush1.msra.mxu0 0.0
        %3521 = vmatprep.subr.mxu0 0.0
        %3522 = vmatpush1.msra.mxu0 0.0
        %3523 = vmatprep.subr.mxu0 0.0
        %3524 = vmatpush1.msra.mxu0 0.0
        %3525 = vmatprep.subr.mxu0 0.0
        %3526 = vmatpush1.msra.mxu0 0.0
        %3527 = vmatprep.subr.mxu0 0.0
        %3528 = vmatpush1.msra.mxu0 0.0
        %3529 = vmatprep.subr.mxu0 0.0
        %3530 = vmatpush1.msra.mxu0 0.0
        %3531 = vmatprep.subr.mxu0 0.0
        %3532 = vmatpush1.msra.mxu0 0.0
        %3533 = vmatprep.subr.mxu0 0.0
        %3534 = vmatpush1.msra.mxu0 0.0
        %3535 = vmatprep.subr.mxu0 0.0
        %3536 = vmatpush1.msra.mxu0 0.0
        %3537 = vmatprep.subr.mxu0 0.0
        %3538 = vmatpush1.msra.mxu0 0.0
        %3539 = vmatprep.subr.mxu0 0.0
        %3540 = vmatpush1.msra.mxu0 0.0
        %3541 = vmatprep.subr.mxu0 0.0
        %3542 = vmatpush1.msra.mxu0 0.0
        %3543 = vmatprep.subr.mxu0 0.0
        %3544 = vmatpush1.msra.mxu0 0.0
        %3545 = vmatprep.subr.mxu0 0.0
        %3546 = vmatpush1.msra.mxu0 0.0
        %3547 = vmatprep.subr.mxu0 0.0
        %3548 = vmatpush1.msra.mxu0 0.0
        %3549 = vmatprep.subr.mxu0 0.0
        %3550 = vmatpush1.msra.mxu0 0.0
        %3551 = vmatprep.subr.mxu0 0.0
        %3552 = vmatpush1.msra.mxu0 0.0
        %3553 = vmatprep.subr.mxu0 0.0
        %3554 = vmatpush1.msra.mxu0 0.0
        %3555 = vmatprep.subr.mxu0 0.0
        %3556 = vmatpush1.msra.mxu0 0.0
        %3557 = vmatprep.subr.mxu0 0.0
        %3558 = vmatpush1.msra.mxu0 0.0
        %3559 = vmatprep.mubr.f32.mxu0 0.0
        %3560 = vmatmul.mubr.f32.gmra.mrb[0].mxu0 %v3484
        %v3561 = vpop.f32.mrb[0].mxu0
        %v3562 = vadd.f32 0.0, %v3561
        %v3563 = vpop.f32.mrb[0].mxu0
        %3564 = vmatprep.mubr.f32.mxu0 0.0
        %3565 = vmatmul.mubr.f32.gmra.mrb[0].mxu0 %v3487
        %v3566 = vpop.f32.mrb[0].mxu0
        %v3567 = vadd.f32 0.0, %v3566
        %v3568 = vpop.f32.mrb[0].mxu0
        %3569 = vmatprep.mubr.f32.mxu0 0.0
        %3570 = vmatmul.mubr.f32.gmra.mrb[0].mxu0 %v3490
        %v3571 = vpop.f32.mrb[0].mxu0
        %v3572 = vadd.f32 0.0, %v3571
        %v3573 = vpop.f32.mrb[0].mxu0
        %3574 = vmatprep.mubr.f32.mxu0 0.0
        %3575 = vmatmul.mubr.f32.gmra.mrb[0].mxu0 %v3493
        %v3576 = vpop.f32.mrb[0].mxu0
        %v3577 = vadd.f32 0.0, %v3576
        %v3578 = vpop.f32.mrb[0].mxu0
        %3579 = vdwg.mxu0
        %v3580 = vadd.f32 %v3195, %v3562
        %v3581 = vadd.f32 %v3200, %v3567
        %v3582 = vadd.f32 %v3205, %v3572
        %v3583 = vadd.f32 %v3210, %v3577
        %3584 = vrot.lane.b32.xlu0 %v2378, 104
        %v3585 = vpop.permute.xlu0 %3584
        %3586 = vrot.lane.b32.xlu0 %v2383, 104
        %v3587 = vpop.permute.xlu0 %3586
        %3588 = vrot.lane.b32.xlu0 %v2388, 104
        %v3589 = vpop.permute.xlu0 %3588
        %3590 = vrot.lane.b32.xlu0 %v2393, 104
        %v3591 = vpop.permute.xlu0 %3590
        %3592 = vrot.lane.b32.xlu0 %v2469, 104
        %v3593 = vpop.permute.xlu0 %3592
        %3594 = vrot.lane.b32.xlu0 %v2474, 104
        %v3595 = vpop.permute.xlu0 %3594
        %3596 = vrot.lane.b32.xlu0 %v2479, 104
        %v3597 = vpop.permute.xlu0 %3596
        %3598 = vrot.lane.b32.xlu0 %v2484, 104
        %v3599 = vpop.permute.xlu0 %3598
        %v3600 = vsel %vm789, %v3585, 0
        %v3602 = vsel %vm789, %v3587, 0
        %v3604 = vsel %vm789, %v3589, 0
        %v3606 = vsel %vm789, %v3591, 0
        %v3608 = vsel %vm789, %v3593, 0
        %v3610 = vsel %vm789, %v3595, 0
        %v3612 = vsel %vm789, %v3597, 0
        %v3614 = vsel %vm789, %v3599, 0
        %3616 = vmatprep.subr.mxu0 0.0
        %3617 = vmatpush1.xpose.msra.mxu0 %v3608
        %3618 = vmatprep.subr.mxu0 0.0
        %3619 = vmatpush1.xpose.msra.mxu0 %v3610
        %3620 = vmatprep.subr.mxu0 0.0
        %3621 = vmatpush1.xpose.msra.mxu0 %v3612
        %3622 = vmatprep.subr.mxu0 0.0
        %3623 = vmatpush1.xpose.msra.mxu0 %v3614
        %3624 = vmatprep.subr.mxu0 0.0
        %3625 = vmatpush1.xpose.msra.mxu0 0.0
        %3626 = vmatprep.subr.mxu0 0.0
        %3627 = vmatpush1.xpose.msra.mxu0 0.0
        %3628 = vmatprep.subr.mxu0 0.0
        %3629 = vmatpush1.xpose.msra.mxu0 0.0
        %3630 = vmatprep.subr.mxu0 0.0
        %3631 = vmatpush1.xpose.msra.mxu0 0.0
        %3632 = vmatprep.subr.mxu0 0.0
        %3633 = vmatpush1.xpose.msra.mxu0 0.0
        %3634 = vmatprep.subr.mxu0 0.0
        %3635 = vmatpush1.xpose.msra.mxu0 0.0
        %3636 = vmatprep.subr.mxu0 0.0
        %3637 = vmatpush1.xpose.msra.mxu0 0.0
        %3638 = vmatprep.subr.mxu0 0.0
        %3639 = vmatpush1.xpose.msra.mxu0 0.0
        %3640 = vmatprep.subr.mxu0 0.0
        %3641 = vmatpush1.xpose.msra.mxu0 0.0
        %3642 = vmatprep.subr.mxu0 0.0
        %3643 = vmatpush1.xpose.msra.mxu0 0.0
        %3644 = vmatprep.subr.mxu0 0.0
        %3645 = vmatpush1.xpose.msra.mxu0 0.0
        %3646 = vmatprep.subr.mxu0 0.0
        %3647 = vmatpush1.xpose.msra.mxu0 0.0
        %3648 = vmatprep.subr.mxu0 0.0
        %3649 = vmatpush1.xpose.msra.mxu0 0.0
        %3650 = vmatprep.subr.mxu0 0.0
        %3651 = vmatpush1.xpose.msra.mxu0 0.0
        %3652 = vmatprep.subr.mxu0 0.0
        %3653 = vmatpush1.xpose.msra.mxu0 0.0
        %3654 = vmatprep.subr.mxu0 0.0
        %3655 = vmatpush1.xpose.msra.mxu0 0.0
        %3656 = vmatprep.subr.mxu0 0.0
        %3657 = vmatpush1.xpose.msra.mxu0 0.0
        %3658 = vmatprep.subr.mxu0 0.0
        %3659 = vmatpush1.xpose.msra.mxu0 0.0
        %3660 = vmatprep.subr.mxu0 0.0
        %3661 = vmatpush1.xpose.msra.mxu0 0.0
        %3662 = vmatprep.subr.mxu0 0.0
        %3663 = vmatpush1.xpose.msra.mxu0 0.0
        %3664 = vmatprep.subr.mxu0 0.0
        %3665 = vmatpush1.xpose.msra.mxu0 0.0
        %3666 = vmatprep.subr.mxu0 0.0
        %3667 = vmatpush1.xpose.msra.mxu0 0.0
        %3668 = vmatprep.subr.mxu0 0.0
        %3669 = vmatpush1.xpose.msra.mxu0 0.0
        %3670 = vmatprep.subr.mxu0 0.0
        %3671 = vmatpush1.xpose.msra.mxu0 0.0
        %3672 = vmatprep.subr.mxu0 0.0
        %3673 = vmatpush1.xpose.msra.mxu0 0.0
        %3674 = vmatprep.subr.mxu0 0.0
        %3675 = vmatpush1.xpose.msra.mxu0 0.0
        %3676 = vmatprep.subr.mxu0 0.0
        %3677 = vmatpush1.xpose.msra.mxu0 0.0
        %3678 = vmatprep.subr.mxu0 0.0
        %3679 = vmatpush1.xpose.msra.mxu0 0.0
        %3680 = vmatprep.mubr.f32.mxu0 0.0
        %3681 = vmatmul.mubr.f32.gmra.mrb[0].mxu0 %v3600
        %v3682 = vpop.f32.mrb[0].mxu0
        %v3683 = vadd.f32 %v2289, %v3682
        %v3684 = vpop.f32.mrb[0].mxu0
        %3685 = vmatprep.mubr.f32.mxu0 0.0
        %3686 = vmatmul.mubr.f32.gmra.mrb[0].mxu0 %v3602
        %v3687 = vpop.f32.mrb[0].mxu0
        %v3688 = vadd.f32 %v2290, %v3687
        %v3689 = vpop.f32.mrb[0].mxu0
        %3690 = vmatprep.mubr.f32.mxu0 0.0
        %3691 = vmatmul.mubr.f32.gmra.mrb[0].mxu0 %v3604
        %v3692 = vpop.f32.mrb[0].mxu0
        %v3693 = vadd.f32 %v2291, %v3692
        %v3694 = vpop.f32.mrb[0].mxu0
        %3695 = vmatprep.mubr.f32.mxu0 0.0
        %3696 = vmatmul.mubr.f32.gmra.mrb[0].mxu0 %v3606
        %v3697 = vpop.f32.mrb[0].mxu0
        %v3698 = vadd.f32 %v2292, %v3697
        %v3699 = vpop.f32.mrb[0].mxu0
        %3700 = vdwg.mxu0
        %v3701 = vsel %vm600, %v3683, -inf
        %3702 = vmax.xlane.f32.xlu0 %v3701
        %v3703 = vpop.xlane.xlu0 %3702
        %v3704 = vsel %vm600, %v3688, -inf
        %3705 = vmax.xlane.f32.xlu0 %v3704
        %v3706 = vpop.xlane.xlu0 %3705
        %v3707 = vsel %vm600, %v3693, -inf
        %3708 = vmax.xlane.f32.xlu0 %v3707
        %v3709 = vpop.xlane.xlu0 %3708
        %v3710 = vsel %vm600, %v3698, -inf
        %3711 = vmax.xlane.f32.xlu0 %v3710
        %v3712 = vpop.xlane.xlu0 %3711
        %v3713 = vsub.f32 %v3683, %v3703
        %v3714 = vsub.f32 %v3688, %v3706
        %v3715 = vsub.f32 %v3693, %v3709
        %v3716 = vsub.f32 %v3698, %v3712
        %v3717 = vmul.f32 %v3713, 1.442695
        %v3718 = vpow.pop %v3717
        %v3719 = vmul.f32 %v3714, 1.442695
        %v3720 = vpow.pop %v3719
        %v3721 = vmul.f32 %v3715, 1.442695
        %v3722 = vpow.pop %v3721
        %v3723 = vmul.f32 %v3716, 1.442695
        %v3724 = vpow.pop %v3723
        %v3725 = vsel %vm600, %v3718, 0.0
        %3726 = vadd.xlane.f32.xlu0 %v3725
        %v3727 = vpop.xlane.xlu0 %3726
        %v3728 = vsel %vm600, %v3720, 0.0
        %3729 = vadd.xlane.f32.xlu0 %v3728
        %v3730 = vpop.xlane.xlu0 %3729
        %v3731 = vsel %vm600, %v3722, 0.0
        %3732 = vadd.xlane.f32.xlu0 %v3731
        %v3733 = vpop.xlane.xlu0 %3732
        %v3734 = vsel %vm600, %v3724, 0.0
        %3735 = vadd.xlane.f32.xlu0 %v3734
        %v3736 = vpop.xlane.xlu0 %3735
        %v3737 = vrcp.pop %v3727
        %v3738 = vrcp.pop %v3730
        %v3739 = vrcp.pop %v3733
        %v3740 = vrcp.pop %v3736
        %v3741 = vmul.f32 %v3718, %v3737
        %v3742 = vmul.f32 %v3720, %v3738
        %v3743 = vmul.f32 %v3722, %v3739
        %v3744 = vmul.f32 %v3724, %v3740
        %3745 = vrot.lane.b32.xlu0 %v2469, 72
        %v3746 = vpop.permute.xlu0 %3745
        %3747 = vrot.lane.b32.xlu0 %v2474, 72
        %v3748 = vpop.permute.xlu0 %3747
        %3749 = vrot.lane.b32.xlu0 %v2479, 72
        %v3750 = vpop.permute.xlu0 %3749
        %3751 = vrot.lane.b32.xlu0 %v2484, 72
        %v3752 = vpop.permute.xlu0 %3751
        %v3758 = vsel %vm600, %v3741, 0
        %v3761 = vsel %vm600, %v3742, 0
        %v3764 = vsel %vm600, %v3743, 0
        %v3767 = vsel %vm600, %v3744, 0
        %3769 = vmatprep.subr.mxu0 0.0
        %3770 = vmatpush1.msra.mxu0 %v3746
        %3771 = vmatprep.subr.mxu0 0.0
        %3772 = vmatpush1.msra.mxu0 %v3748
        %3773 = vmatprep.subr.mxu0 0.0
        %3774 = vmatpush1.msra.mxu0 %v3750
        %3775 = vmatprep.subr.mxu0 0.0
        %3776 = vmatpush1.msra.mxu0 %v3752
        %3777 = vmatprep.subr.mxu0 0.0
        %3778 = vmatpush1.msra.mxu0 0.0
        %3779 = vmatprep.subr.mxu0 0.0
        %3780 = vmatpush1.msra.mxu0 0.0
        %3781 = vmatprep.subr.mxu0 0.0
        %3782 = vmatpush1.msra.mxu0 0.0
        %3783 = vmatprep.subr.mxu0 0.0
        %3784 = vmatpush1.msra.mxu0 0.0
        %3785 = vmatprep.subr.mxu0 0.0
        %3786 = vmatpush1.msra.mxu0 0.0
        %3787 = vmatprep.subr.mxu0 0.0
        %3788 = vmatpush1.msra.mxu0 0.0
        %3789 = vmatprep.subr.mxu0 0.0
        %3790 = vmatpush1.msra.mxu0 0.0
        %3791 = vmatprep.subr.mxu0 0.0
        %3792 = vmatpush1.msra.mxu0 0.0
        %3793 = vmatprep.subr.mxu0 0.0
        %3794 = vmatpush1.msra.mxu0 0.0
        %3795 = vmatprep.subr.mxu0 0.0
        %3796 = vmatpush1.msra.mxu0 0.0
        %3797 = vmatprep.subr.mxu0 0.0
        %3798 = vmatpush1.msra.mxu0 0.0
        %3799 = vmatprep.subr.mxu0 0.0
        %3800 = vmatpush1.msra.mxu0 0.0
        %3801 = vmatprep.subr.mxu0 0.0
        %3802 = vmatpush1.msra.mxu0 0.0
        %3803 = vmatprep.subr.mxu0 0.0
        %3804 = vmatpush1.msra.mxu0 0.0
        %3805 = vmatprep.subr.mxu0 0.0
        %3806 = vmatpush1.msra.mxu0 0.0
        %3807 = vmatprep.subr.mxu0 0.0
        %3808 = vmatpush1.msra.mxu0 0.0
        %3809 = vmatprep.subr.mxu0 0.0
        %3810 = vmatpush1.msra.mxu0 0.0
        %3811 = vmatprep.subr.mxu0 0.0
        %3812 = vmatpush1.msra.mxu0 0.0
        %3813 = vmatprep.subr.mxu0 0.0
        %3814 = vmatpush1.msra.mxu0 0.0
        %3815 = vmatprep.subr.mxu0 0.0
        %3816 = vmatpush1.msra.mxu0 0.0
        %3817 = vmatprep.subr.mxu0 0.0
        %3818 = vmatpush1.msra.mxu0 0.0
        %3819 = vmatprep.subr.mxu0 0.0
        %3820 = vmatpush1.msra.mxu0 0.0
        %3821 = vmatprep.subr.mxu0 0.0
        %3822 = vmatpush1.msra.mxu0 0.0
        %3823 = vmatprep.subr.mxu0 0.0
        %3824 = vmatpush1.msra.mxu0 0.0
        %3825 = vmatprep.subr.mxu0 0.0
        %3826 = vmatpush1.msra.mxu0 0.0
        %3827 = vmatprep.subr.mxu0 0.0
        %3828 = vmatpush1.msra.mxu0 0.0
        %3829 = vmatprep.subr.mxu0 0.0
        %3830 = vmatpush1.msra.mxu0 0.0
        %3831 = vmatprep.subr.mxu0 0.0
        %3832 = vmatpush1.msra.mxu0 0.0
        %3833 = vmatprep.mubr.f32.mxu0 0.0
        %3834 = vmatmul.mubr.f32.gmra.mrb[0].mxu0 %v3758
        %v3835 = vpop.f32.mrb[0].mxu0
        %v3836 = vadd.f32 0.0, %v3835
        %v3837 = vpop.f32.mrb[0].mxu0
        %3838 = vmatprep.mubr.f32.mxu0 0.0
        %3839 = vmatmul.mubr.f32.gmra.mrb[0].mxu0 %v3761
        %v3840 = vpop.f32.mrb[0].mxu0
        %v3841 = vadd.f32 0.0, %v3840
        %v3842 = vpop.f32.mrb[0].mxu0
        %3843 = vmatprep.mubr.f32.mxu0 0.0
        %3844 = vmatmul.mubr.f32.gmra.mrb[0].mxu0 %v3764
        %v3845 = vpop.f32.mrb[0].mxu0
        %v3846 = vadd.f32 0.0, %v3845
        %v3847 = vpop.f32.mrb[0].mxu0
        %3848 = vmatprep.mubr.f32.mxu0 0.0
        %3849 = vmatmul.mubr.f32.gmra.mrb[0].mxu0 %v3767
        %v3850 = vpop.f32.mrb[0].mxu0
        %v3851 = vadd.f32 0.0, %v3850
        %v3852 = vpop.f32.mrb[0].mxu0
        %3853 = vdwg.mxu0
        %v3855 = vsel %vm789, %v3836, 0
        %v3858 = vsel %vm789, %v3841, 0
        %v3861 = vsel %vm789, %v3846, 0
        %v3864 = vsel %vm789, %v3851, 0
        %3866 = vmatprep.subr.mxu0 0.0
        %3867 = vmatpush1.msra.mxu0 %v2286
        %3868 = vmatprep.subr.mxu0 0.0
        %3869 = vmatpush1.msra.mxu0 0.0
        %3870 = vmatprep.subr.mxu0 0.0
        %3871 = vmatpush1.msra.mxu0 0.0
        %3872 = vmatprep.subr.mxu0 0.0
        %3873 = vmatpush1.msra.mxu0 0.0
        %3874 = vmatprep.subr.mxu0 0.0
        %3875 = vmatpush1.msra.mxu0 0.0
        %3876 = vmatprep.subr.mxu0 0.0
        %3877 = vmatpush1.msra.mxu0 0.0
        %3878 = vmatprep.subr.mxu0 0.0
        %3879 = vmatpush1.msra.mxu0 0.0
        %3880 = vmatprep.subr.mxu0 0.0
        %3881 = vmatpush1.msra.mxu0 0.0
        %3882 = vmatprep.subr.mxu0 0.0
        %3883 = vmatpush1.msra.mxu0 0.0
        %3884 = vmatprep.subr.mxu0 0.0
        %3885 = vmatpush1.msra.mxu0 0.0
        %3886 = vmatprep.subr.mxu0 0.0
        %3887 = vmatpush1.msra.mxu0 0.0
        %3888 = vmatprep.subr.mxu0 0.0
        %3889 = vmatpush1.msra.mxu0 0.0
        %3890 = vmatprep.subr.mxu0 0.0
        %3891 = vmatpush1.msra.mxu0 0.0
        %3892 = vmatprep.subr.mxu0 0.0
        %3893 = vmatpush1.msra.mxu0 0.0
        %3894 = vmatprep.subr.mxu0 0.0
        %3895 = vmatpush1.msra.mxu0 0.0
        %3896 = vmatprep.subr.mxu0 0.0
        %3897 = vmatpush1.msra.mxu0 0.0
        %3898 = vmatprep.subr.mxu0 0.0
        %3899 = vmatpush1.msra.mxu0 0.0
        %3900 = vmatprep.subr.mxu0 0.0
        %3901 = vmatpush1.msra.mxu0 0.0
        %3902 = vmatprep.subr.mxu0 0.0
        %3903 = vmatpush1.msra.mxu0 0.0
        %3904 = vmatprep.subr.mxu0 0.0
        %3905 = vmatpush1.msra.mxu0 0.0
        %3906 = vmatprep.subr.mxu0 0.0
        %3907 = vmatpush1.msra.mxu0 0.0
        %3908 = vmatprep.subr.mxu0 0.0
        %3909 = vmatpush1.msra.mxu0 0.0
        %3910 = vmatprep.subr.mxu0 0.0
        %3911 = vmatpush1.msra.mxu0 0.0
        %3912 = vmatprep.subr.mxu0 0.0
        %3913 = vmatpush1.msra.mxu0 0.0
        %3914 = vmatprep.subr.mxu0 0.0
        %3915 = vmatpush1.msra.mxu0 0.0
        %3916 = vmatprep.subr.mxu0 0.0
        %3917 = vmatpush1.msra.mxu0 0.0
        %3918 = vmatprep.subr.mxu0 0.0
        %3919 = vmatpush1.msra.mxu0 0.0
        %3920 = vmatprep.subr.mxu0 0.0
        %3921 = vmatpush1.msra.mxu0 0.0
        %3922 = vmatprep.subr.mxu0 0.0
        %3923 = vmatpush1.msra.mxu0 0.0
        %3924 = vmatprep.subr.mxu0 0.0
        %3925 = vmatpush1.msra.mxu0 0.0
        %3926 = vmatprep.subr.mxu0 0.0
        %3927 = vmatpush1.msra.mxu0 0.0
        %3928 = vmatprep.subr.mxu0 0.0
        %3929 = vmatpush1.msra.mxu0 0.0
        %3930 = vmatprep.mubr.f32.mxu0 0.0
        %3931 = vmatmul.mubr.f32.gmra.mrb[0].mxu0 %v3855
        %v3932 = vpop.f32.mrb[0].mxu0
        %v3933 = vadd.f32 0.0, %v3932
        %v3934 = vpop.f32.mrb[0].mxu0
        %3935 = vmatprep.mubr.f32.mxu0 0.0
        %3936 = vmatmul.mubr.f32.gmra.mrb[0].mxu0 %v3858
        %v3937 = vpop.f32.mrb[0].mxu0
        %v3938 = vadd.f32 0.0, %v3937
        %v3939 = vpop.f32.mrb[0].mxu0
        %3940 = vmatprep.mubr.f32.mxu0 0.0
        %3941 = vmatmul.mubr.f32.gmra.mrb[0].mxu0 %v3861
        %v3942 = vpop.f32.mrb[0].mxu0
        %v3943 = vadd.f32 0.0, %v3942
        %v3944 = vpop.f32.mrb[0].mxu0
        %3945 = vmatprep.mubr.f32.mxu0 0.0
        %3946 = vmatmul.mubr.f32.gmra.mrb[0].mxu0 %v3864
        %v3947 = vpop.f32.mrb[0].mxu0
        %v3948 = vadd.f32 0.0, %v3947
        %v3949 = vpop.f32.mrb[0].mxu0
        %3950 = vdwg.mxu0
        %v3951 = vadd.f32 %v3580, %v3933
        %v3952 = vadd.f32 %v3581, %v3938
        %v3953 = vadd.f32 %v3582, %v3943
        %v3954 = vadd.f32 %v3583, %v3948
        %v3956 = vlaneseq
        %v3957 = vshrl.u32 %v3956, 7
        %v3958 = vsub.s32 0, %v3957
        %v3959 = vrot.slane %v2288, %v3958
        %v3961 = vadd.f32 %v3951, %v3959
        %v3962 = vadd.f32 %v3952, %v3959
        %v3963 = vadd.f32 %v3953, %v3959
        %v3964 = vadd.f32 %v3954, %v3959
        %v3965 = vld [vmem:[%s11] sm:$0x1]
        %v3966 = vld [vmem:[%s12] sm:$0x1]
        %v3967 = vadd.f32 %v567, %v3961
        %v3968 = vadd.f32 %v568, %v3962
        %v3969 = vadd.f32 %v569, %v3963
        %v3970 = vadd.f32 %v570, %v3964
        %v3971 = vsel %vm600, %v3967, 0.0
        %3972 = vadd.xlane.f32.xlu0 %v3971
        %v3973 = vpop.xlane.xlu0 %3972
        %v3974 = vsel %vm600, %v3968, 0.0
        %3975 = vadd.xlane.f32.xlu0 %v3974
        %v3976 = vpop.xlane.xlu0 %3975
        %v3977 = vsel %vm600, %v3969, 0.0
        %3978 = vadd.xlane.f32.xlu0 %v3977
        %v3979 = vpop.xlane.xlu0 %3978
        %v3980 = vsel %vm600, %v3970, 0.0
        %3981 = vadd.xlane.f32.xlu0 %v3980
        %v3982 = vpop.xlane.xlu0 %3981
        %v3983 = vrcp.pop 32.0
        %v3984 = vmul.f32 %v3973, %v3983
        %v3985 = vmul.f32 %v3976, %v3983
        %v3986 = vmul.f32 %v3979, %v3983
        %v3987 = vmul.f32 %v3982, %v3983
        %v3988 = vsub.f32 %v3967, %v3984
        %v3989 = vsub.f32 %v3968, %v3985
        %v3990 = vsub.f32 %v3969, %v3986
        %v3991 = vsub.f32 %v3970, %v3987
        %v3992 = vmul.f32 %v3988, %v3988
        %v3993 = vmul.f32 %v3989, %v3989
        %v3994 = vmul.f32 %v3990, %v3990
        %v3995 = vmul.f32 %v3991, %v3991
        %v3996 = vsel %vm600, %v3992, 0.0
        %3997 = vadd.xlane.f32.xlu0 %v3996
        %v3998 = vpop.xlane.xlu0 %3997
        %v3999 = vsel %vm600, %v3993, 0.0
        %4000 = vadd.xlane.f32.xlu0 %v3999
        %v4001 = vpop.xlane.xlu0 %4000
        %v4002 = vsel %vm600, %v3994, 0.0
        %4003 = vadd.xlane.f32.xlu0 %v4002
        %v4004 = vpop.xlane.xlu0 %4003
        %v4005 = vsel %vm600, %v3995, 0.0
        %4006 = vadd.xlane.f32.xlu0 %v4005
        %v4007 = vpop.xlane.xlu0 %4006
        %v4008 = vmul.f32 %v3998, %v3983
        %v4009 = vmul.f32 %v4001, %v3983
        %v4010 = vmul.f32 %v4004, %v3983
        %v4011 = vmul.f32 %v4007, %v3983
        %v4012 = vadd.f32 %v4008, 1e-05
        %v4013 = vadd.f32 %v4009, 1e-05
        %v4014 = vadd.f32 %v4010, 1e-05
        %v4015 = vadd.f32 %v4011, 1e-05
        %v4016 = vrsqrt.pop %v4012
        %v4017 = vrsqrt.pop %v4013
        %v4018 = vrsqrt.pop %v4014
        %v4019 = vrsqrt.pop %v4015
        %v4020 = vmul.f32 %v3988, %v4016
        %v4021 = vmul.f32 %v3989, %v4017
        %v4022 = vmul.f32 %v3990, %v4018
        %v4023 = vmul.f32 %v3991, %v4019
        %v4025 = vlaneseq
        %v4026 = vshrl.u32 %v4025, 7
        %v4027 = vsub.s32 0, %v4026
        %v4028 = vrot.slane %v3965, %v4027
        %v4030 = vmul.f32 %v4020, %v4028
        %v4031 = vmul.f32 %v4021, %v4028
        %v4032 = vmul.f32 %v4022, %v4028
        %v4033 = vmul.f32 %v4023, %v4028
        %v4035 = vlaneseq
        %v4036 = vshrl.u32 %v4035, 7
        %v4037 = vsub.s32 0, %v4036
        %v4038 = vrot.slane %v3966, %v4037
        %v4040 = vadd.f32 %v4030, %v4038
        %v4041 = vadd.f32 %v4031, %v4038
        %v4042 = vadd.f32 %v4032, %v4038
        %v4043 = vadd.f32 %v4033, %v4038
        %s4044 = scalar_lea.vmem %s5, 64
        %v4045 = vld [vmem:[%s4044] sm:$0xff]
        %v4046 = vld [vmem:[%s4044 + $0x8] sm:$0xff]
        %v4047 = vld [vmem:[%s4044 + $0x10] sm:$0xff]
        %v4048 = vld [vmem:[%s4044 + $0x18] sm:$0xff]
        %s4049 = scalar_lea.vmem %s6, 2
        %v4050 = vld [vmem:[%s4049] sm:$0x1]
        %s4051 = scalar_lea.vmem %s7, 64
        %v4052 = vld [vmem:[%s4051] sm:$0xff]
        %v4053 = vld [vmem:[%s4051 + $0x8] sm:$0xff]
        %v4054 = vld [vmem:[%s4051 + $0x10] sm:$0xff]
        %v4055 = vld [vmem:[%s4051 + $0x18] sm:$0xff]
        %s4056 = scalar_lea.vmem %s8, 2
        %v4057 = vld [vmem:[%s4056] sm:$0x1]
        %s4058 = scalar_lea.vmem %s9, 64
        %v4059 = vld [vmem:[%s4058] sm:$0xff]
        %v4060 = vld [vmem:[%s4058 + $0x8] sm:$0xff]
        %v4061 = vld [vmem:[%s4058 + $0x10] sm:$0xff]
        %v4062 = vld [vmem:[%s4058 + $0x18] sm:$0xff]
        %s4063 = scalar_lea.vmem %s10, 2
        %v4064 = vld [vmem:[%s4063] sm:$0x1]
        %v4065 = vld [vmem:[%s4] sm:$0xff]
        %v4066 = vld [vmem:[%s4 + $0x8] sm:$0xff]
        %v4067 = vld [vmem:[%s4 + $0x10] sm:$0xff]
        %v4068 = vld [vmem:[%s4 + $0x18] sm:$0xff]
        %v4070 = vlaneseq
        %v4071 = vshrl.u32 %v4070, 7
        %v4072 = vsub.s32 0, %v4071
        %v4073 = vrot.slane %v4050, %v4072
        %v4076 = vsel %vm600, %v4040, 0
        %v4079 = vsel %vm600, %v4041, 0
        %v4082 = vsel %vm600, %v4042, 0
        %v4085 = vsel %vm600, %v4043, 0
        %4087 = vmatprep.subr.mxu0 0.0
        %4088 = vmatpush1.msra.mxu0 %v4045
        %4089 = vmatprep.subr.mxu0 0.0
        %4090 = vmatpush1.msra.mxu0 %v4046
        %4091 = vmatprep.subr.mxu0 0.0
        %4092 = vmatpush1.msra.mxu0 %v4047
        %4093 = vmatprep.subr.mxu0 0.0
        %4094 = vmatpush1.msra.mxu0 %v4048
        %4095 = vmatprep.subr.mxu0 0.0
        %4096 = vmatpush1.msra.mxu0 0.0
        %4097 = vmatprep.subr.mxu0 0.0
        %4098 = vmatpush1.msra.mxu0 0.0
        %4099 = vmatprep.subr.mxu0 0.0
        %4100 = vmatpush1.msra.mxu0 0.0
        %4101 = vmatprep.subr.mxu0 0.0
        %4102 = vmatpush1.msra.mxu0 0.0
        %4103 = vmatprep.subr.mxu0 0.0
        %4104 = vmatpush1.msra.mxu0 0.0
        %4105 = vmatprep.subr.mxu0 0.0
        %4106 = vmatpush1.msra.mxu0 0.0
        %4107 = vmatprep.subr.mxu0 0.0
        %4108 = vmatpush1.msra.mxu0 0.0
        %4109 = vmatprep.subr.mxu0 0.0
        %4110 = vmatpush1.msra.mxu0 0.0
        %4111 = vmatprep.subr.mxu0 0.0
        %4112 = vmatpush1.msra.mxu0 0.0
        %4113 = vmatprep.subr.mxu0 0.0
        %4114 = vmatpush1.msra.mxu0 0.0
        %4115 = vmatprep.subr.mxu0 0.0
        %4116 = vmatpush1.msra.mxu0 0.0
        %4117 = vmatprep.subr.mxu0 0.0
        %4118 = vmatpush1.msra.mxu0 0.0
        %4119 = vmatprep.subr.mxu0 0.0
        %4120 = vmatpush1.msra.mxu0 0.0
        %4121 = vmatprep.subr.mxu0 0.0
        %4122 = vmatpush1.msra.mxu0 0.0
        %4123 = vmatprep.subr.mxu0 0.0
        %4124 = vmatpush1.msra.mxu0 0.0
        %4125 = vmatprep.subr.mxu0 0.0
        %4126 = vmatpush1.msra.mxu0 0.0
        %4127 = vmatprep.subr.mxu0 0.0
        %4128 = vmatpush1.msra.mxu0 0.0
        %4129 = vmatprep.subr.mxu0 0.0
        %4130 = vmatpush1.msra.mxu0 0.0
        %4131 = vmatprep.subr.mxu0 0.0
        %4132 = vmatpush1.msra.mxu0 0.0
        %4133 = vmatprep.subr.mxu0 0.0
        %4134 = vmatpush1.msra.mxu0 0.0
        %4135 = vmatprep.subr.mxu0 0.0
        %4136 = vmatpush1.msra.mxu0 0.0
        %4137 = vmatprep.subr.mxu0 0.0
        %4138 = vmatpush1.msra.mxu0 0.0
        %4139 = vmatprep.subr.mxu0 0.0
        %4140 = vmatpush1.msra.mxu0 0.0
        %4141 = vmatprep.subr.mxu0 0.0
        %4142 = vmatpush1.msra.mxu0 0.0
        %4143 = vmatprep.subr.mxu0 0.0
        %4144 = vmatpush1.msra.mxu0 0.0
        %4145 = vmatprep.subr.mxu0 0.0
        %4146 = vmatpush1.msra.mxu0 0.0
        %4147 = vmatprep.subr.mxu0 0.0
        %4148 = vmatpush1.msra.mxu0 0.0
        %4149 = vmatprep.subr.mxu0 0.0
        %4150 = vmatpush1.msra.mxu0 0.0
        %4151 = vmatprep.mubr.f32.mxu0 0.0
        %4152 = vmatmul.mubr.f32.gmra.mrb[0].mxu0 %v4076
        %v4153 = vpop.f32.mrb[0].mxu0
        %v4154 = vadd.f32 %v4073, %v4153
        %v4155 = vpop.f32.mrb[0].mxu0
        %4156 = vmatprep.mubr.f32.mxu0 0.0
        %4157 = vmatmul.mubr.f32.gmra.mrb[0].mxu0 %v4079
        %v4158 = vpop.f32.mrb[0].mxu0
        %v4159 = vadd.f32 %v4073, %v4158
        %v4160 = vpop.f32.mrb[0].mxu0
        %4161 = vmatprep.mubr.f32.mxu0 0.0
        %4162 = vmatmul.mubr.f32.gmra.mrb[0].mxu0 %v4082
        %v4163 = vpop.f32.mrb[0].mxu0
        %v4164 = vadd.f32 %v4073, %v4163
        %v4165 = vpop.f32.mrb[0].mxu0
        %4166 = vmatprep.mubr.f32.mxu0 0.0
        %4167 = vmatmul.mubr.f32.gmra.mrb[0].mxu0 %v4085
        %v4168 = vpop.f32.mrb[0].mxu0
        %v4169 = vadd.f32 %v4073, %v4168
        %v4170 = vpop.f32.mrb[0].mxu0
        %4171 = vdwg.mxu0
        %v4173 = vlaneseq
        %v4174 = vshrl.u32 %v4173, 7
        %v4175 = vsub.s32 0, %v4174
        %v4176 = vrot.slane %v4057, %v4175
        %v4179 = vsel %vm600, %v571, 0
        %v4182 = vsel %vm600, %v572, 0
        %v4185 = vsel %vm600, %v573, 0
        %v4188 = vsel %vm600, %v574, 0
        %4190 = vmatprep.subr.mxu0 0.0
        %4191 = vmatpush1.msra.mxu0 %v4052
        %4192 = vmatprep.subr.mxu0 0.0
        %4193 = vmatpush1.msra.mxu0 %v4053
        %4194 = vmatprep.subr.mxu0 0.0
        %4195 = vmatpush1.msra.mxu0 %v4054
        %4196 = vmatprep.subr.mxu0 0.0
        %4197 = vmatpush1.msra.mxu0 %v4055
        %4198 = vmatprep.subr.mxu0 0.0
        %4199 = vmatpush1.msra.mxu0 0.0
        %4200 = vmatprep.subr.mxu0 0.0
        %4201 = vmatpush1.msra.mxu0 0.0
        %4202 = vmatprep.subr.mxu0 0.0
        %4203 = vmatpush1.msra.mxu0 0.0
        %4204 = vmatprep.subr.mxu0 0.0
        %4205 = vmatpush1.msra.mxu0 0.0
        %4206 = vmatprep.subr.mxu0 0.0
        %4207 = vmatpush1.msra.mxu0 0.0
        %4208 = vmatprep.subr.mxu0 0.0
        %4209 = vmatpush1.msra.mxu0 0.0
        %4210 = vmatprep.subr.mxu0 0.0
        %4211 = vmatpush1.msra.mxu0 0.0
        %4212 = vmatprep.subr.mxu0 0.0
        %4213 = vmatpush1.msra.mxu0 0.0
        %4214 = vmatprep.subr.mxu0 0.0
        %4215 = vmatpush1.msra.mxu0 0.0
        %4216 = vmatprep.subr.mxu0 0.0
        %4217 = vmatpush1.msra.mxu0 0.0
        %4218 = vmatprep.subr.mxu0 0.0
        %4219 = vmatpush1.msra.mxu0 0.0
        %4220 = vmatprep.subr.mxu0 0.0
        %4221 = vmatpush1.msra.mxu0 0.0
        %4222 = vmatprep.subr.mxu0 0.0
        %4223 = vmatpush1.msra.mxu0 0.0
        %4224 = vmatprep.subr.mxu0 0.0
        %4225 = vmatpush1.msra.mxu0 0.0
        %4226 = vmatprep.subr.mxu0 0.0
        %4227 = vmatpush1.msra.mxu0 0.0
        %4228 = vmatprep.subr.mxu0 0.0
        %4229 = vmatpush1.msra.mxu0 0.0
        %4230 = vmatprep.subr.mxu0 0.0
        %4231 = vmatpush1.msra.mxu0 0.0
        %4232 = vmatprep.subr.mxu0 0.0
        %4233 = vmatpush1.msra.mxu0 0.0
        %4234 = vmatprep.subr.mxu0 0.0
        %4235 = vmatpush1.msra.mxu0 0.0
        %4236 = vmatprep.subr.mxu0 0.0
        %4237 = vmatpush1.msra.mxu0 0.0
        %4238 = vmatprep.subr.mxu0 0.0
        %4239 = vmatpush1.msra.mxu0 0.0
        %4240 = vmatprep.subr.mxu0 0.0
        %4241 = vmatpush1.msra.mxu0 0.0
        %4242 = vmatprep.subr.mxu0 0.0
        %4243 = vmatpush1.msra.mxu0 0.0
        %4244 = vmatprep.subr.mxu0 0.0
        %4245 = vmatpush1.msra.mxu0 0.0
        %4246 = vmatprep.subr.mxu0 0.0
        %4247 = vmatpush1.msra.mxu0 0.0
        %4248 = vmatprep.subr.mxu0 0.0
        %4249 = vmatpush1.msra.mxu0 0.0
        %4250 = vmatprep.subr.mxu0 0.0
        %4251 = vmatpush1.msra.mxu0 0.0
        %4252 = vmatprep.subr.mxu0 0.0
        %4253 = vmatpush1.msra.mxu0 0.0
        %4254 = vmatprep.mubr.f32.mxu0 0.0
        %4255 = vmatmul.mubr.f32.gmra.mrb[0].mxu0 %v4179
        %v4256 = vpop.f32.mrb[0].mxu0
        %v4257 = vadd.f32 %v4176, %v4256
        %v4258 = vpop.f32.mrb[0].mxu0
        %4259 = vmatprep.mubr.f32.mxu0 0.0
        %4260 = vmatmul.mubr.f32.gmra.mrb[0].mxu0 %v4182
        %v4261 = vpop.f32.mrb[0].mxu0
        %v4262 = vadd.f32 %v4176, %v4261
        %v4263 = vpop.f32.mrb[0].mxu0
        %4264 = vmatprep.mubr.f32.mxu0 0.0
        %4265 = vmatmul.mubr.f32.gmra.mrb[0].mxu0 %v4185
        %v4266 = vpop.f32.mrb[0].mxu0
        %v4267 = vadd.f32 %v4176, %v4266
        %v4268 = vpop.f32.mrb[0].mxu0
        %4269 = vmatprep.mubr.f32.mxu0 0.0
        %4270 = vmatmul.mubr.f32.gmra.mrb[0].mxu0 %v4188
        %v4271 = vpop.f32.mrb[0].mxu0
        %v4272 = vadd.f32 %v4176, %v4271
        %v4273 = vpop.f32.mrb[0].mxu0
        %4274 = vdwg.mxu0
        %v4276 = vsel %vm789, %v4154, 0
        %v4279 = vsel %vm789, %v4159, 0
        %v4282 = vsel %vm789, %v4164, 0
        %v4285 = vsel %vm789, %v4169, 0
        %v4288 = vsel %vm789, %v4257, 0
        %v4291 = vsel %vm789, %v4262, 0
        %v4294 = vsel %vm789, %v4267, 0
        %v4297 = vsel %vm789, %v4272, 0
        %4299 = vmatprep.subr.mxu0 0.0
        %4300 = vmatpush1.xpose.msra.mxu0 %v4288
        %4301 = vmatprep.subr.mxu0 0.0
        %4302 = vmatpush1.xpose.msra.mxu0 %v4291
        %4303 = vmatprep.subr.mxu0 0.0
        %4304 = vmatpush1.xpose.msra.mxu0 %v4294
        %4305 = vmatprep.subr.mxu0 0.0
        %4306 = vmatpush1.xpose.msra.mxu0 %v4297
        %4307 = vmatprep.subr.mxu0 0.0
        %4308 = vmatpush1.xpose.msra.mxu0 0.0
        %4309 = vmatprep.subr.mxu0 0.0
        %4310 = vmatpush1.xpose.msra.mxu0 0.0
        %4311 = vmatprep.subr.mxu0 0.0
        %4312 = vmatpush1.xpose.msra.mxu0 0.0
        %4313 = vmatprep.subr.mxu0 0.0
        %4314 = vmatpush1.xpose.msra.mxu0 0.0
        %4315 = vmatprep.subr.mxu0 0.0
        %4316 = vmatpush1.xpose.msra.mxu0 0.0
        %4317 = vmatprep.subr.mxu0 0.0
        %4318 = vmatpush1.xpose.msra.mxu0 0.0
        %4319 = vmatprep.subr.mxu0 0.0
        %4320 = vmatpush1.xpose.msra.mxu0 0.0
        %4321 = vmatprep.subr.mxu0 0.0
        %4322 = vmatpush1.xpose.msra.mxu0 0.0
        %4323 = vmatprep.subr.mxu0 0.0
        %4324 = vmatpush1.xpose.msra.mxu0 0.0
        %4325 = vmatprep.subr.mxu0 0.0
        %4326 = vmatpush1.xpose.msra.mxu0 0.0
        %4327 = vmatprep.subr.mxu0 0.0
        %4328 = vmatpush1.xpose.msra.mxu0 0.0
        %4329 = vmatprep.subr.mxu0 0.0
        %4330 = vmatpush1.xpose.msra.mxu0 0.0
        %4331 = vmatprep.subr.mxu0 0.0
        %4332 = vmatpush1.xpose.msra.mxu0 0.0
        %4333 = vmatprep.subr.mxu0 0.0
        %4334 = vmatpush1.xpose.msra.mxu0 0.0
        %4335 = vmatprep.subr.mxu0 0.0
        %4336 = vmatpush1.xpose.msra.mxu0 0.0
        %4337 = vmatprep.subr.mxu0 0.0
        %4338 = vmatpush1.xpose.msra.mxu0 0.0
        %4339 = vmatprep.subr.mxu0 0.0
        %4340 = vmatpush1.xpose.msra.mxu0 0.0
        %4341 = vmatprep.subr.mxu0 0.0
        %4342 = vmatpush1.xpose.msra.mxu0 0.0
        %4343 = vmatprep.subr.mxu0 0.0
        %4344 = vmatpush1.xpose.msra.mxu0 0.0
        %4345 = vmatprep.subr.mxu0 0.0
        %4346 = vmatpush1.xpose.msra.mxu0 0.0
        %4347 = vmatprep.subr.mxu0 0.0
        %4348 = vmatpush1.xpose.msra.mxu0 0.0
        %4349 = vmatprep.subr.mxu0 0.0
        %4350 = vmatpush1.xpose.msra.mxu0 0.0
        %4351 = vmatprep.subr.mxu0 0.0
        %4352 = vmatpush1.xpose.msra.mxu0 0.0
        %4353 = vmatprep.subr.mxu0 0.0
        %4354 = vmatpush1.xpose.msra.mxu0 0.0
        %4355 = vmatprep.subr.mxu0 0.0
        %4356 = vmatpush1.xpose.msra.mxu0 0.0
        %4357 = vmatprep.subr.mxu0 0.0
        %4358 = vmatpush1.xpose.msra.mxu0 0.0
        %4359 = vmatprep.subr.mxu0 0.0
        %4360 = vmatpush1.xpose.msra.mxu0 0.0
        %4361 = vmatprep.subr.mxu0 0.0
        %4362 = vmatpush1.xpose.msra.mxu0 0.0
        %4363 = vmatprep.mubr.f32.mxu0 0.0
        %4364 = vmatmul.mubr.f32.gmra.mrb[0].mxu0 %v4276
        %v4365 = vpop.f32.mrb[0].mxu0
        %v4366 = vadd.f32 %v4065, %v4365
        %v4367 = vpop.f32.mrb[0].mxu0
        %4368 = vmatprep.mubr.f32.mxu0 0.0
        %4369 = vmatmul.mubr.f32.gmra.mrb[0].mxu0 %v4279
        %v4370 = vpop.f32.mrb[0].mxu0
        %v4371 = vadd.f32 %v4066, %v4370
        %v4372 = vpop.f32.mrb[0].mxu0
        %4373 = vmatprep.mubr.f32.mxu0 0.0
        %4374 = vmatmul.mubr.f32.gmra.mrb[0].mxu0 %v4282
        %v4375 = vpop.f32.mrb[0].mxu0
        %v4376 = vadd.f32 %v4067, %v4375
        %v4377 = vpop.f32.mrb[0].mxu0
        %4378 = vmatprep.mubr.f32.mxu0 0.0
        %4379 = vmatmul.mubr.f32.gmra.mrb[0].mxu0 %v4285
        %v4380 = vpop.f32.mrb[0].mxu0
        %v4381 = vadd.f32 %v4068, %v4380
        %v4382 = vpop.f32.mrb[0].mxu0
        %4383 = vdwg.mxu0
        %v4384 = vsel %vm600, %v4366, -inf
        %4385 = vmax.xlane.f32.xlu0 %v4384
        %v4386 = vpop.xlane.xlu0 %4385
        %v4387 = vsel %vm600, %v4371, -inf
        %4388 = vmax.xlane.f32.xlu0 %v4387
        %v4389 = vpop.xlane.xlu0 %4388
        %v4390 = vsel %vm600, %v4376, -inf
        %4391 = vmax.xlane.f32.xlu0 %v4390
        %v4392 = vpop.xlane.xlu0 %4391
        %v4393 = vsel %vm600, %v4381, -inf
        %4394 = vmax.xlane.f32.xlu0 %v4393
        %v4395 = vpop.xlane.xlu0 %4394
        %v4396 = vsub.f32 %v4366, %v4386
        %v4397 = vsub.f32 %v4371, %v4389
        %v4398 = vsub.f32 %v4376, %v4392
        %v4399 = vsub.f32 %v4381, %v4395
        %v4400 = vmul.f32 %v4396, 1.442695
        %v4401 = vpow.pop %v4400
        %v4402 = vmul.f32 %v4397, 1.442695
        %v4403 = vpow.pop %v4402
        %v4404 = vmul.f32 %v4398, 1.442695
        %v4405 = vpow.pop %v4404
        %v4406 = vmul.f32 %v4399, 1.442695
        %v4407 = vpow.pop %v4406
        %v4408 = vsel %vm600, %v4401, 0.0
        %4409 = vadd.xlane.f32.xlu0 %v4408
        %v4410 = vpop.xlane.xlu0 %4409
        %v4411 = vsel %vm600, %v4403, 0.0
        %4412 = vadd.xlane.f32.xlu0 %v4411
        %v4413 = vpop.xlane.xlu0 %4412
        %v4414 = vsel %vm600, %v4405, 0.0
        %4415 = vadd.xlane.f32.xlu0 %v4414
        %v4416 = vpop.xlane.xlu0 %4415
        %v4417 = vsel %vm600, %v4407, 0.0
        %4418 = vadd.xlane.f32.xlu0 %v4417
        %v4419 = vpop.xlane.xlu0 %4418
        %v4420 = vrcp.pop %v4410
        %v4421 = vrcp.pop %v4413
        %v4422 = vrcp.pop %v4416
        %v4423 = vrcp.pop %v4419
        %v4424 = vmul.f32 %v4401, %v4420
        %v4425 = vmul.f32 %v4403, %v4421
        %v4426 = vmul.f32 %v4405, %v4422
        %v4427 = vmul.f32 %v4407, %v4423
        %4428 = vrot.lane.b32.xlu0 %v4257, 96
        %v4429 = vpop.permute.xlu0 %4428
        %4430 = vrot.lane.b32.xlu0 %v4262, 96
        %v4431 = vpop.permute.xlu0 %4430
        %4432 = vrot.lane.b32.xlu0 %v4267, 96
        %v4433 = vpop.permute.xlu0 %4432
        %4434 = vrot.lane.b32.xlu0 %v4272, 96
        %v4435 = vpop.permute.xlu0 %4434
        %v4441 = vsel %vm600, %v4424, 0
        %v4444 = vsel %vm600, %v4425, 0
        %v4447 = vsel %vm600, %v4426, 0
        %v4450 = vsel %vm600, %v4427, 0
        %4452 = vmatprep.subr.mxu0 0.0
        %4453 = vmatpush1.msra.mxu0 %v4429
        %4454 = vmatprep.subr.mxu0 0.0
        %4455 = vmatpush1.msra.mxu0 %v4431
        %4456 = vmatprep.subr.mxu0 0.0
        %4457 = vmatpush1.msra.mxu0 %v4433
        %4458 = vmatprep.subr.mxu0 0.0
        %4459 = vmatpush1.msra.mxu0 %v4435
        %4460 = vmatprep.subr.mxu0 0.0
        %4461 = vmatpush1.msra.mxu0 0.0
        %4462 = vmatprep.subr.mxu0 0.0
        %4463 = vmatpush1.msra.mxu0 0.0
        %4464 = vmatprep.subr.mxu0 0.0
        %4465 = vmatpush1.msra.mxu0 0.0
        %4466 = vmatprep.subr.mxu0 0.0
        %4467 = vmatpush1.msra.mxu0 0.0
        %4468 = vmatprep.subr.mxu0 0.0
        %4469 = vmatpush1.msra.mxu0 0.0
        %4470 = vmatprep.subr.mxu0 0.0
        %4471 = vmatpush1.msra.mxu0 0.0
        %4472 = vmatprep.subr.mxu0 0.0
        %4473 = vmatpush1.msra.mxu0 0.0
        %4474 = vmatprep.subr.mxu0 0.0
        %4475 = vmatpush1.msra.mxu0 0.0
        %4476 = vmatprep.subr.mxu0 0.0
        %4477 = vmatpush1.msra.mxu0 0.0
        %4478 = vmatprep.subr.mxu0 0.0
        %4479 = vmatpush1.msra.mxu0 0.0
        %4480 = vmatprep.subr.mxu0 0.0
        %4481 = vmatpush1.msra.mxu0 0.0
        %4482 = vmatprep.subr.mxu0 0.0
        %4483 = vmatpush1.msra.mxu0 0.0
        %4484 = vmatprep.subr.mxu0 0.0
        %4485 = vmatpush1.msra.mxu0 0.0
        %4486 = vmatprep.subr.mxu0 0.0
        %4487 = vmatpush1.msra.mxu0 0.0
        %4488 = vmatprep.subr.mxu0 0.0
        %4489 = vmatpush1.msra.mxu0 0.0
        %4490 = vmatprep.subr.mxu0 0.0
        %4491 = vmatpush1.msra.mxu0 0.0
        %4492 = vmatprep.subr.mxu0 0.0
        %4493 = vmatpush1.msra.mxu0 0.0
        %4494 = vmatprep.subr.mxu0 0.0
        %4495 = vmatpush1.msra.mxu0 0.0
        %4496 = vmatprep.subr.mxu0 0.0
        %4497 = vmatpush1.msra.mxu0 0.0
        %4498 = vmatprep.subr.mxu0 0.0
        %4499 = vmatpush1.msra.mxu0 0.0
        %4500 = vmatprep.subr.mxu0 0.0
        %4501 = vmatpush1.msra.mxu0 0.0
        %4502 = vmatprep.subr.mxu0 0.0
        %4503 = vmatpush1.msra.mxu0 0.0
        %4504 = vmatprep.subr.mxu0 0.0
        %4505 = vmatpush1.msra.mxu0 0.0
        %4506 = vmatprep.subr.mxu0 0.0
        %4507 = vmatpush1.msra.mxu0 0.0
        %4508 = vmatprep.subr.mxu0 0.0
        %4509 = vmatpush1.msra.mxu0 0.0
        %4510 = vmatprep.subr.mxu0 0.0
        %4511 = vmatpush1.msra.mxu0 0.0
        %4512 = vmatprep.subr.mxu0 0.0
        %4513 = vmatpush1.msra.mxu0 0.0
        %4514 = vmatprep.subr.mxu0 0.0
        %4515 = vmatpush1.msra.mxu0 0.0
        %4516 = vmatprep.mubr.f32.mxu0 0.0
        %4517 = vmatmul.mubr.f32.gmra.mrb[0].mxu0 %v4441
        %v4518 = vpop.f32.mrb[0].mxu0
        %v4519 = vadd.f32 0.0, %v4518
        %v4520 = vpop.f32.mrb[0].mxu0
        %4521 = vmatprep.mubr.f32.mxu0 0.0
        %4522 = vmatmul.mubr.f32.gmra.mrb[0].mxu0 %v4444
        %v4523 = vpop.f32.mrb[0].mxu0
        %v4524 = vadd.f32 0.0, %v4523
        %v4525 = vpop.f32.mrb[0].mxu0
        %4526 = vmatprep.mubr.f32.mxu0 0.0
        %4527 = vmatmul.mubr.f32.gmra.mrb[0].mxu0 %v4447
        %v4528 = vpop.f32.mrb[0].mxu0
        %v4529 = vadd.f32 0.0, %v4528
        %v4530 = vpop.f32.mrb[0].mxu0
        %4531 = vmatprep.mubr.f32.mxu0 0.0
        %4532 = vmatmul.mubr.f32.gmra.mrb[0].mxu0 %v4450
        %v4533 = vpop.f32.mrb[0].mxu0
        %v4534 = vadd.f32 0.0, %v4533
        %v4535 = vpop.f32.mrb[0].mxu0
        %4536 = vdwg.mxu0
        %4537 = vrot.lane.b32.xlu0 %v4154, 120
        %v4538 = vpop.permute.xlu0 %4537
        %4539 = vrot.lane.b32.xlu0 %v4159, 120
        %v4540 = vpop.permute.xlu0 %4539
        %4541 = vrot.lane.b32.xlu0 %v4164, 120
        %v4542 = vpop.permute.xlu0 %4541
        %4543 = vrot.lane.b32.xlu0 %v4169, 120
        %v4544 = vpop.permute.xlu0 %4543
        %4545 = vrot.lane.b32.xlu0 %v4257, 120
        %v4546 = vpop.permute.xlu0 %4545
        %4547 = vrot.lane.b32.xlu0 %v4262, 120
        %v4548 = vpop.permute.xlu0 %4547
        %4549 = vrot.lane.b32.xlu0 %v4267, 120
        %v4550 = vpop.permute.xlu0 %4549
        %4551 = vrot.lane.b32.xlu0 %v4272, 120
        %v4552 = vpop.permute.xlu0 %4551
        %v4553 = vsel %vm789, %v4538, 0
        %v4555 = vsel %vm789, %v4540, 0
        %v4557 = vsel %vm789, %v4542, 0
        %v4559 = vsel %vm789, %v4544, 0
        %v4561 = vsel %vm789, %v4546, 0
        %v4563 = vsel %vm789, %v4548, 0
        %v4565 = vsel %vm789, %v4550, 0
        %v4567 = vsel %vm789, %v4552, 0
        %4569 = vmatprep.subr.mxu0 0.0
        %4570 = vmatpush1.xpose.msra.mxu0 %v4561
        %4571 = vmatprep.subr.mxu0 0.0
        %4572 = vmatpush1.xpose.msra.mxu0 %v4563
        %4573 = vmatprep.subr.mxu0 0.0
        %4574 = vmatpush1.xpose.msra.mxu0 %v4565
        %4575 = vmatprep.subr.mxu0 0.0
        %4576 = vmatpush1.xpose.msra.mxu0 %v4567
        %4577 = vmatprep.subr.mxu0 0.0
        %4578 = vmatpush1.xpose.msra.mxu0 0.0
        %4579 = vmatprep.subr.mxu0 0.0
        %4580 = vmatpush1.xpose.msra.mxu0 0.0
        %4581 = vmatprep.subr.mxu0 0.0
        %4582 = vmatpush1.xpose.msra.mxu0 0.0
        %4583 = vmatprep.subr.mxu0 0.0
        %4584 = vmatpush1.xpose.msra.mxu0 0.0
        %4585 = vmatprep.subr.mxu0 0.0
        %4586 = vmatpush1.xpose.msra.mxu0 0.0
        %4587 = vmatprep.subr.mxu0 0.0
        %4588 = vmatpush1.xpose.msra.mxu0 0.0
        %4589 = vmatprep.subr.mxu0 0.0
        %4590 = vmatpush1.xpose.msra.mxu0 0.0
        %4591 = vmatprep.subr.mxu0 0.0
        %4592 = vmatpush1.xpose.msra.mxu0 0.0
        %4593 = vmatprep.subr.mxu0 0.0
        %4594 = vmatpush1.xpose.msra.mxu0 0.0
        %4595 = vmatprep.subr.mxu0 0.0
        %4596 = vmatpush1.xpose.msra.mxu0 0.0
        %4597 = vmatprep.subr.mxu0 0.0
        %4598 = vmatpush1.xpose.msra.mxu0 0.0
        %4599 = vmatprep.subr.mxu0 0.0
        %4600 = vmatpush1.xpose.msra.mxu0 0.0
        %4601 = vmatprep.subr.mxu0 0.0
        %4602 = vmatpush1.xpose.msra.mxu0 0.0
        %4603 = vmatprep.subr.mxu0 0.0
        %4604 = vmatpush1.xpose.msra.mxu0 0.0
        %4605 = vmatprep.subr.mxu0 0.0
        %4606 = vmatpush1.xpose.msra.mxu0 0.0
        %4607 = vmatprep.subr.mxu0 0.0
        %4608 = vmatpush1.xpose.msra.mxu0 0.0
        %4609 = vmatprep.subr.mxu0 0.0
        %4610 = vmatpush1.xpose.msra.mxu0 0.0
        %4611 = vmatprep.subr.mxu0 0.0
        %4612 = vmatpush1.xpose.msra.mxu0 0.0
        %4613 = vmatprep.subr.mxu0 0.0
        %4614 = vmatpush1.xpose.msra.mxu0 0.0
        %4615 = vmatprep.subr.mxu0 0.0
        %4616 = vmatpush1.xpose.msra.mxu0 0.0
        %4617 = vmatprep.subr.mxu0 0.0
        %4618 = vmatpush1.xpose.msra.mxu0 0.0
        %4619 = vmatprep.subr.mxu0 0.0
        %4620 = vmatpush1.xpose.msra.mxu0 0.0
        %4621 = vmatprep.subr.mxu0 0.0
        %4622 = vmatpush1.xpose.msra.mxu0 0.0
        %4623 = vmatprep.subr.mxu0 0.0
        %4624 = vmatpush1.xpose.msra.mxu0 0.0
        %4625 = vmatprep.subr.mxu0 0.0
        %4626 = vmatpush1.xpose.msra.mxu0 0.0
        %4627 = vmatprep.subr.mxu0 0.0
        %4628 = vmatpush1.xpose.msra.mxu0 0.0
        %4629 = vmatprep.subr.mxu0 0.0
        %4630 = vmatpush1.xpose.msra.mxu0 0.0
        %4631 = vmatprep.subr.mxu0 0.0
        %4632 = vmatpush1.xpose.msra.mxu0 0.0
        %4633 = vmatprep.mubr.f32.mxu0 0.0
        %4634 = vmatmul.mubr.f32.gmra.mrb[0].mxu0 %v4553
        %v4635 = vpop.f32.mrb[0].mxu0
        %v4636 = vadd.f32 %v4065, %v4635
        %v4637 = vpop.f32.mrb[0].mxu0
        %4638 = vmatprep.mubr.f32.mxu0 0.0
        %4639 = vmatmul.mubr.f32.gmra.mrb[0].mxu0 %v4555
        %v4640 = vpop.f32.mrb[0].mxu0
        %v4641 = vadd.f32 %v4066, %v4640
        %v4642 = vpop.f32.mrb[0].mxu0
        %4643 = vmatprep.mubr.f32.mxu0 0.0
        %4644 = vmatmul.mubr.f32.gmra.mrb[0].mxu0 %v4557
        %v4645 = vpop.f32.mrb[0].mxu0
        %v4646 = vadd.f32 %v4067, %v4645
        %v4647 = vpop.f32.mrb[0].mxu0
        %4648 = vmatprep.mubr.f32.mxu0 0.0
        %4649 = vmatmul.mubr.f32.gmra.mrb[0].mxu0 %v4559
        %v4650 = vpop.f32.mrb[0].mxu0
        %v4651 = vadd.f32 %v4068, %v4650
        %v4652 = vpop.f32.mrb[0].mxu0
        %4653 = vdwg.mxu0
        %v4654 = vsel %vm600, %v4636, -inf
        %4655 = vmax.xlane.f32.xlu0 %v4654
        %v4656 = vpop.xlane.xlu0 %4655
        %v4657 = vsel %vm600, %v4641, -inf
        %4658 = vmax.xlane.f32.xlu0 %v4657
        %v4659 = vpop.xlane.xlu0 %4658
        %v4660 = vsel %vm600, %v4646, -inf
        %4661 = vmax.xlane.f32.xlu0 %v4660
        %v4662 = vpop.xlane.xlu0 %4661
        %v4663 = vsel %vm600, %v4651, -inf
        %4664 = vmax.xlane.f32.xlu0 %v4663
        %v4665 = vpop.xlane.xlu0 %4664
        %v4666 = vsub.f32 %v4636, %v4656
        %v4667 = vsub.f32 %v4641, %v4659
        %v4668 = vsub.f32 %v4646, %v4662
        %v4669 = vsub.f32 %v4651, %v4665
        %v4670 = vmul.f32 %v4666, 1.442695
        %v4671 = vpow.pop %v4670
        %v4672 = vmul.f32 %v4667, 1.442695
        %v4673 = vpow.pop %v4672
        %v4674 = vmul.f32 %v4668, 1.442695
        %v4675 = vpow.pop %v4674
        %v4676 = vmul.f32 %v4669, 1.442695
        %v4677 = vpow.pop %v4676
        %v4678 = vsel %vm600, %v4671, 0.0
        %4679 = vadd.xlane.f32.xlu0 %v4678
        %v4680 = vpop.xlane.xlu0 %4679
        %v4681 = vsel %vm600, %v4673, 0.0
        %4682 = vadd.xlane.f32.xlu0 %v4681
        %v4683 = vpop.xlane.xlu0 %4682
        %v4684 = vsel %vm600, %v4675, 0.0
        %4685 = vadd.xlane.f32.xlu0 %v4684
        %v4686 = vpop.xlane.xlu0 %4685
        %v4687 = vsel %vm600, %v4677, 0.0
        %4688 = vadd.xlane.f32.xlu0 %v4687
        %v4689 = vpop.xlane.xlu0 %4688
        %v4690 = vrcp.pop %v4680
        %v4691 = vrcp.pop %v4683
        %v4692 = vrcp.pop %v4686
        %v4693 = vrcp.pop %v4689
        %v4694 = vmul.f32 %v4671, %v4690
        %v4695 = vmul.f32 %v4673, %v4691
        %v4696 = vmul.f32 %v4675, %v4692
        %v4697 = vmul.f32 %v4677, %v4693
        %4698 = vrot.lane.b32.xlu0 %v4257, 88
        %v4699 = vpop.permute.xlu0 %4698
        %4700 = vrot.lane.b32.xlu0 %v4262, 88
        %v4701 = vpop.permute.xlu0 %4700
        %4702 = vrot.lane.b32.xlu0 %v4267, 88
        %v4703 = vpop.permute.xlu0 %4702
        %4704 = vrot.lane.b32.xlu0 %v4272, 88
        %v4705 = vpop.permute.xlu0 %4704
        %v4711 = vsel %vm600, %v4694, 0
        %v4714 = vsel %vm600, %v4695, 0
        %v4717 = vsel %vm600, %v4696, 0
        %v4720 = vsel %vm600, %v4697, 0
        %4722 = vmatprep.subr.mxu0 0.0
        %4723 = vmatpush1.msra.mxu0 %v4699
        %4724 = vmatprep.subr.mxu0 0.0
        %4725 = vmatpush1.msra.mxu0 %v4701
        %4726 = vmatprep.subr.mxu0 0.0
        %4727 = vmatpush1.msra.mxu0 %v4703
        %4728 = vmatprep.subr.mxu0 0.0
        %4729 = vmatpush1.msra.mxu0 %v4705
        %4730 = vmatprep.subr.mxu0 0.0
        %4731 = vmatpush1.msra.mxu0 0.0
        %4732 = vmatprep.subr.mxu0 0.0
        %4733 = vmatpush1.msra.mxu0 0.0
        %4734 = vmatprep.subr.mxu0 0.0
        %4735 = vmatpush1.msra.mxu0 0.0
        %4736 = vmatprep.subr.mxu0 0.0
        %4737 = vmatpush1.msra.mxu0 0.0
        %4738 = vmatprep.subr.mxu0 0.0
        %4739 = vmatpush1.msra.mxu0 0.0
        %4740 = vmatprep.subr.mxu0 0.0
        %4741 = vmatpush1.msra.mxu0 0.0
        %4742 = vmatprep.subr.mxu0 0.0
        %4743 = vmatpush1.msra.mxu0 0.0
        %4744 = vmatprep.subr.mxu0 0.0
        %4745 = vmatpush1.msra.mxu0 0.0
        %4746 = vmatprep.subr.mxu0 0.0
        %4747 = vmatpush1.msra.mxu0 0.0
        %4748 = vmatprep.subr.mxu0 0.0
        %4749 = vmatpush1.msra.mxu0 0.0
        %4750 = vmatprep.subr.mxu0 0.0
        %4751 = vmatpush1.msra.mxu0 0.0
        %4752 = vmatprep.subr.mxu0 0.0
        %4753 = vmatpush1.msra.mxu0 0.0
        %4754 = vmatprep.subr.mxu0 0.0
        %4755 = vmatpush1.msra.mxu0 0.0
        %4756 = vmatprep.subr.mxu0 0.0
        %4757 = vmatpush1.msra.mxu0 0.0
        %4758 = vmatprep.subr.mxu0 0.0
        %4759 = vmatpush1.msra.mxu0 0.0
        %4760 = vmatprep.subr.mxu0 0.0
        %4761 = vmatpush1.msra.mxu0 0.0
        %4762 = vmatprep.subr.mxu0 0.0
        %4763 = vmatpush1.msra.mxu0 0.0
        %4764 = vmatprep.subr.mxu0 0.0
        %4765 = vmatpush1.msra.mxu0 0.0
        %4766 = vmatprep.subr.mxu0 0.0
        %4767 = vmatpush1.msra.mxu0 0.0
        %4768 = vmatprep.subr.mxu0 0.0
        %4769 = vmatpush1.msra.mxu0 0.0
        %4770 = vmatprep.subr.mxu0 0.0
        %4771 = vmatpush1.msra.mxu0 0.0
        %4772 = vmatprep.subr.mxu0 0.0
        %4773 = vmatpush1.msra.mxu0 0.0
        %4774 = vmatprep.subr.mxu0 0.0
        %4775 = vmatpush1.msra.mxu0 0.0
        %4776 = vmatprep.subr.mxu0 0.0
        %4777 = vmatpush1.msra.mxu0 0.0
        %4778 = vmatprep.subr.mxu0 0.0
        %4779 = vmatpush1.msra.mxu0 0.0
        %4780 = vmatprep.subr.mxu0 0.0
        %4781 = vmatpush1.msra.mxu0 0.0
        %4782 = vmatprep.subr.mxu0 0.0
        %4783 = vmatpush1.msra.mxu0 0.0
        %4784 = vmatprep.subr.mxu0 0.0
        %4785 = vmatpush1.msra.mxu0 0.0
        %4786 = vmatprep.mubr.f32.mxu0 0.0
        %4787 = vmatmul.mubr.f32.gmra.mrb[0].mxu0 %v4711
        %v4788 = vpop.f32.mrb[0].mxu0
        %v4789 = vadd.f32 0.0, %v4788
        %v4790 = vpop.f32.mrb[0].mxu0
        %4791 = vmatprep.mubr.f32.mxu0 0.0
        %4792 = vmatmul.mubr.f32.gmra.mrb[0].mxu0 %v4714
        %v4793 = vpop.f32.mrb[0].mxu0
        %v4794 = vadd.f32 0.0, %v4793
        %v4795 = vpop.f32.mrb[0].mxu0
        %4796 = vmatprep.mubr.f32.mxu0 0.0
        %4797 = vmatmul.mubr.f32.gmra.mrb[0].mxu0 %v4717
        %v4798 = vpop.f32.mrb[0].mxu0
        %v4799 = vadd.f32 0.0, %v4798
        %v4800 = vpop.f32.mrb[0].mxu0
        %4801 = vmatprep.mubr.f32.mxu0 0.0
        %4802 = vmatmul.mubr.f32.gmra.mrb[0].mxu0 %v4720
        %v4803 = vpop.f32.mrb[0].mxu0
        %v4804 = vadd.f32 0.0, %v4803
        %v4805 = vpop.f32.mrb[0].mxu0
        %4806 = vdwg.mxu0
        %v4808 = vsel %vm789, %v4789, 0
        %v4811 = vsel %vm789, %v4794, 0
        %v4814 = vsel %vm789, %v4799, 0
        %v4817 = vsel %vm789, %v4804, 0
        %4819 = vmatprep.subr.mxu0 0.0
        %4820 = vmatpush1.msra.mxu0 %v4060
        %4821 = vmatprep.subr.mxu0 0.0
        %4822 = vmatpush1.msra.mxu0 0.0
        %4823 = vmatprep.subr.mxu0 0.0
        %4824 = vmatpush1.msra.mxu0 0.0
        %4825 = vmatprep.subr.mxu0 0.0
        %4826 = vmatpush1.msra.mxu0 0.0
        %4827 = vmatprep.subr.mxu0 0.0
        %4828 = vmatpush1.msra.mxu0 0.0
        %4829 = vmatprep.subr.mxu0 0.0
        %4830 = vmatpush1.msra.mxu0 0.0
        %4831 = vmatprep.subr.mxu0 0.0
        %4832 = vmatpush1.msra.mxu0 0.0
        %4833 = vmatprep.subr.mxu0 0.0
        %4834 = vmatpush1.msra.mxu0 0.0
        %4835 = vmatprep.subr.mxu0 0.0
        %4836 = vmatpush1.msra.mxu0 0.0
        %4837 = vmatprep.subr.mxu0 0.0
        %4838 = vmatpush1.msra.mxu0 0.0
        %4839 = vmatprep.subr.mxu0 0.0
        %4840 = vmatpush1.msra.mxu0 0.0
        %4841 = vmatprep.subr.mxu0 0.0
        %4842 = vmatpush1.msra.mxu0 0.0
        %4843 = vmatprep.subr.mxu0 0.0
        %4844 = vmatpush1.msra.mxu0 0.0
        %4845 = vmatprep.subr.mxu0 0.0
        %4846 = vmatpush1.msra.mxu0 0.0
        %4847 = vmatprep.subr.mxu0 0.0
        %4848 = vmatpush1.msra.mxu0 0.0
        %4849 = vmatprep.subr.mxu0 0.0
        %4850 = vmatpush1.msra.mxu0 0.0
        %4851 = vmatprep.subr.mxu0 0.0
        %4852 = vmatpush1.msra.mxu0 0.0
        %4853 = vmatprep.subr.mxu0 0.0
        %4854 = vmatpush1.msra.mxu0 0.0
        %4855 = vmatprep.subr.mxu0 0.0
        %4856 = vmatpush1.msra.mxu0 0.0
        %4857 = vmatprep.subr.mxu0 0.0
        %4858 = vmatpush1.msra.mxu0 0.0
        %4859 = vmatprep.subr.mxu0 0.0
        %4860 = vmatpush1.msra.mxu0 0.0
        %4861 = vmatprep.subr.mxu0 0.0
        %4862 = vmatpush1.msra.mxu0 0.0
        %4863 = vmatprep.subr.mxu0 0.0
        %4864 = vmatpush1.msra.mxu0 0.0
        %4865 = vmatprep.subr.mxu0 0.0
        %4866 = vmatpush1.msra.mxu0 0.0
        %4867 = vmatprep.subr.mxu0 0.0
        %4868 = vmatpush1.msra.mxu0 0.0
        %4869 = vmatprep.subr.mxu0 0.0
        %4870 = vmatpush1.msra.mxu0 0.0
        %4871 = vmatprep.subr.mxu0 0.0
        %4872 = vmatpush1.msra.mxu0 0.0
        %4873 = vmatprep.subr.mxu0 0.0
        %4874 = vmatpush1.msra.mxu0 0.0
        %4875 = vmatprep.subr.mxu0 0.0
        %4876 = vmatpush1.msra.mxu0 0.0
        %4877 = vmatprep.subr.mxu0 0.0
        %4878 = vmatpush1.msra.mxu0 0.0
        %4879 = vmatprep.subr.mxu0 0.0
        %4880 = vmatpush1.msra.mxu0 0.0
        %4881 = vmatprep.subr.mxu0 0.0
        %4882 = vmatpush1.msra.mxu0 0.0
        %4883 = vmatprep.mubr.f32.mxu0 0.0
        %4884 = vmatmul.mubr.f32.gmra.mrb[0].mxu0 %v4808
        %v4885 = vpop.f32.mrb[0].mxu0
        %v4886 = vadd.f32 0.0, %v4885
        %v4887 = vpop.f32.mrb[0].mxu0
        %4888 = vmatprep.mubr.f32.mxu0 0.0
        %4889 = vmatmul.mubr.f32.gmra.mrb[0].mxu0 %v4811
        %v4890 = vpop.f32.mrb[0].mxu0
        %v4891 = vadd.f32 0.0, %v4890
        %v4892 = vpop.f32.mrb[0].mxu0
        %4893 = vmatprep.mubr.f32.mxu0 0.0
        %4894 = vmatmul.mubr.f32.gmra.mrb[0].mxu0 %v4814
        %v4895 = vpop.f32.mrb[0].mxu0
        %v4896 = vadd.f32 0.0, %v4895
        %v4897 = vpop.f32.mrb[0].mxu0
        %4898 = vmatprep.mubr.f32.mxu0 0.0
        %4899 = vmatmul.mubr.f32.gmra.mrb[0].mxu0 %v4817
        %v4900 = vpop.f32.mrb[0].mxu0
        %v4901 = vadd.f32 0.0, %v4900
        %v4902 = vpop.f32.mrb[0].mxu0
        %4903 = vdwg.mxu0
        %v4905 = vsel %vm789, %v4519, 0
        %v4908 = vsel %vm789, %v4524, 0
        %v4911 = vsel %vm789, %v4529, 0
        %v4914 = vsel %vm789, %v4534, 0
        %4916 = vmatprep.subr.mxu0 0.0
        %4917 = vmatpush1.msra.mxu0 %v4059
        %4918 = vmatprep.subr.mxu0 0.0
        %4919 = vmatpush1.msra.mxu0 0.0
        %4920 = vmatprep.subr.mxu0 0.0
        %4921 = vmatpush1.msra.mxu0 0.0
        %4922 = vmatprep.subr.mxu0 0.0
        %4923 = vmatpush1.msra.mxu0 0.0
        %4924 = vmatprep.subr.mxu0 0.0
        %4925 = vmatpush1.msra.mxu0 0.0
        %4926 = vmatprep.subr.mxu0 0.0
        %4927 = vmatpush1.msra.mxu0 0.0
        %4928 = vmatprep.subr.mxu0 0.0
        %4929 = vmatpush1.msra.mxu0 0.0
        %4930 = vmatprep.subr.mxu0 0.0
        %4931 = vmatpush1.msra.mxu0 0.0
        %4932 = vmatprep.subr.mxu0 0.0
        %4933 = vmatpush1.msra.mxu0 0.0
        %4934 = vmatprep.subr.mxu0 0.0
        %4935 = vmatpush1.msra.mxu0 0.0
        %4936 = vmatprep.subr.mxu0 0.0
        %4937 = vmatpush1.msra.mxu0 0.0
        %4938 = vmatprep.subr.mxu0 0.0
        %4939 = vmatpush1.msra.mxu0 0.0
        %4940 = vmatprep.subr.mxu0 0.0
        %4941 = vmatpush1.msra.mxu0 0.0
        %4942 = vmatprep.subr.mxu0 0.0
        %4943 = vmatpush1.msra.mxu0 0.0
        %4944 = vmatprep.subr.mxu0 0.0
        %4945 = vmatpush1.msra.mxu0 0.0
        %4946 = vmatprep.subr.mxu0 0.0
        %4947 = vmatpush1.msra.mxu0 0.0
        %4948 = vmatprep.subr.mxu0 0.0
        %4949 = vmatpush1.msra.mxu0 0.0
        %4950 = vmatprep.subr.mxu0 0.0
        %4951 = vmatpush1.msra.mxu0 0.0
        %4952 = vmatprep.subr.mxu0 0.0
        %4953 = vmatpush1.msra.mxu0 0.0
        %4954 = vmatprep.subr.mxu0 0.0
        %4955 = vmatpush1.msra.mxu0 0.0
        %4956 = vmatprep.subr.mxu0 0.0
        %4957 = vmatpush1.msra.mxu0 0.0
        %4958 = vmatprep.subr.mxu0 0.0
        %4959 = vmatpush1.msra.mxu0 0.0
        %4960 = vmatprep.subr.mxu0 0.0
        %4961 = vmatpush1.msra.mxu0 0.0
        %4962 = vmatprep.subr.mxu0 0.0
        %4963 = vmatpush1.msra.mxu0 0.0
        %4964 = vmatprep.subr.mxu0 0.0
        %4965 = vmatpush1.msra.mxu0 0.0
        %4966 = vmatprep.subr.mxu0 0.0
        %4967 = vmatpush1.msra.mxu0 0.0
        %4968 = vmatprep.subr.mxu0 0.0
        %4969 = vmatpush1.msra.mxu0 0.0
        %4970 = vmatprep.subr.mxu0 0.0
        %4971 = vmatpush1.msra.mxu0 0.0
        %4972 = vmatprep.subr.mxu0 0.0
        %4973 = vmatpush1.msra.mxu0 0.0
        %4974 = vmatprep.subr.mxu0 0.0
        %4975 = vmatpush1.msra.mxu0 0.0
        %4976 = vmatprep.subr.mxu0 0.0
        %4977 = vmatpush1.msra.mxu0 0.0
        %4978 = vmatprep.subr.mxu0 0.0
        %4979 = vmatpush1.msra.mxu0 0.0
        %4980 = vmatprep.mubr.f32.mxu0 0.0
        %4981 = vmatmul.mubr.f32.gmra.mrb[0].mxu0 %v4905
        %v4982 = vpop.f32.mrb[0].mxu0
        %v4983 = vadd.f32 %v4886, %v4982
        %v4984 = vpop.f32.mrb[0].mxu0
        %4985 = vmatprep.mubr.f32.mxu0 0.0
        %4986 = vmatmul.mubr.f32.gmra.mrb[0].mxu0 %v4908
        %v4987 = vpop.f32.mrb[0].mxu0
        %v4988 = vadd.f32 %v4891, %v4987
        %v4989 = vpop.f32.mrb[0].mxu0
        %4990 = vmatprep.mubr.f32.mxu0 0.0
        %4991 = vmatmul.mubr.f32.gmra.mrb[0].mxu0 %v4911
        %v4992 = vpop.f32.mrb[0].mxu0
        %v4993 = vadd.f32 %v4896, %v4992
        %v4994 = vpop.f32.mrb[0].mxu0
        %4995 = vmatprep.mubr.f32.mxu0 0.0
        %4996 = vmatmul.mubr.f32.gmra.mrb[0].mxu0 %v4914
        %v4997 = vpop.f32.mrb[0].mxu0
        %v4998 = vadd.f32 %v4901, %v4997
        %v4999 = vpop.f32.mrb[0].mxu0
        %5000 = vdwg.mxu0
        %5001 = vrot.lane.b32.xlu0 %v4154, 112
        %v5002 = vpop.permute.xlu0 %5001
        %5003 = vrot.lane.b32.xlu0 %v4159, 112
        %v5004 = vpop.permute.xlu0 %5003
        %5005 = vrot.lane.b32.xlu0 %v4164, 112
        %v5006 = vpop.permute.xlu0 %5005
        %5007 = vrot.lane.b32.xlu0 %v4169, 112
        %v5008 = vpop.permute.xlu0 %5007
        %5009 = vrot.lane.b32.xlu0 %v4257, 112
        %v5010 = vpop.permute.xlu0 %5009
        %5011 = vrot.lane.b32.xlu0 %v4262, 112
        %v5012 = vpop.permute.xlu0 %5011
        %5013 = vrot.lane.b32.xlu0 %v4267, 112
        %v5014 = vpop.permute.xlu0 %5013
        %5015 = vrot.lane.b32.xlu0 %v4272, 112
        %v5016 = vpop.permute.xlu0 %5015
        %v5017 = vsel %vm789, %v5002, 0
        %v5019 = vsel %vm789, %v5004, 0
        %v5021 = vsel %vm789, %v5006, 0
        %v5023 = vsel %vm789, %v5008, 0
        %v5025 = vsel %vm789, %v5010, 0
        %v5027 = vsel %vm789, %v5012, 0
        %v5029 = vsel %vm789, %v5014, 0
        %v5031 = vsel %vm789, %v5016, 0
        %5033 = vmatprep.subr.mxu0 0.0
        %5034 = vmatpush1.xpose.msra.mxu0 %v5025
        %5035 = vmatprep.subr.mxu0 0.0
        %5036 = vmatpush1.xpose.msra.mxu0 %v5027
        %5037 = vmatprep.subr.mxu0 0.0
        %5038 = vmatpush1.xpose.msra.mxu0 %v5029
        %5039 = vmatprep.subr.mxu0 0.0
        %5040 = vmatpush1.xpose.msra.mxu0 %v5031
        %5041 = vmatprep.subr.mxu0 0.0
        %5042 = vmatpush1.xpose.msra.mxu0 0.0
        %5043 = vmatprep.subr.mxu0 0.0
        %5044 = vmatpush1.xpose.msra.mxu0 0.0
        %5045 = vmatprep.subr.mxu0 0.0
        %5046 = vmatpush1.xpose.msra.mxu0 0.0
        %5047 = vmatprep.subr.mxu0 0.0
        %5048 = vmatpush1.xpose.msra.mxu0 0.0
        %5049 = vmatprep.subr.mxu0 0.0
        %5050 = vmatpush1.xpose.msra.mxu0 0.0
        %5051 = vmatprep.subr.mxu0 0.0
        %5052 = vmatpush1.xpose.msra.mxu0 0.0
        %5053 = vmatprep.subr.mxu0 0.0
        %5054 = vmatpush1.xpose.msra.mxu0 0.0
        %5055 = vmatprep.subr.mxu0 0.0
        %5056 = vmatpush1.xpose.msra.mxu0 0.0
        %5057 = vmatprep.subr.mxu0 0.0
        %5058 = vmatpush1.xpose.msra.mxu0 0.0
        %5059 = vmatprep.subr.mxu0 0.0
        %5060 = vmatpush1.xpose.msra.mxu0 0.0
        %5061 = vmatprep.subr.mxu0 0.0
        %5062 = vmatpush1.xpose.msra.mxu0 0.0
        %5063 = vmatprep.subr.mxu0 0.0
        %5064 = vmatpush1.xpose.msra.mxu0 0.0
        %5065 = vmatprep.subr.mxu0 0.0
        %5066 = vmatpush1.xpose.msra.mxu0 0.0
        %5067 = vmatprep.subr.mxu0 0.0
        %5068 = vmatpush1.xpose.msra.mxu0 0.0
        %5069 = vmatprep.subr.mxu0 0.0
        %5070 = vmatpush1.xpose.msra.mxu0 0.0
        %5071 = vmatprep.subr.mxu0 0.0
        %5072 = vmatpush1.xpose.msra.mxu0 0.0
        %5073 = vmatprep.subr.mxu0 0.0
        %5074 = vmatpush1.xpose.msra.mxu0 0.0
        %5075 = vmatprep.subr.mxu0 0.0
        %5076 = vmatpush1.xpose.msra.mxu0 0.0
        %5077 = vmatprep.subr.mxu0 0.0
        %5078 = vmatpush1.xpose.msra.mxu0 0.0
        %5079 = vmatprep.subr.mxu0 0.0
        %5080 = vmatpush1.xpose.msra.mxu0 0.0
        %5081 = vmatprep.subr.mxu0 0.0
        %5082 = vmatpush1.xpose.msra.mxu0 0.0
        %5083 = vmatprep.subr.mxu0 0.0
        %5084 = vmatpush1.xpose.msra.mxu0 0.0
        %5085 = vmatprep.subr.mxu0 0.0
        %5086 = vmatpush1.xpose.msra.mxu0 0.0
        %5087 = vmatprep.subr.mxu0 0.0
        %5088 = vmatpush1.xpose.msra.mxu0 0.0
        %5089 = vmatprep.subr.mxu0 0.0
        %5090 = vmatpush1.xpose.msra.mxu0 0.0
        %5091 = vmatprep.subr.mxu0 0.0
        %5092 = vmatpush1.xpose.msra.mxu0 0.0
        %5093 = vmatprep.subr.mxu0 0.0
        %5094 = vmatpush1.xpose.msra.mxu0 0.0
        %5095 = vmatprep.subr.mxu0 0.0
        %5096 = vmatpush1.xpose.msra.mxu0 0.0
        %5097 = vmatprep.mubr.f32.mxu0 0.0
        %5098 = vmatmul.mubr.f32.gmra.mrb[0].mxu0 %v5017
        %v5099 = vpop.f32.mrb[0].mxu0
        %v5100 = vadd.f32 %v4065, %v5099
        %v5101 = vpop.f32.mrb[0].mxu0
        %5102 = vmatprep.mubr.f32.mxu0 0.0
        %5103 = vmatmul.mubr.f32.gmra.mrb[0].mxu0 %v5019
        %v5104 = vpop.f32.mrb[0].mxu0
        %v5105 = vadd.f32 %v4066, %v5104
        %v5106 = vpop.f32.mrb[0].mxu0
        %5107 = vmatprep.mubr.f32.mxu0 0.0
        %5108 = vmatmul.mubr.f32.gmra.mrb[0].mxu0 %v5021
        %v5109 = vpop.f32.mrb[0].mxu0
        %v5110 = vadd.f32 %v4067, %v5109
        %v5111 = vpop.f32.mrb[0].mxu0
        %5112 = vmatprep.mubr.f32.mxu0 0.0
        %5113 = vmatmul.mubr.f32.gmra.mrb[0].mxu0 %v5023
        %v5114 = vpop.f32.mrb[0].mxu0
        %v5115 = vadd.f32 %v4068, %v5114
        %v5116 = vpop.f32.mrb[0].mxu0
        %5117 = vdwg.mxu0
        %v5118 = vsel %vm600, %v5100, -inf
        %5119 = vmax.xlane.f32.xlu0 %v5118
        %v5120 = vpop.xlane.xlu0 %5119
        %v5121 = vsel %vm600, %v5105, -inf
        %5122 = vmax.xlane.f32.xlu0 %v5121
        %v5123 = vpop.xlane.xlu0 %5122
        %v5124 = vsel %vm600, %v5110, -inf
        %5125 = vmax.xlane.f32.xlu0 %v5124
        %v5126 = vpop.xlane.xlu0 %5125
        %v5127 = vsel %vm600, %v5115, -inf
        %5128 = vmax.xlane.f32.xlu0 %v5127
        %v5129 = vpop.xlane.xlu0 %5128
        %v5130 = vsub.f32 %v5100, %v5120
        %v5131 = vsub.f32 %v5105, %v5123
        %v5132 = vsub.f32 %v5110, %v5126
        %v5133 = vsub.f32 %v5115, %v5129
        %v5134 = vmul.f32 %v5130, 1.442695
        %v5135 = vpow.pop %v5134
        %v5136 = vmul.f32 %v5131, 1.442695
        %v5137 = vpow.pop %v5136
        %v5138 = vmul.f32 %v5132, 1.442695
        %v5139 = vpow.pop %v5138
        %v5140 = vmul.f32 %v5133, 1.442695
        %v5141 = vpow.pop %v5140
        %v5142 = vsel %vm600, %v5135, 0.0
        %5143 = vadd.xlane.f32.xlu0 %v5142
        %v5144 = vpop.xlane.xlu0 %5143
        %v5145 = vsel %vm600, %v5137, 0.0
        %5146 = vadd.xlane.f32.xlu0 %v5145
        %v5147 = vpop.xlane.xlu0 %5146
        %v5148 = vsel %vm600, %v5139, 0.0
        %5149 = vadd.xlane.f32.xlu0 %v5148
        %v5150 = vpop.xlane.xlu0 %5149
        %v5151 = vsel %vm600, %v5141, 0.0
        %5152 = vadd.xlane.f32.xlu0 %v5151
        %v5153 = vpop.xlane.xlu0 %5152
        %v5154 = vrcp.pop %v5144
        %v5155 = vrcp.pop %v5147
        %v5156 = vrcp.pop %v5150
        %v5157 = vrcp.pop %v5153
        %v5158 = vmul.f32 %v5135, %v5154
        %v5159 = vmul.f32 %v5137, %v5155
        %v5160 = vmul.f32 %v5139, %v5156
        %v5161 = vmul.f32 %v5141, %v5157
        %5162 = vrot.lane.b32.xlu0 %v4257, 80
        %v5163 = vpop.permute.xlu0 %5162
        %5164 = vrot.lane.b32.xlu0 %v4262, 80
        %v5165 = vpop.permute.xlu0 %5164
        %5166 = vrot.lane.b32.xlu0 %v4267, 80
        %v5167 = vpop.permute.xlu0 %5166
        %5168 = vrot.lane.b32.xlu0 %v4272, 80
        %v5169 = vpop.permute.xlu0 %5168
        %v5175 = vsel %vm600, %v5158, 0
        %v5178 = vsel %vm600, %v5159, 0
        %v5181 = vsel %vm600, %v5160, 0
        %v5184 = vsel %vm600, %v5161, 0
        %5186 = vmatprep.subr.mxu0 0.0
        %5187 = vmatpush1.msra.mxu0 %v5163
        %5188 = vmatprep.subr.mxu0 0.0
        %5189 = vmatpush1.msra.mxu0 %v5165
        %5190 = vmatprep.subr.mxu0 0.0
        %5191 = vmatpush1.msra.mxu0 %v5167
        %5192 = vmatprep.subr.mxu0 0.0
        %5193 = vmatpush1.msra.mxu0 %v5169
        %5194 = vmatprep.subr.mxu0 0.0
        %5195 = vmatpush1.msra.mxu0 0.0
        %5196 = vmatprep.subr.mxu0 0.0
        %5197 = vmatpush1.msra.mxu0 0.0
        %5198 = vmatprep.subr.mxu0 0.0
        %5199 = vmatpush1.msra.mxu0 0.0
        %5200 = vmatprep.subr.mxu0 0.0
        %5201 = vmatpush1.msra.mxu0 0.0
        %5202 = vmatprep.subr.mxu0 0.0
        %5203 = vmatpush1.msra.mxu0 0.0
        %5204 = vmatprep.subr.mxu0 0.0
        %5205 = vmatpush1.msra.mxu0 0.0
        %5206 = vmatprep.subr.mxu0 0.0
        %5207 = vmatpush1.msra.mxu0 0.0
        %5208 = vmatprep.subr.mxu0 0.0
        %5209 = vmatpush1.msra.mxu0 0.0
        %5210 = vmatprep.subr.mxu0 0.0
        %5211 = vmatpush1.msra.mxu0 0.0
        %5212 = vmatprep.subr.mxu0 0.0
        %5213 = vmatpush1.msra.mxu0 0.0
        %5214 = vmatprep.subr.mxu0 0.0
        %5215 = vmatpush1.msra.mxu0 0.0
        %5216 = vmatprep.subr.mxu0 0.0
        %5217 = vmatpush1.msra.mxu0 0.0
        %5218 = vmatprep.subr.mxu0 0.0
        %5219 = vmatpush1.msra.mxu0 0.0
        %5220 = vmatprep.subr.mxu0 0.0
        %5221 = vmatpush1.msra.mxu0 0.0
        %5222 = vmatprep.subr.mxu0 0.0
        %5223 = vmatpush1.msra.mxu0 0.0
        %5224 = vmatprep.subr.mxu0 0.0
        %5225 = vmatpush1.msra.mxu0 0.0
        %5226 = vmatprep.subr.mxu0 0.0
        %5227 = vmatpush1.msra.mxu0 0.0
        %5228 = vmatprep.subr.mxu0 0.0
        %5229 = vmatpush1.msra.mxu0 0.0
        %5230 = vmatprep.subr.mxu0 0.0
        %5231 = vmatpush1.msra.mxu0 0.0
        %5232 = vmatprep.subr.mxu0 0.0
        %5233 = vmatpush1.msra.mxu0 0.0
        %5234 = vmatprep.subr.mxu0 0.0
        %5235 = vmatpush1.msra.mxu0 0.0
        %5236 = vmatprep.subr.mxu0 0.0
        %5237 = vmatpush1.msra.mxu0 0.0
        %5238 = vmatprep.subr.mxu0 0.0
        %5239 = vmatpush1.msra.mxu0 0.0
        %5240 = vmatprep.subr.mxu0 0.0
        %5241 = vmatpush1.msra.mxu0 0.0
        %5242 = vmatprep.subr.mxu0 0.0
        %5243 = vmatpush1.msra.mxu0 0.0
        %5244 = vmatprep.subr.mxu0 0.0
        %5245 = vmatpush1.msra.mxu0 0.0
        %5246 = vmatprep.subr.mxu0 0.0
        %5247 = vmatpush1.msra.mxu0 0.0
        %5248 = vmatprep.subr.mxu0 0.0
        %5249 = vmatpush1.msra.mxu0 0.0
        %5250 = vmatprep.mubr.f32.mxu0 0.0
        %5251 = vmatmul.mubr.f32.gmra.mrb[0].mxu0 %v5175
        %v5252 = vpop.f32.mrb[0].mxu0
        %v5253 = vadd.f32 0.0, %v5252
        %v5254 = vpop.f32.mrb[0].mxu0
        %5255 = vmatprep.mubr.f32.mxu0 0.0
        %5256 = vmatmul.mubr.f32.gmra.mrb[0].mxu0 %v5178
        %v5257 = vpop.f32.mrb[0].mxu0
        %v5258 = vadd.f32 0.0, %v5257
        %v5259 = vpop.f32.mrb[0].mxu0
        %5260 = vmatprep.mubr.f32.mxu0 0.0
        %5261 = vmatmul.mubr.f32.gmra.mrb[0].mxu0 %v5181
        %v5262 = vpop.f32.mrb[0].mxu0
        %v5263 = vadd.f32 0.0, %v5262
        %v5264 = vpop.f32.mrb[0].mxu0
        %5265 = vmatprep.mubr.f32.mxu0 0.0
        %5266 = vmatmul.mubr.f32.gmra.mrb[0].mxu0 %v5184
        %v5267 = vpop.f32.mrb[0].mxu0
        %v5268 = vadd.f32 0.0, %v5267
        %v5269 = vpop.f32.mrb[0].mxu0
        %5270 = vdwg.mxu0
        %v5272 = vsel %vm789, %v5253, 0
        %v5275 = vsel %vm789, %v5258, 0
        %v5278 = vsel %vm789, %v5263, 0
        %v5281 = vsel %vm789, %v5268, 0
        %5283 = vmatprep.subr.mxu0 0.0
        %5284 = vmatpush1.msra.mxu0 %v4061
        %5285 = vmatprep.subr.mxu0 0.0
        %5286 = vmatpush1.msra.mxu0 0.0
        %5287 = vmatprep.subr.mxu0 0.0
        %5288 = vmatpush1.msra.mxu0 0.0
        %5289 = vmatprep.subr.mxu0 0.0
        %5290 = vmatpush1.msra.mxu0 0.0
        %5291 = vmatprep.subr.mxu0 0.0
        %5292 = vmatpush1.msra.mxu0 0.0
        %5293 = vmatprep.subr.mxu0 0.0
        %5294 = vmatpush1.msra.mxu0 0.0
        %5295 = vmatprep.subr.mxu0 0.0
        %5296 = vmatpush1.msra.mxu0 0.0
        %5297 = vmatprep.subr.mxu0 0.0
        %5298 = vmatpush1.msra.mxu0 0.0
        %5299 = vmatprep.subr.mxu0 0.0
        %5300 = vmatpush1.msra.mxu0 0.0
        %5301 = vmatprep.subr.mxu0 0.0
        %5302 = vmatpush1.msra.mxu0 0.0
        %5303 = vmatprep.subr.mxu0 0.0
        %5304 = vmatpush1.msra.mxu0 0.0
        %5305 = vmatprep.subr.mxu0 0.0
        %5306 = vmatpush1.msra.mxu0 0.0
        %5307 = vmatprep.subr.mxu0 0.0
        %5308 = vmatpush1.msra.mxu0 0.0
        %5309 = vmatprep.subr.mxu0 0.0
        %5310 = vmatpush1.msra.mxu0 0.0
        %5311 = vmatprep.subr.mxu0 0.0
        %5312 = vmatpush1.msra.mxu0 0.0
        %5313 = vmatprep.subr.mxu0 0.0
        %5314 = vmatpush1.msra.mxu0 0.0
        %5315 = vmatprep.subr.mxu0 0.0
        %5316 = vmatpush1.msra.mxu0 0.0
        %5317 = vmatprep.subr.mxu0 0.0
        %5318 = vmatpush1.msra.mxu0 0.0
        %5319 = vmatprep.subr.mxu0 0.0
        %5320 = vmatpush1.msra.mxu0 0.0
        %5321 = vmatprep.subr.mxu0 0.0
        %5322 = vmatpush1.msra.mxu0 0.0
        %5323 = vmatprep.subr.mxu0 0.0
        %5324 = vmatpush1.msra.mxu0 0.0
        %5325 = vmatprep.subr.mxu0 0.0
        %5326 = vmatpush1.msra.mxu0 0.0
        %5327 = vmatprep.subr.mxu0 0.0
        %5328 = vmatpush1.msra.mxu0 0.0
        %5329 = vmatprep.subr.mxu0 0.0
        %5330 = vmatpush1.msra.mxu0 0.0
        %5331 = vmatprep.subr.mxu0 0.0
        %5332 = vmatpush1.msra.mxu0 0.0
        %5333 = vmatprep.subr.mxu0 0.0
        %5334 = vmatpush1.msra.mxu0 0.0
        %5335 = vmatprep.subr.mxu0 0.0
        %5336 = vmatpush1.msra.mxu0 0.0
        %5337 = vmatprep.subr.mxu0 0.0
        %5338 = vmatpush1.msra.mxu0 0.0
        %5339 = vmatprep.subr.mxu0 0.0
        %5340 = vmatpush1.msra.mxu0 0.0
        %5341 = vmatprep.subr.mxu0 0.0
        %5342 = vmatpush1.msra.mxu0 0.0
        %5343 = vmatprep.subr.mxu0 0.0
        %5344 = vmatpush1.msra.mxu0 0.0
        %5345 = vmatprep.subr.mxu0 0.0
        %5346 = vmatpush1.msra.mxu0 0.0
        %5347 = vmatprep.mubr.f32.mxu0 0.0
        %5348 = vmatmul.mubr.f32.gmra.mrb[0].mxu0 %v5272
        %v5349 = vpop.f32.mrb[0].mxu0
        %v5350 = vadd.f32 0.0, %v5349
        %v5351 = vpop.f32.mrb[0].mxu0
        %5352 = vmatprep.mubr.f32.mxu0 0.0
        %5353 = vmatmul.mubr.f32.gmra.mrb[0].mxu0 %v5275
        %v5354 = vpop.f32.mrb[0].mxu0
        %v5355 = vadd.f32 0.0, %v5354
        %v5356 = vpop.f32.mrb[0].mxu0
        %5357 = vmatprep.mubr.f32.mxu0 0.0
        %5358 = vmatmul.mubr.f32.gmra.mrb[0].mxu0 %v5278
        %v5359 = vpop.f32.mrb[0].mxu0
        %v5360 = vadd.f32 0.0, %v5359
        %v5361 = vpop.f32.mrb[0].mxu0
        %5362 = vmatprep.mubr.f32.mxu0 0.0
        %5363 = vmatmul.mubr.f32.gmra.mrb[0].mxu0 %v5281
        %v5364 = vpop.f32.mrb[0].mxu0
        %v5365 = vadd.f32 0.0, %v5364
        %v5366 = vpop.f32.mrb[0].mxu0
        %5367 = vdwg.mxu0
        %v5368 = vadd.f32 %v4983, %v5350
        %v5369 = vadd.f32 %v4988, %v5355
        %v5370 = vadd.f32 %v4993, %v5360
        %v5371 = vadd.f32 %v4998, %v5365
        %5372 = vrot.lane.b32.xlu0 %v4154, 104
        %v5373 = vpop.permute.xlu0 %5372
        %5374 = vrot.lane.b32.xlu0 %v4159, 104
        %v5375 = vpop.permute.xlu0 %5374
        %5376 = vrot.lane.b32.xlu0 %v4164, 104
        %v5377 = vpop.permute.xlu0 %5376
        %5378 = vrot.lane.b32.xlu0 %v4169, 104
        %v5379 = vpop.permute.xlu0 %5378
        %5380 = vrot.lane.b32.xlu0 %v4257, 104
        %v5381 = vpop.permute.xlu0 %5380
        %5382 = vrot.lane.b32.xlu0 %v4262, 104
        %v5383 = vpop.permute.xlu0 %5382
        %5384 = vrot.lane.b32.xlu0 %v4267, 104
        %v5385 = vpop.permute.xlu0 %5384
        %5386 = vrot.lane.b32.xlu0 %v4272, 104
        %v5387 = vpop.permute.xlu0 %5386
        %v5388 = vsel %vm789, %v5373, 0
        %v5390 = vsel %vm789, %v5375, 0
        %v5392 = vsel %vm789, %v5377, 0
        %v5394 = vsel %vm789, %v5379, 0
        %v5396 = vsel %vm789, %v5381, 0
        %v5398 = vsel %vm789, %v5383, 0
        %v5400 = vsel %vm789, %v5385, 0
        %v5402 = vsel %vm789, %v5387, 0
        %5404 = vmatprep.subr.mxu0 0.0
        %5405 = vmatpush1.xpose.msra.mxu0 %v5396
        %5406 = vmatprep.subr.mxu0 0.0
        %5407 = vmatpush1.xpose.msra.mxu0 %v5398
        %5408 = vmatprep.subr.mxu0 0.0
        %5409 = vmatpush1.xpose.msra.mxu0 %v5400
        %5410 = vmatprep.subr.mxu0 0.0
        %5411 = vmatpush1.xpose.msra.mxu0 %v5402
        %5412 = vmatprep.subr.mxu0 0.0
        %5413 = vmatpush1.xpose.msra.mxu0 0.0
        %5414 = vmatprep.subr.mxu0 0.0
        %5415 = vmatpush1.xpose.msra.mxu0 0.0
        %5416 = vmatprep.subr.mxu0 0.0
        %5417 = vmatpush1.xpose.msra.mxu0 0.0
        %5418 = vmatprep.subr.mxu0 0.0
        %5419 = vmatpush1.xpose.msra.mxu0 0.0
        %5420 = vmatprep.subr.mxu0 0.0
        %5421 = vmatpush1.xpose.msra.mxu0 0.0
        %5422 = vmatprep.subr.mxu0 0.0
        %5423 = vmatpush1.xpose.msra.mxu0 0.0
        %5424 = vmatprep.subr.mxu0 0.0
        %5425 = vmatpush1.xpose.msra.mxu0 0.0
        %5426 = vmatprep.subr.mxu0 0.0
        %5427 = vmatpush1.xpose.msra.mxu0 0.0
        %5428 = vmatprep.subr.mxu0 0.0
        %5429 = vmatpush1.xpose.msra.mxu0 0.0
        %5430 = vmatprep.subr.mxu0 0.0
        %5431 = vmatpush1.xpose.msra.mxu0 0.0
        %5432 = vmatprep.subr.mxu0 0.0
        %5433 = vmatpush1.xpose.msra.mxu0 0.0
        %5434 = vmatprep.subr.mxu0 0.0
        %5435 = vmatpush1.xpose.msra.mxu0 0.0
        %5436 = vmatprep.subr.mxu0 0.0
        %5437 = vmatpush1.xpose.msra.mxu0 0.0
        %5438 = vmatprep.subr.mxu0 0.0
        %5439 = vmatpush1.xpose.msra.mxu0 0.0
        %5440 = vmatprep.subr.mxu0 0.0
        %5441 = vmatpush1.xpose.msra.mxu0 0.0
        %5442 = vmatprep.subr.mxu0 0.0
        %5443 = vmatpush1.xpose.msra.mxu0 0.0
        %5444 = vmatprep.subr.mxu0 0.0
        %5445 = vmatpush1.xpose.msra.mxu0 0.0
        %5446 = vmatprep.subr.mxu0 0.0
        %5447 = vmatpush1.xpose.msra.mxu0 0.0
        %5448 = vmatprep.subr.mxu0 0.0
        %5449 = vmatpush1.xpose.msra.mxu0 0.0
        %5450 = vmatprep.subr.mxu0 0.0
        %5451 = vmatpush1.xpose.msra.mxu0 0.0
        %5452 = vmatprep.subr.mxu0 0.0
        %5453 = vmatpush1.xpose.msra.mxu0 0.0
        %5454 = vmatprep.subr.mxu0 0.0
        %5455 = vmatpush1.xpose.msra.mxu0 0.0
        %5456 = vmatprep.subr.mxu0 0.0
        %5457 = vmatpush1.xpose.msra.mxu0 0.0
        %5458 = vmatprep.subr.mxu0 0.0
        %5459 = vmatpush1.xpose.msra.mxu0 0.0
        %5460 = vmatprep.subr.mxu0 0.0
        %5461 = vmatpush1.xpose.msra.mxu0 0.0
        %5462 = vmatprep.subr.mxu0 0.0
        %5463 = vmatpush1.xpose.msra.mxu0 0.0
        %5464 = vmatprep.subr.mxu0 0.0
        %5465 = vmatpush1.xpose.msra.mxu0 0.0
        %5466 = vmatprep.subr.mxu0 0.0
        %5467 = vmatpush1.xpose.msra.mxu0 0.0
        %5468 = vmatprep.mubr.f32.mxu0 0.0
        %5469 = vmatmul.mubr.f32.gmra.mrb[0].mxu0 %v5388
        %v5470 = vpop.f32.mrb[0].mxu0
        %v5471 = vadd.f32 %v4065, %v5470
        %v5472 = vpop.f32.mrb[0].mxu0
        %5473 = vmatprep.mubr.f32.mxu0 0.0
        %5474 = vmatmul.mubr.f32.gmra.mrb[0].mxu0 %v5390
        %v5475 = vpop.f32.mrb[0].mxu0
        %v5476 = vadd.f32 %v4066, %v5475
        %v5477 = vpop.f32.mrb[0].mxu0
        %5478 = vmatprep.mubr.f32.mxu0 0.0
        %5479 = vmatmul.mubr.f32.gmra.mrb[0].mxu0 %v5392
        %v5480 = vpop.f32.mrb[0].mxu0
        %v5481 = vadd.f32 %v4067, %v5480
        %v5482 = vpop.f32.mrb[0].mxu0
        %5483 = vmatprep.mubr.f32.mxu0 0.0
        %5484 = vmatmul.mubr.f32.gmra.mrb[0].mxu0 %v5394
        %v5485 = vpop.f32.mrb[0].mxu0
        %v5486 = vadd.f32 %v4068, %v5485
        %v5487 = vpop.f32.mrb[0].mxu0
        %5488 = vdwg.mxu0
        %v5489 = vsel %vm600, %v5471, -inf
        %5490 = vmax.xlane.f32.xlu0 %v5489
        %v5491 = vpop.xlane.xlu0 %5490
        %v5492 = vsel %vm600, %v5476, -inf
        %5493 = vmax.xlane.f32.xlu0 %v5492
        %v5494 = vpop.xlane.xlu0 %5493
        %v5495 = vsel %vm600, %v5481, -inf
        %5496 = vmax.xlane.f32.xlu0 %v5495
        %v5497 = vpop.xlane.xlu0 %5496
        %v5498 = vsel %vm600, %v5486, -inf
        %5499 = vmax.xlane.f32.xlu0 %v5498
        %v5500 = vpop.xlane.xlu0 %5499
        %v5501 = vsub.f32 %v5471, %v5491
        %v5502 = vsub.f32 %v5476, %v5494
        %v5503 = vsub.f32 %v5481, %v5497
        %v5504 = vsub.f32 %v5486, %v5500
        %v5505 = vmul.f32 %v5501, 1.442695
        %v5506 = vpow.pop %v5505
        %v5507 = vmul.f32 %v5502, 1.442695
        %v5508 = vpow.pop %v5507
        %v5509 = vmul.f32 %v5503, 1.442695
        %v5510 = vpow.pop %v5509
        %v5511 = vmul.f32 %v5504, 1.442695
        %v5512 = vpow.pop %v5511
        %v5513 = vsel %vm600, %v5506, 0.0
        %5514 = vadd.xlane.f32.xlu0 %v5513
        %v5515 = vpop.xlane.xlu0 %5514
        %v5516 = vsel %vm600, %v5508, 0.0
        %5517 = vadd.xlane.f32.xlu0 %v5516
        %v5518 = vpop.xlane.xlu0 %5517
        %v5519 = vsel %vm600, %v5510, 0.0
        %5520 = vadd.xlane.f32.xlu0 %v5519
        %v5521 = vpop.xlane.xlu0 %5520
        %v5522 = vsel %vm600, %v5512, 0.0
        %5523 = vadd.xlane.f32.xlu0 %v5522
        %v5524 = vpop.xlane.xlu0 %5523
        %v5525 = vrcp.pop %v5515
        %v5526 = vrcp.pop %v5518
        %v5527 = vrcp.pop %v5521
        %v5528 = vrcp.pop %v5524
        %v5529 = vmul.f32 %v5506, %v5525
        %v5530 = vmul.f32 %v5508, %v5526
        %v5531 = vmul.f32 %v5510, %v5527
        %v5532 = vmul.f32 %v5512, %v5528
        %5533 = vrot.lane.b32.xlu0 %v4257, 72
        %v5534 = vpop.permute.xlu0 %5533
        %5535 = vrot.lane.b32.xlu0 %v4262, 72
        %v5536 = vpop.permute.xlu0 %5535
        %5537 = vrot.lane.b32.xlu0 %v4267, 72
        %v5538 = vpop.permute.xlu0 %5537
        %5539 = vrot.lane.b32.xlu0 %v4272, 72
        %v5540 = vpop.permute.xlu0 %5539
        %v5546 = vsel %vm600, %v5529, 0
        %v5549 = vsel %vm600, %v5530, 0
        %v5552 = vsel %vm600, %v5531, 0
        %v5555 = vsel %vm600, %v5532, 0
        %5557 = vmatprep.subr.mxu0 0.0
        %5558 = vmatpush1.msra.mxu0 %v5534
        %5559 = vmatprep.subr.mxu0 0.0
        %5560 = vmatpush1.msra.mxu0 %v5536
        %5561 = vmatprep.subr.mxu0 0.0
        %5562 = vmatpush1.msra.mxu0 %v5538
        %5563 = vmatprep.subr.mxu0 0.0
        %5564 = vmatpush1.msra.mxu0 %v5540
        %5565 = vmatprep.subr.mxu0 0.0
        %5566 = vmatpush1.msra.mxu0 0.0
        %5567 = vmatprep.subr.mxu0 0.0
        %5568 = vmatpush1.msra.mxu0 0.0
        %5569 = vmatprep.subr.mxu0 0.0
        %5570 = vmatpush1.msra.mxu0 0.0
        %5571 = vmatprep.subr.mxu0 0.0
        %5572 = vmatpush1.msra.mxu0 0.0
        %5573 = vmatprep.subr.mxu0 0.0
        %5574 = vmatpush1.msra.mxu0 0.0
        %5575 = vmatprep.subr.mxu0 0.0
        %5576 = vmatpush1.msra.mxu0 0.0
        %5577 = vmatprep.subr.mxu0 0.0
        %5578 = vmatpush1.msra.mxu0 0.0
        %5579 = vmatprep.subr.mxu0 0.0
        %5580 = vmatpush1.msra.mxu0 0.0
        %5581 = vmatprep.subr.mxu0 0.0
        %5582 = vmatpush1.msra.mxu0 0.0
        %5583 = vmatprep.subr.mxu0 0.0
        %5584 = vmatpush1.msra.mxu0 0.0
        %5585 = vmatprep.subr.mxu0 0.0
        %5586 = vmatpush1.msra.mxu0 0.0
        %5587 = vmatprep.subr.mxu0 0.0
        %5588 = vmatpush1.msra.mxu0 0.0
        %5589 = vmatprep.subr.mxu0 0.0
        %5590 = vmatpush1.msra.mxu0 0.0
        %5591 = vmatprep.subr.mxu0 0.0
        %5592 = vmatpush1.msra.mxu0 0.0
        %5593 = vmatprep.subr.mxu0 0.0
        %5594 = vmatpush1.msra.mxu0 0.0
        %5595 = vmatprep.subr.mxu0 0.0
        %5596 = vmatpush1.msra.mxu0 0.0
        %5597 = vmatprep.subr.mxu0 0.0
        %5598 = vmatpush1.msra.mxu0 0.0
        %5599 = vmatprep.subr.mxu0 0.0
        %5600 = vmatpush1.msra.mxu0 0.0
        %5601 = vmatprep.subr.mxu0 0.0
        %5602 = vmatpush1.msra.mxu0 0.0
        %5603 = vmatprep.subr.mxu0 0.0
        %5604 = vmatpush1.msra.mxu0 0.0
        %5605 = vmatprep.subr.mxu0 0.0
        %5606 = vmatpush1.msra.mxu0 0.0
        %5607 = vmatprep.subr.mxu0 0.0
        %5608 = vmatpush1.msra.mxu0 0.0
        %5609 = vmatprep.subr.mxu0 0.0
        %5610 = vmatpush1.msra.mxu0 0.0
        %5611 = vmatprep.subr.mxu0 0.0
        %5612 = vmatpush1.msra.mxu0 0.0
        %5613 = vmatprep.subr.mxu0 0.0
        %5614 = vmatpush1.msra.mxu0 0.0
        %5615 = vmatprep.subr.mxu0 0.0
        %5616 = vmatpush1.msra.mxu0 0.0
        %5617 = vmatprep.subr.mxu0 0.0
        %5618 = vmatpush1.msra.mxu0 0.0
        %5619 = vmatprep.subr.mxu0 0.0
        %5620 = vmatpush1.msra.mxu0 0.0
        %5621 = vmatprep.mubr.f32.mxu0 0.0
        %5622 = vmatmul.mubr.f32.gmra.mrb[0].mxu0 %v5546
        %v5623 = vpop.f32.mrb[0].mxu0
        %v5624 = vadd.f32 0.0, %v5623
        %v5625 = vpop.f32.mrb[0].mxu0
        %5626 = vmatprep.mubr.f32.mxu0 0.0
        %5627 = vmatmul.mubr.f32.gmra.mrb[0].mxu0 %v5549
        %v5628 = vpop.f32.mrb[0].mxu0
        %v5629 = vadd.f32 0.0, %v5628
        %v5630 = vpop.f32.mrb[0].mxu0
        %5631 = vmatprep.mubr.f32.mxu0 0.0
        %5632 = vmatmul.mubr.f32.gmra.mrb[0].mxu0 %v5552
        %v5633 = vpop.f32.mrb[0].mxu0
        %v5634 = vadd.f32 0.0, %v5633
        %v5635 = vpop.f32.mrb[0].mxu0
        %5636 = vmatprep.mubr.f32.mxu0 0.0
        %5637 = vmatmul.mubr.f32.gmra.mrb[0].mxu0 %v5555
        %v5638 = vpop.f32.mrb[0].mxu0
        %v5639 = vadd.f32 0.0, %v5638
        %v5640 = vpop.f32.mrb[0].mxu0
        %5641 = vdwg.mxu0
        %v5643 = vsel %vm789, %v5624, 0
        %v5646 = vsel %vm789, %v5629, 0
        %v5649 = vsel %vm789, %v5634, 0
        %v5652 = vsel %vm789, %v5639, 0
        %5654 = vmatprep.subr.mxu0 0.0
        %5655 = vmatpush1.msra.mxu0 %v4062
        %5656 = vmatprep.subr.mxu0 0.0
        %5657 = vmatpush1.msra.mxu0 0.0
        %5658 = vmatprep.subr.mxu0 0.0
        %5659 = vmatpush1.msra.mxu0 0.0
        %5660 = vmatprep.subr.mxu0 0.0
        %5661 = vmatpush1.msra.mxu0 0.0
        %5662 = vmatprep.subr.mxu0 0.0
        %5663 = vmatpush1.msra.mxu0 0.0
        %5664 = vmatprep.subr.mxu0 0.0
        %5665 = vmatpush1.msra.mxu0 0.0
        %5666 = vmatprep.subr.mxu0 0.0
        %5667 = vmatpush1.msra.mxu0 0.0
        %5668 = vmatprep.subr.mxu0 0.0
        %5669 = vmatpush1.msra.mxu0 0.0
        %5670 = vmatprep.subr.mxu0 0.0
        %5671 = vmatpush1.msra.mxu0 0.0
        %5672 = vmatprep.subr.mxu0 0.0
        %5673 = vmatpush1.msra.mxu0 0.0
        %5674 = vmatprep.subr.mxu0 0.0
        %5675 = vmatpush1.msra.mxu0 0.0
        %5676 = vmatprep.subr.mxu0 0.0
        %5677 = vmatpush1.msra.mxu0 0.0
        %5678 = vmatprep.subr.mxu0 0.0
        %5679 = vmatpush1.msra.mxu0 0.0
        %5680 = vmatprep.subr.mxu0 0.0
        %5681 = vmatpush1.msra.mxu0 0.0
        %5682 = vmatprep.subr.mxu0 0.0
        %5683 = vmatpush1.msra.mxu0 0.0
        %5684 = vmatprep.subr.mxu0 0.0
        %5685 = vmatpush1.msra.mxu0 0.0
        %5686 = vmatprep.subr.mxu0 0.0
        %5687 = vmatpush1.msra.mxu0 0.0
        %5688 = vmatprep.subr.mxu0 0.0
        %5689 = vmatpush1.msra.mxu0 0.0
        %5690 = vmatprep.subr.mxu0 0.0
        %5691 = vmatpush1.msra.mxu0 0.0
        %5692 = vmatprep.subr.mxu0 0.0
        %5693 = vmatpush1.msra.mxu0 0.0
        %5694 = vmatprep.subr.mxu0 0.0
        %5695 = vmatpush1.msra.mxu0 0.0
        %5696 = vmatprep.subr.mxu0 0.0
        %5697 = vmatpush1.msra.mxu0 0.0
        %5698 = vmatprep.subr.mxu0 0.0
        %5699 = vmatpush1.msra.mxu0 0.0
        %5700 = vmatprep.subr.mxu0 0.0
        %5701 = vmatpush1.msra.mxu0 0.0
        %5702 = vmatprep.subr.mxu0 0.0
        %5703 = vmatpush1.msra.mxu0 0.0
        %5704 = vmatprep.subr.mxu0 0.0
        %5705 = vmatpush1.msra.mxu0 0.0
        %5706 = vmatprep.subr.mxu0 0.0
        %5707 = vmatpush1.msra.mxu0 0.0
        %5708 = vmatprep.subr.mxu0 0.0
        %5709 = vmatpush1.msra.mxu0 0.0
        %5710 = vmatprep.subr.mxu0 0.0
        %5711 = vmatpush1.msra.mxu0 0.0
        %5712 = vmatprep.subr.mxu0 0.0
        %5713 = vmatpush1.msra.mxu0 0.0
        %5714 = vmatprep.subr.mxu0 0.0
        %5715 = vmatpush1.msra.mxu0 0.0
        %5716 = vmatprep.subr.mxu0 0.0
        %5717 = vmatpush1.msra.mxu0 0.0
        %5718 = vmatprep.mubr.f32.mxu0 0.0
        %5719 = vmatmul.mubr.f32.gmra.mrb[0].mxu0 %v5643
        %v5720 = vpop.f32.mrb[0].mxu0
        %v5721 = vadd.f32 0.0, %v5720
        %v5722 = vpop.f32.mrb[0].mxu0
        %5723 = vmatprep.mubr.f32.mxu0 0.0
        %5724 = vmatmul.mubr.f32.gmra.mrb[0].mxu0 %v5646
        %v5725 = vpop.f32.mrb[0].mxu0
        %v5726 = vadd.f32 0.0, %v5725
        %v5727 = vpop.f32.mrb[0].mxu0
        %5728 = vmatprep.mubr.f32.mxu0 0.0
        %5729 = vmatmul.mubr.f32.gmra.mrb[0].mxu0 %v5649
        %v5730 = vpop.f32.mrb[0].mxu0
        %v5731 = vadd.f32 0.0, %v5730
        %v5732 = vpop.f32.mrb[0].mxu0
        %5733 = vmatprep.mubr.f32.mxu0 0.0
        %5734 = vmatmul.mubr.f32.gmra.mrb[0].mxu0 %v5652
        %v5735 = vpop.f32.mrb[0].mxu0
        %v5736 = vadd.f32 0.0, %v5735
        %v5737 = vpop.f32.mrb[0].mxu0
        %5738 = vdwg.mxu0
        %v5739 = vadd.f32 %v5368, %v5721
        %v5740 = vadd.f32 %v5369, %v5726
        %v5741 = vadd.f32 %v5370, %v5731
        %v5742 = vadd.f32 %v5371, %v5736
        %v5744 = vlaneseq
        %v5745 = vshrl.u32 %v5744, 7
        %v5746 = vsub.s32 0, %v5745
        %v5747 = vrot.slane %v4064, %v5746
        %v5749 = vadd.f32 %v5739, %v5747
        %v5750 = vadd.f32 %v5740, %v5747
        %v5751 = vadd.f32 %v5741, %v5747
        %v5752 = vadd.f32 %v5742, %v5747
        %s5753 = scalar_lea.vmem %s11, 1
        %v5754 = vld [vmem:[%s5753] sm:$0x1]
        %s5755 = scalar_lea.vmem %s12, 1
        %v5756 = vld [vmem:[%s5755] sm:$0x1]
        %v5757 = vadd.f32 %v4040, %v5749
        %v5758 = vadd.f32 %v4041, %v5750
        %v5759 = vadd.f32 %v4042, %v5751
        %v5760 = vadd.f32 %v4043, %v5752
        %v5761 = vsel %vm600, %v5757, 0.0
        %5762 = vadd.xlane.f32.xlu0 %v5761
        %v5763 = vpop.xlane.xlu0 %5762
        %v5764 = vsel %vm600, %v5758, 0.0
        %5765 = vadd.xlane.f32.xlu0 %v5764
        %v5766 = vpop.xlane.xlu0 %5765
        %v5767 = vsel %vm600, %v5759, 0.0
        %5768 = vadd.xlane.f32.xlu0 %v5767
        %v5769 = vpop.xlane.xlu0 %5768
        %v5770 = vsel %vm600, %v5760, 0.0
        %5771 = vadd.xlane.f32.xlu0 %v5770
        %v5772 = vpop.xlane.xlu0 %5771
        %v5773 = vmul.f32 %v5763, %v3983
        %v5774 = vmul.f32 %v5766, %v3983
        %v5775 = vmul.f32 %v5769, %v3983
        %v5776 = vmul.f32 %v5772, %v3983
        %v5777 = vsub.f32 %v5757, %v5773
        %v5778 = vsub.f32 %v5758, %v5774
        %v5779 = vsub.f32 %v5759, %v5775
        %v5780 = vsub.f32 %v5760, %v5776
        %v5781 = vmul.f32 %v5777, %v5777
        %v5782 = vmul.f32 %v5778, %v5778
        %v5783 = vmul.f32 %v5779, %v5779
        %v5784 = vmul.f32 %v5780, %v5780
        %v5785 = vsel %vm600, %v5781, 0.0
        %5786 = vadd.xlane.f32.xlu0 %v5785
        %v5787 = vpop.xlane.xlu0 %5786
        %v5788 = vsel %vm600, %v5782, 0.0
        %5789 = vadd.xlane.f32.xlu0 %v5788
        %v5790 = vpop.xlane.xlu0 %5789
        %v5791 = vsel %vm600, %v5783, 0.0
        %5792 = vadd.xlane.f32.xlu0 %v5791
        %v5793 = vpop.xlane.xlu0 %5792
        %v5794 = vsel %vm600, %v5784, 0.0
        %5795 = vadd.xlane.f32.xlu0 %v5794
        %v5796 = vpop.xlane.xlu0 %5795
        %v5797 = vmul.f32 %v5787, %v3983
        %v5798 = vmul.f32 %v5790, %v3983
        %v5799 = vmul.f32 %v5793, %v3983
        %v5800 = vmul.f32 %v5796, %v3983
        %v5801 = vadd.f32 %v5797, 1e-05
        %v5802 = vadd.f32 %v5798, 1e-05
        %v5803 = vadd.f32 %v5799, 1e-05
        %v5804 = vadd.f32 %v5800, 1e-05
        %v5805 = vrsqrt.pop %v5801
        %v5806 = vrsqrt.pop %v5802
        %v5807 = vrsqrt.pop %v5803
        %v5808 = vrsqrt.pop %v5804
        %v5809 = vmul.f32 %v5777, %v5805
        %v5810 = vmul.f32 %v5778, %v5806
        %v5811 = vmul.f32 %v5779, %v5807
        %v5812 = vmul.f32 %v5780, %v5808
        %v5814 = vlaneseq
        %v5815 = vshrl.u32 %v5814, 7
        %v5816 = vsub.s32 0, %v5815
        %v5817 = vrot.slane %v5754, %v5816
        %v5819 = vmul.f32 %v5809, %v5817
        %v5820 = vmul.f32 %v5810, %v5817
        %v5821 = vmul.f32 %v5811, %v5817
        %v5822 = vmul.f32 %v5812, %v5817
        %v5824 = vlaneseq
        %v5825 = vshrl.u32 %v5824, 7
        %v5826 = vsub.s32 0, %v5825
        %v5827 = vrot.slane %v5756, %v5826
        %v5829 = vadd.f32 %v5819, %v5827
        %v5830 = vadd.f32 %v5820, %v5827
        %v5831 = vadd.f32 %v5821, %v5827
        %v5832 = vadd.f32 %v5822, %v5827
        %v5833 = vld [vmem:[%s13] sm:$0xff]
        %v5834 = vld [vmem:[%s13 + $0x8] sm:$0xff]
        %v5835 = vld [vmem:[%s13 + $0x10] sm:$0xff]
        %v5836 = vld [vmem:[%s13 + $0x18] sm:$0xff]
        %v5837 = vld [vmem:[%s14] sm:$0x1]
        %v5839 = vlaneseq
        %v5840 = vshrl.u32 %v5839, 7
        %v5841 = vsub.s32 0, %v5840
        %v5842 = vrot.slane %v5837, %v5841
        %v5845 = vsel %vm600, %v5829, 0
        %v5848 = vsel %vm600, %v5830, 0
        %v5851 = vsel %vm600, %v5831, 0
        %v5854 = vsel %vm600, %v5832, 0
        %5856 = vmatprep.subr.mxu0 0.0
        %5857 = vmatpush1.msra.mxu0 %v5833
        %5858 = vmatprep.subr.mxu0 0.0
        %5859 = vmatpush1.msra.mxu0 %v5834
        %5860 = vmatprep.subr.mxu0 0.0
        %5861 = vmatpush1.msra.mxu0 %v5835
        %5862 = vmatprep.subr.mxu0 0.0
        %5863 = vmatpush1.msra.mxu0 %v5836
        %5864 = vmatprep.subr.mxu0 0.0
        %5865 = vmatpush1.msra.mxu0 0.0
        %5866 = vmatprep.subr.mxu0 0.0
        %5867 = vmatpush1.msra.mxu0 0.0
        %5868 = vmatprep.subr.mxu0 0.0
        %5869 = vmatpush1.msra.mxu0 0.0
        %5870 = vmatprep.subr.mxu0 0.0
        %5871 = vmatpush1.msra.mxu0 0.0
        %5872 = vmatprep.subr.mxu0 0.0
        %5873 = vmatpush1.msra.mxu0 0.0
        %5874 = vmatprep.subr.mxu0 0.0
        %5875 = vmatpush1.msra.mxu0 0.0
        %5876 = vmatprep.subr.mxu0 0.0
        %5877 = vmatpush1.msra.mxu0 0.0
        %5878 = vmatprep.subr.mxu0 0.0
        %5879 = vmatpush1.msra.mxu0 0.0
        %5880 = vmatprep.subr.mxu0 0.0
        %5881 = vmatpush1.msra.mxu0 0.0
        %5882 = vmatprep.subr.mxu0 0.0
        %5883 = vmatpush1.msra.mxu0 0.0
        %5884 = vmatprep.subr.mxu0 0.0
        %5885 = vmatpush1.msra.mxu0 0.0
        %5886 = vmatprep.subr.mxu0 0.0
        %5887 = vmatpush1.msra.mxu0 0.0
        %5888 = vmatprep.subr.mxu0 0.0
        %5889 = vmatpush1.msra.mxu0 0.0
        %5890 = vmatprep.subr.mxu0 0.0
        %5891 = vmatpush1.msra.mxu0 0.0
        %5892 = vmatprep.subr.mxu0 0.0
        %5893 = vmatpush1.msra.mxu0 0.0
        %5894 = vmatprep.subr.mxu0 0.0
        %5895 = vmatpush1.msra.mxu0 0.0
        %5896 = vmatprep.subr.mxu0 0.0
        %5897 = vmatpush1.msra.mxu0 0.0
        %5898 = vmatprep.subr.mxu0 0.0
        %5899 = vmatpush1.msra.mxu0 0.0
        %5900 = vmatprep.subr.mxu0 0.0
        %5901 = vmatpush1.msra.mxu0 0.0
        %5902 = vmatprep.subr.mxu0 0.0
        %5903 = vmatpush1.msra.mxu0 0.0
        %5904 = vmatprep.subr.mxu0 0.0
        %5905 = vmatpush1.msra.mxu0 0.0
        %5906 = vmatprep.subr.mxu0 0.0
        %5907 = vmatpush1.msra.mxu0 0.0
        %5908 = vmatprep.subr.mxu0 0.0
        %5909 = vmatpush1.msra.mxu0 0.0
        %5910 = vmatprep.subr.mxu0 0.0
        %5911 = vmatpush1.msra.mxu0 0.0
        %5912 = vmatprep.subr.mxu0 0.0
        %5913 = vmatpush1.msra.mxu0 0.0
        %5914 = vmatprep.subr.mxu0 0.0
        %5915 = vmatpush1.msra.mxu0 0.0
        %5916 = vmatprep.subr.mxu0 0.0
        %5917 = vmatpush1.msra.mxu0 0.0
        %5918 = vmatprep.subr.mxu0 0.0
        %5919 = vmatpush1.msra.mxu0 0.0
        %5920 = vmatprep.mubr.f32.mxu0 0.0
        %5921 = vmatmul.mubr.f32.gmra.mrb[0].mxu0 %v5845
        %v5922 = vpop.f32.mrb[0].mxu0
        %v5923 = vadd.f32 %v5842, %v5922
        %v5924 = vpop.f32.mrb[0].mxu0
        %5925 = vmatprep.mubr.f32.mxu0 0.0
        %5926 = vmatmul.mubr.f32.gmra.mrb[0].mxu0 %v5848
        %v5927 = vpop.f32.mrb[0].mxu0
        %v5928 = vadd.f32 %v5842, %v5927
        %v5929 = vpop.f32.mrb[0].mxu0
        %5930 = vmatprep.mubr.f32.mxu0 0.0
        %5931 = vmatmul.mubr.f32.gmra.mrb[0].mxu0 %v5851
        %v5932 = vpop.f32.mrb[0].mxu0
        %v5933 = vadd.f32 %v5842, %v5932
        %v5934 = vpop.f32.mrb[0].mxu0
        %5935 = vmatprep.mubr.f32.mxu0 0.0
        %5936 = vmatmul.mubr.f32.gmra.mrb[0].mxu0 %v5854
        %v5937 = vpop.f32.mrb[0].mxu0
        %v5938 = vadd.f32 %v5842, %v5937
        %v5939 = vpop.f32.mrb[0].mxu0
        %5940 = vdwg.mxu0
        %v5941 = vmax.f32 %v5923, 0.0
        %v5942 = vmax.f32 %v5928, 0.0
        %v5943 = vmax.f32 %v5933, 0.0
        %v5944 = vmax.f32 %v5938, 0.0
        %v5945 = vld [vmem:[%s15] sm:$0xff]
        %v5946 = vld [vmem:[%s15 + $0x8] sm:$0xff]
        %v5947 = vld [vmem:[%s15 + $0x10] sm:$0xff]
        %v5948 = vld [vmem:[%s15 + $0x18] sm:$0xff]
        %v5949 = vld [vmem:[%s15 + $0x20] sm:$0xff]
        %v5950 = vld [vmem:[%s15 + $0x28] sm:$0xff]
        %v5951 = vld [vmem:[%s15 + $0x30] sm:$0xff]
        %v5952 = vld [vmem:[%s15 + $0x38] sm:$0xff]
        %v5953 = vld [vmem:[%s16] sm:$0x1]
        %v5955 = vlaneseq
        %v5956 = vshrl.u32 %v5955, 7
        %v5957 = vsub.s32 0, %v5956
        %v5958 = vrot.slane %v5953, %v5957
        %vm5960 = vcmask 523264
        %v5962 = vsel %vm5960, %v5941, 0
        %v5965 = vsel %vm5960, %v5942, 0
        %v5968 = vsel %vm5960, %v5943, 0
        %v5971 = vsel %vm5960, %v5944, 0
        %5973 = vmatprep.subr.mxu0 0.0
        %5974 = vmatpush1.msra.mxu0 %v5945
        %5975 = vmatprep.subr.mxu0 0.0
        %5976 = vmatpush1.msra.mxu0 %v5946
        %5977 = vmatprep.subr.mxu0 0.0
        %5978 = vmatpush1.msra.mxu0 %v5947
        %5979 = vmatprep.subr.mxu0 0.0
        %5980 = vmatpush1.msra.mxu0 %v5948
        %5981 = vmatprep.subr.mxu0 0.0
        %5982 = vmatpush1.msra.mxu0 %v5949
        %5983 = vmatprep.subr.mxu0 0.0
        %5984 = vmatpush1.msra.mxu0 %v5950
        %5985 = vmatprep.subr.mxu0 0.0
        %5986 = vmatpush1.msra.mxu0 %v5951
        %5987 = vmatprep.subr.mxu0 0.0
        %5988 = vmatpush1.msra.mxu0 %v5952
        %5989 = vmatprep.subr.mxu0 0.0
        %5990 = vmatpush1.msra.mxu0 0.0
        %5991 = vmatprep.subr.mxu0 0.0
        %5992 = vmatpush1.msra.mxu0 0.0
        %5993 = vmatprep.subr.mxu0 0.0
        %5994 = vmatpush1.msra.mxu0 0.0
        %5995 = vmatprep.subr.mxu0 0.0
        %5996 = vmatpush1.msra.mxu0 0.0
        %5997 = vmatprep.subr.mxu0 0.0
        %5998 = vmatpush1.msra.mxu0 0.0
        %5999 = vmatprep.subr.mxu0 0.0
        %6000 = vmatpush1.msra.mxu0 0.0
        %6001 = vmatprep.subr.mxu0 0.0
        %6002 = vmatpush1.msra.mxu0 0.0
        %6003 = vmatprep.subr.mxu0 0.0
        %6004 = vmatpush1.msra.mxu0 0.0
        %6005 = vmatprep.subr.mxu0 0.0
        %6006 = vmatpush1.msra.mxu0 0.0
        %6007 = vmatprep.subr.mxu0 0.0
        %6008 = vmatpush1.msra.mxu0 0.0
        %6009 = vmatprep.subr.mxu0 0.0
        %6010 = vmatpush1.msra.mxu0 0.0
        %6011 = vmatprep.subr.mxu0 0.0
        %6012 = vmatpush1.msra.mxu0 0.0
        %6013 = vmatprep.subr.mxu0 0.0
        %6014 = vmatpush1.msra.mxu0 0.0
        %6015 = vmatprep.subr.mxu0 0.0
        %6016 = vmatpush1.msra.mxu0 0.0
        %6017 = vmatprep.subr.mxu0 0.0
        %6018 = vmatpush1.msra.mxu0 0.0
        %6019 = vmatprep.subr.mxu0 0.0
        %6020 = vmatpush1.msra.mxu0 0.0
        %6021 = vmatprep.subr.mxu0 0.0
        %6022 = vmatpush1.msra.mxu0 0.0
        %6023 = vmatprep.subr.mxu0 0.0
        %6024 = vmatpush1.msra.mxu0 0.0
        %6025 = vmatprep.subr.mxu0 0.0
        %6026 = vmatpush1.msra.mxu0 0.0
        %6027 = vmatprep.subr.mxu0 0.0
        %6028 = vmatpush1.msra.mxu0 0.0
        %6029 = vmatprep.subr.mxu0 0.0
        %6030 = vmatpush1.msra.mxu0 0.0
        %6031 = vmatprep.subr.mxu0 0.0
        %6032 = vmatpush1.msra.mxu0 0.0
        %6033 = vmatprep.subr.mxu0 0.0
        %6034 = vmatpush1.msra.mxu0 0.0
        %6035 = vmatprep.subr.mxu0 0.0
        %6036 = vmatpush1.msra.mxu0 0.0
        %6037 = vmatprep.mubr.f32.mxu0 0.0
        %6038 = vmatmul.mubr.f32.gmra.mrb[0].mxu0 %v5962
        %v6039 = vpop.f32.mrb[0].mxu0
        %v6040 = vadd.f32 %v5958, %v6039
        %v6041 = vpop.f32.mrb[0].mxu0
        %6042 = vmatprep.mubr.f32.mxu0 0.0
        %6043 = vmatmul.mubr.f32.gmra.mrb[0].mxu0 %v5965
        %v6044 = vpop.f32.mrb[0].mxu0
        %v6045 = vadd.f32 %v5958, %v6044
        %v6046 = vpop.f32.mrb[0].mxu0
        %6047 = vmatprep.mubr.f32.mxu0 0.0
        %6048 = vmatmul.mubr.f32.gmra.mrb[0].mxu0 %v5968
        %v6049 = vpop.f32.mrb[0].mxu0
        %v6050 = vadd.f32 %v5958, %v6049
        %v6051 = vpop.f32.mrb[0].mxu0
        %6052 = vmatprep.mubr.f32.mxu0 0.0
        %6053 = vmatmul.mubr.f32.gmra.mrb[0].mxu0 %v5971
        %v6054 = vpop.f32.mrb[0].mxu0
        %v6055 = vadd.f32 %v5958, %v6054
        %v6056 = vpop.f32.mrb[0].mxu0
        %6057 = vdwg.mxu0
        %s6058 = scalar_lea.vmem %s11, 2
        %v6059 = vld [vmem:[%s6058] sm:$0x1]
        %s6060 = scalar_lea.vmem %s12, 2
        %v6061 = vld [vmem:[%s6060] sm:$0x1]
        %v6062 = vadd.f32 %v5829, %v6040
        %v6063 = vadd.f32 %v5830, %v6045
        %v6064 = vadd.f32 %v5831, %v6050
        %v6065 = vadd.f32 %v5832, %v6055
        %v6066 = vsel %vm600, %v6062, 0.0
        %6067 = vadd.xlane.f32.xlu0 %v6066
        %v6068 = vpop.xlane.xlu0 %6067
        %v6069 = vsel %vm600, %v6063, 0.0
        %6070 = vadd.xlane.f32.xlu0 %v6069
        %v6071 = vpop.xlane.xlu0 %6070
        %v6072 = vsel %vm600, %v6064, 0.0
        %6073 = vadd.xlane.f32.xlu0 %v6072
        %v6074 = vpop.xlane.xlu0 %6073
        %v6075 = vsel %vm600, %v6065, 0.0
        %6076 = vadd.xlane.f32.xlu0 %v6075
        %v6077 = vpop.xlane.xlu0 %6076
        %v6078 = vmul.f32 %v6068, %v3983
        %v6079 = vmul.f32 %v6071, %v3983
        %v6080 = vmul.f32 %v6074, %v3983
        %v6081 = vmul.f32 %v6077, %v3983
        %v6082 = vsub.f32 %v6062, %v6078
        %v6083 = vsub.f32 %v6063, %v6079
        %v6084 = vsub.f32 %v6064, %v6080
        %v6085 = vsub.f32 %v6065, %v6081
        %v6086 = vmul.f32 %v6082, %v6082
        %v6087 = vmul.f32 %v6083, %v6083
        %v6088 = vmul.f32 %v6084, %v6084
        %v6089 = vmul.f32 %v6085, %v6085
        %v6090 = vsel %vm600, %v6086, 0.0
        %6091 = vadd.xlane.f32.xlu0 %v6090
        %v6092 = vpop.xlane.xlu0 %6091
        %v6093 = vsel %vm600, %v6087, 0.0
        %6094 = vadd.xlane.f32.xlu0 %v6093
        %v6095 = vpop.xlane.xlu0 %6094
        %v6096 = vsel %vm600, %v6088, 0.0
        %6097 = vadd.xlane.f32.xlu0 %v6096
        %v6098 = vpop.xlane.xlu0 %6097
        %v6099 = vsel %vm600, %v6089, 0.0
        %6100 = vadd.xlane.f32.xlu0 %v6099
        %v6101 = vpop.xlane.xlu0 %6100
        %v6102 = vmul.f32 %v6092, %v3983
        %v6103 = vmul.f32 %v6095, %v3983
        %v6104 = vmul.f32 %v6098, %v3983
        %v6105 = vmul.f32 %v6101, %v3983
        %v6106 = vadd.f32 %v6102, 1e-05
        %v6107 = vadd.f32 %v6103, 1e-05
        %v6108 = vadd.f32 %v6104, 1e-05
        %v6109 = vadd.f32 %v6105, 1e-05
        %v6110 = vrsqrt.pop %v6106
        %v6111 = vrsqrt.pop %v6107
        %v6112 = vrsqrt.pop %v6108
        %v6113 = vrsqrt.pop %v6109
        %v6114 = vmul.f32 %v6082, %v6110
        %v6115 = vmul.f32 %v6083, %v6111
        %v6116 = vmul.f32 %v6084, %v6112
        %v6117 = vmul.f32 %v6085, %v6113
        %v6119 = vlaneseq
        %v6120 = vshrl.u32 %v6119, 7
        %v6121 = vsub.s32 0, %v6120
        %v6122 = vrot.slane %v6059, %v6121
        %v6124 = vmul.f32 %v6114, %v6122
        %v6125 = vmul.f32 %v6115, %v6122
        %v6126 = vmul.f32 %v6116, %v6122
        %v6127 = vmul.f32 %v6117, %v6122
        %v6129 = vlaneseq
        %v6130 = vshrl.u32 %v6129, 7
        %v6131 = vsub.s32 0, %v6130
        %v6132 = vrot.slane %v6061, %v6131
        %v6134 = vadd.f32 %v6124, %v6132
        %v6135 = vadd.f32 %v6125, %v6132
        %v6136 = vadd.f32 %v6126, %v6132
        %v6137 = vadd.f32 %v6127, %v6132
        %6138 = vst.msk [vmem:[%s556] sm:$0xff] %vm600, %v6134
        %6139 = vst.msk [vmem:[%s556 + $0x8] sm:$0xff] %vm600, %v6135
        %6140 = vst.msk [vmem:[%s556 + $0x10] sm:$0xff] %vm600, %v6136
        %6141 = vst.msk [vmem:[%s556 + $0x18] sm:$0xff] %vm600, %v6137
        %s6142 = sand.u32 %s406, 1
        %s6143 = scalar_lea.sflag [#allocation3], %s6142
        %s6144 = sand.u32 %s406, 1
        %s6145 = smul.addr %s6144, 32
        %s6146 = scalar_lea.vmem [#allocation2], %s6145
        // Predicated region
        $region89: #{mini_decoder_forward.1} parent=87 // pred_check
          %p6147 = pneg %p416
        $region90: #{mini_decoder_forward.1} parent=87 // pred_check_branch
          %6149 = sbr.rel (%p6147) target = $region92
        $region91: #{mini_decoder_forward.1} parent=87 // pred_region
          %s6151 = ssub.s32 512, 512
          %6152 = vsyncadd %s6143, %s6151
          %s6153 = smul.addr %s31, 4
          %s6154 = smul.addr %s6153, 128
          %s6155 = scalar_lea.hbm %s17, %s6154
          %s6156 = sshll.u32 %s6146, 4
          %s6157 = int_to_ptr.vmem [resolvable:$true] %s6156
          %6162 = dma.vmem_to_hbm [thread:$0]  %s6157, 512, %s6155, %s6143, 128, 128, 8
        $region92: #{mini_decoder_forward.1} parent=87 // pred_fallthru
          _
      $region88: #{mini_decoder_forward.1} parent=5 // pred_fallthru
        _
      %p6163 = scmp.le.s32.totalorder 2, %s26
      // Predicated region
      $region93: #{mini_decoder_forward.1} parent=5 // pred_check
        %p6164 = pneg %p6163
      $region94: #{mini_decoder_forward.1} parent=5 // pred_check_branch
        %6166 = sbr.rel (%p6164) target = $region96
      $region95: #{mini_decoder_forward.1} parent=5 // pred_region
        %s6167 = ssub.s32 %s26, 2
        // Predicated region
        $region97: #{mini_decoder_forward.1} parent=95 // pred_check
          %p6168 = pneg %p422
        $region98: #{mini_decoder_forward.1} parent=95 // pred_check_branch
          %6170 = sbr.rel (%p6168) target = $region100
        $region99: #{mini_decoder_forward.1} parent=95 // pred_region
          %s6171 = sand.u32 %s407, 1
          %s6172 = scalar_lea.sflag [#allocation3], %s6171
          %s6173 = sand.u32 %s407, 1
          %s6174 = smul.addr %s6173, 32
          %s6175 = scalar_lea.vmem [#allocation2], %s6174
          %6176 = dma.done %s6172, 512
        $region100: #{mini_decoder_forward.1} parent=95 // pred_fallthru
          _
      $region96: #{mini_decoder_forward.1} parent=5 // pred_fallthru
        _
    $region6: #{mini_decoder_forward.1} parent=1 // loop_footer
      %s30 = sadd.s32 1, %s26
    $region7: #{mini_decoder_forward.1} parent=1 // loop_footer_branch
      %25 = sbr.rel target = $region3
    $region8: #{mini_decoder_forward.1} parent=1 // loop_exit
      _
    %6177 = vsyncpa [#allocation3], 1
    %s6178 = scalar_lea.sflag [#allocation3], 1
    %6179 = vsyncpa %s6178, 1

</llo_original>
